<compile_context>
chip_gen: v5e
topology: v5e:2x2
jax: 0.10.0
libtpu: 0.0.40
codegen_flags: <defaults>
</compile_context>

<pallas_src>
import jax
import jax.numpy as jnp
from jax.experimental import pallas as pl
from jax.experimental.pallas import tpu as pltpu

GN_EPS = 1e-5  # PyTorch GroupNorm default


def _im2col_3x3(xp, H, W, c, dtype):
    """xp: (H+2, W+2, >=c) padded slab -> (H*W, 9*c) patches, (ky,kx,c) order."""
    cols = []
    for ky in range(3):
        for kx in range(3):
            cols.append(xp[ky:ky + H, kx:kx + W, :c])
    return jnp.concatenate(cols, axis=-1).reshape(H * W, 9 * c).astype(dtype)


def _silu(y, fast):
    denom = 1.0 + jnp.exp(-y)                          # exp -> EUP
    if fast:
        return y * pl.reciprocal(denom, approx=True)   # recip -> EUP too
    return y / denom


def _make_resblock_kernel(depth, has_res_conv, H, W, f0, filters, mxu_dtype,
                          fast_silu):
    def kernel(*refs):
        i = 0
        x_ref = refs[i]; i += 1
        if has_res_conv:
            wr_ref, br_ref = refs[i], refs[i + 1]; i += 2
        stage_refs = []
        for _ in range(depth):
            stage_refs.append(refs[i:i + 6]); i += 6
        o_ref = refs[i]
        pad_ref = refs[i + 1]

        x = x_ref[0].astype(jnp.float32)               # (H, W, f0)

        # ---- residual path (1x1 conv fused in; else identity) ----
        if has_res_conv:
            res = jnp.dot(x.reshape(H * W, f0).astype(mxu_dtype), wr_ref[...],
                          preferred_element_type=jnp.float32) + br_ref[...]
        else:
            res = x.reshape(H * W, filters)

        # ---- zero only the 1-wide borders of the shared padded scratch ----
        # (interior is fully overwritten before each read; border zeros are
        #  never clobbered afterwards)
        Cmax = pad_ref.shape[-1]
        pad_ref[0:1, :, :] = jnp.zeros((1, W + 2, Cmax), pad_ref.dtype)
        pad_ref[H + 1:H + 2, :, :] = jnp.zeros((1, W + 2, Cmax), pad_ref.dtype)
        pad_ref[:, 0:1, :] = jnp.zeros((H + 2, 1, Cmax), pad_ref.dtype)
        pad_ref[:, W + 1:W + 2, :] = jnp.zeros((H + 2, 1, Cmax), pad_ref.dtype)

        cur = x
        for s in range(depth):
            g_ref, b_ref, w1_ref, b1_ref, w2_ref, b2_ref = stage_refs[s]
            cin = f0 if s == 0 else filters

            # ---- GroupNorm(num_groups=1): single-pass sum / sum-of-squares ----
            n = float(H * W * cin)
            s1 = jnp.sum(cur)
            s2 = jnp.sum(cur * cur)
            mean = s1 / n
            var = jnp.maximum(s2 / n - mean * mean, 0.0)
            xn = (cur - mean) * jax.lax.rsqrt(var + GN_EPS)
            xn = xn * g_ref[...].reshape(1, 1, cin) + b_ref[...].reshape(1, 1, cin)

            # ---- Conv2d 3x3 #1 (im2col -> single MXU matmul) ----
            pad_ref[1:H + 1, 1:W + 1, :cin] = xn.astype(pad_ref.dtype)
            patches = _im2col_3x3(pad_ref[...], H, W, cin, mxu_dtype)
            y = jnp.dot(patches, w1_ref[...],
                        preferred_element_type=jnp.float32) + b1_ref[...]

            # ---- SiLU ----
            y = _silu(y, fast_silu)

            # ---- Conv2d 3x3 #2 ----
            pad_ref[1:H + 1, 1:W + 1, :filters] = (
                y.reshape(H, W, filters).astype(pad_ref.dtype))
            patches = _im2col_3x3(pad_ref[...], H, W, filters, mxu_dtype)
            z = jnp.dot(patches, w2_ref[...],
                        preferred_element_type=jnp.float32) + b2_ref[...]

            # ---- residual add; running residual stays on-chip in f32 ----
            cur_flat = z + res
            res = cur_flat
            cur = cur_flat.reshape(H, W, filters)

        o_ref[0] = cur.astype(o_ref.dtype)

    return kernel


def residual_block_forward(x_nchw, params, *, mxu_dtype=jnp.float32):
    """Exact forward semantics of the PyTorch ResidualBlock (NCHW in / out)."""
    x = jnp.transpose(x_nchw, (0, 2, 3, 1))            # NCHW -> NHWC
    N, H, W, f0 = x.shape
    filters = params["stages"][0]["w1"].shape[-1]
    depth = len(params["stages"])
    has_res_conv = params["res_conv"] is not None
    fast_silu = (mxu_dtype != jnp.float32)

    def full_spec(a):
        nd = a.ndim
        return pl.BlockSpec(a.shape, lambda n, _nd=nd: (0,) * _nd)

    inputs = [x]
    in_specs = [pl.BlockSpec((1, H, W, f0), lambda n: (n, 0, 0, 0))]

    if has_res_conv:
        wr = params["res_conv"]["w"].astype(mxu_dtype)
        br = params["res_conv"]["b"].astype(jnp.float32)
        inputs += [wr, br]
        in_specs += [full_spec(wr), full_spec(br)]

    for i, st in enumerate(params["stages"]):
        cin = f0 if i == 0 else filters
        # Pre-reshape conv weights to im2col layout (9*Cin, F) and pre-cast.
        w1 = st["w1"].reshape(9 * cin, filters).astype(mxu_dtype)
        w2 = st["w2"].reshape(9 * filters, filters).astype(mxu_dtype)
        for a in (st["gamma"].astype(jnp.float32),
                  st["beta"].astype(jnp.float32),
                  w1, st["b1"].astype(jnp.float32),
                  w2, st["b2"].astype(jnp.float32)):
            inputs.append(a)
            in_specs.append(full_spec(a))

    Cmax = max(f0, filters)
    kernel = _make_resblock_kernel(depth, has_res_conv, H, W, f0, filters,
                                   mxu_dtype, fast_silu)

    out = pl.pallas_call(
        kernel,
        out_shape=jax.ShapeDtypeStruct((N, H, W, filters), x.dtype),
        grid=(N,),
        in_specs=in_specs,
        out_specs=pl.BlockSpec((1, H, W, filters), lambda n: (n, 0, 0, 0)),
        scratch_shapes=[pltpu.VMEM((H + 2, W + 2, Cmax), mxu_dtype)],
        compiler_params=pltpu.CompilerParams(
            dimension_semantics=("parallel",),
            vmem_limit_bytes=48 * 1024 * 1024),
    )(*inputs)
    return jnp.transpose(out, (0, 3, 1, 2))            # NHWC -> NCHW


# ---------------------------- pure-JAX reference ----------------------------
def _ref_gn1(x, g, b):
    mean = jnp.mean(x, axis=(1, 2, 3), keepdims=True)
    var = jnp.mean((x - mean) ** 2, axis=(1, 2, 3), keepdims=True)
    return (x - mean) / jnp.sqrt(var + GN_EPS) * g.reshape(1, 1, 1, -1) \
        + b.reshape(1, 1, 1, -1)


def _ref_conv3x3(x, w, b):
    y = jax.lax.conv_general_dilated(
        x, w, window_strides=(1, 1), padding="SAME",
        dimension_numbers=("NHWC", "HWIO", "NHWC"))
    return y + b.reshape(1, 1, 1, -1)


def reference_forward(x_nchw, params):
    x = jnp.transpose(x_nchw, (0, 2, 3, 1))
    if params["res_conv"] is not None:
        res = jnp.einsum("nhwc,cf->nhwf", x, params["res_conv"]["w"]) \
            + params["res_conv"]["b"].reshape(1, 1, 1, -1)
    else:
        res = x
    cur = x
    for st in params["stages"]:
        h = _ref_gn1(cur, st["gamma"], st["beta"])
        h = _ref_conv3x3(h, st["w1"], st["b1"])
        h = h * jax.nn.sigmoid(h)
        h = _ref_conv3x3(h, st["w2"], st["b2"])
        cur = h + res
        res = cur
    return jnp.transpose(cur, (0, 3, 1, 2))


# ------------------------------- param init ---------------------------------
def init_params(key, f0, filters, depth):
    ks = iter(jax.random.split(key, 2 + 6 * depth))
    params = {}
    if f0 != filters:
        params["res_conv"] = {
            "w": 0.1 * jax.random.normal(next(ks), (f0, filters), jnp.float32),
            "b": 0.1 * jax.random.normal(next(ks), (1, filters), jnp.float32),
        }
    else:
        params["res_conv"] = None
        next(ks); next(ks)
    stages = []
    for i in range(depth):
        cin = f0 if i == 0 else filters
        stages.append({
            "gamma": 1.0 + 0.1 * jax.random.normal(next(ks), (1, cin), jnp.float32),
            "beta": 0.1 * jax.random.normal(next(ks), (1, cin), jnp.float32),
            "w1": 0.1 * jax.random.normal(next(ks), (3, 3, cin, filters), jnp.float32),
            "b1": 0.1 * jax.random.normal(next(ks), (1, filters), jnp.float32),
            "w2": 0.1 * jax.random.normal(next(ks), (3, 3, filters, filters), jnp.float32),
            "b2": 0.1 * jax.random.normal(next(ks), (1, filters), jnp.float32),
        })
    params["stages"] = stages
    return params


if __name__ == "__main__":
    N, f0, filters, depth = 2, 4, 8, 2
    H = W = 16

    root = jax.random.PRNGKey(0)
    k_params, k_x, k_p2, k_x2 = jax.random.split(root, 4)
    params = init_params(k_params, f0, filters, depth)
    x = jax.random.normal(k_x, (N, f0, H, W), jnp.float32)   # NCHW like PyTorch

    # f32 MXU path (faithful to the module semantics).
    out = jax.block_until_ready(residual_block_forward(x, params))
    assert out.shape == (N, filters, H, W), out.shape
    ref = reference_forward(x, params)
    err = float(jnp.max(jnp.abs(out - ref)))
    assert err < 1e-3, f"f32 path max abs error {err}"

    # bf16-MXU-operand / f32-accumulate path (perf mode) — looser tolerance.
    out_bf16 = jax.block_until_ready(
        residual_block_forward(x, params, mxu_dtype=jnp.bfloat16))
    err_bf16 = float(jnp.max(jnp.abs(out_bf16 - ref)))
    assert err_bf16 < 2.5e-1, f"bf16 path max abs error {err_bf16}"

    # Identity-residual config (f0 == filters -> no 1x1 conv).
    params2 = init_params(k_p2, filters, filters, 1)
    x2 = jax.random.normal(k_x2, (N, filters, H, W), jnp.float32)
    out2 = jax.block_until_ready(residual_block_forward(x2, params2))
    err2 = float(jnp.max(jnp.abs(out2 - reference_forward(x2, params2))))
    assert err2 < 1e-3, f"identity-res path max abs error {err2}"

    print("KERNEL_OK")
</pallas_src>

<mosaic_0001>
module attributes {stable_mosaic.version = 11 : i64} {
  func.func @kernel(%arg0: i32, %arg1: memref<1x16x16x4xf32, #tpu.memory_space<vmem>>, %arg2: memref<4x8xf32, #tpu.memory_space<vmem>>, %arg3: memref<1x8xf32, #tpu.memory_space<vmem>>, %arg4: memref<1x4xf32, #tpu.memory_space<vmem>>, %arg5: memref<1x4xf32, #tpu.memory_space<vmem>>, %arg6: memref<36x8xf32, #tpu.memory_space<vmem>>, %arg7: memref<1x8xf32, #tpu.memory_space<vmem>>, %arg8: memref<72x8xf32, #tpu.memory_space<vmem>>, %arg9: memref<1x8xf32, #tpu.memory_space<vmem>>, %arg10: memref<1x8xf32, #tpu.memory_space<vmem>>, %arg11: memref<1x8xf32, #tpu.memory_space<vmem>>, %arg12: memref<72x8xf32, #tpu.memory_space<vmem>>, %arg13: memref<1x8xf32, #tpu.memory_space<vmem>>, %arg14: memref<72x8xf32, #tpu.memory_space<vmem>>, %arg15: memref<1x8xf32, #tpu.memory_space<vmem>>, %arg16: memref<1x16x16x8xf32, #tpu.memory_space<vmem>>, %arg17: memref<18x18x8xf32, #tpu.memory_space<vmem>>) attributes {dimension_semantics = [#tpu.dimension_semantics<parallel>], iteration_bounds = array<i64: 2>, scalar_prefetch = 0 : i64, scratch_operands = 1 : i64, tpu.core_type = #tpu.core_type<tc>, window_params = [{transform_indices = @transform_0, window_bounds = array<i64: 1, 16, 16, 4>}, {pipeline_mode = #tpu.pipeline_mode<synchronous>, transform_indices = @transform_1, window_bounds = array<i64: 4, 8>}, {pipeline_mode = #tpu.pipeline_mode<synchronous>, transform_indices = @transform_2, window_bounds = array<i64: 1, 8>}, {pipeline_mode = #tpu.pipeline_mode<synchronous>, transform_indices = @transform_3, window_bounds = array<i64: 1, 4>}, {pipeline_mode = #tpu.pipeline_mode<synchronous>, transform_indices = @transform_4, window_bounds = array<i64: 1, 4>}, {pipeline_mode = #tpu.pipeline_mode<synchronous>, transform_indices = @transform_5, window_bounds = array<i64: 36, 8>}, {pipeline_mode = #tpu.pipeline_mode<synchronous>, transform_indices = @transform_6, window_bounds = array<i64: 1, 8>}, {pipeline_mode = #tpu.pipeline_mode<synchronous>, transform_indices = @transform_7, window_bounds = array<i64: 72, 8>}, {pipeline_mode = #tpu.pipeline_mode<synchronous>, transform_indices = @transform_8, window_bounds = array<i64: 1, 8>}, {pipeline_mode = #tpu.pipeline_mode<synchronous>, transform_indices = @transform_9, window_bounds = array<i64: 1, 8>}, {pipeline_mode = #tpu.pipeline_mode<synchronous>, transform_indices = @transform_10, window_bounds = array<i64: 1, 8>}, {pipeline_mode = #tpu.pipeline_mode<synchronous>, transform_indices = @transform_11, window_bounds = array<i64: 72, 8>}, {pipeline_mode = #tpu.pipeline_mode<synchronous>, transform_indices = @transform_12, window_bounds = array<i64: 1, 8>}, {pipeline_mode = #tpu.pipeline_mode<synchronous>, transform_indices = @transform_13, window_bounds = array<i64: 72, 8>}, {pipeline_mode = #tpu.pipeline_mode<synchronous>, transform_indices = @transform_14, window_bounds = array<i64: 1, 8>}, {transform_indices = @transform_15, window_bounds = array<i64: 1, 16, 16, 8>}]} {
    %c0 = arith.constant 0 : index
    %c0_0 = arith.constant 0 : index
    %c0_1 = arith.constant 0 : index
    %c0_2 = arith.constant 0 : index
    %0 = vector.load %arg1[%c0, %c0_0, %c0_1, %c0_2] : memref<1x16x16x4xf32, #tpu.memory_space<vmem>>, vector<1x16x16x4xf32>
    %1 = vector.shape_cast %0 : vector<1x16x16x4xf32> to vector<16x16x4xf32>
    %2 = vector.shape_cast %1 : vector<16x16x4xf32> to vector<256x4xf32>
    %c0_3 = arith.constant 0 : index
    %c0_4 = arith.constant 0 : index
    %3 = vector.load %arg2[%c0_3, %c0_4] : memref<4x8xf32, #tpu.memory_space<vmem>>, vector<4x8xf32>
    %cst = arith.constant dense<0.000000e+00> : vector<256x8xf32>
    %4 = tpu.matmul %2, %3, %cst {dimension_numbers = #tpu.dot_dimension_numbers<[1], [0], [0], [1], [0, 0, 1, 1], [], []>} : vector<256x4xf32>, vector<4x8xf32>, vector<256x8xf32> -> vector<256x8xf32>
    %c0_5 = arith.constant 0 : index
    %c0_6 = arith.constant 0 : index
    %5 = vector.load %arg3[%c0_5, %c0_6] : memref<1x8xf32, #tpu.memory_space<vmem>>, vector<1x8xf32>
    %6 = vector.broadcast %5 : vector<1x8xf32> to vector<256x8xf32>
    %7 = arith.addf %4, %6 : vector<256x8xf32>
    %cst_7 = arith.constant 0.000000e+00 : f32
    %8 = vector.broadcast %cst_7 : f32 to vector<1x18x8xf32>
    %c0_8 = arith.constant 0 : index
    %c0_9 = arith.constant 0 : index
    %c0_10 = arith.constant 0 : index
    %9 = vector.load %arg17[%c0_8, %c0_9, %c0_10] : memref<18x18x8xf32, #tpu.memory_space<vmem>>, vector<1x18x8xf32>
    tpu.vector_store %arg17[%c0_8, %c0_9, %c0_10], %8 {strides = array<i32>} : memref<18x18x8xf32, #tpu.memory_space<vmem>>, vector<1x18x8xf32>,
    %cst_11 = arith.constant 0.000000e+00 : f32
    %10 = vector.broadcast %cst_11 : f32 to vector<1x18x8xf32>
    %c17 = arith.constant 17 : index
    %c0_12 = arith.constant 0 : index
    %c0_13 = arith.constant 0 : index
    %11 = vector.load %arg17[%c17, %c0_12, %c0_13] : memref<18x18x8xf32, #tpu.memory_space<vmem>>, vector<1x18x8xf32>
    tpu.vector_store %arg17[%c17, %c0_12, %c0_13], %10 {strides = array<i32>} : memref<18x18x8xf32, #tpu.memory_space<vmem>>, vector<1x18x8xf32>,
    %cst_14 = arith.constant 0.000000e+00 : f32
    %12 = vector.broadcast %cst_14 : f32 to vector<18x1x8xf32>
    %c0_15 = arith.constant 0 : index
    %c0_16 = arith.constant 0 : index
    %c0_17 = arith.constant 0 : index
    %13 = vector.load %arg17[%c0_15, %c0_16, %c0_17] : memref<18x18x8xf32, #tpu.memory_space<vmem>>, vector<18x1x8xf32>
    tpu.vector_store %arg17[%c0_15, %c0_16, %c0_17], %12 {strides = array<i32>} : memref<18x18x8xf32, #tpu.memory_space<vmem>>, vector<18x1x8xf32>,
    %cst_18 = arith.constant 0.000000e+00 : f32
    %14 = vector.broadcast %cst_18 : f32 to vector<18x1x8xf32>
    %c0_19 = arith.constant 0 : index
    %c17_20 = arith.constant 17 : index
    %c0_21 = arith.constant 0 : index
    %15 = vector.load %arg17[%c0_19, %c17_20, %c0_21] : memref<18x18x8xf32, #tpu.memory_space<vmem>>, vector<18x1x8xf32>
    tpu.vector_store %arg17[%c0_19, %c17_20, %c0_21], %14 {strides = array<i32>} : memref<18x18x8xf32, #tpu.memory_space<vmem>>, vector<18x1x8xf32>,
    %16 = vector.shape_cast %1 : vector<16x16x4xf32> to vector<1x16x16x4xf32>
    %cst_22 = arith.constant dense<0.000000e+00> : vector<1xf32>
    %17 = vector.multi_reduction <add>, %16, %cst_22 [1, 2, 3] : vector<1x16x16x4xf32> to vector<1xf32>
    %18 = vector.shape_cast %17 : vector<1xf32> to vector<1x1x1x1xf32>
    %19 = vector.extract %18[0, 0, 0, 0] : f32 from vector<1x1x1x1xf32>
    %20 = arith.mulf %1, %1 : vector<16x16x4xf32>
    %21 = vector.shape_cast %20 : vector<16x16x4xf32> to vector<1x16x16x4xf32>
    %cst_23 = arith.constant dense<0.000000e+00> : vector<1xf32>
    %22 = vector.multi_reduction <add>, %21, %cst_23 [1, 2, 3] : vector<1x16x16x4xf32> to vector<1xf32>
    %23 = vector.shape_cast %22 : vector<1xf32> to vector<1x1x1x1xf32>
    %24 = vector.extract %23[0, 0, 0, 0] : f32 from vector<1x1x1x1xf32>
    %cst_24 = arith.constant 1.024000e+03 : f32
    %25 = arith.divf %19, %cst_24 : f32
    %cst_25 = arith.constant 1.024000e+03 : f32
    %26 = arith.divf %24, %cst_25 : f32
    %27 = arith.mulf %25, %25 : f32
    %28 = arith.subf %26, %27 : f32
    %cst_26 = arith.constant 0.000000e+00 : f32
    %29 = arith.maximumf %28, %cst_26 : f32
    %30 = vector.broadcast %25 : f32 to vector<16x16x4xf32>
    %31 = arith.subf %1, %30 : vector<16x16x4xf32>
    %cst_27 = arith.constant 9.99999974E-6 : f32
    %32 = arith.addf %29, %cst_27 : f32
    %33 = math.rsqrt %32 : f32
    %34 = vector.broadcast %33 : f32 to vector<16x16x4xf32>
    %35 = arith.mulf %31, %34 : vector<16x16x4xf32>
    %c0_28 = arith.constant 0 : index
    %c0_29 = arith.constant 0 : index
    %36 = vector.load %arg4[%c0_28, %c0_29] : memref<1x4xf32, #tpu.memory_space<vmem>>, vector<1x4xf32>
    %37 = vector.shape_cast %36 : vector<1x4xf32> to vector<1x1x4xf32>
    %38 = vector.broadcast %37 : vector<1x1x4xf32> to vector<16x16x4xf32>
    %39 = arith.mulf %35, %38 : vector<16x16x4xf32>
    %c0_30 = arith.constant 0 : index
    %c0_31 = arith.constant 0 : index
    %40 = vector.load %arg5[%c0_30, %c0_31] : memref<1x4xf32, #tpu.memory_space<vmem>>, vector<1x4xf32>
    %41 = vector.shape_cast %40 : vector<1x4xf32> to vector<1x1x4xf32>
    %42 = vector.broadcast %41 : vector<1x1x4xf32> to vector<16x16x4xf32>
    %43 = arith.addf %39, %42 : vector<16x16x4xf32>
    %c1 = arith.constant 1 : index
    %c1_32 = arith.constant 1 : index
    %c0_33 = arith.constant 0 : index
    %44 = vector.load %arg17[%c1, %c1_32, %c0_33] : memref<18x18x8xf32, #tpu.memory_space<vmem>>, vector<16x16x4xf32>
    tpu.vector_store %arg17[%c1, %c1_32, %c0_33], %43 {strides = array<i32>} : memref<18x18x8xf32, #tpu.memory_space<vmem>>, vector<16x16x4xf32>,
    %c0_34 = arith.constant 0 : index
    %c0_35 = arith.constant 0 : index
    %c0_36 = arith.constant 0 : index
    %45 = vector.load %arg17[%c0_34, %c0_35, %c0_36] : memref<18x18x8xf32, #tpu.memory_space<vmem>>, vector<18x18x8xf32>
    %46 = vector.extract_strided_slice %45 {offsets = [0, 0, 0], sizes = [16, 16, 4], strides = [1, 1, 1]} : vector<18x18x8xf32> to vector<16x16x4xf32>
    %47 = vector.extract_strided_slice %45 {offsets = [0, 1, 0], sizes = [16, 16, 4], strides = [1, 1, 1]} : vector<18x18x8xf32> to vector<16x16x4xf32>
    %48 = vector.extract_strided_slice %45 {offsets = [0, 2, 0], sizes = [16, 16, 4], strides = [1, 1, 1]} : vector<18x18x8xf32> to vector<16x16x4xf32>
    %49 = vector.extract_strided_slice %45 {offsets = [1, 0, 0], sizes = [16, 16, 4], strides = [1, 1, 1]} : vector<18x18x8xf32> to vector<16x16x4xf32>
    %50 = vector.extract_strided_slice %45 {offsets = [1, 1, 0], sizes = [16, 16, 4], strides = [1, 1, 1]} : vector<18x18x8xf32> to vector<16x16x4xf32>
    %51 = vector.extract_strided_slice %45 {offsets = [1, 2, 0], sizes = [16, 16, 4], strides = [1, 1, 1]} : vector<18x18x8xf32> to vector<16x16x4xf32>
    %52 = vector.extract_strided_slice %45 {offsets = [2, 0, 0], sizes = [16, 16, 4], strides = [1, 1, 1]} : vector<18x18x8xf32> to vector<16x16x4xf32>
    %53 = vector.extract_strided_slice %45 {offsets = [2, 1, 0], sizes = [16, 16, 4], strides = [1, 1, 1]} : vector<18x18x8xf32> to vector<16x16x4xf32>
    %54 = vector.extract_strided_slice %45 {offsets = [2, 2, 0], sizes = [16, 16, 4], strides = [1, 1, 1]} : vector<18x18x8xf32> to vector<16x16x4xf32>
    %55 = tpu.concatenate %46, %47, %48, %49, %50, %51, %52, %53, %54 in 2 : vector<16x16x4xf32>, vector<16x16x4xf32>, vector<16x16x4xf32>, vector<16x16x4xf32>, vector<16x16x4xf32>, vector<16x16x4xf32>, vector<16x16x4xf32>, vector<16x16x4xf32>, vector<16x16x4xf32> -> vector<16x16x36xf32>
    %56 = vector.shape_cast %55 : vector<16x16x36xf32> to vector<256x36xf32>
    %c0_37 = arith.constant 0 : index
    %c0_38 = arith.constant 0 : index
    %57 = vector.load %arg6[%c0_37, %c0_38] : memref<36x8xf32, #tpu.memory_space<vmem>>, vector<36x8xf32>
    %cst_39 = arith.constant dense<0.000000e+00> : vector<256x8xf32>
    %58 = tpu.matmul %56, %57, %cst_39 {dimension_numbers = #tpu.dot_dimension_numbers<[1], [0], [0], [1], [0, 0, 1, 1], [], []>} : vector<256x36xf32>, vector<36x8xf32>, vector<256x8xf32> -> vector<256x8xf32>
    %c0_40 = arith.constant 0 : index
    %c0_41 = arith.constant 0 : index
    %59 = vector.load %arg7[%c0_40, %c0_41] : memref<1x8xf32, #tpu.memory_space<vmem>>, vector<1x8xf32>
    %60 = vector.broadcast %59 : vector<1x8xf32> to vector<256x8xf32>
    %61 = arith.addf %58, %60 : vector<256x8xf32>
    %cst_42 = arith.constant 0.000000e+00 : f32
    %62 = vector.broadcast %cst_42 : f32 to vector<256x8xf32>
    %63 = arith.subf %62, %61 : vector<256x8xf32>
    %64 = math.exp %63 : vector<256x8xf32>
    %cst_43 = arith.constant 1.000000e+00 : f32
    %65 = vector.broadcast %cst_43 : f32 to vector<256x8xf32>
    %66 = arith.addf %65, %64 : vector<256x8xf32>
    %67 = arith.divf %61, %66 : vector<256x8xf32>
    %68 = vector.shape_cast %67 : vector<256x8xf32> to vector<16x16x8xf32>
    %c1_44 = arith.constant 1 : index
    %c1_45 = arith.constant 1 : index
    %c0_46 = arith.constant 0 : index
    %69 = vector.load %arg17[%c1_44, %c1_45, %c0_46] : memref<18x18x8xf32, #tpu.memory_space<vmem>>, vector<16x16x8xf32>
    tpu.vector_store %arg17[%c1_44, %c1_45, %c0_46], %68 {strides = array<i32>} : memref<18x18x8xf32, #tpu.memory_space<vmem>>, vector<16x16x8xf32>,
    %c0_47 = arith.constant 0 : index
    %c0_48 = arith.constant 0 : index
    %c0_49 = arith.constant 0 : index
    %70 = vector.load %arg17[%c0_47, %c0_48, %c0_49] : memref<18x18x8xf32, #tpu.memory_space<vmem>>, vector<18x18x8xf32>
    %71 = vector.extract_strided_slice %70 {offsets = [0, 0, 0], sizes = [16, 16, 8], strides = [1, 1, 1]} : vector<18x18x8xf32> to vector<16x16x8xf32>
    %72 = vector.extract_strided_slice %70 {offsets = [0, 1, 0], sizes = [16, 16, 8], strides = [1, 1, 1]} : vector<18x18x8xf32> to vector<16x16x8xf32>
    %73 = vector.extract_strided_slice %70 {offsets = [0, 2, 0], sizes = [16, 16, 8], strides = [1, 1, 1]} : vector<18x18x8xf32> to vector<16x16x8xf32>
    %74 = vector.extract_strided_slice %70 {offsets = [1, 0, 0], sizes = [16, 16, 8], strides = [1, 1, 1]} : vector<18x18x8xf32> to vector<16x16x8xf32>
    %75 = vector.extract_strided_slice %70 {offsets = [1, 1, 0], sizes = [16, 16, 8], strides = [1, 1, 1]} : vector<18x18x8xf32> to vector<16x16x8xf32>
    %76 = vector.extract_strided_slice %70 {offsets = [1, 2, 0], sizes = [16, 16, 8], strides = [1, 1, 1]} : vector<18x18x8xf32> to vector<16x16x8xf32>
    %77 = vector.extract_strided_slice %70 {offsets = [2, 0, 0], sizes = [16, 16, 8], strides = [1, 1, 1]} : vector<18x18x8xf32> to vector<16x16x8xf32>
    %78 = vector.extract_strided_slice %70 {offsets = [2, 1, 0], sizes = [16, 16, 8], strides = [1, 1, 1]} : vector<18x18x8xf32> to vector<16x16x8xf32>
    %79 = vector.extract_strided_slice %70 {offsets = [2, 2, 0], sizes = [16, 16, 8], strides = [1, 1, 1]} : vector<18x18x8xf32> to vector<16x16x8xf32>
    %80 = tpu.concatenate %71, %72, %73, %74, %75, %76, %77, %78, %79 in 2 : vector<16x16x8xf32>, vector<16x16x8xf32>, vector<16x16x8xf32>, vector<16x16x8xf32>, vector<16x16x8xf32>, vector<16x16x8xf32>, vector<16x16x8xf32>, vector<16x16x8xf32>, vector<16x16x8xf32> -> vector<16x16x72xf32>
    %81 = vector.shape_cast %80 : vector<16x16x72xf32> to vector<256x72xf32>
    %c0_50 = arith.constant 0 : index
    %c0_51 = arith.constant 0 : index
    %82 = vector.load %arg8[%c0_50, %c0_51] : memref<72x8xf32, #tpu.memory_space<vmem>>, vector<72x8xf32>
    %cst_52 = arith.constant dense<0.000000e+00> : vector<256x8xf32>
    %83 = tpu.matmul %81, %82, %cst_52 {dimension_numbers = #tpu.dot_dimension_numbers<[1], [0], [0], [1], [0, 0, 1, 1], [], []>} : vector<256x72xf32>, vector<72x8xf32>, vector<256x8xf32> -> vector<256x8xf32>
    %c0_53 = arith.constant 0 : index
    %c0_54 = arith.constant 0 : index
    %84 = vector.load %arg9[%c0_53, %c0_54] : memref<1x8xf32, #tpu.memory_space<vmem>>, vector<1x8xf32>
    %85 = vector.broadcast %84 : vector<1x8xf32> to vector<256x8xf32>
    %86 = arith.addf %83, %85 : vector<256x8xf32>
    %87 = arith.addf %86, %7 : vector<256x8xf32>
    %88 = vector.shape_cast %87 : vector<256x8xf32> to vector<16x16x8xf32>
    %89 = vector.shape_cast %88 : vector<16x16x8xf32> to vector<1x16x16x8xf32>
    %cst_55 = arith.constant dense<0.000000e+00> : vector<1xf32>
    %90 = vector.multi_reduction <add>, %89, %cst_55 [1, 2, 3] : vector<1x16x16x8xf32> to vector<1xf32>
    %91 = vector.shape_cast %90 : vector<1xf32> to vector<1x1x1x1xf32>
    %92 = vector.extract %91[0, 0, 0, 0] : f32 from vector<1x1x1x1xf32>
    %93 = arith.mulf %88, %88 : vector<16x16x8xf32>
    %94 = vector.shape_cast %93 : vector<16x16x8xf32> to vector<1x16x16x8xf32>
    %cst_56 = arith.constant dense<0.000000e+00> : vector<1xf32>
    %95 = vector.multi_reduction <add>, %94, %cst_56 [1, 2, 3] : vector<1x16x16x8xf32> to vector<1xf32>
    %96 = vector.shape_cast %95 : vector<1xf32> to vector<1x1x1x1xf32>
    %97 = vector.extract %96[0, 0, 0, 0] : f32 from vector<1x1x1x1xf32>
    %cst_57 = arith.constant 2.048000e+03 : f32
    %98 = arith.divf %92, %cst_57 : f32
    %cst_58 = arith.constant 2.048000e+03 : f32
    %99 = arith.divf %97, %cst_58 : f32
    %100 = arith.mulf %98, %98 : f32
    %101 = arith.subf %99, %100 : f32
    %cst_59 = arith.constant 0.000000e+00 : f32
    %102 = arith.maximumf %101, %cst_59 : f32
    %103 = vector.broadcast %98 : f32 to vector<16x16x8xf32>
    %104 = arith.subf %88, %103 : vector<16x16x8xf32>
    %cst_60 = arith.constant 9.99999974E-6 : f32
    %105 = arith.addf %102, %cst_60 : f32
    %106 = math.rsqrt %105 : f32
    %107 = vector.broadcast %106 : f32 to vector<16x16x8xf32>
    %108 = arith.mulf %104, %107 : vector<16x16x8xf32>
    %c0_61 = arith.constant 0 : index
    %c0_62 = arith.constant 0 : index
    %109 = vector.load %arg10[%c0_61, %c0_62] : memref<1x8xf32, #tpu.memory_space<vmem>>, vector<1x8xf32>
    %110 = vector.shape_cast %109 : vector<1x8xf32> to vector<1x1x8xf32>
    %111 = vector.broadcast %110 : vector<1x1x8xf32> to vector<16x16x8xf32>
    %112 = arith.mulf %108, %111 : vector<16x16x8xf32>
    %c0_63 = arith.constant 0 : index
    %c0_64 = arith.constant 0 : index
    %113 = vector.load %arg11[%c0_63, %c0_64] : memref<1x8xf32, #tpu.memory_space<vmem>>, vector<1x8xf32>
    %114 = vector.shape_cast %113 : vector<1x8xf32> to vector<1x1x8xf32>
    %115 = vector.broadcast %114 : vector<1x1x8xf32> to vector<16x16x8xf32>
    %116 = arith.addf %112, %115 : vector<16x16x8xf32>
    %c1_65 = arith.constant 1 : index
    %c1_66 = arith.constant 1 : index
    %c0_67 = arith.constant 0 : index
    %117 = vector.load %arg17[%c1_65, %c1_66, %c0_67] : memref<18x18x8xf32, #tpu.memory_space<vmem>>, vector<16x16x8xf32>
    tpu.vector_store %arg17[%c1_65, %c1_66, %c0_67], %116 {strides = array<i32>} : memref<18x18x8xf32, #tpu.memory_space<vmem>>, vector<16x16x8xf32>,
    %c0_68 = arith.constant 0 : index
    %c0_69 = arith.constant 0 : index
    %c0_70 = arith.constant 0 : index
    %118 = vector.load %arg17[%c0_68, %c0_69, %c0_70] : memref<18x18x8xf32, #tpu.memory_space<vmem>>, vector<18x18x8xf32>
    %119 = vector.extract_strided_slice %118 {offsets = [0, 0, 0], sizes = [16, 16, 8], strides = [1, 1, 1]} : vector<18x18x8xf32> to vector<16x16x8xf32>
    %120 = vector.extract_strided_slice %118 {offsets = [0, 1, 0], sizes = [16, 16, 8], strides = [1, 1, 1]} : vector<18x18x8xf32> to vector<16x16x8xf32>
    %121 = vector.extract_strided_slice %118 {offsets = [0, 2, 0], sizes = [16, 16, 8], strides = [1, 1, 1]} : vector<18x18x8xf32> to vector<16x16x8xf32>
    %122 = vector.extract_strided_slice %118 {offsets = [1, 0, 0], sizes = [16, 16, 8], strides = [1, 1, 1]} : vector<18x18x8xf32> to vector<16x16x8xf32>
    %123 = vector.extract_strided_slice %118 {offsets = [1, 1, 0], sizes = [16, 16, 8], strides = [1, 1, 1]} : vector<18x18x8xf32> to vector<16x16x8xf32>
    %124 = vector.extract_strided_slice %118 {offsets = [1, 2, 0], sizes = [16, 16, 8], strides = [1, 1, 1]} : vector<18x18x8xf32> to vector<16x16x8xf32>
    %125 = vector.extract_strided_slice %118 {offsets = [2, 0, 0], sizes = [16, 16, 8], strides = [1, 1, 1]} : vector<18x18x8xf32> to vector<16x16x8xf32>
    %126 = vector.extract_strided_slice %118 {offsets = [2, 1, 0], sizes = [16, 16, 8], strides = [1, 1, 1]} : vector<18x18x8xf32> to vector<16x16x8xf32>
    %127 = vector.extract_strided_slice %118 {offsets = [2, 2, 0], sizes = [16, 16, 8], strides = [1, 1, 1]} : vector<18x18x8xf32> to vector<16x16x8xf32>
    %128 = tpu.concatenate %119, %120, %121, %122, %123, %124, %125, %126, %127 in 2 : vector<16x16x8xf32>, vector<16x16x8xf32>, vector<16x16x8xf32>, vector<16x16x8xf32>, vector<16x16x8xf32>, vector<16x16x8xf32>, vector<16x16x8xf32>, vector<16x16x8xf32>, vector<16x16x8xf32> -> vector<16x16x72xf32>
    %129 = vector.shape_cast %128 : vector<16x16x72xf32> to vector<256x72xf32>
    %c0_71 = arith.constant 0 : index
    %c0_72 = arith.constant 0 : index
    %130 = vector.load %arg12[%c0_71, %c0_72] : memref<72x8xf32, #tpu.memory_space<vmem>>, vector<72x8xf32>
    %cst_73 = arith.constant dense<0.000000e+00> : vector<256x8xf32>
    %131 = tpu.matmul %129, %130, %cst_73 {dimension_numbers = #tpu.dot_dimension_numbers<[1], [0], [0], [1], [0, 0, 1, 1], [], []>} : vector<256x72xf32>, vector<72x8xf32>, vector<256x8xf32> -> vector<256x8xf32>
    %c0_74 = arith.constant 0 : index
    %c0_75 = arith.constant 0 : index
    %132 = vector.load %arg13[%c0_74, %c0_75] : memref<1x8xf32, #tpu.memory_space<vmem>>, vector<1x8xf32>
    %133 = vector.broadcast %132 : vector<1x8xf32> to vector<256x8xf32>
    %134 = arith.addf %131, %133 : vector<256x8xf32>
    %cst_76 = arith.constant 0.000000e+00 : f32
    %135 = vector.broadcast %cst_76 : f32 to vector<256x8xf32>
    %136 = arith.subf %135, %134 : vector<256x8xf32>
    %137 = math.exp %136 : vector<256x8xf32>
    %cst_77 = arith.constant 1.000000e+00 : f32
    %138 = vector.broadcast %cst_77 : f32 to vector<256x8xf32>
    %139 = arith.addf %138, %137 : vector<256x8xf32>
    %140 = arith.divf %134, %139 : vector<256x8xf32>
    %141 = vector.shape_cast %140 : vector<256x8xf32> to vector<16x16x8xf32>
    %c1_78 = arith.constant 1 : index
    %c1_79 = arith.constant 1 : index
    %c0_80 = arith.constant 0 : index
    %142 = vector.load %arg17[%c1_78, %c1_79, %c0_80] : memref<18x18x8xf32, #tpu.memory_space<vmem>>, vector<16x16x8xf32>
    tpu.vector_store %arg17[%c1_78, %c1_79, %c0_80], %141 {strides = array<i32>} : memref<18x18x8xf32, #tpu.memory_space<vmem>>, vector<16x16x8xf32>,
    %c0_81 = arith.constant 0 : index
    %c0_82 = arith.constant 0 : index
    %c0_83 = arith.constant 0 : index
    %143 = vector.load %arg17[%c0_81, %c0_82, %c0_83] : memref<18x18x8xf32, #tpu.memory_space<vmem>>, vector<18x18x8xf32>
    %144 = vector.extract_strided_slice %143 {offsets = [0, 0, 0], sizes = [16, 16, 8], strides = [1, 1, 1]} : vector<18x18x8xf32> to vector<16x16x8xf32>
    %145 = vector.extract_strided_slice %143 {offsets = [0, 1, 0], sizes = [16, 16, 8], strides = [1, 1, 1]} : vector<18x18x8xf32> to vector<16x16x8xf32>
    %146 = vector.extract_strided_slice %143 {offsets = [0, 2, 0], sizes = [16, 16, 8], strides = [1, 1, 1]} : vector<18x18x8xf32> to vector<16x16x8xf32>
    %147 = vector.extract_strided_slice %143 {offsets = [1, 0, 0], sizes = [16, 16, 8], strides = [1, 1, 1]} : vector<18x18x8xf32> to vector<16x16x8xf32>
    %148 = vector.extract_strided_slice %143 {offsets = [1, 1, 0], sizes = [16, 16, 8], strides = [1, 1, 1]} : vector<18x18x8xf32> to vector<16x16x8xf32>
    %149 = vector.extract_strided_slice %143 {offsets = [1, 2, 0], sizes = [16, 16, 8], strides = [1, 1, 1]} : vector<18x18x8xf32> to vector<16x16x8xf32>
    %150 = vector.extract_strided_slice %143 {offsets = [2, 0, 0], sizes = [16, 16, 8], strides = [1, 1, 1]} : vector<18x18x8xf32> to vector<16x16x8xf32>
    %151 = vector.extract_strided_slice %143 {offsets = [2, 1, 0], sizes = [16, 16, 8], strides = [1, 1, 1]} : vector<18x18x8xf32> to vector<16x16x8xf32>
    %152 = vector.extract_strided_slice %143 {offsets = [2, 2, 0], sizes = [16, 16, 8], strides = [1, 1, 1]} : vector<18x18x8xf32> to vector<16x16x8xf32>
    %153 = tpu.concatenate %144, %145, %146, %147, %148, %149, %150, %151, %152 in 2 : vector<16x16x8xf32>, vector<16x16x8xf32>, vector<16x16x8xf32>, vector<16x16x8xf32>, vector<16x16x8xf32>, vector<16x16x8xf32>, vector<16x16x8xf32>, vector<16x16x8xf32>, vector<16x16x8xf32> -> vector<16x16x72xf32>
    %154 = vector.shape_cast %153 : vector<16x16x72xf32> to vector<256x72xf32>
    %c0_84 = arith.constant 0 : index
    %c0_85 = arith.constant 0 : index
    %155 = vector.load %arg14[%c0_84, %c0_85] : memref<72x8xf32, #tpu.memory_space<vmem>>, vector<72x8xf32>
    %cst_86 = arith.constant dense<0.000000e+00> : vector<256x8xf32>
    %156 = tpu.matmul %154, %155, %cst_86 {dimension_numbers = #tpu.dot_dimension_numbers<[1], [0], [0], [1], [0, 0, 1, 1], [], []>} : vector<256x72xf32>, vector<72x8xf32>, vector<256x8xf32> -> vector<256x8xf32>
    %c0_87 = arith.constant 0 : index
    %c0_88 = arith.constant 0 : index
    %157 = vector.load %arg15[%c0_87, %c0_88] : memref<1x8xf32, #tpu.memory_space<vmem>>, vector<1x8xf32>
    %158 = vector.broadcast %157 : vector<1x8xf32> to vector<256x8xf32>
    %159 = arith.addf %156, %158 : vector<256x8xf32>
    %160 = arith.addf %159, %87 : vector<256x8xf32>
    %161 = vector.shape_cast %160 : vector<256x8xf32> to vector<16x16x8xf32>
    %c0_89 = arith.constant 0 : index
    %c0_90 = arith.constant 0 : index
    %c0_91 = arith.constant 0 : index
    %c0_92 = arith.constant 0 : index
    %162 = vector.load %arg16[%c0_89, %c0_90, %c0_91, %c0_92] : memref<1x16x16x8xf32, #tpu.memory_space<vmem>>, vector<1x16x16x8xf32>
    %163 = vector.shape_cast %162 : vector<1x16x16x8xf32> to vector<16x16x8xf32>
    %164 = vector.shape_cast %161 : vector<16x16x8xf32> to vector<1x16x16x8xf32>
    tpu.vector_store %arg16[%c0_89, %c0_90, %c0_91, %c0_92], %164 {strides = array<i32>} : memref<1x16x16x8xf32, #tpu.memory_space<vmem>>, vector<1x16x16x8xf32>,
    return
  }
  func.func @transform_0(%arg0: i32) -> (i32, i32, i32, i32) {
    %c0_i32 = arith.constant 0 : i32
    %c0_i32_0 = arith.constant 0 : i32
    %c0_i32_1 = arith.constant 0 : i32
    %c0_i32_2 = arith.constant 0 : i32
    return %arg0, %c0_i32, %c0_i32_0, %c0_i32_1 : i32, i32, i32, i32
  }
  func.func @transform_1(%arg0: i32) -> (i32, i32) {
    %c0_i32 = arith.constant 0 : i32
    %c0_i32_0 = arith.constant 0 : i32
    %c0_i32_1 = arith.constant 0 : i32
    return %c0_i32, %c0_i32_0 : i32, i32
  }
  func.func @transform_2(%arg0: i32) -> (i32, i32) {
    %c0_i32 = arith.constant 0 : i32
    %c0_i32_0 = arith.constant 0 : i32
    %c0_i32_1 = arith.constant 0 : i32
    return %c0_i32, %c0_i32_0 : i32, i32
  }
  func.func @transform_3(%arg0: i32) -> (i32, i32) {
    %c0_i32 = arith.constant 0 : i32
    %c0_i32_0 = arith.constant 0 : i32
    %c0_i32_1 = arith.constant 0 : i32
    return %c0_i32, %c0_i32_0 : i32, i32
  }
  func.func @transform_4(%arg0: i32) -> (i32, i32) {
    %c0_i32 = arith.constant 0 : i32
    %c0_i32_0 = arith.constant 0 : i32
    %c0_i32_1 = arith.constant 0 : i32
    return %c0_i32, %c0_i32_0 : i32, i32
  }
  func.func @transform_5(%arg0: i32) -> (i32, i32) {
    %c0_i32 = arith.constant 0 : i32
    %c0_i32_0 = arith.constant 0 : i32
    %c0_i32_1 = arith.constant 0 : i32
    return %c0_i32, %c0_i32_0 : i32, i32
  }
  func.func @transform_6(%arg0: i32) -> (i32, i32) {
    %c0_i32 = arith.constant 0 : i32
    %c0_i32_0 = arith.constant 0 : i32
    %c0_i32_1 = arith.constant 0 : i32
    return %c0_i32, %c0_i32_0 : i32, i32
  }
  func.func @transform_7(%arg0: i32) -> (i32, i32) {
    %c0_i32 = arith.constant 0 : i32
    %c0_i32_0 = arith.constant 0 : i32
    %c0_i32_1 = arith.constant 0 : i32
    return %c0_i32, %c0_i32_0 : i32, i32
  }
  func.func @transform_8(%arg0: i32) -> (i32, i32) {
    %c0_i32 = arith.constant 0 : i32
    %c0_i32_0 = arith.constant 0 : i32
    %c0_i32_1 = arith.constant 0 : i32
    return %c0_i32, %c0_i32_0 : i32, i32
  }
  func.func @transform_9(%arg0: i32) -> (i32, i32) {
    %c0_i32 = arith.constant 0 : i32
    %c0_i32_0 = arith.constant 0 : i32
    %c0_i32_1 = arith.constant 0 : i32
    return %c0_i32, %c0_i32_0 : i32, i32
  }
  func.func @transform_10(%arg0: i32) -> (i32, i32) {
    %c0_i32 = arith.constant 0 : i32
    %c0_i32_0 = arith.constant 0 : i32
    %c0_i32_1 = arith.constant 0 : i32
    return %c0_i32, %c0_i32_0 : i32, i32
  }
  func.func @transform_11(%arg0: i32) -> (i32, i32) {
    %c0_i32 = arith.constant 0 : i32
    %c0_i32_0 = arith.constant 0 : i32
    %c0_i32_1 = arith.constant 0 : i32
    return %c0_i32, %c0_i32_0 : i32, i32
  }
  func.func @transform_12(%arg0: i32) -> (i32, i32) {
    %c0_i32 = arith.constant 0 : i32
    %c0_i32_0 = arith.constant 0 : i32
    %c0_i32_1 = arith.constant 0 : i32
    return %c0_i32, %c0_i32_0 : i32, i32
  }
  func.func @transform_13(%arg0: i32) -> (i32, i32) {
    %c0_i32 = arith.constant 0 : i32
    %c0_i32_0 = arith.constant 0 : i32
    %c0_i32_1 = arith.constant 0 : i32
    return %c0_i32, %c0_i32_0 : i32, i32
  }
  func.func @transform_14(%arg0: i32) -> (i32, i32) {
    %c0_i32 = arith.constant 0 : i32
    %c0_i32_0 = arith.constant 0 : i32
    %c0_i32_1 = arith.constant 0 : i32
    return %c0_i32, %c0_i32_0 : i32, i32
  }
  func.func @transform_15(%arg0: i32) -> (i32, i32, i32, i32) {
    %c0_i32 = arith.constant 0 : i32
    %c0_i32_0 = arith.constant 0 : i32
    %c0_i32_1 = arith.constant 0 : i32
    %c0_i32_2 = arith.constant 0 : i32
    return %arg0, %c0_i32, %c0_i32_0, %c0_i32_1 : i32, i32, i32, i32
  }
}

</mosaic_0001>

<llo_original>
// kernel: tpu_custom_call.1
$region0: #{tpu_custom_call.1}
  #allocation0 [shape = 'u32[]', space=smem, size = 0x4, offset = 0x4, fixed_abs, tag = 'smem constant byte address 0x4 - core index']
  #allocation1 [shape = 'u32[72,128]{1,0:T(1,128)}', space=vmem, size = 0x9000, scoped, tag = 'internal scratch']
  #allocation2 [shape = 'f32[18,18,8]{2,1,0:T(8,128)}', space=vmem, size = 0x36000, scoped, tag = 'scratch operand']
  %s0 = inlined_call_operand.vmem [shape: f32[2,16,16,4], index: 0, kind: input, shape index: {}]
  %s1 = inlined_call_operand.vmem [shape: f32[4,8], index: 1, kind: input, shape index: {}]
  %s2 = inlined_call_operand.vmem [shape: f32[1,8], index: 2, kind: input, shape index: {}]
  %s3 = inlined_call_operand.vmem [shape: f32[1,4], index: 3, kind: input, shape index: {}]
  %s4 = inlined_call_operand.vmem [shape: f32[1,4], index: 4, kind: input, shape index: {}]
  %s5 = inlined_call_operand.vmem [shape: f32[36,8], index: 5, kind: input, shape index: {}]
  %s6 = inlined_call_operand.vmem [shape: f32[1,8], index: 6, kind: input, shape index: {}]
  %s7 = inlined_call_operand.vmem [shape: f32[72,8], index: 7, kind: input, shape index: {}]
  %s8 = inlined_call_operand.vmem [shape: f32[1,8], index: 8, kind: input, shape index: {}]
  %s9 = inlined_call_operand.vmem [shape: f32[1,8], index: 9, kind: input, shape index: {}]
  %s10 = inlined_call_operand.vmem [shape: f32[1,8], index: 10, kind: input, shape index: {}]
  %s11 = inlined_call_operand.vmem [shape: f32[72,8], index: 11, kind: input, shape index: {}]
  %s12 = inlined_call_operand.vmem [shape: f32[1,8], index: 12, kind: input, shape index: {}]
  %s13 = inlined_call_operand.vmem [shape: f32[72,8], index: 13, kind: input, shape index: {}]
  %s14 = inlined_call_operand.vmem [shape: f32[1,8], index: 14, kind: input, shape index: {}]
  %s15 = inlined_call_operand.vmem [shape: f32[2,16,16,8], index: 15, kind: output, shape index: {}]
  %s16 = sld [smem:[#allocation0]]
  $region93: #{tpu_custom_call.1} parent=0
    _
  %s18 = ssub.s32 1, %s16
  %s19 = scalar_select 0, %s18, %s16
  loop: start=0, step=1, limit=4
  $region2: #{tpu_custom_call.1} parent=0 // loop_pre_header
    _
  $region3: #{tpu_custom_call.1} parent=0 // loop_header
    %s21 = sphi 0, %s25
    %p22 = scmp.ge.s32.totalorder %s21, 4
    %s31 = sphi 0, %s33
    %s34 = sphi 0, %s31
    %s35 = sphi 0, %s34
    %s51 = sphi 0, %s35
    %s55 = sphi 0, %s55
    %s57 = sphi 0, %s55
    %s58 = sphi 0, %s57
    %s72 = sphi 0, %s58
    %s76 = sphi 0, %s76
    %s78 = sphi 0, %s76
    %s79 = sphi 0, %s78
    %s93 = sphi 0, %s79
    %s97 = sphi 0, %s97
    %s99 = sphi 0, %s97
    %s100 = sphi 0, %s99
    %s114 = sphi 0, %s100
    %s118 = sphi 0, %s118
    %s120 = sphi 0, %s118
    %s121 = sphi 0, %s120
    %s135 = sphi 0, %s121
    %s139 = sphi 0, %s139
    %s141 = sphi 0, %s139
    %s142 = sphi 0, %s141
    %s156 = sphi 0, %s142
    %s160 = sphi 0, %s160
    %s162 = sphi 0, %s160
    %s163 = sphi 0, %s162
    %s177 = sphi 0, %s163
    %s181 = sphi 0, %s181
    %s183 = sphi 0, %s181
    %s184 = sphi 0, %s183
    %s198 = sphi 0, %s184
    %s202 = sphi 0, %s202
    %s204 = sphi 0, %s202
    %s205 = sphi 0, %s204
    %s219 = sphi 0, %s205
    %s223 = sphi 0, %s223
    %s225 = sphi 0, %s223
    %s226 = sphi 0, %s225
    %s240 = sphi 0, %s226
    %s244 = sphi 0, %s244
    %s246 = sphi 0, %s244
    %s247 = sphi 0, %s246
    %s261 = sphi 0, %s247
    %s265 = sphi 0, %s265
    %s267 = sphi 0, %s265
    %s268 = sphi 0, %s267
    %s282 = sphi 0, %s268
    %s286 = sphi 0, %s286
    %s288 = sphi 0, %s286
    %s289 = sphi 0, %s288
    %s303 = sphi 0, %s289
    %s307 = sphi 0, %s307
    %s309 = sphi 0, %s307
    %s310 = sphi 0, %s309
    %s324 = sphi 0, %s310
    %s328 = sphi 0, %s328
    %s330 = sphi 0, %s328
    %s331 = sphi 0, %s330
    %s345 = sphi 0, %s331
    %s351 = sphi 0, %s353
    %s354 = sphi 0, %s351
    %s355 = sphi 0, %s354
    %s371 = sphi 0, %s355
  $region4: #{tpu_custom_call.1} parent=0 // loop_header_branch
    %24 = sbr.rel (%p22) target = $region8
  $region5: #{tpu_custom_call.1} parent=0 // loop_body
    %s26 = ssub.s32 %s21, 1
    %s27 = ssub.s32 %s21, 2
    %s28 = sadd.s32 %s21, 1
    %s29 = ssub.s32 %s21, %s28
    %p30 = scmp.eq.s32.totalorder %s29, 0
    %s32 = sadd.s32 %s31, 1
    %s33 = scalar_select %p30, %s31, %s32
    %p36 = pneg %p30
    %p37 = scmp.eq.s32.totalorder %s21, 1
    %p38 = por %p36, %p37
    %p39 = scmp.ne.s32.totalorder %s31, %s34
    %p40 = scmp.eq.s32.totalorder %s21, 0
    %p41 = por %p39, %p40
    %p42 = scmp.ne.s32.totalorder %s31, %s34
    %p43 = scmp.eq.s32.totalorder %s26, 1
    %p44 = por %p42, %p43
    %p45 = scmp.ne.s32.totalorder %s34, %s35
    %p46 = scmp.eq.s32.totalorder %s26, 0
    %p47 = por %p45, %p46
    %p48 = scmp.ne.s32.totalorder %s34, %s35
    %p49 = scmp.eq.s32.totalorder %s27, 1
    %p50 = por %p48, %p49
    %p52 = scmp.ne.s32.totalorder %s35, %s51
    %p53 = scmp.eq.s32.totalorder %s27, 0
    %p54 = por %p52, %p53
    %s56 = sadd.s32 %s55, 1
    %p59 = scmp.eq.s32.totalorder %s21, 1
    %p60 = scmp.ne.s32.totalorder %s55, %s57
    %p61 = scmp.eq.s32.totalorder %s21, 0
    %p62 = por %p60, %p61
    %p63 = scmp.ne.s32.totalorder %s55, %s57
    %p64 = scmp.eq.s32.totalorder %s26, 1
    %p65 = por %p63, %p64
    %p66 = scmp.ne.s32.totalorder %s57, %s58
    %p67 = scmp.eq.s32.totalorder %s26, 0
    %p68 = por %p66, %p67
    %p69 = scmp.ne.s32.totalorder %s57, %s58
    %p70 = scmp.eq.s32.totalorder %s27, 1
    %p71 = por %p69, %p70
    %p73 = scmp.ne.s32.totalorder %s58, %s72
    %p74 = scmp.eq.s32.totalorder %s27, 0
    %p75 = por %p73, %p74
    %s77 = sadd.s32 %s76, 1
    %p80 = scmp.eq.s32.totalorder %s21, 1
    %p81 = scmp.ne.s32.totalorder %s76, %s78
    %p82 = scmp.eq.s32.totalorder %s21, 0
    %p83 = por %p81, %p82
    %p84 = scmp.ne.s32.totalorder %s76, %s78
    %p85 = scmp.eq.s32.totalorder %s26, 1
    %p86 = por %p84, %p85
    %p87 = scmp.ne.s32.totalorder %s78, %s79
    %p88 = scmp.eq.s32.totalorder %s26, 0
    %p89 = por %p87, %p88
    %p90 = scmp.ne.s32.totalorder %s78, %s79
    %p91 = scmp.eq.s32.totalorder %s27, 1
    %p92 = por %p90, %p91
    %p94 = scmp.ne.s32.totalorder %s79, %s93
    %p95 = scmp.eq.s32.totalorder %s27, 0
    %p96 = por %p94, %p95
    %s98 = sadd.s32 %s97, 1
    %p101 = scmp.eq.s32.totalorder %s21, 1
    %p102 = scmp.ne.s32.totalorder %s97, %s99
    %p103 = scmp.eq.s32.totalorder %s21, 0
    %p104 = por %p102, %p103
    %p105 = scmp.ne.s32.totalorder %s97, %s99
    %p106 = scmp.eq.s32.totalorder %s26, 1
    %p107 = por %p105, %p106
    %p108 = scmp.ne.s32.totalorder %s99, %s100
    %p109 = scmp.eq.s32.totalorder %s26, 0
    %p110 = por %p108, %p109
    %p111 = scmp.ne.s32.totalorder %s99, %s100
    %p112 = scmp.eq.s32.totalorder %s27, 1
    %p113 = por %p111, %p112
    %p115 = scmp.ne.s32.totalorder %s100, %s114
    %p116 = scmp.eq.s32.totalorder %s27, 0
    %p117 = por %p115, %p116
    %s119 = sadd.s32 %s118, 1
    %p122 = scmp.eq.s32.totalorder %s21, 1
    %p123 = scmp.ne.s32.totalorder %s118, %s120
    %p124 = scmp.eq.s32.totalorder %s21, 0
    %p125 = por %p123, %p124
    %p126 = scmp.ne.s32.totalorder %s118, %s120
    %p127 = scmp.eq.s32.totalorder %s26, 1
    %p128 = por %p126, %p127
    %p129 = scmp.ne.s32.totalorder %s120, %s121
    %p130 = scmp.eq.s32.totalorder %s26, 0
    %p131 = por %p129, %p130
    %p132 = scmp.ne.s32.totalorder %s120, %s121
    %p133 = scmp.eq.s32.totalorder %s27, 1
    %p134 = por %p132, %p133
    %p136 = scmp.ne.s32.totalorder %s121, %s135
    %p137 = scmp.eq.s32.totalorder %s27, 0
    %p138 = por %p136, %p137
    %s140 = sadd.s32 %s139, 1
    %p143 = scmp.eq.s32.totalorder %s21, 1
    %p144 = scmp.ne.s32.totalorder %s139, %s141
    %p145 = scmp.eq.s32.totalorder %s21, 0
    %p146 = por %p144, %p145
    %p147 = scmp.ne.s32.totalorder %s139, %s141
    %p148 = scmp.eq.s32.totalorder %s26, 1
    %p149 = por %p147, %p148
    %p150 = scmp.ne.s32.totalorder %s141, %s142
    %p151 = scmp.eq.s32.totalorder %s26, 0
    %p152 = por %p150, %p151
    %p153 = scmp.ne.s32.totalorder %s141, %s142
    %p154 = scmp.eq.s32.totalorder %s27, 1
    %p155 = por %p153, %p154
    %p157 = scmp.ne.s32.totalorder %s142, %s156
    %p158 = scmp.eq.s32.totalorder %s27, 0
    %p159 = por %p157, %p158
    %s161 = sadd.s32 %s160, 1
    %p164 = scmp.eq.s32.totalorder %s21, 1
    %p165 = scmp.ne.s32.totalorder %s160, %s162
    %p166 = scmp.eq.s32.totalorder %s21, 0
    %p167 = por %p165, %p166
    %p168 = scmp.ne.s32.totalorder %s160, %s162
    %p169 = scmp.eq.s32.totalorder %s26, 1
    %p170 = por %p168, %p169
    %p171 = scmp.ne.s32.totalorder %s162, %s163
    %p172 = scmp.eq.s32.totalorder %s26, 0
    %p173 = por %p171, %p172
    %p174 = scmp.ne.s32.totalorder %s162, %s163
    %p175 = scmp.eq.s32.totalorder %s27, 1
    %p176 = por %p174, %p175
    %p178 = scmp.ne.s32.totalorder %s163, %s177
    %p179 = scmp.eq.s32.totalorder %s27, 0
    %p180 = por %p178, %p179
    %s182 = sadd.s32 %s181, 1
    %p185 = scmp.eq.s32.totalorder %s21, 1
    %p186 = scmp.ne.s32.totalorder %s181, %s183
    %p187 = scmp.eq.s32.totalorder %s21, 0
    %p188 = por %p186, %p187
    %p189 = scmp.ne.s32.totalorder %s181, %s183
    %p190 = scmp.eq.s32.totalorder %s26, 1
    %p191 = por %p189, %p190
    %p192 = scmp.ne.s32.totalorder %s183, %s184
    %p193 = scmp.eq.s32.totalorder %s26, 0
    %p194 = por %p192, %p193
    %p195 = scmp.ne.s32.totalorder %s183, %s184
    %p196 = scmp.eq.s32.totalorder %s27, 1
    %p197 = por %p195, %p196
    %p199 = scmp.ne.s32.totalorder %s184, %s198
    %p200 = scmp.eq.s32.totalorder %s27, 0
    %p201 = por %p199, %p200
    %s203 = sadd.s32 %s202, 1
    %p206 = scmp.eq.s32.totalorder %s21, 1
    %p207 = scmp.ne.s32.totalorder %s202, %s204
    %p208 = scmp.eq.s32.totalorder %s21, 0
    %p209 = por %p207, %p208
    %p210 = scmp.ne.s32.totalorder %s202, %s204
    %p211 = scmp.eq.s32.totalorder %s26, 1
    %p212 = por %p210, %p211
    %p213 = scmp.ne.s32.totalorder %s204, %s205
    %p214 = scmp.eq.s32.totalorder %s26, 0
    %p215 = por %p213, %p214
    %p216 = scmp.ne.s32.totalorder %s204, %s205
    %p217 = scmp.eq.s32.totalorder %s27, 1
    %p218 = por %p216, %p217
    %p220 = scmp.ne.s32.totalorder %s205, %s219
    %p221 = scmp.eq.s32.totalorder %s27, 0
    %p222 = por %p220, %p221
    %s224 = sadd.s32 %s223, 1
    %p227 = scmp.eq.s32.totalorder %s21, 1
    %p228 = scmp.ne.s32.totalorder %s223, %s225
    %p229 = scmp.eq.s32.totalorder %s21, 0
    %p230 = por %p228, %p229
    %p231 = scmp.ne.s32.totalorder %s223, %s225
    %p232 = scmp.eq.s32.totalorder %s26, 1
    %p233 = por %p231, %p232
    %p234 = scmp.ne.s32.totalorder %s225, %s226
    %p235 = scmp.eq.s32.totalorder %s26, 0
    %p236 = por %p234, %p235
    %p237 = scmp.ne.s32.totalorder %s225, %s226
    %p238 = scmp.eq.s32.totalorder %s27, 1
    %p239 = por %p237, %p238
    %p241 = scmp.ne.s32.totalorder %s226, %s240
    %p242 = scmp.eq.s32.totalorder %s27, 0
    %p243 = por %p241, %p242
    %s245 = sadd.s32 %s244, 1
    %p248 = scmp.eq.s32.totalorder %s21, 1
    %p249 = scmp.ne.s32.totalorder %s244, %s246
    %p250 = scmp.eq.s32.totalorder %s21, 0
    %p251 = por %p249, %p250
    %p252 = scmp.ne.s32.totalorder %s244, %s246
    %p253 = scmp.eq.s32.totalorder %s26, 1
    %p254 = por %p252, %p253
    %p255 = scmp.ne.s32.totalorder %s246, %s247
    %p256 = scmp.eq.s32.totalorder %s26, 0
    %p257 = por %p255, %p256
    %p258 = scmp.ne.s32.totalorder %s246, %s247
    %p259 = scmp.eq.s32.totalorder %s27, 1
    %p260 = por %p258, %p259
    %p262 = scmp.ne.s32.totalorder %s247, %s261
    %p263 = scmp.eq.s32.totalorder %s27, 0
    %p264 = por %p262, %p263
    %s266 = sadd.s32 %s265, 1
    %p269 = scmp.eq.s32.totalorder %s21, 1
    %p270 = scmp.ne.s32.totalorder %s265, %s267
    %p271 = scmp.eq.s32.totalorder %s21, 0
    %p272 = por %p270, %p271
    %p273 = scmp.ne.s32.totalorder %s265, %s267
    %p274 = scmp.eq.s32.totalorder %s26, 1
    %p275 = por %p273, %p274
    %p276 = scmp.ne.s32.totalorder %s267, %s268
    %p277 = scmp.eq.s32.totalorder %s26, 0
    %p278 = por %p276, %p277
    %p279 = scmp.ne.s32.totalorder %s267, %s268
    %p280 = scmp.eq.s32.totalorder %s27, 1
    %p281 = por %p279, %p280
    %p283 = scmp.ne.s32.totalorder %s268, %s282
    %p284 = scmp.eq.s32.totalorder %s27, 0
    %p285 = por %p283, %p284
    %s287 = sadd.s32 %s286, 1
    %p290 = scmp.eq.s32.totalorder %s21, 1
    %p291 = scmp.ne.s32.totalorder %s286, %s288
    %p292 = scmp.eq.s32.totalorder %s21, 0
    %p293 = por %p291, %p292
    %p294 = scmp.ne.s32.totalorder %s286, %s288
    %p295 = scmp.eq.s32.totalorder %s26, 1
    %p296 = por %p294, %p295
    %p297 = scmp.ne.s32.totalorder %s288, %s289
    %p298 = scmp.eq.s32.totalorder %s26, 0
    %p299 = por %p297, %p298
    %p300 = scmp.ne.s32.totalorder %s288, %s289
    %p301 = scmp.eq.s32.totalorder %s27, 1
    %p302 = por %p300, %p301
    %p304 = scmp.ne.s32.totalorder %s289, %s303
    %p305 = scmp.eq.s32.totalorder %s27, 0
    %p306 = por %p304, %p305
    %s308 = sadd.s32 %s307, 1
    %p311 = scmp.eq.s32.totalorder %s21, 1
    %p312 = scmp.ne.s32.totalorder %s307, %s309
    %p313 = scmp.eq.s32.totalorder %s21, 0
    %p314 = por %p312, %p313
    %p315 = scmp.ne.s32.totalorder %s307, %s309
    %p316 = scmp.eq.s32.totalorder %s26, 1
    %p317 = por %p315, %p316
    %p318 = scmp.ne.s32.totalorder %s309, %s310
    %p319 = scmp.eq.s32.totalorder %s26, 0
    %p320 = por %p318, %p319
    %p321 = scmp.ne.s32.totalorder %s309, %s310
    %p322 = scmp.eq.s32.totalorder %s27, 1
    %p323 = por %p321, %p322
    %p325 = scmp.ne.s32.totalorder %s310, %s324
    %p326 = scmp.eq.s32.totalorder %s27, 0
    %p327 = por %p325, %p326
    %s329 = sadd.s32 %s328, 1
    %p332 = scmp.eq.s32.totalorder %s21, 1
    %p333 = scmp.ne.s32.totalorder %s328, %s330
    %p334 = scmp.eq.s32.totalorder %s21, 0
    %p335 = por %p333, %p334
    %p336 = scmp.ne.s32.totalorder %s328, %s330
    %p337 = scmp.eq.s32.totalorder %s26, 1
    %p338 = por %p336, %p337
    %p339 = scmp.ne.s32.totalorder %s330, %s331
    %p340 = scmp.eq.s32.totalorder %s26, 0
    %p341 = por %p339, %p340
    %p342 = scmp.ne.s32.totalorder %s330, %s331
    %p343 = scmp.eq.s32.totalorder %s27, 1
    %p344 = por %p342, %p343
    %p346 = scmp.ne.s32.totalorder %s331, %s345
    %p347 = scmp.eq.s32.totalorder %s27, 0
    %p348 = por %p346, %p347
    %s349 = ssub.s32 %s21, %s28
    %p350 = scmp.eq.s32.totalorder %s349, 0
    %s352 = sadd.s32 %s351, 1
    %s353 = scalar_select %p350, %s351, %s352
    %p356 = pneg %p350
    %p357 = scmp.eq.s32.totalorder %s21, 1
    %p358 = por %p356, %p357
    %p359 = scmp.ne.s32.totalorder %s351, %s354
    %p360 = scmp.eq.s32.totalorder %s21, 0
    %p361 = por %p359, %p360
    %p362 = scmp.ne.s32.totalorder %s351, %s354
    %p363 = scmp.eq.s32.totalorder %s26, 1
    %p364 = por %p362, %p363
    %p365 = scmp.ne.s32.totalorder %s354, %s355
    %p366 = scmp.eq.s32.totalorder %s26, 0
    %p367 = por %p365, %p366
    %p368 = scmp.ne.s32.totalorder %s354, %s355
    %p369 = scmp.eq.s32.totalorder %s27, 1
    %p370 = por %p368, %p369
    %p372 = scmp.ne.s32.totalorder %s355, %s371
    %p373 = scmp.eq.s32.totalorder %s27, 0
    %p374 = por %p372, %p373
    %p375 = scmp.le.s32.totalorder 1, %s21
    %p376 = scmp.lt.s32.totalorder %s21, 3
    %p377 = pnand %p375, %p376
    %p378 = pneg %p377
    // Predicated region
    $region9: #{tpu_custom_call.1} parent=5 // pred_check
      _
    $region10: #{tpu_custom_call.1} parent=5 // pred_check_branch
      %380 = sbr.rel (%p377) target = $region12
    $region11: #{tpu_custom_call.1} parent=5 // pred_region
      %s381 = ssub.s32 %s21, 1
      // Predicated region
      $region13: #{tpu_custom_call.1} parent=11 // pred_check
        %p382 = pneg %p68
      $region14: #{tpu_custom_call.1} parent=11 // pred_check_branch
        %384 = sbr.rel (%p382) target = $region16
      $region15: #{tpu_custom_call.1} parent=11 // pred_region
        _
      $region16: #{tpu_custom_call.1} parent=11 // pred_fallthru
        _
      // Predicated region
      $region17: #{tpu_custom_call.1} parent=11 // pred_check
        %p385 = pneg %p89
      $region18: #{tpu_custom_call.1} parent=11 // pred_check_branch
        %387 = sbr.rel (%p385) target = $region20
      $region19: #{tpu_custom_call.1} parent=11 // pred_region
        _
      $region20: #{tpu_custom_call.1} parent=11 // pred_fallthru
        _
      // Predicated region
      $region21: #{tpu_custom_call.1} parent=11 // pred_check
        %p388 = pneg %p110
      $region22: #{tpu_custom_call.1} parent=11 // pred_check_branch
        %390 = sbr.rel (%p388) target = $region24
      $region23: #{tpu_custom_call.1} parent=11 // pred_region
        _
      $region24: #{tpu_custom_call.1} parent=11 // pred_fallthru
        _
      // Predicated region
      $region25: #{tpu_custom_call.1} parent=11 // pred_check
        %p391 = pneg %p131
      $region26: #{tpu_custom_call.1} parent=11 // pred_check_branch
        %393 = sbr.rel (%p391) target = $region28
      $region27: #{tpu_custom_call.1} parent=11 // pred_region
        _
      $region28: #{tpu_custom_call.1} parent=11 // pred_fallthru
        _
      // Predicated region
      $region29: #{tpu_custom_call.1} parent=11 // pred_check
        %p394 = pneg %p152
      $region30: #{tpu_custom_call.1} parent=11 // pred_check_branch
        %396 = sbr.rel (%p394) target = $region32
      $region31: #{tpu_custom_call.1} parent=11 // pred_region
        _
      $region32: #{tpu_custom_call.1} parent=11 // pred_fallthru
        _
      // Predicated region
      $region33: #{tpu_custom_call.1} parent=11 // pred_check
        %p397 = pneg %p173
      $region34: #{tpu_custom_call.1} parent=11 // pred_check_branch
        %399 = sbr.rel (%p397) target = $region36
      $region35: #{tpu_custom_call.1} parent=11 // pred_region
        _
      $region36: #{tpu_custom_call.1} parent=11 // pred_fallthru
        _
      // Predicated region
      $region37: #{tpu_custom_call.1} parent=11 // pred_check
        %p400 = pneg %p194
      $region38: #{tpu_custom_call.1} parent=11 // pred_check_branch
        %402 = sbr.rel (%p400) target = $region40
      $region39: #{tpu_custom_call.1} parent=11 // pred_region
        _
      $region40: #{tpu_custom_call.1} parent=11 // pred_fallthru
        _
      // Predicated region
      $region41: #{tpu_custom_call.1} parent=11 // pred_check
        %p403 = pneg %p215
      $region42: #{tpu_custom_call.1} parent=11 // pred_check_branch
        %405 = sbr.rel (%p403) target = $region44
      $region43: #{tpu_custom_call.1} parent=11 // pred_region
        _
      $region44: #{tpu_custom_call.1} parent=11 // pred_fallthru
        _
      // Predicated region
      $region45: #{tpu_custom_call.1} parent=11 // pred_check
        %p406 = pneg %p236
      $region46: #{tpu_custom_call.1} parent=11 // pred_check_branch
        %408 = sbr.rel (%p406) target = $region48
      $region47: #{tpu_custom_call.1} parent=11 // pred_region
        _
      $region48: #{tpu_custom_call.1} parent=11 // pred_fallthru
        _
      // Predicated region
      $region49: #{tpu_custom_call.1} parent=11 // pred_check
        %p409 = pneg %p257
      $region50: #{tpu_custom_call.1} parent=11 // pred_check_branch
        %411 = sbr.rel (%p409) target = $region52
      $region51: #{tpu_custom_call.1} parent=11 // pred_region
        _
      $region52: #{tpu_custom_call.1} parent=11 // pred_fallthru
        _
      // Predicated region
      $region53: #{tpu_custom_call.1} parent=11 // pred_check
        %p412 = pneg %p278
      $region54: #{tpu_custom_call.1} parent=11 // pred_check_branch
        %414 = sbr.rel (%p412) target = $region56
      $region55: #{tpu_custom_call.1} parent=11 // pred_region
        _
      $region56: #{tpu_custom_call.1} parent=11 // pred_fallthru
        _
      // Predicated region
      $region57: #{tpu_custom_call.1} parent=11 // pred_check
        %p415 = pneg %p299
      $region58: #{tpu_custom_call.1} parent=11 // pred_check_branch
        %417 = sbr.rel (%p415) target = $region60
      $region59: #{tpu_custom_call.1} parent=11 // pred_region
        _
      $region60: #{tpu_custom_call.1} parent=11 // pred_fallthru
        _
      // Predicated region
      $region61: #{tpu_custom_call.1} parent=11 // pred_check
        %p418 = pneg %p320
      $region62: #{tpu_custom_call.1} parent=11 // pred_check_branch
        %420 = sbr.rel (%p418) target = $region64
      $region63: #{tpu_custom_call.1} parent=11 // pred_region
        _
      $region64: #{tpu_custom_call.1} parent=11 // pred_fallthru
        _
      // Predicated region
      $region65: #{tpu_custom_call.1} parent=11 // pred_check
        %p421 = pneg %p341
      $region66: #{tpu_custom_call.1} parent=11 // pred_check_branch
        %423 = sbr.rel (%p421) target = $region68
      $region67: #{tpu_custom_call.1} parent=11 // pred_region
        _
      $region68: #{tpu_custom_call.1} parent=11 // pred_fallthru
        _
    $region12: #{tpu_custom_call.1} parent=5 // pred_fallthru
      _
    %p424 = scmp.lt.s32.totalorder %s21, 2
    // Predicated region
    $region69: #{tpu_custom_call.1} parent=5 // pred_check
      %p425 = pneg %p424
    $region70: #{tpu_custom_call.1} parent=5 // pred_check_branch
      %427 = sbr.rel (%p425) target = $region72
    $region71: #{tpu_custom_call.1} parent=5 // pred_region
      // Predicated region
      $region73: #{tpu_custom_call.1} parent=71 // pred_check
        %p428 = pneg %p41
      $region74: #{tpu_custom_call.1} parent=71 // pred_check_branch
        %430 = sbr.rel (%p428) target = $region76
      $region75: #{tpu_custom_call.1} parent=71 // pred_region
        %p431 = scmp.lt.s32.totalorder %s21, 1
        %s432 = scalar_select %p431, %s21, 1
        %s433 = smul.addr %s432, 32
        %s434 = smul.addr %s433, 8
        %s435 = scalar_lea.vmem %s0, %s434
      $region76: #{tpu_custom_call.1} parent=71 // pred_fallthru
        _
    $region72: #{tpu_custom_call.1} parent=5 // pred_fallthru
      _
    %p436 = scmp.le.s32.totalorder 1, %s21
    %p437 = scmp.lt.s32.totalorder %s21, 3
    %p438 = pnand %p436, %p437
    %p439 = pneg %p438
    // Predicated region
    $region77: #{tpu_custom_call.1} parent=5 // pred_check
      _
    $region78: #{tpu_custom_call.1} parent=5 // pred_check_branch
      %441 = sbr.rel (%p438) target = $region80
    $region79: #{tpu_custom_call.1} parent=5 // pred_region
      %s442 = ssub.s32 %s21, 1
      %p443 = scmp.lt.s32.totalorder %s26, 1
      %s444 = scalar_select %p443, %s26, 1
      %s445 = smul.addr %s444, 32
      %s446 = smul.addr %s445, 8
      %s447 = scalar_lea.vmem %s0, %s446
      %p448 = pneg %p47
      %p449 = pneg %p44
      %p450 = pneg %p68
      %p451 = pneg %p65
      %p452 = pneg %p89
      %p453 = pneg %p86
      %p454 = pneg %p110
      %p455 = pneg %p107
      %p456 = pneg %p131
      %p457 = pneg %p128
      %p458 = pneg %p152
      %p459 = pneg %p149
      %p460 = pneg %p173
      %p461 = pneg %p170
      %p462 = pneg %p194
      %p463 = pneg %p191
      %p464 = pneg %p215
      %p465 = pneg %p212
      %p466 = pneg %p236
      %p467 = pneg %p233
      %p468 = pneg %p257
      %p469 = pneg %p254
      %p470 = pneg %p278
      %p471 = pneg %p275
      %p472 = pneg %p299
      %p473 = pneg %p296
      %p474 = pneg %p320
      %p475 = pneg %p317
      %p476 = pneg %p341
      %p477 = pneg %p338
      %p478 = pneg %p367
      %p479 = pneg %p364
      %p480 = scmp.lt.s32.totalorder %s26, 1
      %s481 = scalar_select %p480, %s26, 1
      %s482 = smul.addr %s481, 32
      %s483 = smul.addr %s482, 8
      %s484 = scalar_lea.vmem %s15, %s483
      %p485 = scmp.lt.s32.totalorder %s26, 1
      %s486 = scalar_select %p485, %s26, 1
      %s487 = smul.addr %s486, 32
      %s488 = smul.addr %s487, 8
      %s489 = scalar_lea.vmem %s0, %s488
      %p490 = scmp.lt.s32.totalorder %s26, 1
      %s491 = scalar_select %p490, %s26, 1
      %s492 = smul.addr %s491, 32
      %s493 = smul.addr %s492, 8
      %s494 = scalar_lea.vmem %s15, %s493
      %v495 = vld [vmem:[%s489] sm:$0xff]
      %v496 = vld [vmem:[%s489 + $0x8] sm:$0xff]
      %v497 = vld [vmem:[%s489 + $0x10] sm:$0xff]
      %v498 = vld [vmem:[%s489 + $0x18] sm:$0xff]
      %v499 = vld [vmem:[%s489 + $0x20] sm:$0xff]
      %v500 = vld [vmem:[%s489 + $0x28] sm:$0xff]
      %v501 = vld [vmem:[%s489 + $0x30] sm:$0xff]
      %v502 = vld [vmem:[%s489 + $0x38] sm:$0xff]
      %v503 = vld [vmem:[%s489 + $0x40] sm:$0xff]
      %v504 = vld [vmem:[%s489 + $0x48] sm:$0xff]
      %v505 = vld [vmem:[%s489 + $0x50] sm:$0xff]
      %v506 = vld [vmem:[%s489 + $0x58] sm:$0xff]
      %v507 = vld [vmem:[%s489 + $0x60] sm:$0xff]
      %v508 = vld [vmem:[%s489 + $0x68] sm:$0xff]
      %v509 = vld [vmem:[%s489 + $0x70] sm:$0xff]
      %v510 = vld [vmem:[%s489 + $0x78] sm:$0xff]
      %v511 = vld [vmem:[%s489 + $0x80] sm:$0xff]
      %v512 = vld [vmem:[%s489 + $0x88] sm:$0xff]
      %v513 = vld [vmem:[%s489 + $0x90] sm:$0xff]
      %v514 = vld [vmem:[%s489 + $0x98] sm:$0xff]
      %v515 = vld [vmem:[%s489 + $0xa0] sm:$0xff]
      %v516 = vld [vmem:[%s489 + $0xa8] sm:$0xff]
      %v517 = vld [vmem:[%s489 + $0xb0] sm:$0xff]
      %v518 = vld [vmem:[%s489 + $0xb8] sm:$0xff]
      %v519 = vld [vmem:[%s489 + $0xc0] sm:$0xff]
      %v520 = vld [vmem:[%s489 + $0xc8] sm:$0xff]
      %v521 = vld [vmem:[%s489 + $0xd0] sm:$0xff]
      %v522 = vld [vmem:[%s489 + $0xd8] sm:$0xff]
      %v523 = vld [vmem:[%s489 + $0xe0] sm:$0xff]
      %v524 = vld [vmem:[%s489 + $0xe8] sm:$0xff]
      %v525 = vld [vmem:[%s489 + $0xf0] sm:$0xff]
      %v526 = vld [vmem:[%s489 + $0xf8] sm:$0xff]
      %v527 = vld [vmem:[%s1] sm:$0xf]
      %v528 = vld [vmem:[%s2] sm:$0x1]
      %v530 = vperm.slane %v528, 0
      %vm532 = vcmask 31744
      %v534 = vsel %vm532, %v495, 0
      %v537 = vsel %vm532, %v496, 0
      %v540 = vsel %vm532, %v497, 0
      %v543 = vsel %vm532, %v498, 0
      %v546 = vsel %vm532, %v499, 0
      %v549 = vsel %vm532, %v500, 0
      %v552 = vsel %vm532, %v501, 0
      %v555 = vsel %vm532, %v502, 0
      %v558 = vsel %vm532, %v503, 0
      %v561 = vsel %vm532, %v504, 0
      %v564 = vsel %vm532, %v505, 0
      %v567 = vsel %vm532, %v506, 0
      %v570 = vsel %vm532, %v507, 0
      %v573 = vsel %vm532, %v508, 0
      %v576 = vsel %vm532, %v509, 0
      %v579 = vsel %vm532, %v510, 0
      %v582 = vsel %vm532, %v511, 0
      %v585 = vsel %vm532, %v512, 0
      %v588 = vsel %vm532, %v513, 0
      %v591 = vsel %vm532, %v514, 0
      %v594 = vsel %vm532, %v515, 0
      %v597 = vsel %vm532, %v516, 0
      %v600 = vsel %vm532, %v517, 0
      %v603 = vsel %vm532, %v518, 0
      %v606 = vsel %vm532, %v519, 0
      %v609 = vsel %vm532, %v520, 0
      %v612 = vsel %vm532, %v521, 0
      %v615 = vsel %vm532, %v522, 0
      %v618 = vsel %vm532, %v523, 0
      %v621 = vsel %vm532, %v524, 0
      %v624 = vsel %vm532, %v525, 0
      %v627 = vsel %vm532, %v526, 0
      %vm629 = vcmask 1043456
      %v631 = vsel %vm629, %v527, 0
      %633 = vmatpush.msra.mxu0 0.0
      %634 = vmatpush.msra.mxu0 0.0
      %635 = vmatpush.msra.mxu0 0.0
      %636 = vmatpush.msra.mxu0 0.0
      %637 = vmatpush.msra.mxu0 0.0
      %638 = vmatpush.msra.mxu0 0.0
      %639 = vmatpush.msra.mxu0 0.0
      %640 = vmatpush.msra.mxu0 0.0
      %641 = vmatpush.msra.mxu0 0.0
      %642 = vmatpush.msra.mxu0 0.0
      %643 = vmatpush.msra.mxu0 0.0
      %644 = vmatpush.msra.mxu0 0.0
      %645 = vmatpush.msra.mxu0 0.0
      %646 = vmatpush.msra.mxu0 0.0
      %647 = vmatpush.msra.mxu0 0.0
      %648 = vmatpush.msra.mxu0 %v631
      %649 = vmatmul.f32.gmra.mxu0 %v534
      %v650 = vpop.f32.mrf.mxu0
      %v651 = vadd.f32 %v530, %v650
      %652 = vmatmul.f32.gmra.mxu0 %v537
      %v653 = vpop.f32.mrf.mxu0
      %v654 = vadd.f32 %v530, %v653
      %655 = vmatmul.f32.gmra.mxu0 %v540
      %v656 = vpop.f32.mrf.mxu0
      %v657 = vadd.f32 %v530, %v656
      %658 = vmatmul.f32.gmra.mxu0 %v543
      %v659 = vpop.f32.mrf.mxu0
      %v660 = vadd.f32 %v530, %v659
      %661 = vmatmul.f32.gmra.mxu0 %v546
      %v662 = vpop.f32.mrf.mxu0
      %v663 = vadd.f32 %v530, %v662
      %664 = vmatmul.f32.gmra.mxu0 %v549
      %v665 = vpop.f32.mrf.mxu0
      %v666 = vadd.f32 %v530, %v665
      %667 = vmatmul.f32.gmra.mxu0 %v552
      %v668 = vpop.f32.mrf.mxu0
      %v669 = vadd.f32 %v530, %v668
      %670 = vmatmul.f32.gmra.mxu0 %v555
      %v671 = vpop.f32.mrf.mxu0
      %v672 = vadd.f32 %v530, %v671
      %673 = vmatmul.f32.gmra.mxu0 %v558
      %v674 = vpop.f32.mrf.mxu0
      %v675 = vadd.f32 %v530, %v674
      %676 = vmatmul.f32.gmra.mxu0 %v561
      %v677 = vpop.f32.mrf.mxu0
      %v678 = vadd.f32 %v530, %v677
      %679 = vmatmul.f32.gmra.mxu0 %v564
      %v680 = vpop.f32.mrf.mxu0
      %v681 = vadd.f32 %v530, %v680
      %682 = vmatmul.f32.gmra.mxu0 %v567
      %v683 = vpop.f32.mrf.mxu0
      %v684 = vadd.f32 %v530, %v683
      %685 = vmatmul.f32.gmra.mxu0 %v570
      %v686 = vpop.f32.mrf.mxu0
      %v687 = vadd.f32 %v530, %v686
      %688 = vmatmul.f32.gmra.mxu0 %v573
      %v689 = vpop.f32.mrf.mxu0
      %v690 = vadd.f32 %v530, %v689
      %691 = vmatmul.f32.gmra.mxu0 %v576
      %v692 = vpop.f32.mrf.mxu0
      %v693 = vadd.f32 %v530, %v692
      %694 = vmatmul.f32.gmra.mxu0 %v579
      %v695 = vpop.f32.mrf.mxu0
      %v696 = vadd.f32 %v530, %v695
      %697 = vmatmul.f32.gmra.mxu0 %v582
      %v698 = vpop.f32.mrf.mxu0
      %v699 = vadd.f32 %v530, %v698
      %700 = vmatmul.f32.gmra.mxu0 %v585
      %v701 = vpop.f32.mrf.mxu0
      %v702 = vadd.f32 %v530, %v701
      %703 = vmatmul.f32.gmra.mxu0 %v588
      %v704 = vpop.f32.mrf.mxu0
      %v705 = vadd.f32 %v530, %v704
      %706 = vmatmul.f32.gmra.mxu0 %v591
      %v707 = vpop.f32.mrf.mxu0
      %v708 = vadd.f32 %v530, %v707
      %709 = vmatmul.f32.gmra.mxu0 %v594
      %v710 = vpop.f32.mrf.mxu0
      %v711 = vadd.f32 %v530, %v710
      %712 = vmatmul.f32.gmra.mxu0 %v597
      %v713 = vpop.f32.mrf.mxu0
      %v714 = vadd.f32 %v530, %v713
      %715 = vmatmul.f32.gmra.mxu0 %v600
      %v716 = vpop.f32.mrf.mxu0
      %v717 = vadd.f32 %v530, %v716
      %718 = vmatmul.f32.gmra.mxu0 %v603
      %v719 = vpop.f32.mrf.mxu0
      %v720 = vadd.f32 %v530, %v719
      %721 = vmatmul.f32.gmra.mxu0 %v606
      %v722 = vpop.f32.mrf.mxu0
      %v723 = vadd.f32 %v530, %v722
      %724 = vmatmul.f32.gmra.mxu0 %v609
      %v725 = vpop.f32.mrf.mxu0
      %v726 = vadd.f32 %v530, %v725
      %727 = vmatmul.f32.gmra.mxu0 %v612
      %v728 = vpop.f32.mrf.mxu0
      %v729 = vadd.f32 %v530, %v728
      %730 = vmatmul.f32.gmra.mxu0 %v615
      %v731 = vpop.f32.mrf.mxu0
      %v732 = vadd.f32 %v530, %v731
      %733 = vmatmul.f32.gmra.mxu0 %v618
      %v734 = vpop.f32.mrf.mxu0
      %v735 = vadd.f32 %v530, %v734
      %736 = vmatmul.f32.gmra.mxu0 %v621
      %v737 = vpop.f32.mrf.mxu0
      %v738 = vadd.f32 %v530, %v737
      %739 = vmatmul.f32.gmra.mxu0 %v624
      %v740 = vpop.f32.mrf.mxu0
      %v741 = vadd.f32 %v530, %v740
      %742 = vmatmul.f32.gmra.mxu0 %v627
      %v743 = vpop.f32.mrf.mxu0
      %v744 = vadd.f32 %v530, %v743
      %745 = vdwg.mxu0
      %vm746 = vcmask 64512
      %747 = vst.msk [vmem:[#allocation2] sm:$0xff] %vm746, 0.0
      %748 = vst.msk [vmem:[#allocation2 + $0x8] sm:$0xff] %vm746, 0.0
      %vm749 = vcmask 58368
      %750 = vst.msk [vmem:[#allocation2 + $0x10] sm:$0x3] %vm749, 0.0
      %s751 = scalar_lea.vmem [#allocation2], 408
      %752 = vst.msk [vmem:[%s751] sm:$0xff] %vm746, 0.0
      %753 = vst.msk [vmem:[%s751 + $0x8] sm:$0xff] %vm746, 0.0
      %754 = vst.msk [vmem:[%s751 + $0x10] sm:$0x3] %vm749, 0.0
      %vm755 = vcmask 57344
      %756 = vst.msk [vmem:[#allocation2] sm:$0x1] %vm755, 0.0
      %757 = vst.msk [vmem:[#allocation2 + $0x18] sm:$0x1] %vm755, 0.0
      %758 = vst.msk [vmem:[#allocation2 + $0x30] sm:$0x1] %vm755, 0.0
      %759 = vst.msk [vmem:[#allocation2 + $0x48] sm:$0x1] %vm755, 0.0
      %760 = vst.msk [vmem:[#allocation2 + $0x60] sm:$0x1] %vm755, 0.0
      %761 = vst.msk [vmem:[#allocation2 + $0x78] sm:$0x1] %vm755, 0.0
      %762 = vst.msk [vmem:[#allocation2 + $0x90] sm:$0x1] %vm755, 0.0
      %763 = vst.msk [vmem:[#allocation2 + $0xa8] sm:$0x1] %vm755, 0.0
      %764 = vst.msk [vmem:[#allocation2 + $0xc0] sm:$0x1] %vm755, 0.0
      %765 = vst.msk [vmem:[#allocation2 + $0xd8] sm:$0x1] %vm755, 0.0
      %766 = vst.msk [vmem:[#allocation2 + $0xf0] sm:$0x1] %vm755, 0.0
      %767 = vst.msk [vmem:[#allocation2 + $0x108] sm:$0x1] %vm755, 0.0
      %768 = vst.msk [vmem:[#allocation2 + $0x120] sm:$0x1] %vm755, 0.0
      %769 = vst.msk [vmem:[#allocation2 + $0x138] sm:$0x1] %vm755, 0.0
      %770 = vst.msk [vmem:[#allocation2 + $0x150] sm:$0x1] %vm755, 0.0
      %771 = vst.msk [vmem:[#allocation2 + $0x168] sm:$0x1] %vm755, 0.0
      %772 = vst.msk [vmem:[#allocation2 + $0x180] sm:$0x1] %vm755, 0.0
      %773 = vst.msk [vmem:[#allocation2 + $0x198] sm:$0x1] %vm755, 0.0
      %774 = vst.msk [vmem:[#allocation2 + $0x11] sm:$0x1] %vm755, 0.0
      %775 = vst.msk [vmem:[#allocation2 + $0x29] sm:$0x1] %vm755, 0.0
      %776 = vst.msk [vmem:[#allocation2 + $0x41] sm:$0x1] %vm755, 0.0
      %777 = vst.msk [vmem:[#allocation2 + $0x59] sm:$0x1] %vm755, 0.0
      %778 = vst.msk [vmem:[#allocation2 + $0x71] sm:$0x1] %vm755, 0.0
      %779 = vst.msk [vmem:[#allocation2 + $0x89] sm:$0x1] %vm755, 0.0
      %780 = vst.msk [vmem:[#allocation2 + $0xa1] sm:$0x1] %vm755, 0.0
      %781 = vst.msk [vmem:[#allocation2 + $0xb9] sm:$0x1] %vm755, 0.0
      %782 = vst.msk [vmem:[#allocation2 + $0xd1] sm:$0x1] %vm755, 0.0
      %783 = vst.msk [vmem:[#allocation2 + $0xe9] sm:$0x1] %vm755, 0.0
      %784 = vst.msk [vmem:[#allocation2 + $0x101] sm:$0x1] %vm755, 0.0
      %785 = vst.msk [vmem:[#allocation2 + $0x119] sm:$0x1] %vm755, 0.0
      %786 = vst.msk [vmem:[#allocation2 + $0x131] sm:$0x1] %vm755, 0.0
      %787 = vst.msk [vmem:[#allocation2 + $0x149] sm:$0x1] %vm755, 0.0
      %788 = vst.msk [vmem:[#allocation2 + $0x161] sm:$0x1] %vm755, 0.0
      %789 = vst.msk [vmem:[#allocation2 + $0x179] sm:$0x1] %vm755, 0.0
      %790 = vst.msk [vmem:[#allocation2 + $0x191] sm:$0x1] %vm755, 0.0
      %791 = vst.msk [vmem:[#allocation2 + $0x1a9] sm:$0x1] %vm755, 0.0
      %v792 = vsel %vm532, %v495, 0.0
      %v793 = vsel %vm532, %v496, 0.0
      %v794 = vadd.f32 %v792, %v793
      %v795 = vsel %vm532, %v497, 0.0
      %v796 = vadd.f32 %v794, %v795
      %v797 = vsel %vm532, %v498, 0.0
      %v798 = vadd.f32 %v796, %v797
      %v799 = vsel %vm532, %v499, 0.0
      %v800 = vadd.f32 %v798, %v799
      %v801 = vsel %vm532, %v500, 0.0
      %v802 = vadd.f32 %v800, %v801
      %v803 = vsel %vm532, %v501, 0.0
      %v804 = vadd.f32 %v802, %v803
      %v805 = vsel %vm532, %v502, 0.0
      %v806 = vadd.f32 %v804, %v805
      %v807 = vsel %vm532, %v503, 0.0
      %v808 = vadd.f32 %v806, %v807
      %v809 = vsel %vm532, %v504, 0.0
      %v810 = vadd.f32 %v808, %v809
      %v811 = vsel %vm532, %v505, 0.0
      %v812 = vadd.f32 %v810, %v811
      %v813 = vsel %vm532, %v506, 0.0
      %v814 = vadd.f32 %v812, %v813
      %v815 = vsel %vm532, %v507, 0.0
      %v816 = vadd.f32 %v814, %v815
      %v817 = vsel %vm532, %v508, 0.0
      %v818 = vadd.f32 %v816, %v817
      %v819 = vsel %vm532, %v509, 0.0
      %v820 = vadd.f32 %v818, %v819
      %v821 = vsel %vm532, %v510, 0.0
      %v822 = vadd.f32 %v820, %v821
      %v823 = vsel %vm532, %v511, 0.0
      %v824 = vadd.f32 %v822, %v823
      %v825 = vsel %vm532, %v512, 0.0
      %v826 = vadd.f32 %v824, %v825
      %v827 = vsel %vm532, %v513, 0.0
      %v828 = vadd.f32 %v826, %v827
      %v829 = vsel %vm532, %v514, 0.0
      %v830 = vadd.f32 %v828, %v829
      %v831 = vsel %vm532, %v515, 0.0
      %v832 = vadd.f32 %v830, %v831
      %v833 = vsel %vm532, %v516, 0.0
      %v834 = vadd.f32 %v832, %v833
      %v835 = vsel %vm532, %v517, 0.0
      %v836 = vadd.f32 %v834, %v835
      %v837 = vsel %vm532, %v518, 0.0
      %v838 = vadd.f32 %v836, %v837
      %v839 = vsel %vm532, %v519, 0.0
      %v840 = vadd.f32 %v838, %v839
      %v841 = vsel %vm532, %v520, 0.0
      %v842 = vadd.f32 %v840, %v841
      %v843 = vsel %vm532, %v521, 0.0
      %v844 = vadd.f32 %v842, %v843
      %v845 = vsel %vm532, %v522, 0.0
      %v846 = vadd.f32 %v844, %v845
      %v847 = vsel %vm532, %v523, 0.0
      %v848 = vadd.f32 %v846, %v847
      %v849 = vsel %vm532, %v524, 0.0
      %v850 = vadd.f32 %v848, %v849
      %v851 = vsel %vm532, %v525, 0.0
      %v852 = vadd.f32 %v850, %v851
      %v853 = vsel %vm532, %v526, 0.0
      %v854 = vadd.f32 %v852, %v853
      %855 = vadd.xlane.f32.xlu0 %v854
      %v856 = vpop.xlane.xlu0 %855
      %v857 = vrot.slane %v856, 4
      %v858 = vadd.f32 %v856, %v857
      %v859 = vrot.slane %v858, 2
      %v860 = vadd.f32 %v858, %v859
      %v861 = vrot.slane %v860, 1
      %v862 = vadd.f32 %v860, %v861
      %s863 = vtos %v862
      %v864 = vmul.f32 %v495, %v495
      %v865 = vmul.f32 %v496, %v496
      %v866 = vmul.f32 %v497, %v497
      %v867 = vmul.f32 %v498, %v498
      %v868 = vmul.f32 %v499, %v499
      %v869 = vmul.f32 %v500, %v500
      %v870 = vmul.f32 %v501, %v501
      %v871 = vmul.f32 %v502, %v502
      %v872 = vmul.f32 %v503, %v503
      %v873 = vmul.f32 %v504, %v504
      %v874 = vmul.f32 %v505, %v505
      %v875 = vmul.f32 %v506, %v506
      %v876 = vmul.f32 %v507, %v507
      %v877 = vmul.f32 %v508, %v508
      %v878 = vmul.f32 %v509, %v509
      %v879 = vmul.f32 %v510, %v510
      %v880 = vmul.f32 %v511, %v511
      %v881 = vmul.f32 %v512, %v512
      %v882 = vmul.f32 %v513, %v513
      %v883 = vmul.f32 %v514, %v514
      %v884 = vmul.f32 %v515, %v515
      %v885 = vmul.f32 %v516, %v516
      %v886 = vmul.f32 %v517, %v517
      %v887 = vmul.f32 %v518, %v518
      %v888 = vmul.f32 %v519, %v519
      %v889 = vmul.f32 %v520, %v520
      %v890 = vmul.f32 %v521, %v521
      %v891 = vmul.f32 %v522, %v522
      %v892 = vmul.f32 %v523, %v523
      %v893 = vmul.f32 %v524, %v524
      %v894 = vmul.f32 %v525, %v525
      %v895 = vmul.f32 %v526, %v526
      %v896 = vsel %vm532, %v864, 0.0
      %v897 = vsel %vm532, %v865, 0.0
      %v898 = vadd.f32 %v896, %v897
      %v899 = vsel %vm532, %v866, 0.0
      %v900 = vadd.f32 %v898, %v899
      %v901 = vsel %vm532, %v867, 0.0
      %v902 = vadd.f32 %v900, %v901
      %v903 = vsel %vm532, %v868, 0.0
      %v904 = vadd.f32 %v902, %v903
      %v905 = vsel %vm532, %v869, 0.0
      %v906 = vadd.f32 %v904, %v905
      %v907 = vsel %vm532, %v870, 0.0
      %v908 = vadd.f32 %v906, %v907
      %v909 = vsel %vm532, %v871, 0.0
      %v910 = vadd.f32 %v908, %v909
      %v911 = vsel %vm532, %v872, 0.0
      %v912 = vadd.f32 %v910, %v911
      %v913 = vsel %vm532, %v873, 0.0
      %v914 = vadd.f32 %v912, %v913
      %v915 = vsel %vm532, %v874, 0.0
      %v916 = vadd.f32 %v914, %v915
      %v917 = vsel %vm532, %v875, 0.0
      %v918 = vadd.f32 %v916, %v917
      %v919 = vsel %vm532, %v876, 0.0
      %v920 = vadd.f32 %v918, %v919
      %v921 = vsel %vm532, %v877, 0.0
      %v922 = vadd.f32 %v920, %v921
      %v923 = vsel %vm532, %v878, 0.0
      %v924 = vadd.f32 %v922, %v923
      %v925 = vsel %vm532, %v879, 0.0
      %v926 = vadd.f32 %v924, %v925
      %v927 = vsel %vm532, %v880, 0.0
      %v928 = vadd.f32 %v926, %v927
      %v929 = vsel %vm532, %v881, 0.0
      %v930 = vadd.f32 %v928, %v929
      %v931 = vsel %vm532, %v882, 0.0
      %v932 = vadd.f32 %v930, %v931
      %v933 = vsel %vm532, %v883, 0.0
      %v934 = vadd.f32 %v932, %v933
      %v935 = vsel %vm532, %v884, 0.0
      %v936 = vadd.f32 %v934, %v935
      %v937 = vsel %vm532, %v885, 0.0
      %v938 = vadd.f32 %v936, %v937
      %v939 = vsel %vm532, %v886, 0.0
      %v940 = vadd.f32 %v938, %v939
      %v941 = vsel %vm532, %v887, 0.0
      %v942 = vadd.f32 %v940, %v941
      %v943 = vsel %vm532, %v888, 0.0
      %v944 = vadd.f32 %v942, %v943
      %v945 = vsel %vm532, %v889, 0.0
      %v946 = vadd.f32 %v944, %v945
      %v947 = vsel %vm532, %v890, 0.0
      %v948 = vadd.f32 %v946, %v947
      %v949 = vsel %vm532, %v891, 0.0
      %v950 = vadd.f32 %v948, %v949
      %v951 = vsel %vm532, %v892, 0.0
      %v952 = vadd.f32 %v950, %v951
      %v953 = vsel %vm532, %v893, 0.0
      %v954 = vadd.f32 %v952, %v953
      %v955 = vsel %vm532, %v894, 0.0
      %v956 = vadd.f32 %v954, %v955
      %v957 = vsel %vm532, %v895, 0.0
      %v958 = vadd.f32 %v956, %v957
      %959 = vadd.xlane.f32.xlu0 %v958
      %v960 = vpop.xlane.xlu0 %959
      %v961 = vrot.slane %v960, 4
      %v962 = vadd.f32 %v960, %v961
      %v963 = vrot.slane %v962, 2
      %v964 = vadd.f32 %v962, %v963
      %v965 = vrot.slane %v964, 1
      %v966 = vadd.f32 %v964, %v965
      %s967 = vtos %v966
      %v968 = vrcp.pop 1024.0
      %v969 = vmul.f32 1024.0, %v968
      %v970 = vsub.f32 1.0, %v969
      %v971 = vmul.f32 %v968, %v970
      %v972 = vadd.f32 %v968, %v971
      %vm973 = vweird.f32 %v968
      %v974 = vsel %vm973, %v968, %v972
      %s975 = vtos %v974
      %s976 = smul.f32 %s863, %s975
      %v977 = vrcp.pop 1024.0
      %v978 = vmul.f32 1024.0, %v977
      %v979 = vsub.f32 1.0, %v978
      %v980 = vmul.f32 %v977, %v979
      %v981 = vadd.f32 %v977, %v980
      %vm982 = vweird.f32 %v977
      %v983 = vsel %vm982, %v977, %v981
      %s984 = vtos %v983
      %s985 = smul.f32 %s967, %s984
      %s986 = smul.f32 %s976, %s976
      %s987 = ssub.f32 %s985, %s986
      %s988 = smax.f32 %s987, 0.0
      %v989 = vstv %s976
      %v990 = vsub.f32 %v495, %v989
      %v991 = vsub.f32 %v496, %v989
      %v992 = vsub.f32 %v497, %v989
      %v993 = vsub.f32 %v498, %v989
      %v994 = vsub.f32 %v499, %v989
      %v995 = vsub.f32 %v500, %v989
      %v996 = vsub.f32 %v501, %v989
      %v997 = vsub.f32 %v502, %v989
      %v998 = vsub.f32 %v503, %v989
      %v999 = vsub.f32 %v504, %v989
      %v1000 = vsub.f32 %v505, %v989
      %v1001 = vsub.f32 %v506, %v989
      %v1002 = vsub.f32 %v507, %v989
      %v1003 = vsub.f32 %v508, %v989
      %v1004 = vsub.f32 %v509, %v989
      %v1005 = vsub.f32 %v510, %v989
      %v1006 = vsub.f32 %v511, %v989
      %v1007 = vsub.f32 %v512, %v989
      %v1008 = vsub.f32 %v513, %v989
      %v1009 = vsub.f32 %v514, %v989
      %v1010 = vsub.f32 %v515, %v989
      %v1011 = vsub.f32 %v516, %v989
      %v1012 = vsub.f32 %v517, %v989
      %v1013 = vsub.f32 %v518, %v989
      %v1014 = vsub.f32 %v519, %v989
      %v1015 = vsub.f32 %v520, %v989
      %v1016 = vsub.f32 %v521, %v989
      %v1017 = vsub.f32 %v522, %v989
      %v1018 = vsub.f32 %v523, %v989
      %v1019 = vsub.f32 %v524, %v989
      %v1020 = vsub.f32 %v525, %v989
      %v1021 = vsub.f32 %v526, %v989
      %s1022 = sadd.f32 %s988, 1e-05
      %v1023 = vstv %s1022
      %v1024 = vrsqrt.pop %v1023
      %v1025 = vmul.f32 %v1024, %v1023
      %v1026 = vmul.f32 %v1025, %v1024
      %v1027 = vmul.f32 0.5, %v1026
      %v1028 = vsub.f32 1.5, %v1027
      %v1029 = vmul.f32 %v1024, %v1028
      %vm1030 = vweird.f32 %v1023
      %vm1031 = vweird.f32 %v1024
      %vm1032 = vmor %vm1030, %vm1031
      %v1033 = vsel %vm1032, %v1024, %v1029
      %s1034 = vtos %v1033
      %v1035 = vstv %s1034
      %v1036 = vmul.f32 %v990, %v1035
      %v1037 = vmul.f32 %v991, %v1035
      %v1038 = vmul.f32 %v992, %v1035
      %v1039 = vmul.f32 %v993, %v1035
      %v1040 = vmul.f32 %v994, %v1035
      %v1041 = vmul.f32 %v995, %v1035
      %v1042 = vmul.f32 %v996, %v1035
      %v1043 = vmul.f32 %v997, %v1035
      %v1044 = vmul.f32 %v998, %v1035
      %v1045 = vmul.f32 %v999, %v1035
      %v1046 = vmul.f32 %v1000, %v1035
      %v1047 = vmul.f32 %v1001, %v1035
      %v1048 = vmul.f32 %v1002, %v1035
      %v1049 = vmul.f32 %v1003, %v1035
      %v1050 = vmul.f32 %v1004, %v1035
      %v1051 = vmul.f32 %v1005, %v1035
      %v1052 = vmul.f32 %v1006, %v1035
      %v1053 = vmul.f32 %v1007, %v1035
      %v1054 = vmul.f32 %v1008, %v1035
      %v1055 = vmul.f32 %v1009, %v1035
      %v1056 = vmul.f32 %v1010, %v1035
      %v1057 = vmul.f32 %v1011, %v1035
      %v1058 = vmul.f32 %v1012, %v1035
      %v1059 = vmul.f32 %v1013, %v1035
      %v1060 = vmul.f32 %v1014, %v1035
      %v1061 = vmul.f32 %v1015, %v1035
      %v1062 = vmul.f32 %v1016, %v1035
      %v1063 = vmul.f32 %v1017, %v1035
      %v1064 = vmul.f32 %v1018, %v1035
      %v1065 = vmul.f32 %v1019, %v1035
      %v1066 = vmul.f32 %v1020, %v1035
      %v1067 = vmul.f32 %v1021, %v1035
      %v1068 = vld [vmem:[%s3] sm:$0x1]
      %v1070 = vperm.slane %v1068, 0
      %v1072 = vmul.f32 %v1036, %v1070
      %v1073 = vmul.f32 %v1037, %v1070
      %v1074 = vmul.f32 %v1038, %v1070
      %v1075 = vmul.f32 %v1039, %v1070
      %v1076 = vmul.f32 %v1040, %v1070
      %v1077 = vmul.f32 %v1041, %v1070
      %v1078 = vmul.f32 %v1042, %v1070
      %v1079 = vmul.f32 %v1043, %v1070
      %v1080 = vmul.f32 %v1044, %v1070
      %v1081 = vmul.f32 %v1045, %v1070
      %v1082 = vmul.f32 %v1046, %v1070
      %v1083 = vmul.f32 %v1047, %v1070
      %v1084 = vmul.f32 %v1048, %v1070
      %v1085 = vmul.f32 %v1049, %v1070
      %v1086 = vmul.f32 %v1050, %v1070
      %v1087 = vmul.f32 %v1051, %v1070
      %v1088 = vmul.f32 %v1052, %v1070
      %v1089 = vmul.f32 %v1053, %v1070
      %v1090 = vmul.f32 %v1054, %v1070
      %v1091 = vmul.f32 %v1055, %v1070
      %v1092 = vmul.f32 %v1056, %v1070
      %v1093 = vmul.f32 %v1057, %v1070
      %v1094 = vmul.f32 %v1058, %v1070
      %v1095 = vmul.f32 %v1059, %v1070
      %v1096 = vmul.f32 %v1060, %v1070
      %v1097 = vmul.f32 %v1061, %v1070
      %v1098 = vmul.f32 %v1062, %v1070
      %v1099 = vmul.f32 %v1063, %v1070
      %v1100 = vmul.f32 %v1064, %v1070
      %v1101 = vmul.f32 %v1065, %v1070
      %v1102 = vmul.f32 %v1066, %v1070
      %v1103 = vmul.f32 %v1067, %v1070
      %v1104 = vld [vmem:[%s4] sm:$0x1]
      %v1106 = vperm.slane %v1104, 0
      %v1108 = vadd.f32 %v1072, %v1106
      %v1109 = vadd.f32 %v1073, %v1106
      %v1110 = vadd.f32 %v1074, %v1106
      %v1111 = vadd.f32 %v1075, %v1106
      %v1112 = vadd.f32 %v1076, %v1106
      %v1113 = vadd.f32 %v1077, %v1106
      %v1114 = vadd.f32 %v1078, %v1106
      %v1115 = vadd.f32 %v1079, %v1106
      %v1116 = vadd.f32 %v1080, %v1106
      %v1117 = vadd.f32 %v1081, %v1106
      %v1118 = vadd.f32 %v1082, %v1106
      %v1119 = vadd.f32 %v1083, %v1106
      %v1120 = vadd.f32 %v1084, %v1106
      %v1121 = vadd.f32 %v1085, %v1106
      %v1122 = vadd.f32 %v1086, %v1106
      %v1123 = vadd.f32 %v1087, %v1106
      %v1124 = vadd.f32 %v1088, %v1106
      %v1125 = vadd.f32 %v1089, %v1106
      %v1126 = vadd.f32 %v1090, %v1106
      %v1127 = vadd.f32 %v1091, %v1106
      %v1128 = vadd.f32 %v1092, %v1106
      %v1129 = vadd.f32 %v1093, %v1106
      %v1130 = vadd.f32 %v1094, %v1106
      %v1131 = vadd.f32 %v1095, %v1106
      %v1132 = vadd.f32 %v1096, %v1106
      %v1133 = vadd.f32 %v1097, %v1106
      %v1134 = vadd.f32 %v1098, %v1106
      %v1135 = vadd.f32 %v1099, %v1106
      %v1136 = vadd.f32 %v1100, %v1106
      %v1137 = vadd.f32 %v1101, %v1106
      %v1138 = vadd.f32 %v1102, %v1106
      %v1139 = vadd.f32 %v1103, %v1106
      %s1140 = scalar_lea.vmem [#allocation2], 24
      %1141 = vst.msk [vmem:[%s1140 + $0x1] sm:$0xff] %vm532, %v1108
      %1142 = vst.msk [vmem:[%s1140 + $0x9] sm:$0xff] %vm532, %v1109
      %1143 = vst.msk [vmem:[%s1140 + $0x19] sm:$0xff] %vm532, %v1110
      %1144 = vst.msk [vmem:[%s1140 + $0x21] sm:$0xff] %vm532, %v1111
      %1145 = vst.msk [vmem:[%s1140 + $0x31] sm:$0xff] %vm532, %v1112
      %1146 = vst.msk [vmem:[%s1140 + $0x39] sm:$0xff] %vm532, %v1113
      %1147 = vst.msk [vmem:[%s1140 + $0x49] sm:$0xff] %vm532, %v1114
      %1148 = vst.msk [vmem:[%s1140 + $0x51] sm:$0xff] %vm532, %v1115
      %1149 = vst.msk [vmem:[%s1140 + $0x61] sm:$0xff] %vm532, %v1116
      %1150 = vst.msk [vmem:[%s1140 + $0x69] sm:$0xff] %vm532, %v1117
      %1151 = vst.msk [vmem:[%s1140 + $0x79] sm:$0xff] %vm532, %v1118
      %1152 = vst.msk [vmem:[%s1140 + $0x81] sm:$0xff] %vm532, %v1119
      %1153 = vst.msk [vmem:[%s1140 + $0x91] sm:$0xff] %vm532, %v1120
      %1154 = vst.msk [vmem:[%s1140 + $0x99] sm:$0xff] %vm532, %v1121
      %1155 = vst.msk [vmem:[%s1140 + $0xa9] sm:$0xff] %vm532, %v1122
      %1156 = vst.msk [vmem:[%s1140 + $0xb1] sm:$0xff] %vm532, %v1123
      %1157 = vst.msk [vmem:[%s1140 + $0xc1] sm:$0xff] %vm532, %v1124
      %1158 = vst.msk [vmem:[%s1140 + $0xc9] sm:$0xff] %vm532, %v1125
      %1159 = vst.msk [vmem:[%s1140 + $0xd9] sm:$0xff] %vm532, %v1126
      %1160 = vst.msk [vmem:[%s1140 + $0xe1] sm:$0xff] %vm532, %v1127
      %1161 = vst.msk [vmem:[%s1140 + $0xf1] sm:$0xff] %vm532, %v1128
      %1162 = vst.msk [vmem:[%s1140 + $0xf9] sm:$0xff] %vm532, %v1129
      %1163 = vst.msk [vmem:[%s1140 + $0x109] sm:$0xff] %vm532, %v1130
      %1164 = vst.msk [vmem:[%s1140 + $0x111] sm:$0xff] %vm532, %v1131
      %1165 = vst.msk [vmem:[%s1140 + $0x121] sm:$0xff] %vm532, %v1132
      %1166 = vst.msk [vmem:[%s1140 + $0x129] sm:$0xff] %vm532, %v1133
      %1167 = vst.msk [vmem:[%s1140 + $0x139] sm:$0xff] %vm532, %v1134
      %1168 = vst.msk [vmem:[%s1140 + $0x141] sm:$0xff] %vm532, %v1135
      %1169 = vst.msk [vmem:[%s1140 + $0x151] sm:$0xff] %vm532, %v1136
      %1170 = vst.msk [vmem:[%s1140 + $0x159] sm:$0xff] %vm532, %v1137
      %1171 = vst.msk [vmem:[%s1140 + $0x169] sm:$0xff] %vm532, %v1138
      %1172 = vst.msk [vmem:[%s1140 + $0x171] sm:$0xff] %vm532, %v1139
      %v1173 = vld [vmem:[#allocation2] sm:$0xff]
      %v1174 = vld [vmem:[#allocation2 + $0x8] sm:$0xff]
      %v1175 = vld [vmem:[#allocation2 + $0x10] sm:$0x3]
      %v1176 = vld [vmem:[#allocation2 + $0x18] sm:$0xff]
      %v1177 = vld [vmem:[#allocation2 + $0x20] sm:$0xff]
      %v1178 = vld [vmem:[#allocation2 + $0x28] sm:$0x3]
      %v1179 = vld [vmem:[#allocation2 + $0x30] sm:$0xff]
      %v1180 = vld [vmem:[#allocation2 + $0x38] sm:$0xff]
      %v1181 = vld [vmem:[#allocation2 + $0x40] sm:$0x3]
      %v1182 = vld [vmem:[#allocation2 + $0x48] sm:$0xff]
      %v1183 = vld [vmem:[#allocation2 + $0x50] sm:$0xff]
      %v1184 = vld [vmem:[#allocation2 + $0x58] sm:$0x3]
      %v1185 = vld [vmem:[#allocation2 + $0x60] sm:$0xff]
      %v1186 = vld [vmem:[#allocation2 + $0x68] sm:$0xff]
      %v1187 = vld [vmem:[#allocation2 + $0x70] sm:$0x3]
      %v1188 = vld [vmem:[#allocation2 + $0x78] sm:$0xff]
      %v1189 = vld [vmem:[#allocation2 + $0x80] sm:$0xff]
      %v1190 = vld [vmem:[#allocation2 + $0x88] sm:$0x3]
      %v1191 = vld [vmem:[#allocation2 + $0x90] sm:$0xff]
      %v1192 = vld [vmem:[#allocation2 + $0x98] sm:$0xff]
      %v1193 = vld [vmem:[#allocation2 + $0xa0] sm:$0x3]
      %v1194 = vld [vmem:[#allocation2 + $0xa8] sm:$0xff]
      %v1195 = vld [vmem:[#allocation2 + $0xb0] sm:$0xff]
      %v1196 = vld [vmem:[#allocation2 + $0xb8] sm:$0x3]
      %v1197 = vld [vmem:[#allocation2 + $0xc0] sm:$0xff]
      %v1198 = vld [vmem:[#allocation2 + $0xc8] sm:$0xff]
      %v1199 = vld [vmem:[#allocation2 + $0xd0] sm:$0x3]
      %v1200 = vld [vmem:[#allocation2 + $0xd8] sm:$0xff]
      %v1201 = vld [vmem:[#allocation2 + $0xe0] sm:$0xff]
      %v1202 = vld [vmem:[#allocation2 + $0xe8] sm:$0x3]
      %v1203 = vld [vmem:[#allocation2 + $0xf0] sm:$0xff]
      %v1204 = vld [vmem:[#allocation2 + $0xf8] sm:$0xff]
      %v1205 = vld [vmem:[#allocation2 + $0x100] sm:$0x3]
      %v1206 = vld [vmem:[#allocation2 + $0x108] sm:$0xff]
      %v1207 = vld [vmem:[#allocation2 + $0x110] sm:$0xff]
      %v1208 = vld [vmem:[#allocation2 + $0x118] sm:$0x3]
      %v1209 = vld [vmem:[#allocation2 + $0x120] sm:$0xff]
      %v1210 = vld [vmem:[#allocation2 + $0x128] sm:$0xff]
      %v1211 = vld [vmem:[#allocation2 + $0x130] sm:$0x3]
      %v1212 = vld [vmem:[#allocation2 + $0x138] sm:$0xff]
      %v1213 = vld [vmem:[#allocation2 + $0x140] sm:$0xff]
      %v1214 = vld [vmem:[#allocation2 + $0x148] sm:$0x3]
      %v1215 = vld [vmem:[#allocation2 + $0x150] sm:$0xff]
      %v1216 = vld [vmem:[#allocation2 + $0x158] sm:$0xff]
      %v1217 = vld [vmem:[#allocation2 + $0x160] sm:$0x3]
      %v1218 = vld [vmem:[#allocation2 + $0x168] sm:$0xff]
      %v1219 = vld [vmem:[#allocation2 + $0x170] sm:$0xff]
      %v1220 = vld [vmem:[#allocation2 + $0x178] sm:$0x3]
      %v1221 = vld [vmem:[#allocation2 + $0x180] sm:$0xff]
      %v1222 = vld [vmem:[#allocation2 + $0x188] sm:$0xff]
      %v1223 = vld [vmem:[#allocation2 + $0x190] sm:$0x3]
      %v1224 = vld [vmem:[#allocation2 + $0x198] sm:$0xff]
      %v1225 = vld [vmem:[#allocation2 + $0x1a0] sm:$0xff]
      %v1226 = vld [vmem:[#allocation2 + $0x1a8] sm:$0x3]
      %vm1275 = vcmask 1046528
      %v1276 = vrot.slane %v1173, 1
      %v1277 = vrot.slane %v1174, 1
      %v1278 = vsel %vm1275, %v1276, %v1277
      %v1279 = vrot.slane %v1175, 1
      %v1280 = vsel %vm1275, %v1277, %v1279
      %v1281 = vrot.slane %v1176, 1
      %v1282 = vrot.slane %v1177, 1
      %v1283 = vsel %vm1275, %v1281, %v1282
      %v1284 = vrot.slane %v1178, 1
      %v1285 = vsel %vm1275, %v1282, %v1284
      %v1286 = vrot.slane %v1179, 1
      %v1287 = vrot.slane %v1180, 1
      %v1288 = vsel %vm1275, %v1286, %v1287
      %v1289 = vrot.slane %v1181, 1
      %v1290 = vsel %vm1275, %v1287, %v1289
      %v1291 = vrot.slane %v1182, 1
      %v1292 = vrot.slane %v1183, 1
      %v1293 = vsel %vm1275, %v1291, %v1292
      %v1294 = vrot.slane %v1184, 1
      %v1295 = vsel %vm1275, %v1292, %v1294
      %v1296 = vrot.slane %v1185, 1
      %v1297 = vrot.slane %v1186, 1
      %v1298 = vsel %vm1275, %v1296, %v1297
      %v1299 = vrot.slane %v1187, 1
      %v1300 = vsel %vm1275, %v1297, %v1299
      %v1301 = vrot.slane %v1188, 1
      %v1302 = vrot.slane %v1189, 1
      %v1303 = vsel %vm1275, %v1301, %v1302
      %v1304 = vrot.slane %v1190, 1
      %v1305 = vsel %vm1275, %v1302, %v1304
      %v1306 = vrot.slane %v1191, 1
      %v1307 = vrot.slane %v1192, 1
      %v1308 = vsel %vm1275, %v1306, %v1307
      %v1309 = vrot.slane %v1193, 1
      %v1310 = vsel %vm1275, %v1307, %v1309
      %v1311 = vrot.slane %v1194, 1
      %v1312 = vrot.slane %v1195, 1
      %v1313 = vsel %vm1275, %v1311, %v1312
      %v1314 = vrot.slane %v1196, 1
      %v1315 = vsel %vm1275, %v1312, %v1314
      %v1316 = vrot.slane %v1197, 1
      %v1317 = vrot.slane %v1198, 1
      %v1318 = vsel %vm1275, %v1316, %v1317
      %v1319 = vrot.slane %v1199, 1
      %v1320 = vsel %vm1275, %v1317, %v1319
      %v1321 = vrot.slane %v1200, 1
      %v1322 = vrot.slane %v1201, 1
      %v1323 = vsel %vm1275, %v1321, %v1322
      %v1324 = vrot.slane %v1202, 1
      %v1325 = vsel %vm1275, %v1322, %v1324
      %v1326 = vrot.slane %v1203, 1
      %v1327 = vrot.slane %v1204, 1
      %v1328 = vsel %vm1275, %v1326, %v1327
      %v1329 = vrot.slane %v1205, 1
      %v1330 = vsel %vm1275, %v1327, %v1329
      %v1331 = vrot.slane %v1206, 1
      %v1332 = vrot.slane %v1207, 1
      %v1333 = vsel %vm1275, %v1331, %v1332
      %v1334 = vrot.slane %v1208, 1
      %v1335 = vsel %vm1275, %v1332, %v1334
      %v1336 = vrot.slane %v1209, 1
      %v1337 = vrot.slane %v1210, 1
      %v1338 = vsel %vm1275, %v1336, %v1337
      %v1339 = vrot.slane %v1211, 1
      %v1340 = vsel %vm1275, %v1337, %v1339
      %v1341 = vrot.slane %v1212, 1
      %v1342 = vrot.slane %v1213, 1
      %v1343 = vsel %vm1275, %v1341, %v1342
      %v1344 = vrot.slane %v1214, 1
      %v1345 = vsel %vm1275, %v1342, %v1344
      %v1346 = vrot.slane %v1215, 1
      %v1347 = vrot.slane %v1216, 1
      %v1348 = vsel %vm1275, %v1346, %v1347
      %v1349 = vrot.slane %v1217, 1
      %v1350 = vsel %vm1275, %v1347, %v1349
      %v1351 = vrot.slane %v1218, 1
      %v1352 = vrot.slane %v1219, 1
      %v1353 = vsel %vm1275, %v1351, %v1352
      %v1354 = vrot.slane %v1220, 1
      %v1355 = vsel %vm1275, %v1352, %v1354
      %1356 = vrot.lane.b32.xlu0 %v1278, 4
      %v1357 = vpop.permute.xlu0 %1356
      %1358 = vrot.lane.b32.xlu0 %v1280, 4
      %v1359 = vpop.permute.xlu0 %1358
      %1360 = vrot.lane.b32.xlu0 %v1283, 4
      %v1361 = vpop.permute.xlu0 %1360
      %1362 = vrot.lane.b32.xlu0 %v1285, 4
      %v1363 = vpop.permute.xlu0 %1362
      %1364 = vrot.lane.b32.xlu0 %v1288, 4
      %v1365 = vpop.permute.xlu0 %1364
      %1366 = vrot.lane.b32.xlu0 %v1290, 4
      %v1367 = vpop.permute.xlu0 %1366
      %1368 = vrot.lane.b32.xlu0 %v1293, 4
      %v1369 = vpop.permute.xlu0 %1368
      %1370 = vrot.lane.b32.xlu0 %v1295, 4
      %v1371 = vpop.permute.xlu0 %1370
      %1372 = vrot.lane.b32.xlu0 %v1298, 4
      %v1373 = vpop.permute.xlu0 %1372
      %1374 = vrot.lane.b32.xlu0 %v1300, 4
      %v1375 = vpop.permute.xlu0 %1374
      %1376 = vrot.lane.b32.xlu0 %v1303, 4
      %v1377 = vpop.permute.xlu0 %1376
      %1378 = vrot.lane.b32.xlu0 %v1305, 4
      %v1379 = vpop.permute.xlu0 %1378
      %1380 = vrot.lane.b32.xlu0 %v1308, 4
      %v1381 = vpop.permute.xlu0 %1380
      %1382 = vrot.lane.b32.xlu0 %v1310, 4
      %v1383 = vpop.permute.xlu0 %1382
      %1384 = vrot.lane.b32.xlu0 %v1313, 4
      %v1385 = vpop.permute.xlu0 %1384
      %1386 = vrot.lane.b32.xlu0 %v1315, 4
      %v1387 = vpop.permute.xlu0 %1386
      %1388 = vrot.lane.b32.xlu0 %v1318, 4
      %v1389 = vpop.permute.xlu0 %1388
      %1390 = vrot.lane.b32.xlu0 %v1320, 4
      %v1391 = vpop.permute.xlu0 %1390
      %1392 = vrot.lane.b32.xlu0 %v1323, 4
      %v1393 = vpop.permute.xlu0 %1392
      %1394 = vrot.lane.b32.xlu0 %v1325, 4
      %v1395 = vpop.permute.xlu0 %1394
      %1396 = vrot.lane.b32.xlu0 %v1328, 4
      %v1397 = vpop.permute.xlu0 %1396
      %1398 = vrot.lane.b32.xlu0 %v1330, 4
      %v1399 = vpop.permute.xlu0 %1398
      %1400 = vrot.lane.b32.xlu0 %v1333, 4
      %v1401 = vpop.permute.xlu0 %1400
      %1402 = vrot.lane.b32.xlu0 %v1335, 4
      %v1403 = vpop.permute.xlu0 %1402
      %1404 = vrot.lane.b32.xlu0 %v1338, 4
      %v1405 = vpop.permute.xlu0 %1404
      %1406 = vrot.lane.b32.xlu0 %v1340, 4
      %v1407 = vpop.permute.xlu0 %1406
      %1408 = vrot.lane.b32.xlu0 %v1343, 4
      %v1409 = vpop.permute.xlu0 %1408
      %1410 = vrot.lane.b32.xlu0 %v1345, 4
      %v1411 = vpop.permute.xlu0 %1410
      %1412 = vrot.lane.b32.xlu0 %v1348, 4
      %v1413 = vpop.permute.xlu0 %1412
      %1414 = vrot.lane.b32.xlu0 %v1350, 4
      %v1415 = vpop.permute.xlu0 %1414
      %1416 = vrot.lane.b32.xlu0 %v1353, 4
      %v1417 = vpop.permute.xlu0 %1416
      %1418 = vrot.lane.b32.xlu0 %v1355, 4
      %v1419 = vpop.permute.xlu0 %1418
      %vm1452 = vcmask 1045504
      %v1453 = vrot.slane %v1173, 2
      %v1454 = vrot.slane %v1174, 2
      %v1455 = vsel %vm1452, %v1453, %v1454
      %v1456 = vrot.slane %v1175, 2
      %v1457 = vsel %vm1452, %v1454, %v1456
      %v1458 = vrot.slane %v1176, 2
      %v1459 = vrot.slane %v1177, 2
      %v1460 = vsel %vm1452, %v1458, %v1459
      %v1461 = vrot.slane %v1178, 2
      %v1462 = vsel %vm1452, %v1459, %v1461
      %v1463 = vrot.slane %v1179, 2
      %v1464 = vrot.slane %v1180, 2
      %v1465 = vsel %vm1452, %v1463, %v1464
      %v1466 = vrot.slane %v1181, 2
      %v1467 = vsel %vm1452, %v1464, %v1466
      %v1468 = vrot.slane %v1182, 2
      %v1469 = vrot.slane %v1183, 2
      %v1470 = vsel %vm1452, %v1468, %v1469
      %v1471 = vrot.slane %v1184, 2
      %v1472 = vsel %vm1452, %v1469, %v1471
      %v1473 = vrot.slane %v1185, 2
      %v1474 = vrot.slane %v1186, 2
      %v1475 = vsel %vm1452, %v1473, %v1474
      %v1476 = vrot.slane %v1187, 2
      %v1477 = vsel %vm1452, %v1474, %v1476
      %v1478 = vrot.slane %v1188, 2
      %v1479 = vrot.slane %v1189, 2
      %v1480 = vsel %vm1452, %v1478, %v1479
      %v1481 = vrot.slane %v1190, 2
      %v1482 = vsel %vm1452, %v1479, %v1481
      %v1483 = vrot.slane %v1191, 2
      %v1484 = vrot.slane %v1192, 2
      %v1485 = vsel %vm1452, %v1483, %v1484
      %v1486 = vrot.slane %v1193, 2
      %v1487 = vsel %vm1452, %v1484, %v1486
      %v1488 = vrot.slane %v1194, 2
      %v1489 = vrot.slane %v1195, 2
      %v1490 = vsel %vm1452, %v1488, %v1489
      %v1491 = vrot.slane %v1196, 2
      %v1492 = vsel %vm1452, %v1489, %v1491
      %v1493 = vrot.slane %v1197, 2
      %v1494 = vrot.slane %v1198, 2
      %v1495 = vsel %vm1452, %v1493, %v1494
      %v1496 = vrot.slane %v1199, 2
      %v1497 = vsel %vm1452, %v1494, %v1496
      %v1498 = vrot.slane %v1200, 2
      %v1499 = vrot.slane %v1201, 2
      %v1500 = vsel %vm1452, %v1498, %v1499
      %v1501 = vrot.slane %v1202, 2
      %v1502 = vsel %vm1452, %v1499, %v1501
      %v1503 = vrot.slane %v1203, 2
      %v1504 = vrot.slane %v1204, 2
      %v1505 = vsel %vm1452, %v1503, %v1504
      %v1506 = vrot.slane %v1205, 2
      %v1507 = vsel %vm1452, %v1504, %v1506
      %v1508 = vrot.slane %v1206, 2
      %v1509 = vrot.slane %v1207, 2
      %v1510 = vsel %vm1452, %v1508, %v1509
      %v1511 = vrot.slane %v1208, 2
      %v1512 = vsel %vm1452, %v1509, %v1511
      %v1513 = vrot.slane %v1209, 2
      %v1514 = vrot.slane %v1210, 2
      %v1515 = vsel %vm1452, %v1513, %v1514
      %v1516 = vrot.slane %v1211, 2
      %v1517 = vsel %vm1452, %v1514, %v1516
      %v1518 = vrot.slane %v1212, 2
      %v1519 = vrot.slane %v1213, 2
      %v1520 = vsel %vm1452, %v1518, %v1519
      %v1521 = vrot.slane %v1214, 2
      %v1522 = vsel %vm1452, %v1519, %v1521
      %v1523 = vrot.slane %v1215, 2
      %v1524 = vrot.slane %v1216, 2
      %v1525 = vsel %vm1452, %v1523, %v1524
      %v1526 = vrot.slane %v1217, 2
      %v1527 = vsel %vm1452, %v1524, %v1526
      %v1528 = vrot.slane %v1218, 2
      %v1529 = vrot.slane %v1219, 2
      %v1530 = vsel %vm1452, %v1528, %v1529
      %v1531 = vrot.slane %v1220, 2
      %v1532 = vsel %vm1452, %v1529, %v1531
      %1533 = vrot.lane.b32.xlu0 %v1455, 8
      %v1534 = vpop.permute.xlu0 %1533
      %1535 = vrot.lane.b32.xlu0 %v1457, 8
      %v1536 = vpop.permute.xlu0 %1535
      %1537 = vrot.lane.b32.xlu0 %v1460, 8
      %v1538 = vpop.permute.xlu0 %1537
      %1539 = vrot.lane.b32.xlu0 %v1462, 8
      %v1540 = vpop.permute.xlu0 %1539
      %1541 = vrot.lane.b32.xlu0 %v1465, 8
      %v1542 = vpop.permute.xlu0 %1541
      %1543 = vrot.lane.b32.xlu0 %v1467, 8
      %v1544 = vpop.permute.xlu0 %1543
      %1545 = vrot.lane.b32.xlu0 %v1470, 8
      %v1546 = vpop.permute.xlu0 %1545
      %1547 = vrot.lane.b32.xlu0 %v1472, 8
      %v1548 = vpop.permute.xlu0 %1547
      %1549 = vrot.lane.b32.xlu0 %v1475, 8
      %v1550 = vpop.permute.xlu0 %1549
      %1551 = vrot.lane.b32.xlu0 %v1477, 8
      %v1552 = vpop.permute.xlu0 %1551
      %1553 = vrot.lane.b32.xlu0 %v1480, 8
      %v1554 = vpop.permute.xlu0 %1553
      %1555 = vrot.lane.b32.xlu0 %v1482, 8
      %v1556 = vpop.permute.xlu0 %1555
      %1557 = vrot.lane.b32.xlu0 %v1485, 8
      %v1558 = vpop.permute.xlu0 %1557
      %1559 = vrot.lane.b32.xlu0 %v1487, 8
      %v1560 = vpop.permute.xlu0 %1559
      %1561 = vrot.lane.b32.xlu0 %v1490, 8
      %v1562 = vpop.permute.xlu0 %1561
      %1563 = vrot.lane.b32.xlu0 %v1492, 8
      %v1564 = vpop.permute.xlu0 %1563
      %1565 = vrot.lane.b32.xlu0 %v1495, 8
      %v1566 = vpop.permute.xlu0 %1565
      %1567 = vrot.lane.b32.xlu0 %v1497, 8
      %v1568 = vpop.permute.xlu0 %1567
      %1569 = vrot.lane.b32.xlu0 %v1500, 8
      %v1570 = vpop.permute.xlu0 %1569
      %1571 = vrot.lane.b32.xlu0 %v1502, 8
      %v1572 = vpop.permute.xlu0 %1571
      %1573 = vrot.lane.b32.xlu0 %v1505, 8
      %v1574 = vpop.permute.xlu0 %1573
      %1575 = vrot.lane.b32.xlu0 %v1507, 8
      %v1576 = vpop.permute.xlu0 %1575
      %1577 = vrot.lane.b32.xlu0 %v1510, 8
      %v1578 = vpop.permute.xlu0 %1577
      %1579 = vrot.lane.b32.xlu0 %v1512, 8
      %v1580 = vpop.permute.xlu0 %1579
      %1581 = vrot.lane.b32.xlu0 %v1515, 8
      %v1582 = vpop.permute.xlu0 %1581
      %1583 = vrot.lane.b32.xlu0 %v1517, 8
      %v1584 = vpop.permute.xlu0 %1583
      %1585 = vrot.lane.b32.xlu0 %v1520, 8
      %v1586 = vpop.permute.xlu0 %1585
      %1587 = vrot.lane.b32.xlu0 %v1522, 8
      %v1588 = vpop.permute.xlu0 %1587
      %1589 = vrot.lane.b32.xlu0 %v1525, 8
      %v1590 = vpop.permute.xlu0 %1589
      %1591 = vrot.lane.b32.xlu0 %v1527, 8
      %v1592 = vpop.permute.xlu0 %1591
      %1593 = vrot.lane.b32.xlu0 %v1530, 8
      %v1594 = vpop.permute.xlu0 %1593
      %1595 = vrot.lane.b32.xlu0 %v1532, 8
      %v1596 = vpop.permute.xlu0 %1595
      %1631 = vrot.lane.b32.xlu0 %v1176, 12
      %v1632 = vpop.permute.xlu0 %1631
      %1633 = vrot.lane.b32.xlu0 %v1177, 12
      %v1634 = vpop.permute.xlu0 %1633
      %1635 = vrot.lane.b32.xlu0 %v1179, 12
      %v1636 = vpop.permute.xlu0 %1635
      %1637 = vrot.lane.b32.xlu0 %v1180, 12
      %v1638 = vpop.permute.xlu0 %1637
      %1639 = vrot.lane.b32.xlu0 %v1182, 12
      %v1640 = vpop.permute.xlu0 %1639
      %1641 = vrot.lane.b32.xlu0 %v1183, 12
      %v1642 = vpop.permute.xlu0 %1641
      %1643 = vrot.lane.b32.xlu0 %v1185, 12
      %v1644 = vpop.permute.xlu0 %1643
      %1645 = vrot.lane.b32.xlu0 %v1186, 12
      %v1646 = vpop.permute.xlu0 %1645
      %1647 = vrot.lane.b32.xlu0 %v1188, 12
      %v1648 = vpop.permute.xlu0 %1647
      %1649 = vrot.lane.b32.xlu0 %v1189, 12
      %v1650 = vpop.permute.xlu0 %1649
      %1651 = vrot.lane.b32.xlu0 %v1191, 12
      %v1652 = vpop.permute.xlu0 %1651
      %1653 = vrot.lane.b32.xlu0 %v1192, 12
      %v1654 = vpop.permute.xlu0 %1653
      %1655 = vrot.lane.b32.xlu0 %v1194, 12
      %v1656 = vpop.permute.xlu0 %1655
      %1657 = vrot.lane.b32.xlu0 %v1195, 12
      %v1658 = vpop.permute.xlu0 %1657
      %1659 = vrot.lane.b32.xlu0 %v1197, 12
      %v1660 = vpop.permute.xlu0 %1659
      %1661 = vrot.lane.b32.xlu0 %v1198, 12
      %v1662 = vpop.permute.xlu0 %1661
      %1663 = vrot.lane.b32.xlu0 %v1200, 12
      %v1664 = vpop.permute.xlu0 %1663
      %1665 = vrot.lane.b32.xlu0 %v1201, 12
      %v1666 = vpop.permute.xlu0 %1665
      %1667 = vrot.lane.b32.xlu0 %v1203, 12
      %v1668 = vpop.permute.xlu0 %1667
      %1669 = vrot.lane.b32.xlu0 %v1204, 12
      %v1670 = vpop.permute.xlu0 %1669
      %1671 = vrot.lane.b32.xlu0 %v1206, 12
      %v1672 = vpop.permute.xlu0 %1671
      %1673 = vrot.lane.b32.xlu0 %v1207, 12
      %v1674 = vpop.permute.xlu0 %1673
      %1675 = vrot.lane.b32.xlu0 %v1209, 12
      %v1676 = vpop.permute.xlu0 %1675
      %1677 = vrot.lane.b32.xlu0 %v1210, 12
      %v1678 = vpop.permute.xlu0 %1677
      %1679 = vrot.lane.b32.xlu0 %v1212, 12
      %v1680 = vpop.permute.xlu0 %1679
      %1681 = vrot.lane.b32.xlu0 %v1213, 12
      %v1682 = vpop.permute.xlu0 %1681
      %1683 = vrot.lane.b32.xlu0 %v1215, 12
      %v1684 = vpop.permute.xlu0 %1683
      %1685 = vrot.lane.b32.xlu0 %v1216, 12
      %v1686 = vpop.permute.xlu0 %1685
      %1687 = vrot.lane.b32.xlu0 %v1218, 12
      %v1688 = vpop.permute.xlu0 %1687
      %1689 = vrot.lane.b32.xlu0 %v1219, 12
      %v1690 = vpop.permute.xlu0 %1689
      %1691 = vrot.lane.b32.xlu0 %v1221, 12
      %v1692 = vpop.permute.xlu0 %1691
      %1693 = vrot.lane.b32.xlu0 %v1222, 12
      %v1694 = vpop.permute.xlu0 %1693
      %v1728 = vrot.slane %v1221, 1
      %v1729 = vrot.slane %v1222, 1
      %v1730 = vsel %vm1275, %v1728, %v1729
      %v1731 = vrot.slane %v1223, 1
      %v1732 = vsel %vm1275, %v1729, %v1731
      %1733 = vrot.lane.b32.xlu0 %v1283, 16
      %v1734 = vpop.permute.xlu0 %1733
      %1735 = vrot.lane.b32.xlu0 %v1285, 16
      %v1736 = vpop.permute.xlu0 %1735
      %1737 = vrot.lane.b32.xlu0 %v1288, 16
      %v1738 = vpop.permute.xlu0 %1737
      %1739 = vrot.lane.b32.xlu0 %v1290, 16
      %v1740 = vpop.permute.xlu0 %1739
      %1741 = vrot.lane.b32.xlu0 %v1293, 16
      %v1742 = vpop.permute.xlu0 %1741
      %1743 = vrot.lane.b32.xlu0 %v1295, 16
      %v1744 = vpop.permute.xlu0 %1743
      %1745 = vrot.lane.b32.xlu0 %v1298, 16
      %v1746 = vpop.permute.xlu0 %1745
      %1747 = vrot.lane.b32.xlu0 %v1300, 16
      %v1748 = vpop.permute.xlu0 %1747
      %1749 = vrot.lane.b32.xlu0 %v1303, 16
      %v1750 = vpop.permute.xlu0 %1749
      %1751 = vrot.lane.b32.xlu0 %v1305, 16
      %v1752 = vpop.permute.xlu0 %1751
      %1753 = vrot.lane.b32.xlu0 %v1308, 16
      %v1754 = vpop.permute.xlu0 %1753
      %1755 = vrot.lane.b32.xlu0 %v1310, 16
      %v1756 = vpop.permute.xlu0 %1755
      %1757 = vrot.lane.b32.xlu0 %v1313, 16
      %v1758 = vpop.permute.xlu0 %1757
      %1759 = vrot.lane.b32.xlu0 %v1315, 16
      %v1760 = vpop.permute.xlu0 %1759
      %1761 = vrot.lane.b32.xlu0 %v1318, 16
      %v1762 = vpop.permute.xlu0 %1761
      %1763 = vrot.lane.b32.xlu0 %v1320, 16
      %v1764 = vpop.permute.xlu0 %1763
      %1765 = vrot.lane.b32.xlu0 %v1323, 16
      %v1766 = vpop.permute.xlu0 %1765
      %1767 = vrot.lane.b32.xlu0 %v1325, 16
      %v1768 = vpop.permute.xlu0 %1767
      %1769 = vrot.lane.b32.xlu0 %v1328, 16
      %v1770 = vpop.permute.xlu0 %1769
      %1771 = vrot.lane.b32.xlu0 %v1330, 16
      %v1772 = vpop.permute.xlu0 %1771
      %1773 = vrot.lane.b32.xlu0 %v1333, 16
      %v1774 = vpop.permute.xlu0 %1773
      %1775 = vrot.lane.b32.xlu0 %v1335, 16
      %v1776 = vpop.permute.xlu0 %1775
      %1777 = vrot.lane.b32.xlu0 %v1338, 16
      %v1778 = vpop.permute.xlu0 %1777
      %1779 = vrot.lane.b32.xlu0 %v1340, 16
      %v1780 = vpop.permute.xlu0 %1779
      %1781 = vrot.lane.b32.xlu0 %v1343, 16
      %v1782 = vpop.permute.xlu0 %1781
      %1783 = vrot.lane.b32.xlu0 %v1345, 16
      %v1784 = vpop.permute.xlu0 %1783
      %1785 = vrot.lane.b32.xlu0 %v1348, 16
      %v1786 = vpop.permute.xlu0 %1785
      %1787 = vrot.lane.b32.xlu0 %v1350, 16
      %v1788 = vpop.permute.xlu0 %1787
      %1789 = vrot.lane.b32.xlu0 %v1353, 16
      %v1790 = vpop.permute.xlu0 %1789
      %1791 = vrot.lane.b32.xlu0 %v1355, 16
      %v1792 = vpop.permute.xlu0 %1791
      %1793 = vrot.lane.b32.xlu0 %v1730, 16
      %v1794 = vpop.permute.xlu0 %1793
      %1795 = vrot.lane.b32.xlu0 %v1732, 16
      %v1796 = vpop.permute.xlu0 %1795
      %v1829 = vrot.slane %v1221, 2
      %v1830 = vrot.slane %v1222, 2
      %v1831 = vsel %vm1452, %v1829, %v1830
      %v1832 = vrot.slane %v1223, 2
      %v1833 = vsel %vm1452, %v1830, %v1832
      %1834 = vrot.lane.b32.xlu0 %v1460, 20
      %v1835 = vpop.permute.xlu0 %1834
      %1836 = vrot.lane.b32.xlu0 %v1462, 20
      %v1837 = vpop.permute.xlu0 %1836
      %1838 = vrot.lane.b32.xlu0 %v1465, 20
      %v1839 = vpop.permute.xlu0 %1838
      %1840 = vrot.lane.b32.xlu0 %v1467, 20
      %v1841 = vpop.permute.xlu0 %1840
      %1842 = vrot.lane.b32.xlu0 %v1470, 20
      %v1843 = vpop.permute.xlu0 %1842
      %1844 = vrot.lane.b32.xlu0 %v1472, 20
      %v1845 = vpop.permute.xlu0 %1844
      %1846 = vrot.lane.b32.xlu0 %v1475, 20
      %v1847 = vpop.permute.xlu0 %1846
      %1848 = vrot.lane.b32.xlu0 %v1477, 20
      %v1849 = vpop.permute.xlu0 %1848
      %1850 = vrot.lane.b32.xlu0 %v1480, 20
      %v1851 = vpop.permute.xlu0 %1850
      %1852 = vrot.lane.b32.xlu0 %v1482, 20
      %v1853 = vpop.permute.xlu0 %1852
      %1854 = vrot.lane.b32.xlu0 %v1485, 20
      %v1855 = vpop.permute.xlu0 %1854
      %1856 = vrot.lane.b32.xlu0 %v1487, 20
      %v1857 = vpop.permute.xlu0 %1856
      %1858 = vrot.lane.b32.xlu0 %v1490, 20
      %v1859 = vpop.permute.xlu0 %1858
      %1860 = vrot.lane.b32.xlu0 %v1492, 20
      %v1861 = vpop.permute.xlu0 %1860
      %1862 = vrot.lane.b32.xlu0 %v1495, 20
      %v1863 = vpop.permute.xlu0 %1862
      %1864 = vrot.lane.b32.xlu0 %v1497, 20
      %v1865 = vpop.permute.xlu0 %1864
      %1866 = vrot.lane.b32.xlu0 %v1500, 20
      %v1867 = vpop.permute.xlu0 %1866
      %1868 = vrot.lane.b32.xlu0 %v1502, 20
      %v1869 = vpop.permute.xlu0 %1868
      %1870 = vrot.lane.b32.xlu0 %v1505, 20
      %v1871 = vpop.permute.xlu0 %1870
      %1872 = vrot.lane.b32.xlu0 %v1507, 20
      %v1873 = vpop.permute.xlu0 %1872
      %1874 = vrot.lane.b32.xlu0 %v1510, 20
      %v1875 = vpop.permute.xlu0 %1874
      %1876 = vrot.lane.b32.xlu0 %v1512, 20
      %v1877 = vpop.permute.xlu0 %1876
      %1878 = vrot.lane.b32.xlu0 %v1515, 20
      %v1879 = vpop.permute.xlu0 %1878
      %1880 = vrot.lane.b32.xlu0 %v1517, 20
      %v1881 = vpop.permute.xlu0 %1880
      %1882 = vrot.lane.b32.xlu0 %v1520, 20
      %v1883 = vpop.permute.xlu0 %1882
      %1884 = vrot.lane.b32.xlu0 %v1522, 20
      %v1885 = vpop.permute.xlu0 %1884
      %1886 = vrot.lane.b32.xlu0 %v1525, 20
      %v1887 = vpop.permute.xlu0 %1886
      %1888 = vrot.lane.b32.xlu0 %v1527, 20
      %v1889 = vpop.permute.xlu0 %1888
      %1890 = vrot.lane.b32.xlu0 %v1530, 20
      %v1891 = vpop.permute.xlu0 %1890
      %1892 = vrot.lane.b32.xlu0 %v1532, 20
      %v1893 = vpop.permute.xlu0 %1892
      %1894 = vrot.lane.b32.xlu0 %v1831, 20
      %v1895 = vpop.permute.xlu0 %1894
      %1896 = vrot.lane.b32.xlu0 %v1833, 20
      %v1897 = vpop.permute.xlu0 %1896
      %1932 = vrot.lane.b32.xlu0 %v1179, 24
      %v1933 = vpop.permute.xlu0 %1932
      %1934 = vrot.lane.b32.xlu0 %v1180, 24
      %v1935 = vpop.permute.xlu0 %1934
      %1936 = vrot.lane.b32.xlu0 %v1182, 24
      %v1937 = vpop.permute.xlu0 %1936
      %1938 = vrot.lane.b32.xlu0 %v1183, 24
      %v1939 = vpop.permute.xlu0 %1938
      %1940 = vrot.lane.b32.xlu0 %v1185, 24
      %v1941 = vpop.permute.xlu0 %1940
      %1942 = vrot.lane.b32.xlu0 %v1186, 24
      %v1943 = vpop.permute.xlu0 %1942
      %1944 = vrot.lane.b32.xlu0 %v1188, 24
      %v1945 = vpop.permute.xlu0 %1944
      %1946 = vrot.lane.b32.xlu0 %v1189, 24
      %v1947 = vpop.permute.xlu0 %1946
      %1948 = vrot.lane.b32.xlu0 %v1191, 24
      %v1949 = vpop.permute.xlu0 %1948
      %1950 = vrot.lane.b32.xlu0 %v1192, 24
      %v1951 = vpop.permute.xlu0 %1950
      %1952 = vrot.lane.b32.xlu0 %v1194, 24
      %v1953 = vpop.permute.xlu0 %1952
      %1954 = vrot.lane.b32.xlu0 %v1195, 24
      %v1955 = vpop.permute.xlu0 %1954
      %1956 = vrot.lane.b32.xlu0 %v1197, 24
      %v1957 = vpop.permute.xlu0 %1956
      %1958 = vrot.lane.b32.xlu0 %v1198, 24
      %v1959 = vpop.permute.xlu0 %1958
      %1960 = vrot.lane.b32.xlu0 %v1200, 24
      %v1961 = vpop.permute.xlu0 %1960
      %1962 = vrot.lane.b32.xlu0 %v1201, 24
      %v1963 = vpop.permute.xlu0 %1962
      %1964 = vrot.lane.b32.xlu0 %v1203, 24
      %v1965 = vpop.permute.xlu0 %1964
      %1966 = vrot.lane.b32.xlu0 %v1204, 24
      %v1967 = vpop.permute.xlu0 %1966
      %1968 = vrot.lane.b32.xlu0 %v1206, 24
      %v1969 = vpop.permute.xlu0 %1968
      %1970 = vrot.lane.b32.xlu0 %v1207, 24
      %v1971 = vpop.permute.xlu0 %1970
      %1972 = vrot.lane.b32.xlu0 %v1209, 24
      %v1973 = vpop.permute.xlu0 %1972
      %1974 = vrot.lane.b32.xlu0 %v1210, 24
      %v1975 = vpop.permute.xlu0 %1974
      %1976 = vrot.lane.b32.xlu0 %v1212, 24
      %v1977 = vpop.permute.xlu0 %1976
      %1978 = vrot.lane.b32.xlu0 %v1213, 24
      %v1979 = vpop.permute.xlu0 %1978
      %1980 = vrot.lane.b32.xlu0 %v1215, 24
      %v1981 = vpop.permute.xlu0 %1980
      %1982 = vrot.lane.b32.xlu0 %v1216, 24
      %v1983 = vpop.permute.xlu0 %1982
      %1984 = vrot.lane.b32.xlu0 %v1218, 24
      %v1985 = vpop.permute.xlu0 %1984
      %1986 = vrot.lane.b32.xlu0 %v1219, 24
      %v1987 = vpop.permute.xlu0 %1986
      %1988 = vrot.lane.b32.xlu0 %v1221, 24
      %v1989 = vpop.permute.xlu0 %1988
      %1990 = vrot.lane.b32.xlu0 %v1222, 24
      %v1991 = vpop.permute.xlu0 %1990
      %1992 = vrot.lane.b32.xlu0 %v1224, 24
      %v1993 = vpop.permute.xlu0 %1992
      %1994 = vrot.lane.b32.xlu0 %v1225, 24
      %v1995 = vpop.permute.xlu0 %1994
      %v2029 = vrot.slane %v1224, 1
      %v2030 = vrot.slane %v1225, 1
      %v2031 = vsel %vm1275, %v2029, %v2030
      %v2032 = vrot.slane %v1226, 1
      %v2033 = vsel %vm1275, %v2030, %v2032
      %2034 = vrot.lane.b32.xlu0 %v1288, 28
      %v2035 = vpop.permute.xlu0 %2034
      %2036 = vrot.lane.b32.xlu0 %v1290, 28
      %v2037 = vpop.permute.xlu0 %2036
      %2038 = vrot.lane.b32.xlu0 %v1293, 28
      %v2039 = vpop.permute.xlu0 %2038
      %2040 = vrot.lane.b32.xlu0 %v1295, 28
      %v2041 = vpop.permute.xlu0 %2040
      %2042 = vrot.lane.b32.xlu0 %v1298, 28
      %v2043 = vpop.permute.xlu0 %2042
      %2044 = vrot.lane.b32.xlu0 %v1300, 28
      %v2045 = vpop.permute.xlu0 %2044
      %2046 = vrot.lane.b32.xlu0 %v1303, 28
      %v2047 = vpop.permute.xlu0 %2046
      %2048 = vrot.lane.b32.xlu0 %v1305, 28
      %v2049 = vpop.permute.xlu0 %2048
      %2050 = vrot.lane.b32.xlu0 %v1308, 28
      %v2051 = vpop.permute.xlu0 %2050
      %2052 = vrot.lane.b32.xlu0 %v1310, 28
      %v2053 = vpop.permute.xlu0 %2052
      %2054 = vrot.lane.b32.xlu0 %v1313, 28
      %v2055 = vpop.permute.xlu0 %2054
      %2056 = vrot.lane.b32.xlu0 %v1315, 28
      %v2057 = vpop.permute.xlu0 %2056
      %2058 = vrot.lane.b32.xlu0 %v1318, 28
      %v2059 = vpop.permute.xlu0 %2058
      %2060 = vrot.lane.b32.xlu0 %v1320, 28
      %v2061 = vpop.permute.xlu0 %2060
      %2062 = vrot.lane.b32.xlu0 %v1323, 28
      %v2063 = vpop.permute.xlu0 %2062
      %2064 = vrot.lane.b32.xlu0 %v1325, 28
      %v2065 = vpop.permute.xlu0 %2064
      %2066 = vrot.lane.b32.xlu0 %v1328, 28
      %v2067 = vpop.permute.xlu0 %2066
      %2068 = vrot.lane.b32.xlu0 %v1330, 28
      %v2069 = vpop.permute.xlu0 %2068
      %2070 = vrot.lane.b32.xlu0 %v1333, 28
      %v2071 = vpop.permute.xlu0 %2070
      %2072 = vrot.lane.b32.xlu0 %v1335, 28
      %v2073 = vpop.permute.xlu0 %2072
      %2074 = vrot.lane.b32.xlu0 %v1338, 28
      %v2075 = vpop.permute.xlu0 %2074
      %2076 = vrot.lane.b32.xlu0 %v1340, 28
      %v2077 = vpop.permute.xlu0 %2076
      %2078 = vrot.lane.b32.xlu0 %v1343, 28
      %v2079 = vpop.permute.xlu0 %2078
      %2080 = vrot.lane.b32.xlu0 %v1345, 28
      %v2081 = vpop.permute.xlu0 %2080
      %2082 = vrot.lane.b32.xlu0 %v1348, 28
      %v2083 = vpop.permute.xlu0 %2082
      %2084 = vrot.lane.b32.xlu0 %v1350, 28
      %v2085 = vpop.permute.xlu0 %2084
      %2086 = vrot.lane.b32.xlu0 %v1353, 28
      %v2087 = vpop.permute.xlu0 %2086
      %2088 = vrot.lane.b32.xlu0 %v1355, 28
      %v2089 = vpop.permute.xlu0 %2088
      %2090 = vrot.lane.b32.xlu0 %v1730, 28
      %v2091 = vpop.permute.xlu0 %2090
      %2092 = vrot.lane.b32.xlu0 %v1732, 28
      %v2093 = vpop.permute.xlu0 %2092
      %2094 = vrot.lane.b32.xlu0 %v2031, 28
      %v2095 = vpop.permute.xlu0 %2094
      %2096 = vrot.lane.b32.xlu0 %v2033, 28
      %v2097 = vpop.permute.xlu0 %2096
      %v2130 = vrot.slane %v1224, 2
      %v2131 = vrot.slane %v1225, 2
      %v2132 = vsel %vm1452, %v2130, %v2131
      %v2133 = vrot.slane %v1226, 2
      %v2134 = vsel %vm1452, %v2131, %v2133
      %2135 = vrot.lane.b32.xlu0 %v1465, 32
      %v2136 = vpop.permute.xlu0 %2135
      %2137 = vrot.lane.b32.xlu0 %v1467, 32
      %v2138 = vpop.permute.xlu0 %2137
      %2139 = vrot.lane.b32.xlu0 %v1470, 32
      %v2140 = vpop.permute.xlu0 %2139
      %2141 = vrot.lane.b32.xlu0 %v1472, 32
      %v2142 = vpop.permute.xlu0 %2141
      %2143 = vrot.lane.b32.xlu0 %v1475, 32
      %v2144 = vpop.permute.xlu0 %2143
      %2145 = vrot.lane.b32.xlu0 %v1477, 32
      %v2146 = vpop.permute.xlu0 %2145
      %2147 = vrot.lane.b32.xlu0 %v1480, 32
      %v2148 = vpop.permute.xlu0 %2147
      %2149 = vrot.lane.b32.xlu0 %v1482, 32
      %v2150 = vpop.permute.xlu0 %2149
      %2151 = vrot.lane.b32.xlu0 %v1485, 32
      %v2152 = vpop.permute.xlu0 %2151
      %2153 = vrot.lane.b32.xlu0 %v1487, 32
      %v2154 = vpop.permute.xlu0 %2153
      %2155 = vrot.lane.b32.xlu0 %v1490, 32
      %v2156 = vpop.permute.xlu0 %2155
      %2157 = vrot.lane.b32.xlu0 %v1492, 32
      %v2158 = vpop.permute.xlu0 %2157
      %2159 = vrot.lane.b32.xlu0 %v1495, 32
      %v2160 = vpop.permute.xlu0 %2159
      %2161 = vrot.lane.b32.xlu0 %v1497, 32
      %v2162 = vpop.permute.xlu0 %2161
      %2163 = vrot.lane.b32.xlu0 %v1500, 32
      %v2164 = vpop.permute.xlu0 %2163
      %2165 = vrot.lane.b32.xlu0 %v1502, 32
      %v2166 = vpop.permute.xlu0 %2165
      %2167 = vrot.lane.b32.xlu0 %v1505, 32
      %v2168 = vpop.permute.xlu0 %2167
      %2169 = vrot.lane.b32.xlu0 %v1507, 32
      %v2170 = vpop.permute.xlu0 %2169
      %2171 = vrot.lane.b32.xlu0 %v1510, 32
      %v2172 = vpop.permute.xlu0 %2171
      %2173 = vrot.lane.b32.xlu0 %v1512, 32
      %v2174 = vpop.permute.xlu0 %2173
      %2175 = vrot.lane.b32.xlu0 %v1515, 32
      %v2176 = vpop.permute.xlu0 %2175
      %2177 = vrot.lane.b32.xlu0 %v1517, 32
      %v2178 = vpop.permute.xlu0 %2177
      %2179 = vrot.lane.b32.xlu0 %v1520, 32
      %v2180 = vpop.permute.xlu0 %2179
      %2181 = vrot.lane.b32.xlu0 %v1522, 32
      %v2182 = vpop.permute.xlu0 %2181
      %2183 = vrot.lane.b32.xlu0 %v1525, 32
      %v2184 = vpop.permute.xlu0 %2183
      %2185 = vrot.lane.b32.xlu0 %v1527, 32
      %v2186 = vpop.permute.xlu0 %2185
      %2187 = vrot.lane.b32.xlu0 %v1530, 32
      %v2188 = vpop.permute.xlu0 %2187
      %2189 = vrot.lane.b32.xlu0 %v1532, 32
      %v2190 = vpop.permute.xlu0 %2189
      %2191 = vrot.lane.b32.xlu0 %v1831, 32
      %v2192 = vpop.permute.xlu0 %2191
      %2193 = vrot.lane.b32.xlu0 %v1833, 32
      %v2194 = vpop.permute.xlu0 %2193
      %2195 = vrot.lane.b32.xlu0 %v2132, 32
      %v2196 = vpop.permute.xlu0 %2195
      %2197 = vrot.lane.b32.xlu0 %v2134, 32
      %v2198 = vpop.permute.xlu0 %2197
      %v2231 = vsel %vm532, %v1173, %v1357
      %v2232 = vsel %vm532, %v1174, %v1359
      %v2233 = vsel %vm532, %v1176, %v1361
      %v2234 = vsel %vm532, %v1177, %v1363
      %v2235 = vsel %vm532, %v1179, %v1365
      %v2236 = vsel %vm532, %v1180, %v1367
      %v2237 = vsel %vm532, %v1182, %v1369
      %v2238 = vsel %vm532, %v1183, %v1371
      %v2239 = vsel %vm532, %v1185, %v1373
      %v2240 = vsel %vm532, %v1186, %v1375
      %v2241 = vsel %vm532, %v1188, %v1377
      %v2242 = vsel %vm532, %v1189, %v1379
      %v2243 = vsel %vm532, %v1191, %v1381
      %v2244 = vsel %vm532, %v1192, %v1383
      %v2245 = vsel %vm532, %v1194, %v1385
      %v2246 = vsel %vm532, %v1195, %v1387
      %v2247 = vsel %vm532, %v1197, %v1389
      %v2248 = vsel %vm532, %v1198, %v1391
      %v2249 = vsel %vm532, %v1200, %v1393
      %v2250 = vsel %vm532, %v1201, %v1395
      %v2251 = vsel %vm532, %v1203, %v1397
      %v2252 = vsel %vm532, %v1204, %v1399
      %v2253 = vsel %vm532, %v1206, %v1401
      %v2254 = vsel %vm532, %v1207, %v1403
      %v2255 = vsel %vm532, %v1209, %v1405
      %v2256 = vsel %vm532, %v1210, %v1407
      %v2257 = vsel %vm532, %v1212, %v1409
      %v2258 = vsel %vm532, %v1213, %v1411
      %v2259 = vsel %vm532, %v1215, %v1413
      %v2260 = vsel %vm532, %v1216, %v1415
      %v2261 = vsel %vm532, %v1218, %v1417
      %v2262 = vsel %vm532, %v1219, %v1419
      %v2263 = vsel %vm746, %v2231, %v1534
      %v2264 = vsel %vm746, %v2232, %v1536
      %v2265 = vsel %vm746, %v2233, %v1538
      %v2266 = vsel %vm746, %v2234, %v1540
      %v2267 = vsel %vm746, %v2235, %v1542
      %v2268 = vsel %vm746, %v2236, %v1544
      %v2269 = vsel %vm746, %v2237, %v1546
      %v2270 = vsel %vm746, %v2238, %v1548
      %v2271 = vsel %vm746, %v2239, %v1550
      %v2272 = vsel %vm746, %v2240, %v1552
      %v2273 = vsel %vm746, %v2241, %v1554
      %v2274 = vsel %vm746, %v2242, %v1556
      %v2275 = vsel %vm746, %v2243, %v1558
      %v2276 = vsel %vm746, %v2244, %v1560
      %v2277 = vsel %vm746, %v2245, %v1562
      %v2278 = vsel %vm746, %v2246, %v1564
      %v2279 = vsel %vm746, %v2247, %v1566
      %v2280 = vsel %vm746, %v2248, %v1568
      %v2281 = vsel %vm746, %v2249, %v1570
      %v2282 = vsel %vm746, %v2250, %v1572
      %v2283 = vsel %vm746, %v2251, %v1574
      %v2284 = vsel %vm746, %v2252, %v1576
      %v2285 = vsel %vm746, %v2253, %v1578
      %v2286 = vsel %vm746, %v2254, %v1580
      %v2287 = vsel %vm746, %v2255, %v1582
      %v2288 = vsel %vm746, %v2256, %v1584
      %v2289 = vsel %vm746, %v2257, %v1586
      %v2290 = vsel %vm746, %v2258, %v1588
      %v2291 = vsel %vm746, %v2259, %v1590
      %v2292 = vsel %vm746, %v2260, %v1592
      %v2293 = vsel %vm746, %v2261, %v1594
      %v2294 = vsel %vm746, %v2262, %v1596
      %vm2295 = vcmask 97280
      %v2296 = vsel %vm2295, %v2263, %v1632
      %v2297 = vsel %vm2295, %v2264, %v1634
      %v2298 = vsel %vm2295, %v2265, %v1636
      %v2299 = vsel %vm2295, %v2266, %v1638
      %v2300 = vsel %vm2295, %v2267, %v1640
      %v2301 = vsel %vm2295, %v2268, %v1642
      %v2302 = vsel %vm2295, %v2269, %v1644
      %v2303 = vsel %vm2295, %v2270, %v1646
      %v2304 = vsel %vm2295, %v2271, %v1648
      %v2305 = vsel %vm2295, %v2272, %v1650
      %v2306 = vsel %vm2295, %v2273, %v1652
      %v2307 = vsel %vm2295, %v2274, %v1654
      %v2308 = vsel %vm2295, %v2275, %v1656
      %v2309 = vsel %vm2295, %v2276, %v1658
      %v2310 = vsel %vm2295, %v2277, %v1660
      %v2311 = vsel %vm2295, %v2278, %v1662
      %v2312 = vsel %vm2295, %v2279, %v1664
      %v2313 = vsel %vm2295, %v2280, %v1666
      %v2314 = vsel %vm2295, %v2281, %v1668
      %v2315 = vsel %vm2295, %v2282, %v1670
      %v2316 = vsel %vm2295, %v2283, %v1672
      %v2317 = vsel %vm2295, %v2284, %v1674
      %v2318 = vsel %vm2295, %v2285, %v1676
      %v2319 = vsel %vm2295, %v2286, %v1678
      %v2320 = vsel %vm2295, %v2287, %v1680
      %v2321 = vsel %vm2295, %v2288, %v1682
      %v2322 = vsel %vm2295, %v2289, %v1684
      %v2323 = vsel %vm2295, %v2290, %v1686
      %v2324 = vsel %vm2295, %v2291, %v1688
      %v2325 = vsel %vm2295, %v2292, %v1690
      %v2326 = vsel %vm2295, %v2293, %v1692
      %v2327 = vsel %vm2295, %v2294, %v1694
      %vm2328 = vcmask 130048
      %v2329 = vsel %vm2328, %v2296, %v1734
      %v2330 = vsel %vm2328, %v2297, %v1736
      %v2331 = vsel %vm2328, %v2298, %v1738
      %v2332 = vsel %vm2328, %v2299, %v1740
      %v2333 = vsel %vm2328, %v2300, %v1742
      %v2334 = vsel %vm2328, %v2301, %v1744
      %v2335 = vsel %vm2328, %v2302, %v1746
      %v2336 = vsel %vm2328, %v2303, %v1748
      %v2337 = vsel %vm2328, %v2304, %v1750
      %v2338 = vsel %vm2328, %v2305, %v1752
      %v2339 = vsel %vm2328, %v2306, %v1754
      %v2340 = vsel %vm2328, %v2307, %v1756
      %v2341 = vsel %vm2328, %v2308, %v1758
      %v2342 = vsel %vm2328, %v2309, %v1760
      %v2343 = vsel %vm2328, %v2310, %v1762
      %v2344 = vsel %vm2328, %v2311, %v1764
      %v2345 = vsel %vm2328, %v2312, %v1766
      %v2346 = vsel %vm2328, %v2313, %v1768
      %v2347 = vsel %vm2328, %v2314, %v1770
      %v2348 = vsel %vm2328, %v2315, %v1772
      %v2349 = vsel %vm2328, %v2316, %v1774
      %v2350 = vsel %vm2328, %v2317, %v1776
      %v2351 = vsel %vm2328, %v2318, %v1778
      %v2352 = vsel %vm2328, %v2319, %v1780
      %v2353 = vsel %vm2328, %v2320, %v1782
      %v2354 = vsel %vm2328, %v2321, %v1784
      %v2355 = vsel %vm2328, %v2322, %v1786
      %v2356 = vsel %vm2328, %v2323, %v1788
      %v2357 = vsel %vm2328, %v2324, %v1790
      %v2358 = vsel %vm2328, %v2325, %v1792
      %v2359 = vsel %vm2328, %v2326, %v1794
      %v2360 = vsel %vm2328, %v2327, %v1796
      %vm2361 = vcmask 162816
      %v2362 = vsel %vm2361, %v2329, %v1835
      %v2363 = vsel %vm2361, %v2330, %v1837
      %v2364 = vsel %vm2361, %v2331, %v1839
      %v2365 = vsel %vm2361, %v2332, %v1841
      %v2366 = vsel %vm2361, %v2333, %v1843
      %v2367 = vsel %vm2361, %v2334, %v1845
      %v2368 = vsel %vm2361, %v2335, %v1847
      %v2369 = vsel %vm2361, %v2336, %v1849
      %v2370 = vsel %vm2361, %v2337, %v1851
      %v2371 = vsel %vm2361, %v2338, %v1853
      %v2372 = vsel %vm2361, %v2339, %v1855
      %v2373 = vsel %vm2361, %v2340, %v1857
      %v2374 = vsel %vm2361, %v2341, %v1859
      %v2375 = vsel %vm2361, %v2342, %v1861
      %v2376 = vsel %vm2361, %v2343, %v1863
      %v2377 = vsel %vm2361, %v2344, %v1865
      %v2378 = vsel %vm2361, %v2345, %v1867
      %v2379 = vsel %vm2361, %v2346, %v1869
      %v2380 = vsel %vm2361, %v2347, %v1871
      %v2381 = vsel %vm2361, %v2348, %v1873
      %v2382 = vsel %vm2361, %v2349, %v1875
      %v2383 = vsel %vm2361, %v2350, %v1877
      %v2384 = vsel %vm2361, %v2351, %v1879
      %v2385 = vsel %vm2361, %v2352, %v1881
      %v2386 = vsel %vm2361, %v2353, %v1883
      %v2387 = vsel %vm2361, %v2354, %v1885
      %v2388 = vsel %vm2361, %v2355, %v1887
      %v2389 = vsel %vm2361, %v2356, %v1889
      %v2390 = vsel %vm2361, %v2357, %v1891
      %v2391 = vsel %vm2361, %v2358, %v1893
      %v2392 = vsel %vm2361, %v2359, %v1895
      %v2393 = vsel %vm2361, %v2360, %v1897
      %vm2394 = vcmask 195584
      %v2395 = vsel %vm2394, %v2362, %v1933
      %v2396 = vsel %vm2394, %v2363, %v1935
      %v2397 = vsel %vm2394, %v2364, %v1937
      %v2398 = vsel %vm2394, %v2365, %v1939
      %v2399 = vsel %vm2394, %v2366, %v1941
      %v2400 = vsel %vm2394, %v2367, %v1943
      %v2401 = vsel %vm2394, %v2368, %v1945
      %v2402 = vsel %vm2394, %v2369, %v1947
      %v2403 = vsel %vm2394, %v2370, %v1949
      %v2404 = vsel %vm2394, %v2371, %v1951
      %v2405 = vsel %vm2394, %v2372, %v1953
      %v2406 = vsel %vm2394, %v2373, %v1955
      %v2407 = vsel %vm2394, %v2374, %v1957
      %v2408 = vsel %vm2394, %v2375, %v1959
      %v2409 = vsel %vm2394, %v2376, %v1961
      %v2410 = vsel %vm2394, %v2377, %v1963
      %v2411 = vsel %vm2394, %v2378, %v1965
      %v2412 = vsel %vm2394, %v2379, %v1967
      %v2413 = vsel %vm2394, %v2380, %v1969
      %v2414 = vsel %vm2394, %v2381, %v1971
      %v2415 = vsel %vm2394, %v2382, %v1973
      %v2416 = vsel %vm2394, %v2383, %v1975
      %v2417 = vsel %vm2394, %v2384, %v1977
      %v2418 = vsel %vm2394, %v2385, %v1979
      %v2419 = vsel %vm2394, %v2386, %v1981
      %v2420 = vsel %vm2394, %v2387, %v1983
      %v2421 = vsel %vm2394, %v2388, %v1985
      %v2422 = vsel %vm2394, %v2389, %v1987
      %v2423 = vsel %vm2394, %v2390, %v1989
      %v2424 = vsel %vm2394, %v2391, %v1991
      %v2425 = vsel %vm2394, %v2392, %v1993
      %v2426 = vsel %vm2394, %v2393, %v1995
      %vm2427 = vcmask 228352
      %v2428 = vsel %vm2427, %v2395, %v2035
      %v2429 = vsel %vm2427, %v2396, %v2037
      %v2430 = vsel %vm2427, %v2397, %v2039
      %v2431 = vsel %vm2427, %v2398, %v2041
      %v2432 = vsel %vm2427, %v2399, %v2043
      %v2433 = vsel %vm2427, %v2400, %v2045
      %v2434 = vsel %vm2427, %v2401, %v2047
      %v2435 = vsel %vm2427, %v2402, %v2049
      %v2436 = vsel %vm2427, %v2403, %v2051
      %v2437 = vsel %vm2427, %v2404, %v2053
      %v2438 = vsel %vm2427, %v2405, %v2055
      %v2439 = vsel %vm2427, %v2406, %v2057
      %v2440 = vsel %vm2427, %v2407, %v2059
      %v2441 = vsel %vm2427, %v2408, %v2061
      %v2442 = vsel %vm2427, %v2409, %v2063
      %v2443 = vsel %vm2427, %v2410, %v2065
      %v2444 = vsel %vm2427, %v2411, %v2067
      %v2445 = vsel %vm2427, %v2412, %v2069
      %v2446 = vsel %vm2427, %v2413, %v2071
      %v2447 = vsel %vm2427, %v2414, %v2073
      %v2448 = vsel %vm2427, %v2415, %v2075
      %v2449 = vsel %vm2427, %v2416, %v2077
      %v2450 = vsel %vm2427, %v2417, %v2079
      %v2451 = vsel %vm2427, %v2418, %v2081
      %v2452 = vsel %vm2427, %v2419, %v2083
      %v2453 = vsel %vm2427, %v2420, %v2085
      %v2454 = vsel %vm2427, %v2421, %v2087
      %v2455 = vsel %vm2427, %v2422, %v2089
      %v2456 = vsel %vm2427, %v2423, %v2091
      %v2457 = vsel %vm2427, %v2424, %v2093
      %v2458 = vsel %vm2427, %v2425, %v2095
      %v2459 = vsel %vm2427, %v2426, %v2097
      %vm2460 = vcmask 261120
      %v2461 = vsel %vm2460, %v2428, %v2136
      %v2462 = vsel %vm2460, %v2429, %v2138
      %v2463 = vsel %vm2460, %v2430, %v2140
      %v2464 = vsel %vm2460, %v2431, %v2142
      %v2465 = vsel %vm2460, %v2432, %v2144
      %v2466 = vsel %vm2460, %v2433, %v2146
      %v2467 = vsel %vm2460, %v2434, %v2148
      %v2468 = vsel %vm2460, %v2435, %v2150
      %v2469 = vsel %vm2460, %v2436, %v2152
      %v2470 = vsel %vm2460, %v2437, %v2154
      %v2471 = vsel %vm2460, %v2438, %v2156
      %v2472 = vsel %vm2460, %v2439, %v2158
      %v2473 = vsel %vm2460, %v2440, %v2160
      %v2474 = vsel %vm2460, %v2441, %v2162
      %v2475 = vsel %vm2460, %v2442, %v2164
      %v2476 = vsel %vm2460, %v2443, %v2166
      %v2477 = vsel %vm2460, %v2444, %v2168
      %v2478 = vsel %vm2460, %v2445, %v2170
      %v2479 = vsel %vm2460, %v2446, %v2172
      %v2480 = vsel %vm2460, %v2447, %v2174
      %v2481 = vsel %vm2460, %v2448, %v2176
      %v2482 = vsel %vm2460, %v2449, %v2178
      %v2483 = vsel %vm2460, %v2450, %v2180
      %v2484 = vsel %vm2460, %v2451, %v2182
      %v2485 = vsel %vm2460, %v2452, %v2184
      %v2486 = vsel %vm2460, %v2453, %v2186
      %v2487 = vsel %vm2460, %v2454, %v2188
      %v2488 = vsel %vm2460, %v2455, %v2190
      %v2489 = vsel %vm2460, %v2456, %v2192
      %v2490 = vsel %vm2460, %v2457, %v2194
      %v2491 = vsel %vm2460, %v2458, %v2196
      %v2492 = vsel %vm2460, %v2459, %v2198
      %v2493 = vld [vmem:[%s5] sm:$0xff]
      %v2494 = vld [vmem:[%s5 + $0x8] sm:$0xff]
      %v2495 = vld [vmem:[%s5 + $0x10] sm:$0xff]
      %v2496 = vld [vmem:[%s5 + $0x18] sm:$0xff]
      %v2497 = vld [vmem:[%s5 + $0x20] sm:$0xf]
      %v2498 = vld [vmem:[%s6] sm:$0x1]
      %v2500 = vperm.slane %v2498, 0
      %vm2502 = vcmask 293888
      %v2504 = vsel %vm2502, %v2461, 0
      %v2507 = vsel %vm2502, %v2462, 0
      %v2510 = vsel %vm2502, %v2463, 0
      %v2513 = vsel %vm2502, %v2464, 0
      %v2516 = vsel %vm2502, %v2465, 0
      %v2519 = vsel %vm2502, %v2466, 0
      %v2522 = vsel %vm2502, %v2467, 0
      %v2525 = vsel %vm2502, %v2468, 0
      %v2528 = vsel %vm2502, %v2469, 0
      %v2531 = vsel %vm2502, %v2470, 0
      %v2534 = vsel %vm2502, %v2471, 0
      %v2537 = vsel %vm2502, %v2472, 0
      %v2540 = vsel %vm2502, %v2473, 0
      %v2543 = vsel %vm2502, %v2474, 0
      %v2546 = vsel %vm2502, %v2475, 0
      %v2549 = vsel %vm2502, %v2476, 0
      %v2552 = vsel %vm2502, %v2477, 0
      %v2555 = vsel %vm2502, %v2478, 0
      %v2558 = vsel %vm2502, %v2479, 0
      %v2561 = vsel %vm2502, %v2480, 0
      %v2564 = vsel %vm2502, %v2481, 0
      %v2567 = vsel %vm2502, %v2482, 0
      %v2570 = vsel %vm2502, %v2483, 0
      %v2573 = vsel %vm2502, %v2484, 0
      %v2576 = vsel %vm2502, %v2485, 0
      %v2579 = vsel %vm2502, %v2486, 0
      %v2582 = vsel %vm2502, %v2487, 0
      %v2585 = vsel %vm2502, %v2488, 0
      %v2588 = vsel %vm2502, %v2489, 0
      %v2591 = vsel %vm2502, %v2490, 0
      %v2594 = vsel %vm2502, %v2491, 0
      %v2597 = vsel %vm2502, %v2492, 0
      %v2600 = vsel %vm629, %v2497, 0
      %2602 = vmatpush.msra.mxu0 0.0
      %2603 = vmatpush.msra.mxu0 0.0
      %2604 = vmatpush.msra.mxu0 0.0
      %2605 = vmatpush.msra.mxu0 0.0
      %2606 = vmatpush.msra.mxu0 0.0
      %2607 = vmatpush.msra.mxu0 0.0
      %2608 = vmatpush.msra.mxu0 0.0
      %2609 = vmatpush.msra.mxu0 0.0
      %2610 = vmatpush.msra.mxu0 0.0
      %2611 = vmatpush.msra.mxu0 0.0
      %2612 = vmatpush.msra.mxu0 0.0
      %2613 = vmatpush.msra.mxu0 %v2600
      %2614 = vmatpush.msra.mxu0 %v2496
      %2615 = vmatpush.msra.mxu0 %v2495
      %2616 = vmatpush.msra.mxu0 %v2494
      %2617 = vmatpush.msra.mxu0 %v2493
      %2618 = vmatmul.f32.gmra.mxu0 %v2504
      %v2619 = vpop.f32.mrf.mxu0
      %v2620 = vadd.f32 %v2500, %v2619
      %2621 = vmatmul.f32.gmra.mxu0 %v2507
      %v2622 = vpop.f32.mrf.mxu0
      %v2623 = vadd.f32 %v2500, %v2622
      %2624 = vmatmul.f32.gmra.mxu0 %v2510
      %v2625 = vpop.f32.mrf.mxu0
      %v2626 = vadd.f32 %v2500, %v2625
      %2627 = vmatmul.f32.gmra.mxu0 %v2513
      %v2628 = vpop.f32.mrf.mxu0
      %v2629 = vadd.f32 %v2500, %v2628
      %2630 = vmatmul.f32.gmra.mxu0 %v2516
      %v2631 = vpop.f32.mrf.mxu0
      %v2632 = vadd.f32 %v2500, %v2631
      %2633 = vmatmul.f32.gmra.mxu0 %v2519
      %v2634 = vpop.f32.mrf.mxu0
      %v2635 = vadd.f32 %v2500, %v2634
      %2636 = vmatmul.f32.gmra.mxu0 %v2522
      %v2637 = vpop.f32.mrf.mxu0
      %v2638 = vadd.f32 %v2500, %v2637
      %2639 = vmatmul.f32.gmra.mxu0 %v2525
      %v2640 = vpop.f32.mrf.mxu0
      %v2641 = vadd.f32 %v2500, %v2640
      %2642 = vmatmul.f32.gmra.mxu0 %v2528
      %v2643 = vpop.f32.mrf.mxu0
      %v2644 = vadd.f32 %v2500, %v2643
      %2645 = vmatmul.f32.gmra.mxu0 %v2531
      %v2646 = vpop.f32.mrf.mxu0
      %v2647 = vadd.f32 %v2500, %v2646
      %2648 = vmatmul.f32.gmra.mxu0 %v2534
      %v2649 = vpop.f32.mrf.mxu0
      %v2650 = vadd.f32 %v2500, %v2649
      %2651 = vmatmul.f32.gmra.mxu0 %v2537
      %v2652 = vpop.f32.mrf.mxu0
      %v2653 = vadd.f32 %v2500, %v2652
      %2654 = vmatmul.f32.gmra.mxu0 %v2540
      %v2655 = vpop.f32.mrf.mxu0
      %v2656 = vadd.f32 %v2500, %v2655
      %2657 = vmatmul.f32.gmra.mxu0 %v2543
      %v2658 = vpop.f32.mrf.mxu0
      %v2659 = vadd.f32 %v2500, %v2658
      %2660 = vmatmul.f32.gmra.mxu0 %v2546
      %v2661 = vpop.f32.mrf.mxu0
      %v2662 = vadd.f32 %v2500, %v2661
      %2663 = vmatmul.f32.gmra.mxu0 %v2549
      %v2664 = vpop.f32.mrf.mxu0
      %v2665 = vadd.f32 %v2500, %v2664
      %2666 = vmatmul.f32.gmra.mxu0 %v2552
      %v2667 = vpop.f32.mrf.mxu0
      %v2668 = vadd.f32 %v2500, %v2667
      %2669 = vmatmul.f32.gmra.mxu0 %v2555
      %v2670 = vpop.f32.mrf.mxu0
      %v2671 = vadd.f32 %v2500, %v2670
      %2672 = vmatmul.f32.gmra.mxu0 %v2558
      %v2673 = vpop.f32.mrf.mxu0
      %v2674 = vadd.f32 %v2500, %v2673
      %2675 = vmatmul.f32.gmra.mxu0 %v2561
      %v2676 = vpop.f32.mrf.mxu0
      %v2677 = vadd.f32 %v2500, %v2676
      %2678 = vmatmul.f32.gmra.mxu0 %v2564
      %v2679 = vpop.f32.mrf.mxu0
      %v2680 = vadd.f32 %v2500, %v2679
      %2681 = vmatmul.f32.gmra.mxu0 %v2567
      %v2682 = vpop.f32.mrf.mxu0
      %v2683 = vadd.f32 %v2500, %v2682
      %2684 = vmatmul.f32.gmra.mxu0 %v2570
      %v2685 = vpop.f32.mrf.mxu0
      %v2686 = vadd.f32 %v2500, %v2685
      %2687 = vmatmul.f32.gmra.mxu0 %v2573
      %v2688 = vpop.f32.mrf.mxu0
      %v2689 = vadd.f32 %v2500, %v2688
      %2690 = vmatmul.f32.gmra.mxu0 %v2576
      %v2691 = vpop.f32.mrf.mxu0
      %v2692 = vadd.f32 %v2500, %v2691
      %2693 = vmatmul.f32.gmra.mxu0 %v2579
      %v2694 = vpop.f32.mrf.mxu0
      %v2695 = vadd.f32 %v2500, %v2694
      %2696 = vmatmul.f32.gmra.mxu0 %v2582
      %v2697 = vpop.f32.mrf.mxu0
      %v2698 = vadd.f32 %v2500, %v2697
      %2699 = vmatmul.f32.gmra.mxu0 %v2585
      %v2700 = vpop.f32.mrf.mxu0
      %v2701 = vadd.f32 %v2500, %v2700
      %2702 = vmatmul.f32.gmra.mxu0 %v2588
      %v2703 = vpop.f32.mrf.mxu0
      %v2704 = vadd.f32 %v2500, %v2703
      %2705 = vmatmul.f32.gmra.mxu0 %v2591
      %v2706 = vpop.f32.mrf.mxu0
      %v2707 = vadd.f32 %v2500, %v2706
      %2708 = vmatmul.f32.gmra.mxu0 %v2594
      %v2709 = vpop.f32.mrf.mxu0
      %v2710 = vadd.f32 %v2500, %v2709
      %2711 = vmatmul.f32.gmra.mxu0 %v2597
      %v2712 = vpop.f32.mrf.mxu0
      %v2713 = vadd.f32 %v2500, %v2712
      %2714 = vdwg.mxu0
      %v2715 = vsub.f32 0.0, %v2620
      %v2716 = vsub.f32 0.0, %v2623
      %v2717 = vsub.f32 0.0, %v2626
      %v2718 = vsub.f32 0.0, %v2629
      %v2719 = vsub.f32 0.0, %v2632
      %v2720 = vsub.f32 0.0, %v2635
      %v2721 = vsub.f32 0.0, %v2638
      %v2722 = vsub.f32 0.0, %v2641
      %v2723 = vsub.f32 0.0, %v2644
      %v2724 = vsub.f32 0.0, %v2647
      %v2725 = vsub.f32 0.0, %v2650
      %v2726 = vsub.f32 0.0, %v2653
      %v2727 = vsub.f32 0.0, %v2656
      %v2728 = vsub.f32 0.0, %v2659
      %v2729 = vsub.f32 0.0, %v2662
      %v2730 = vsub.f32 0.0, %v2665
      %v2731 = vsub.f32 0.0, %v2668
      %v2732 = vsub.f32 0.0, %v2671
      %v2733 = vsub.f32 0.0, %v2674
      %v2734 = vsub.f32 0.0, %v2677
      %v2735 = vsub.f32 0.0, %v2680
      %v2736 = vsub.f32 0.0, %v2683
      %v2737 = vsub.f32 0.0, %v2686
      %v2738 = vsub.f32 0.0, %v2689
      %v2739 = vsub.f32 0.0, %v2692
      %v2740 = vsub.f32 0.0, %v2695
      %v2741 = vsub.f32 0.0, %v2698
      %v2742 = vsub.f32 0.0, %v2701
      %v2743 = vsub.f32 0.0, %v2704
      %v2744 = vsub.f32 0.0, %v2707
      %v2745 = vsub.f32 0.0, %v2710
      %v2746 = vsub.f32 0.0, %v2713
      %v2747 = vmul.f32 %v2715, 1.442695
      %v2748 = vpow.pop %v2747
      %v2749 = vmul.f32 %v2716, 1.442695
      %v2750 = vpow.pop %v2749
      %v2751 = vmul.f32 %v2717, 1.442695
      %v2752 = vpow.pop %v2751
      %v2753 = vmul.f32 %v2718, 1.442695
      %v2754 = vpow.pop %v2753
      %v2755 = vmul.f32 %v2719, 1.442695
      %v2756 = vpow.pop %v2755
      %v2757 = vmul.f32 %v2720, 1.442695
      %v2758 = vpow.pop %v2757
      %v2759 = vmul.f32 %v2721, 1.442695
      %v2760 = vpow.pop %v2759
      %v2761 = vmul.f32 %v2722, 1.442695
      %v2762 = vpow.pop %v2761
      %v2763 = vmul.f32 %v2723, 1.442695
      %v2764 = vpow.pop %v2763
      %v2765 = vmul.f32 %v2724, 1.442695
      %v2766 = vpow.pop %v2765
      %v2767 = vmul.f32 %v2725, 1.442695
      %v2768 = vpow.pop %v2767
      %v2769 = vmul.f32 %v2726, 1.442695
      %v2770 = vpow.pop %v2769
      %v2771 = vmul.f32 %v2727, 1.442695
      %v2772 = vpow.pop %v2771
      %v2773 = vmul.f32 %v2728, 1.442695
      %v2774 = vpow.pop %v2773
      %v2775 = vmul.f32 %v2729, 1.442695
      %v2776 = vpow.pop %v2775
      %v2777 = vmul.f32 %v2730, 1.442695
      %v2778 = vpow.pop %v2777
      %v2779 = vmul.f32 %v2731, 1.442695
      %v2780 = vpow.pop %v2779
      %v2781 = vmul.f32 %v2732, 1.442695
      %v2782 = vpow.pop %v2781
      %v2783 = vmul.f32 %v2733, 1.442695
      %v2784 = vpow.pop %v2783
      %v2785 = vmul.f32 %v2734, 1.442695
      %v2786 = vpow.pop %v2785
      %v2787 = vmul.f32 %v2735, 1.442695
      %v2788 = vpow.pop %v2787
      %v2789 = vmul.f32 %v2736, 1.442695
      %v2790 = vpow.pop %v2789
      %v2791 = vmul.f32 %v2737, 1.442695
      %v2792 = vpow.pop %v2791
      %v2793 = vmul.f32 %v2738, 1.442695
      %v2794 = vpow.pop %v2793
      %v2795 = vmul.f32 %v2739, 1.442695
      %v2796 = vpow.pop %v2795
      %v2797 = vmul.f32 %v2740, 1.442695
      %v2798 = vpow.pop %v2797
      %v2799 = vmul.f32 %v2741, 1.442695
      %v2800 = vpow.pop %v2799
      %v2801 = vmul.f32 %v2742, 1.442695
      %v2802 = vpow.pop %v2801
      %v2803 = vmul.f32 %v2743, 1.442695
      %v2804 = vpow.pop %v2803
      %v2805 = vmul.f32 %v2744, 1.442695
      %v2806 = vpow.pop %v2805
      %v2807 = vmul.f32 %v2745, 1.442695
      %v2808 = vpow.pop %v2807
      %v2809 = vmul.f32 %v2746, 1.442695
      %v2810 = vpow.pop %v2809
      %v2811 = vadd.f32 %v2748, 1.0
      %v2812 = vadd.f32 %v2750, 1.0
      %v2813 = vadd.f32 %v2752, 1.0
      %v2814 = vadd.f32 %v2754, 1.0
      %v2815 = vadd.f32 %v2756, 1.0
      %v2816 = vadd.f32 %v2758, 1.0
      %v2817 = vadd.f32 %v2760, 1.0
      %v2818 = vadd.f32 %v2762, 1.0
      %v2819 = vadd.f32 %v2764, 1.0
      %v2820 = vadd.f32 %v2766, 1.0
      %v2821 = vadd.f32 %v2768, 1.0
      %v2822 = vadd.f32 %v2770, 1.0
      %v2823 = vadd.f32 %v2772, 1.0
      %v2824 = vadd.f32 %v2774, 1.0
      %v2825 = vadd.f32 %v2776, 1.0
      %v2826 = vadd.f32 %v2778, 1.0
      %v2827 = vadd.f32 %v2780, 1.0
      %v2828 = vadd.f32 %v2782, 1.0
      %v2829 = vadd.f32 %v2784, 1.0
      %v2830 = vadd.f32 %v2786, 1.0
      %v2831 = vadd.f32 %v2788, 1.0
      %v2832 = vadd.f32 %v2790, 1.0
      %v2833 = vadd.f32 %v2792, 1.0
      %v2834 = vadd.f32 %v2794, 1.0
      %v2835 = vadd.f32 %v2796, 1.0
      %v2836 = vadd.f32 %v2798, 1.0
      %v2837 = vadd.f32 %v2800, 1.0
      %v2838 = vadd.f32 %v2802, 1.0
      %v2839 = vadd.f32 %v2804, 1.0
      %v2840 = vadd.f32 %v2806, 1.0
      %v2841 = vadd.f32 %v2808, 1.0
      %v2842 = vadd.f32 %v2810, 1.0
      %v2843 = vrcp.pop %v2811
      %v2844 = vmul.f32 %v2811, %v2843
      %v2845 = vsub.f32 1.0, %v2844
      %v2846 = vmul.f32 %v2843, %v2845
      %v2847 = vadd.f32 %v2843, %v2846
      %vm2848 = vweird.f32 %v2811
      %vm2849 = vweird.f32 %v2843
      %vm2850 = vmor %vm2848, %vm2849
      %v2851 = vsel %vm2850, %v2843, %v2847
      %v2852 = vand.u32 2147483647, %v2811
      %vm2853 = vcmp.eq.f32.partialorder %v2852, 8.507059e+37
      %v2854 = vand.u32 %v2811, 2147483648
      %v2855 = vor.u32 1.1754944e-38, %v2854
      %v2856 = vsel %vm2853, %v2855, %v2851
      %v2857 = vmul.f32 %v2620, %v2856
      %v2858 = vrcp.pop %v2812
      %v2859 = vmul.f32 %v2812, %v2858
      %v2860 = vsub.f32 1.0, %v2859
      %v2861 = vmul.f32 %v2858, %v2860
      %v2862 = vadd.f32 %v2858, %v2861
      %vm2863 = vweird.f32 %v2812
      %vm2864 = vweird.f32 %v2858
      %vm2865 = vmor %vm2863, %vm2864
      %v2866 = vsel %vm2865, %v2858, %v2862
      %v2867 = vand.u32 2147483647, %v2812
      %vm2868 = vcmp.eq.f32.partialorder %v2867, 8.507059e+37
      %v2869 = vand.u32 %v2812, 2147483648
      %v2870 = vor.u32 1.1754944e-38, %v2869
      %v2871 = vsel %vm2868, %v2870, %v2866
      %v2872 = vmul.f32 %v2623, %v2871
      %v2873 = vrcp.pop %v2813
      %v2874 = vmul.f32 %v2813, %v2873
      %v2875 = vsub.f32 1.0, %v2874
      %v2876 = vmul.f32 %v2873, %v2875
      %v2877 = vadd.f32 %v2873, %v2876
      %vm2878 = vweird.f32 %v2813
      %vm2879 = vweird.f32 %v2873
      %vm2880 = vmor %vm2878, %vm2879
      %v2881 = vsel %vm2880, %v2873, %v2877
      %v2882 = vand.u32 2147483647, %v2813
      %vm2883 = vcmp.eq.f32.partialorder %v2882, 8.507059e+37
      %v2884 = vand.u32 %v2813, 2147483648
      %v2885 = vor.u32 1.1754944e-38, %v2884
      %v2886 = vsel %vm2883, %v2885, %v2881
      %v2887 = vmul.f32 %v2626, %v2886
      %v2888 = vrcp.pop %v2814
      %v2889 = vmul.f32 %v2814, %v2888
      %v2890 = vsub.f32 1.0, %v2889
      %v2891 = vmul.f32 %v2888, %v2890
      %v2892 = vadd.f32 %v2888, %v2891
      %vm2893 = vweird.f32 %v2814
      %vm2894 = vweird.f32 %v2888
      %vm2895 = vmor %vm2893, %vm2894
      %v2896 = vsel %vm2895, %v2888, %v2892
      %v2897 = vand.u32 2147483647, %v2814
      %vm2898 = vcmp.eq.f32.partialorder %v2897, 8.507059e+37
      %v2899 = vand.u32 %v2814, 2147483648
      %v2900 = vor.u32 1.1754944e-38, %v2899
      %v2901 = vsel %vm2898, %v2900, %v2896
      %v2902 = vmul.f32 %v2629, %v2901
      %v2903 = vrcp.pop %v2815
      %v2904 = vmul.f32 %v2815, %v2903
      %v2905 = vsub.f32 1.0, %v2904
      %v2906 = vmul.f32 %v2903, %v2905
      %v2907 = vadd.f32 %v2903, %v2906
      %vm2908 = vweird.f32 %v2815
      %vm2909 = vweird.f32 %v2903
      %vm2910 = vmor %vm2908, %vm2909
      %v2911 = vsel %vm2910, %v2903, %v2907
      %v2912 = vand.u32 2147483647, %v2815
      %vm2913 = vcmp.eq.f32.partialorder %v2912, 8.507059e+37
      %v2914 = vand.u32 %v2815, 2147483648
      %v2915 = vor.u32 1.1754944e-38, %v2914
      %v2916 = vsel %vm2913, %v2915, %v2911
      %v2917 = vmul.f32 %v2632, %v2916
      %v2918 = vrcp.pop %v2816
      %v2919 = vmul.f32 %v2816, %v2918
      %v2920 = vsub.f32 1.0, %v2919
      %v2921 = vmul.f32 %v2918, %v2920
      %v2922 = vadd.f32 %v2918, %v2921
      %vm2923 = vweird.f32 %v2816
      %vm2924 = vweird.f32 %v2918
      %vm2925 = vmor %vm2923, %vm2924
      %v2926 = vsel %vm2925, %v2918, %v2922
      %v2927 = vand.u32 2147483647, %v2816
      %vm2928 = vcmp.eq.f32.partialorder %v2927, 8.507059e+37
      %v2929 = vand.u32 %v2816, 2147483648
      %v2930 = vor.u32 1.1754944e-38, %v2929
      %v2931 = vsel %vm2928, %v2930, %v2926
      %v2932 = vmul.f32 %v2635, %v2931
      %v2933 = vrcp.pop %v2817
      %v2934 = vmul.f32 %v2817, %v2933
      %v2935 = vsub.f32 1.0, %v2934
      %v2936 = vmul.f32 %v2933, %v2935
      %v2937 = vadd.f32 %v2933, %v2936
      %vm2938 = vweird.f32 %v2817
      %vm2939 = vweird.f32 %v2933
      %vm2940 = vmor %vm2938, %vm2939
      %v2941 = vsel %vm2940, %v2933, %v2937
      %v2942 = vand.u32 2147483647, %v2817
      %vm2943 = vcmp.eq.f32.partialorder %v2942, 8.507059e+37
      %v2944 = vand.u32 %v2817, 2147483648
      %v2945 = vor.u32 1.1754944e-38, %v2944
      %v2946 = vsel %vm2943, %v2945, %v2941
      %v2947 = vmul.f32 %v2638, %v2946
      %v2948 = vrcp.pop %v2818
      %v2949 = vmul.f32 %v2818, %v2948
      %v2950 = vsub.f32 1.0, %v2949
      %v2951 = vmul.f32 %v2948, %v2950
      %v2952 = vadd.f32 %v2948, %v2951
      %vm2953 = vweird.f32 %v2818
      %vm2954 = vweird.f32 %v2948
      %vm2955 = vmor %vm2953, %vm2954
      %v2956 = vsel %vm2955, %v2948, %v2952
      %v2957 = vand.u32 2147483647, %v2818
      %vm2958 = vcmp.eq.f32.partialorder %v2957, 8.507059e+37
      %v2959 = vand.u32 %v2818, 2147483648
      %v2960 = vor.u32 1.1754944e-38, %v2959
      %v2961 = vsel %vm2958, %v2960, %v2956
      %v2962 = vmul.f32 %v2641, %v2961
      %v2963 = vrcp.pop %v2819
      %v2964 = vmul.f32 %v2819, %v2963
      %v2965 = vsub.f32 1.0, %v2964
      %v2966 = vmul.f32 %v2963, %v2965
      %v2967 = vadd.f32 %v2963, %v2966
      %vm2968 = vweird.f32 %v2819
      %vm2969 = vweird.f32 %v2963
      %vm2970 = vmor %vm2968, %vm2969
      %v2971 = vsel %vm2970, %v2963, %v2967
      %v2972 = vand.u32 2147483647, %v2819
      %vm2973 = vcmp.eq.f32.partialorder %v2972, 8.507059e+37
      %v2974 = vand.u32 %v2819, 2147483648
      %v2975 = vor.u32 1.1754944e-38, %v2974
      %v2976 = vsel %vm2973, %v2975, %v2971
      %v2977 = vmul.f32 %v2644, %v2976
      %v2978 = vrcp.pop %v2820
      %v2979 = vmul.f32 %v2820, %v2978
      %v2980 = vsub.f32 1.0, %v2979
      %v2981 = vmul.f32 %v2978, %v2980
      %v2982 = vadd.f32 %v2978, %v2981
      %vm2983 = vweird.f32 %v2820
      %vm2984 = vweird.f32 %v2978
      %vm2985 = vmor %vm2983, %vm2984
      %v2986 = vsel %vm2985, %v2978, %v2982
      %v2987 = vand.u32 2147483647, %v2820
      %vm2988 = vcmp.eq.f32.partialorder %v2987, 8.507059e+37
      %v2989 = vand.u32 %v2820, 2147483648
      %v2990 = vor.u32 1.1754944e-38, %v2989
      %v2991 = vsel %vm2988, %v2990, %v2986
      %v2992 = vmul.f32 %v2647, %v2991
      %v2993 = vrcp.pop %v2821
      %v2994 = vmul.f32 %v2821, %v2993
      %v2995 = vsub.f32 1.0, %v2994
      %v2996 = vmul.f32 %v2993, %v2995
      %v2997 = vadd.f32 %v2993, %v2996
      %vm2998 = vweird.f32 %v2821
      %vm2999 = vweird.f32 %v2993
      %vm3000 = vmor %vm2998, %vm2999
      %v3001 = vsel %vm3000, %v2993, %v2997
      %v3002 = vand.u32 2147483647, %v2821
      %vm3003 = vcmp.eq.f32.partialorder %v3002, 8.507059e+37
      %v3004 = vand.u32 %v2821, 2147483648
      %v3005 = vor.u32 1.1754944e-38, %v3004
      %v3006 = vsel %vm3003, %v3005, %v3001
      %v3007 = vmul.f32 %v2650, %v3006
      %v3008 = vrcp.pop %v2822
      %v3009 = vmul.f32 %v2822, %v3008
      %v3010 = vsub.f32 1.0, %v3009
      %v3011 = vmul.f32 %v3008, %v3010
      %v3012 = vadd.f32 %v3008, %v3011
      %vm3013 = vweird.f32 %v2822
      %vm3014 = vweird.f32 %v3008
      %vm3015 = vmor %vm3013, %vm3014
      %v3016 = vsel %vm3015, %v3008, %v3012
      %v3017 = vand.u32 2147483647, %v2822
      %vm3018 = vcmp.eq.f32.partialorder %v3017, 8.507059e+37
      %v3019 = vand.u32 %v2822, 2147483648
      %v3020 = vor.u32 1.1754944e-38, %v3019
      %v3021 = vsel %vm3018, %v3020, %v3016
      %v3022 = vmul.f32 %v2653, %v3021
      %v3023 = vrcp.pop %v2823
      %v3024 = vmul.f32 %v2823, %v3023
      %v3025 = vsub.f32 1.0, %v3024
      %v3026 = vmul.f32 %v3023, %v3025
      %v3027 = vadd.f32 %v3023, %v3026
      %vm3028 = vweird.f32 %v2823
      %vm3029 = vweird.f32 %v3023
      %vm3030 = vmor %vm3028, %vm3029
      %v3031 = vsel %vm3030, %v3023, %v3027
      %v3032 = vand.u32 2147483647, %v2823
      %vm3033 = vcmp.eq.f32.partialorder %v3032, 8.507059e+37
      %v3034 = vand.u32 %v2823, 2147483648
      %v3035 = vor.u32 1.1754944e-38, %v3034
      %v3036 = vsel %vm3033, %v3035, %v3031
      %v3037 = vmul.f32 %v2656, %v3036
      %v3038 = vrcp.pop %v2824
      %v3039 = vmul.f32 %v2824, %v3038
      %v3040 = vsub.f32 1.0, %v3039
      %v3041 = vmul.f32 %v3038, %v3040
      %v3042 = vadd.f32 %v3038, %v3041
      %vm3043 = vweird.f32 %v2824
      %vm3044 = vweird.f32 %v3038
      %vm3045 = vmor %vm3043, %vm3044
      %v3046 = vsel %vm3045, %v3038, %v3042
      %v3047 = vand.u32 2147483647, %v2824
      %vm3048 = vcmp.eq.f32.partialorder %v3047, 8.507059e+37
      %v3049 = vand.u32 %v2824, 2147483648
      %v3050 = vor.u32 1.1754944e-38, %v3049
      %v3051 = vsel %vm3048, %v3050, %v3046
      %v3052 = vmul.f32 %v2659, %v3051
      %v3053 = vrcp.pop %v2825
      %v3054 = vmul.f32 %v2825, %v3053
      %v3055 = vsub.f32 1.0, %v3054
      %v3056 = vmul.f32 %v3053, %v3055
      %v3057 = vadd.f32 %v3053, %v3056
      %vm3058 = vweird.f32 %v2825
      %vm3059 = vweird.f32 %v3053
      %vm3060 = vmor %vm3058, %vm3059
      %v3061 = vsel %vm3060, %v3053, %v3057
      %v3062 = vand.u32 2147483647, %v2825
      %vm3063 = vcmp.eq.f32.partialorder %v3062, 8.507059e+37
      %v3064 = vand.u32 %v2825, 2147483648
      %v3065 = vor.u32 1.1754944e-38, %v3064
      %v3066 = vsel %vm3063, %v3065, %v3061
      %v3067 = vmul.f32 %v2662, %v3066
      %v3068 = vrcp.pop %v2826
      %v3069 = vmul.f32 %v2826, %v3068
      %v3070 = vsub.f32 1.0, %v3069
      %v3071 = vmul.f32 %v3068, %v3070
      %v3072 = vadd.f32 %v3068, %v3071
      %vm3073 = vweird.f32 %v2826
      %vm3074 = vweird.f32 %v3068
      %vm3075 = vmor %vm3073, %vm3074
      %v3076 = vsel %vm3075, %v3068, %v3072
      %v3077 = vand.u32 2147483647, %v2826
      %vm3078 = vcmp.eq.f32.partialorder %v3077, 8.507059e+37
      %v3079 = vand.u32 %v2826, 2147483648
      %v3080 = vor.u32 1.1754944e-38, %v3079
      %v3081 = vsel %vm3078, %v3080, %v3076
      %v3082 = vmul.f32 %v2665, %v3081
      %v3083 = vrcp.pop %v2827
      %v3084 = vmul.f32 %v2827, %v3083
      %v3085 = vsub.f32 1.0, %v3084
      %v3086 = vmul.f32 %v3083, %v3085
      %v3087 = vadd.f32 %v3083, %v3086
      %vm3088 = vweird.f32 %v2827
      %vm3089 = vweird.f32 %v3083
      %vm3090 = vmor %vm3088, %vm3089
      %v3091 = vsel %vm3090, %v3083, %v3087
      %v3092 = vand.u32 2147483647, %v2827
      %vm3093 = vcmp.eq.f32.partialorder %v3092, 8.507059e+37
      %v3094 = vand.u32 %v2827, 2147483648
      %v3095 = vor.u32 1.1754944e-38, %v3094
      %v3096 = vsel %vm3093, %v3095, %v3091
      %v3097 = vmul.f32 %v2668, %v3096
      %v3098 = vrcp.pop %v2828
      %v3099 = vmul.f32 %v2828, %v3098
      %v3100 = vsub.f32 1.0, %v3099
      %v3101 = vmul.f32 %v3098, %v3100
      %v3102 = vadd.f32 %v3098, %v3101
      %vm3103 = vweird.f32 %v2828
      %vm3104 = vweird.f32 %v3098
      %vm3105 = vmor %vm3103, %vm3104
      %v3106 = vsel %vm3105, %v3098, %v3102
      %v3107 = vand.u32 2147483647, %v2828
      %vm3108 = vcmp.eq.f32.partialorder %v3107, 8.507059e+37
      %v3109 = vand.u32 %v2828, 2147483648
      %v3110 = vor.u32 1.1754944e-38, %v3109
      %v3111 = vsel %vm3108, %v3110, %v3106
      %v3112 = vmul.f32 %v2671, %v3111
      %v3113 = vrcp.pop %v2829
      %v3114 = vmul.f32 %v2829, %v3113
      %v3115 = vsub.f32 1.0, %v3114
      %v3116 = vmul.f32 %v3113, %v3115
      %v3117 = vadd.f32 %v3113, %v3116
      %vm3118 = vweird.f32 %v2829
      %vm3119 = vweird.f32 %v3113
      %vm3120 = vmor %vm3118, %vm3119
      %v3121 = vsel %vm3120, %v3113, %v3117
      %v3122 = vand.u32 2147483647, %v2829
      %vm3123 = vcmp.eq.f32.partialorder %v3122, 8.507059e+37
      %v3124 = vand.u32 %v2829, 2147483648
      %v3125 = vor.u32 1.1754944e-38, %v3124
      %v3126 = vsel %vm3123, %v3125, %v3121
      %v3127 = vmul.f32 %v2674, %v3126
      %v3128 = vrcp.pop %v2830
      %v3129 = vmul.f32 %v2830, %v3128
      %v3130 = vsub.f32 1.0, %v3129
      %v3131 = vmul.f32 %v3128, %v3130
      %v3132 = vadd.f32 %v3128, %v3131
      %vm3133 = vweird.f32 %v2830
      %vm3134 = vweird.f32 %v3128
      %vm3135 = vmor %vm3133, %vm3134
      %v3136 = vsel %vm3135, %v3128, %v3132
      %v3137 = vand.u32 2147483647, %v2830
      %vm3138 = vcmp.eq.f32.partialorder %v3137, 8.507059e+37
      %v3139 = vand.u32 %v2830, 2147483648
      %v3140 = vor.u32 1.1754944e-38, %v3139
      %v3141 = vsel %vm3138, %v3140, %v3136
      %v3142 = vmul.f32 %v2677, %v3141
      %v3143 = vrcp.pop %v2831
      %v3144 = vmul.f32 %v2831, %v3143
      %v3145 = vsub.f32 1.0, %v3144
      %v3146 = vmul.f32 %v3143, %v3145
      %v3147 = vadd.f32 %v3143, %v3146
      %vm3148 = vweird.f32 %v2831
      %vm3149 = vweird.f32 %v3143
      %vm3150 = vmor %vm3148, %vm3149
      %v3151 = vsel %vm3150, %v3143, %v3147
      %v3152 = vand.u32 2147483647, %v2831
      %vm3153 = vcmp.eq.f32.partialorder %v3152, 8.507059e+37
      %v3154 = vand.u32 %v2831, 2147483648
      %v3155 = vor.u32 1.1754944e-38, %v3154
      %v3156 = vsel %vm3153, %v3155, %v3151
      %v3157 = vmul.f32 %v2680, %v3156
      %v3158 = vrcp.pop %v2832
      %v3159 = vmul.f32 %v2832, %v3158
      %v3160 = vsub.f32 1.0, %v3159
      %v3161 = vmul.f32 %v3158, %v3160
      %v3162 = vadd.f32 %v3158, %v3161
      %vm3163 = vweird.f32 %v2832
      %vm3164 = vweird.f32 %v3158
      %vm3165 = vmor %vm3163, %vm3164
      %v3166 = vsel %vm3165, %v3158, %v3162
      %v3167 = vand.u32 2147483647, %v2832
      %vm3168 = vcmp.eq.f32.partialorder %v3167, 8.507059e+37
      %v3169 = vand.u32 %v2832, 2147483648
      %v3170 = vor.u32 1.1754944e-38, %v3169
      %v3171 = vsel %vm3168, %v3170, %v3166
      %v3172 = vmul.f32 %v2683, %v3171
      %v3173 = vrcp.pop %v2833
      %v3174 = vmul.f32 %v2833, %v3173
      %v3175 = vsub.f32 1.0, %v3174
      %v3176 = vmul.f32 %v3173, %v3175
      %v3177 = vadd.f32 %v3173, %v3176
      %vm3178 = vweird.f32 %v2833
      %vm3179 = vweird.f32 %v3173
      %vm3180 = vmor %vm3178, %vm3179
      %v3181 = vsel %vm3180, %v3173, %v3177
      %v3182 = vand.u32 2147483647, %v2833
      %vm3183 = vcmp.eq.f32.partialorder %v3182, 8.507059e+37
      %v3184 = vand.u32 %v2833, 2147483648
      %v3185 = vor.u32 1.1754944e-38, %v3184
      %v3186 = vsel %vm3183, %v3185, %v3181
      %v3187 = vmul.f32 %v2686, %v3186
      %v3188 = vrcp.pop %v2834
      %v3189 = vmul.f32 %v2834, %v3188
      %v3190 = vsub.f32 1.0, %v3189
      %v3191 = vmul.f32 %v3188, %v3190
      %v3192 = vadd.f32 %v3188, %v3191
      %vm3193 = vweird.f32 %v2834
      %vm3194 = vweird.f32 %v3188
      %vm3195 = vmor %vm3193, %vm3194
      %v3196 = vsel %vm3195, %v3188, %v3192
      %v3197 = vand.u32 2147483647, %v2834
      %vm3198 = vcmp.eq.f32.partialorder %v3197, 8.507059e+37
      %v3199 = vand.u32 %v2834, 2147483648
      %v3200 = vor.u32 1.1754944e-38, %v3199
      %v3201 = vsel %vm3198, %v3200, %v3196
      %v3202 = vmul.f32 %v2689, %v3201
      %v3203 = vrcp.pop %v2835
      %v3204 = vmul.f32 %v2835, %v3203
      %v3205 = vsub.f32 1.0, %v3204
      %v3206 = vmul.f32 %v3203, %v3205
      %v3207 = vadd.f32 %v3203, %v3206
      %vm3208 = vweird.f32 %v2835
      %vm3209 = vweird.f32 %v3203
      %vm3210 = vmor %vm3208, %vm3209
      %v3211 = vsel %vm3210, %v3203, %v3207
      %v3212 = vand.u32 2147483647, %v2835
      %vm3213 = vcmp.eq.f32.partialorder %v3212, 8.507059e+37
      %v3214 = vand.u32 %v2835, 2147483648
      %v3215 = vor.u32 1.1754944e-38, %v3214
      %v3216 = vsel %vm3213, %v3215, %v3211
      %v3217 = vmul.f32 %v2692, %v3216
      %v3218 = vrcp.pop %v2836
      %v3219 = vmul.f32 %v2836, %v3218
      %v3220 = vsub.f32 1.0, %v3219
      %v3221 = vmul.f32 %v3218, %v3220
      %v3222 = vadd.f32 %v3218, %v3221
      %vm3223 = vweird.f32 %v2836
      %vm3224 = vweird.f32 %v3218
      %vm3225 = vmor %vm3223, %vm3224
      %v3226 = vsel %vm3225, %v3218, %v3222
      %v3227 = vand.u32 2147483647, %v2836
      %vm3228 = vcmp.eq.f32.partialorder %v3227, 8.507059e+37
      %v3229 = vand.u32 %v2836, 2147483648
      %v3230 = vor.u32 1.1754944e-38, %v3229
      %v3231 = vsel %vm3228, %v3230, %v3226
      %v3232 = vmul.f32 %v2695, %v3231
      %v3233 = vrcp.pop %v2837
      %v3234 = vmul.f32 %v2837, %v3233
      %v3235 = vsub.f32 1.0, %v3234
      %v3236 = vmul.f32 %v3233, %v3235
      %v3237 = vadd.f32 %v3233, %v3236
      %vm3238 = vweird.f32 %v2837
      %vm3239 = vweird.f32 %v3233
      %vm3240 = vmor %vm3238, %vm3239
      %v3241 = vsel %vm3240, %v3233, %v3237
      %v3242 = vand.u32 2147483647, %v2837
      %vm3243 = vcmp.eq.f32.partialorder %v3242, 8.507059e+37
      %v3244 = vand.u32 %v2837, 2147483648
      %v3245 = vor.u32 1.1754944e-38, %v3244
      %v3246 = vsel %vm3243, %v3245, %v3241
      %v3247 = vmul.f32 %v2698, %v3246
      %v3248 = vrcp.pop %v2838
      %v3249 = vmul.f32 %v2838, %v3248
      %v3250 = vsub.f32 1.0, %v3249
      %v3251 = vmul.f32 %v3248, %v3250
      %v3252 = vadd.f32 %v3248, %v3251
      %vm3253 = vweird.f32 %v2838
      %vm3254 = vweird.f32 %v3248
      %vm3255 = vmor %vm3253, %vm3254
      %v3256 = vsel %vm3255, %v3248, %v3252
      %v3257 = vand.u32 2147483647, %v2838
      %vm3258 = vcmp.eq.f32.partialorder %v3257, 8.507059e+37
      %v3259 = vand.u32 %v2838, 2147483648
      %v3260 = vor.u32 1.1754944e-38, %v3259
      %v3261 = vsel %vm3258, %v3260, %v3256
      %v3262 = vmul.f32 %v2701, %v3261
      %v3263 = vrcp.pop %v2839
      %v3264 = vmul.f32 %v2839, %v3263
      %v3265 = vsub.f32 1.0, %v3264
      %v3266 = vmul.f32 %v3263, %v3265
      %v3267 = vadd.f32 %v3263, %v3266
      %vm3268 = vweird.f32 %v2839
      %vm3269 = vweird.f32 %v3263
      %vm3270 = vmor %vm3268, %vm3269
      %v3271 = vsel %vm3270, %v3263, %v3267
      %v3272 = vand.u32 2147483647, %v2839
      %vm3273 = vcmp.eq.f32.partialorder %v3272, 8.507059e+37
      %v3274 = vand.u32 %v2839, 2147483648
      %v3275 = vor.u32 1.1754944e-38, %v3274
      %v3276 = vsel %vm3273, %v3275, %v3271
      %v3277 = vmul.f32 %v2704, %v3276
      %v3278 = vrcp.pop %v2840
      %v3279 = vmul.f32 %v2840, %v3278
      %v3280 = vsub.f32 1.0, %v3279
      %v3281 = vmul.f32 %v3278, %v3280
      %v3282 = vadd.f32 %v3278, %v3281
      %vm3283 = vweird.f32 %v2840
      %vm3284 = vweird.f32 %v3278
      %vm3285 = vmor %vm3283, %vm3284
      %v3286 = vsel %vm3285, %v3278, %v3282
      %v3287 = vand.u32 2147483647, %v2840
      %vm3288 = vcmp.eq.f32.partialorder %v3287, 8.507059e+37
      %v3289 = vand.u32 %v2840, 2147483648
      %v3290 = vor.u32 1.1754944e-38, %v3289
      %v3291 = vsel %vm3288, %v3290, %v3286
      %v3292 = vmul.f32 %v2707, %v3291
      %v3293 = vrcp.pop %v2841
      %v3294 = vmul.f32 %v2841, %v3293
      %v3295 = vsub.f32 1.0, %v3294
      %v3296 = vmul.f32 %v3293, %v3295
      %v3297 = vadd.f32 %v3293, %v3296
      %vm3298 = vweird.f32 %v2841
      %vm3299 = vweird.f32 %v3293
      %vm3300 = vmor %vm3298, %vm3299
      %v3301 = vsel %vm3300, %v3293, %v3297
      %v3302 = vand.u32 2147483647, %v2841
      %vm3303 = vcmp.eq.f32.partialorder %v3302, 8.507059e+37
      %v3304 = vand.u32 %v2841, 2147483648
      %v3305 = vor.u32 1.1754944e-38, %v3304
      %v3306 = vsel %vm3303, %v3305, %v3301
      %v3307 = vmul.f32 %v2710, %v3306
      %v3308 = vrcp.pop %v2842
      %v3309 = vmul.f32 %v2842, %v3308
      %v3310 = vsub.f32 1.0, %v3309
      %v3311 = vmul.f32 %v3308, %v3310
      %v3312 = vadd.f32 %v3308, %v3311
      %vm3313 = vweird.f32 %v2842
      %vm3314 = vweird.f32 %v3308
      %vm3315 = vmor %vm3313, %vm3314
      %v3316 = vsel %vm3315, %v3308, %v3312
      %v3317 = vand.u32 2147483647, %v2842
      %vm3318 = vcmp.eq.f32.partialorder %v3317, 8.507059e+37
      %v3319 = vand.u32 %v2842, 2147483648
      %v3320 = vor.u32 1.1754944e-38, %v3319
      %v3321 = vsel %vm3318, %v3320, %v3316
      %v3322 = vmul.f32 %v2713, %v3321
      %3323 = vst.msk [vmem:[%s1140 + $0x1] sm:$0xff] %vm746, %v2857
      %3324 = vst.msk [vmem:[%s1140 + $0x9] sm:$0xff] %vm746, %v2872
      %3325 = vst.msk [vmem:[%s1140 + $0x19] sm:$0xff] %vm746, %v2887
      %3326 = vst.msk [vmem:[%s1140 + $0x21] sm:$0xff] %vm746, %v2902
      %3327 = vst.msk [vmem:[%s1140 + $0x31] sm:$0xff] %vm746, %v2917
      %3328 = vst.msk [vmem:[%s1140 + $0x39] sm:$0xff] %vm746, %v2932
      %3329 = vst.msk [vmem:[%s1140 + $0x49] sm:$0xff] %vm746, %v2947
      %3330 = vst.msk [vmem:[%s1140 + $0x51] sm:$0xff] %vm746, %v2962
      %3331 = vst.msk [vmem:[%s1140 + $0x61] sm:$0xff] %vm746, %v2977
      %3332 = vst.msk [vmem:[%s1140 + $0x69] sm:$0xff] %vm746, %v2992
      %3333 = vst.msk [vmem:[%s1140 + $0x79] sm:$0xff] %vm746, %v3007
      %3334 = vst.msk [vmem:[%s1140 + $0x81] sm:$0xff] %vm746, %v3022
      %3335 = vst.msk [vmem:[%s1140 + $0x91] sm:$0xff] %vm746, %v3037
      %3336 = vst.msk [vmem:[%s1140 + $0x99] sm:$0xff] %vm746, %v3052
      %3337 = vst.msk [vmem:[%s1140 + $0xa9] sm:$0xff] %vm746, %v3067
      %3338 = vst.msk [vmem:[%s1140 + $0xb1] sm:$0xff] %vm746, %v3082
      %3339 = vst.msk [vmem:[%s1140 + $0xc1] sm:$0xff] %vm746, %v3097
      %3340 = vst.msk [vmem:[%s1140 + $0xc9] sm:$0xff] %vm746, %v3112
      %3341 = vst.msk [vmem:[%s1140 + $0xd9] sm:$0xff] %vm746, %v3127
      %3342 = vst.msk [vmem:[%s1140 + $0xe1] sm:$0xff] %vm746, %v3142
      %3343 = vst.msk [vmem:[%s1140 + $0xf1] sm:$0xff] %vm746, %v3157
      %3344 = vst.msk [vmem:[%s1140 + $0xf9] sm:$0xff] %vm746, %v3172
      %3345 = vst.msk [vmem:[%s1140 + $0x109] sm:$0xff] %vm746, %v3187
      %3346 = vst.msk [vmem:[%s1140 + $0x111] sm:$0xff] %vm746, %v3202
      %3347 = vst.msk [vmem:[%s1140 + $0x121] sm:$0xff] %vm746, %v3217
      %3348 = vst.msk [vmem:[%s1140 + $0x129] sm:$0xff] %vm746, %v3232
      %3349 = vst.msk [vmem:[%s1140 + $0x139] sm:$0xff] %vm746, %v3247
      %3350 = vst.msk [vmem:[%s1140 + $0x141] sm:$0xff] %vm746, %v3262
      %3351 = vst.msk [vmem:[%s1140 + $0x151] sm:$0xff] %vm746, %v3277
      %3352 = vst.msk [vmem:[%s1140 + $0x159] sm:$0xff] %vm746, %v3292
      %3353 = vst.msk [vmem:[%s1140 + $0x169] sm:$0xff] %vm746, %v3307
      %3354 = vst.msk [vmem:[%s1140 + $0x171] sm:$0xff] %vm746, %v3322
      %v3355 = vld [vmem:[#allocation2] sm:$0xff]
      %v3356 = vld [vmem:[#allocation2 + $0x8] sm:$0xff]
      %v3357 = vld [vmem:[#allocation2 + $0x10] sm:$0x3]
      %v3358 = vld [vmem:[#allocation2 + $0x18] sm:$0xff]
      %v3359 = vld [vmem:[#allocation2 + $0x20] sm:$0xff]
      %v3360 = vld [vmem:[#allocation2 + $0x28] sm:$0x3]
      %v3361 = vld [vmem:[#allocation2 + $0x30] sm:$0xff]
      %v3362 = vld [vmem:[#allocation2 + $0x38] sm:$0xff]
      %v3363 = vld [vmem:[#allocation2 + $0x40] sm:$0x3]
      %v3364 = vld [vmem:[#allocation2 + $0x48] sm:$0xff]
      %v3365 = vld [vmem:[#allocation2 + $0x50] sm:$0xff]
      %v3366 = vld [vmem:[#allocation2 + $0x58] sm:$0x3]
      %v3367 = vld [vmem:[#allocation2 + $0x60] sm:$0xff]
      %v3368 = vld [vmem:[#allocation2 + $0x68] sm:$0xff]
      %v3369 = vld [vmem:[#allocation2 + $0x70] sm:$0x3]
      %v3370 = vld [vmem:[#allocation2 + $0x78] sm:$0xff]
      %v3371 = vld [vmem:[#allocation2 + $0x80] sm:$0xff]
      %v3372 = vld [vmem:[#allocation2 + $0x88] sm:$0x3]
      %v3373 = vld [vmem:[#allocation2 + $0x90] sm:$0xff]
      %v3374 = vld [vmem:[#allocation2 + $0x98] sm:$0xff]
      %v3375 = vld [vmem:[#allocation2 + $0xa0] sm:$0x3]
      %v3376 = vld [vmem:[#allocation2 + $0xa8] sm:$0xff]
      %v3377 = vld [vmem:[#allocation2 + $0xb0] sm:$0xff]
      %v3378 = vld [vmem:[#allocation2 + $0xb8] sm:$0x3]
      %v3379 = vld [vmem:[#allocation2 + $0xc0] sm:$0xff]
      %v3380 = vld [vmem:[#allocation2 + $0xc8] sm:$0xff]
      %v3381 = vld [vmem:[#allocation2 + $0xd0] sm:$0x3]
      %v3382 = vld [vmem:[#allocation2 + $0xd8] sm:$0xff]
      %v3383 = vld [vmem:[#allocation2 + $0xe0] sm:$0xff]
      %v3384 = vld [vmem:[#allocation2 + $0xe8] sm:$0x3]
      %v3385 = vld [vmem:[#allocation2 + $0xf0] sm:$0xff]
      %v3386 = vld [vmem:[#allocation2 + $0xf8] sm:$0xff]
      %v3387 = vld [vmem:[#allocation2 + $0x100] sm:$0x3]
      %v3388 = vld [vmem:[#allocation2 + $0x108] sm:$0xff]
      %v3389 = vld [vmem:[#allocation2 + $0x110] sm:$0xff]
      %v3390 = vld [vmem:[#allocation2 + $0x118] sm:$0x3]
      %v3391 = vld [vmem:[#allocation2 + $0x120] sm:$0xff]
      %v3392 = vld [vmem:[#allocation2 + $0x128] sm:$0xff]
      %v3393 = vld [vmem:[#allocation2 + $0x130] sm:$0x3]
      %v3394 = vld [vmem:[#allocation2 + $0x138] sm:$0xff]
      %v3395 = vld [vmem:[#allocation2 + $0x140] sm:$0xff]
      %v3396 = vld [vmem:[#allocation2 + $0x148] sm:$0x3]
      %v3397 = vld [vmem:[#allocation2 + $0x150] sm:$0xff]
      %v3398 = vld [vmem:[#allocation2 + $0x158] sm:$0xff]
      %v3399 = vld [vmem:[#allocation2 + $0x160] sm:$0x3]
      %v3400 = vld [vmem:[#allocation2 + $0x168] sm:$0xff]
      %v3401 = vld [vmem:[#allocation2 + $0x170] sm:$0xff]
      %v3402 = vld [vmem:[#allocation2 + $0x178] sm:$0x3]
      %v3403 = vld [vmem:[#allocation2 + $0x180] sm:$0xff]
      %v3404 = vld [vmem:[#allocation2 + $0x188] sm:$0xff]
      %v3405 = vld [vmem:[#allocation2 + $0x190] sm:$0x3]
      %v3406 = vld [vmem:[#allocation2 + $0x198] sm:$0xff]
      %v3407 = vld [vmem:[#allocation2 + $0x1a0] sm:$0xff]
      %v3408 = vld [vmem:[#allocation2 + $0x1a8] sm:$0x3]
      %v3457 = vrot.slane %v3355, 1
      %v3458 = vrot.slane %v3356, 1
      %v3459 = vsel %vm1275, %v3457, %v3458
      %v3460 = vrot.slane %v3357, 1
      %v3461 = vsel %vm1275, %v3458, %v3460
      %v3462 = vrot.slane %v3358, 1
      %v3463 = vrot.slane %v3359, 1
      %v3464 = vsel %vm1275, %v3462, %v3463
      %v3465 = vrot.slane %v3360, 1
      %v3466 = vsel %vm1275, %v3463, %v3465
      %v3467 = vrot.slane %v3361, 1
      %v3468 = vrot.slane %v3362, 1
      %v3469 = vsel %vm1275, %v3467, %v3468
      %v3470 = vrot.slane %v3363, 1
      %v3471 = vsel %vm1275, %v3468, %v3470
      %v3472 = vrot.slane %v3364, 1
      %v3473 = vrot.slane %v3365, 1
      %v3474 = vsel %vm1275, %v3472, %v3473
      %v3475 = vrot.slane %v3366, 1
      %v3476 = vsel %vm1275, %v3473, %v3475
      %v3477 = vrot.slane %v3367, 1
      %v3478 = vrot.slane %v3368, 1
      %v3479 = vsel %vm1275, %v3477, %v3478
      %v3480 = vrot.slane %v3369, 1
      %v3481 = vsel %vm1275, %v3478, %v3480
      %v3482 = vrot.slane %v3370, 1
      %v3483 = vrot.slane %v3371, 1
      %v3484 = vsel %vm1275, %v3482, %v3483
      %v3485 = vrot.slane %v3372, 1
      %v3486 = vsel %vm1275, %v3483, %v3485
      %v3487 = vrot.slane %v3373, 1
      %v3488 = vrot.slane %v3374, 1
      %v3489 = vsel %vm1275, %v3487, %v3488
      %v3490 = vrot.slane %v3375, 1
      %v3491 = vsel %vm1275, %v3488, %v3490
      %v3492 = vrot.slane %v3376, 1
      %v3493 = vrot.slane %v3377, 1
      %v3494 = vsel %vm1275, %v3492, %v3493
      %v3495 = vrot.slane %v3378, 1
      %v3496 = vsel %vm1275, %v3493, %v3495
      %v3497 = vrot.slane %v3379, 1
      %v3498 = vrot.slane %v3380, 1
      %v3499 = vsel %vm1275, %v3497, %v3498
      %v3500 = vrot.slane %v3381, 1
      %v3501 = vsel %vm1275, %v3498, %v3500
      %v3502 = vrot.slane %v3382, 1
      %v3503 = vrot.slane %v3383, 1
      %v3504 = vsel %vm1275, %v3502, %v3503
      %v3505 = vrot.slane %v3384, 1
      %v3506 = vsel %vm1275, %v3503, %v3505
      %v3507 = vrot.slane %v3385, 1
      %v3508 = vrot.slane %v3386, 1
      %v3509 = vsel %vm1275, %v3507, %v3508
      %v3510 = vrot.slane %v3387, 1
      %v3511 = vsel %vm1275, %v3508, %v3510
      %v3512 = vrot.slane %v3388, 1
      %v3513 = vrot.slane %v3389, 1
      %v3514 = vsel %vm1275, %v3512, %v3513
      %v3515 = vrot.slane %v3390, 1
      %v3516 = vsel %vm1275, %v3513, %v3515
      %v3517 = vrot.slane %v3391, 1
      %v3518 = vrot.slane %v3392, 1
      %v3519 = vsel %vm1275, %v3517, %v3518
      %v3520 = vrot.slane %v3393, 1
      %v3521 = vsel %vm1275, %v3518, %v3520
      %v3522 = vrot.slane %v3394, 1
      %v3523 = vrot.slane %v3395, 1
      %v3524 = vsel %vm1275, %v3522, %v3523
      %v3525 = vrot.slane %v3396, 1
      %v3526 = vsel %vm1275, %v3523, %v3525
      %v3527 = vrot.slane %v3397, 1
      %v3528 = vrot.slane %v3398, 1
      %v3529 = vsel %vm1275, %v3527, %v3528
      %v3530 = vrot.slane %v3399, 1
      %v3531 = vsel %vm1275, %v3528, %v3530
      %v3532 = vrot.slane %v3400, 1
      %v3533 = vrot.slane %v3401, 1
      %v3534 = vsel %vm1275, %v3532, %v3533
      %v3535 = vrot.slane %v3402, 1
      %v3536 = vsel %vm1275, %v3533, %v3535
      %3537 = vrot.lane.b32.xlu0 %v3459, 8
      %v3538 = vpop.permute.xlu0 %3537
      %3539 = vrot.lane.b32.xlu0 %v3461, 8
      %v3540 = vpop.permute.xlu0 %3539
      %3541 = vrot.lane.b32.xlu0 %v3464, 8
      %v3542 = vpop.permute.xlu0 %3541
      %3543 = vrot.lane.b32.xlu0 %v3466, 8
      %v3544 = vpop.permute.xlu0 %3543
      %3545 = vrot.lane.b32.xlu0 %v3469, 8
      %v3546 = vpop.permute.xlu0 %3545
      %3547 = vrot.lane.b32.xlu0 %v3471, 8
      %v3548 = vpop.permute.xlu0 %3547
      %3549 = vrot.lane.b32.xlu0 %v3474, 8
      %v3550 = vpop.permute.xlu0 %3549
      %3551 = vrot.lane.b32.xlu0 %v3476, 8
      %v3552 = vpop.permute.xlu0 %3551
      %3553 = vrot.lane.b32.xlu0 %v3479, 8
      %v3554 = vpop.permute.xlu0 %3553
      %3555 = vrot.lane.b32.xlu0 %v3481, 8
      %v3556 = vpop.permute.xlu0 %3555
      %3557 = vrot.lane.b32.xlu0 %v3484, 8
      %v3558 = vpop.permute.xlu0 %3557
      %3559 = vrot.lane.b32.xlu0 %v3486, 8
      %v3560 = vpop.permute.xlu0 %3559
      %3561 = vrot.lane.b32.xlu0 %v3489, 8
      %v3562 = vpop.permute.xlu0 %3561
      %3563 = vrot.lane.b32.xlu0 %v3491, 8
      %v3564 = vpop.permute.xlu0 %3563
      %3565 = vrot.lane.b32.xlu0 %v3494, 8
      %v3566 = vpop.permute.xlu0 %3565
      %3567 = vrot.lane.b32.xlu0 %v3496, 8
      %v3568 = vpop.permute.xlu0 %3567
      %3569 = vrot.lane.b32.xlu0 %v3499, 8
      %v3570 = vpop.permute.xlu0 %3569
      %3571 = vrot.lane.b32.xlu0 %v3501, 8
      %v3572 = vpop.permute.xlu0 %3571
      %3573 = vrot.lane.b32.xlu0 %v3504, 8
      %v3574 = vpop.permute.xlu0 %3573
      %3575 = vrot.lane.b32.xlu0 %v3506, 8
      %v3576 = vpop.permute.xlu0 %3575
      %3577 = vrot.lane.b32.xlu0 %v3509, 8
      %v3578 = vpop.permute.xlu0 %3577
      %3579 = vrot.lane.b32.xlu0 %v3511, 8
      %v3580 = vpop.permute.xlu0 %3579
      %3581 = vrot.lane.b32.xlu0 %v3514, 8
      %v3582 = vpop.permute.xlu0 %3581
      %3583 = vrot.lane.b32.xlu0 %v3516, 8
      %v3584 = vpop.permute.xlu0 %3583
      %3585 = vrot.lane.b32.xlu0 %v3519, 8
      %v3586 = vpop.permute.xlu0 %3585
      %3587 = vrot.lane.b32.xlu0 %v3521, 8
      %v3588 = vpop.permute.xlu0 %3587
      %3589 = vrot.lane.b32.xlu0 %v3524, 8
      %v3590 = vpop.permute.xlu0 %3589
      %3591 = vrot.lane.b32.xlu0 %v3526, 8
      %v3592 = vpop.permute.xlu0 %3591
      %3593 = vrot.lane.b32.xlu0 %v3529, 8
      %v3594 = vpop.permute.xlu0 %3593
      %3595 = vrot.lane.b32.xlu0 %v3531, 8
      %v3596 = vpop.permute.xlu0 %3595
      %3597 = vrot.lane.b32.xlu0 %v3534, 8
      %v3598 = vpop.permute.xlu0 %3597
      %3599 = vrot.lane.b32.xlu0 %v3536, 8
      %v3600 = vpop.permute.xlu0 %3599
      %v3633 = vrot.slane %v3355, 2
      %v3634 = vrot.slane %v3356, 2
      %v3635 = vsel %vm1452, %v3633, %v3634
      %v3636 = vrot.slane %v3357, 2
      %v3637 = vsel %vm1452, %v3634, %v3636
      %v3638 = vrot.slane %v3358, 2
      %v3639 = vrot.slane %v3359, 2
      %v3640 = vsel %vm1452, %v3638, %v3639
      %v3641 = vrot.slane %v3360, 2
      %v3642 = vsel %vm1452, %v3639, %v3641
      %v3643 = vrot.slane %v3361, 2
      %v3644 = vrot.slane %v3362, 2
      %v3645 = vsel %vm1452, %v3643, %v3644
      %v3646 = vrot.slane %v3363, 2
      %v3647 = vsel %vm1452, %v3644, %v3646
      %v3648 = vrot.slane %v3364, 2
      %v3649 = vrot.slane %v3365, 2
      %v3650 = vsel %vm1452, %v3648, %v3649
      %v3651 = vrot.slane %v3366, 2
      %v3652 = vsel %vm1452, %v3649, %v3651
      %v3653 = vrot.slane %v3367, 2
      %v3654 = vrot.slane %v3368, 2
      %v3655 = vsel %vm1452, %v3653, %v3654
      %v3656 = vrot.slane %v3369, 2
      %v3657 = vsel %vm1452, %v3654, %v3656
      %v3658 = vrot.slane %v3370, 2
      %v3659 = vrot.slane %v3371, 2
      %v3660 = vsel %vm1452, %v3658, %v3659
      %v3661 = vrot.slane %v3372, 2
      %v3662 = vsel %vm1452, %v3659, %v3661
      %v3663 = vrot.slane %v3373, 2
      %v3664 = vrot.slane %v3374, 2
      %v3665 = vsel %vm1452, %v3663, %v3664
      %v3666 = vrot.slane %v3375, 2
      %v3667 = vsel %vm1452, %v3664, %v3666
      %v3668 = vrot.slane %v3376, 2
      %v3669 = vrot.slane %v3377, 2
      %v3670 = vsel %vm1452, %v3668, %v3669
      %v3671 = vrot.slane %v3378, 2
      %v3672 = vsel %vm1452, %v3669, %v3671
      %v3673 = vrot.slane %v3379, 2
      %v3674 = vrot.slane %v3380, 2
      %v3675 = vsel %vm1452, %v3673, %v3674
      %v3676 = vrot.slane %v3381, 2
      %v3677 = vsel %vm1452, %v3674, %v3676
      %v3678 = vrot.slane %v3382, 2
      %v3679 = vrot.slane %v3383, 2
      %v3680 = vsel %vm1452, %v3678, %v3679
      %v3681 = vrot.slane %v3384, 2
      %v3682 = vsel %vm1452, %v3679, %v3681
      %v3683 = vrot.slane %v3385, 2
      %v3684 = vrot.slane %v3386, 2
      %v3685 = vsel %vm1452, %v3683, %v3684
      %v3686 = vrot.slane %v3387, 2
      %v3687 = vsel %vm1452, %v3684, %v3686
      %v3688 = vrot.slane %v3388, 2
      %v3689 = vrot.slane %v3389, 2
      %v3690 = vsel %vm1452, %v3688, %v3689
      %v3691 = vrot.slane %v3390, 2
      %v3692 = vsel %vm1452, %v3689, %v3691
      %v3693 = vrot.slane %v3391, 2
      %v3694 = vrot.slane %v3392, 2
      %v3695 = vsel %vm1452, %v3693, %v3694
      %v3696 = vrot.slane %v3393, 2
      %v3697 = vsel %vm1452, %v3694, %v3696
      %v3698 = vrot.slane %v3394, 2
      %v3699 = vrot.slane %v3395, 2
      %v3700 = vsel %vm1452, %v3698, %v3699
      %v3701 = vrot.slane %v3396, 2
      %v3702 = vsel %vm1452, %v3699, %v3701
      %v3703 = vrot.slane %v3397, 2
      %v3704 = vrot.slane %v3398, 2
      %v3705 = vsel %vm1452, %v3703, %v3704
      %v3706 = vrot.slane %v3399, 2
      %v3707 = vsel %vm1452, %v3704, %v3706
      %v3708 = vrot.slane %v3400, 2
      %v3709 = vrot.slane %v3401, 2
      %v3710 = vsel %vm1452, %v3708, %v3709
      %v3711 = vrot.slane %v3402, 2
      %v3712 = vsel %vm1452, %v3709, %v3711
      %3713 = vrot.lane.b32.xlu0 %v3635, 16
      %v3714 = vpop.permute.xlu0 %3713
      %3715 = vrot.lane.b32.xlu0 %v3637, 16
      %v3716 = vpop.permute.xlu0 %3715
      %3717 = vrot.lane.b32.xlu0 %v3640, 16
      %v3718 = vpop.permute.xlu0 %3717
      %3719 = vrot.lane.b32.xlu0 %v3642, 16
      %v3720 = vpop.permute.xlu0 %3719
      %3721 = vrot.lane.b32.xlu0 %v3645, 16
      %v3722 = vpop.permute.xlu0 %3721
      %3723 = vrot.lane.b32.xlu0 %v3647, 16
      %v3724 = vpop.permute.xlu0 %3723
      %3725 = vrot.lane.b32.xlu0 %v3650, 16
      %v3726 = vpop.permute.xlu0 %3725
      %3727 = vrot.lane.b32.xlu0 %v3652, 16
      %v3728 = vpop.permute.xlu0 %3727
      %3729 = vrot.lane.b32.xlu0 %v3655, 16
      %v3730 = vpop.permute.xlu0 %3729
      %3731 = vrot.lane.b32.xlu0 %v3657, 16
      %v3732 = vpop.permute.xlu0 %3731
      %3733 = vrot.lane.b32.xlu0 %v3660, 16
      %v3734 = vpop.permute.xlu0 %3733
      %3735 = vrot.lane.b32.xlu0 %v3662, 16
      %v3736 = vpop.permute.xlu0 %3735
      %3737 = vrot.lane.b32.xlu0 %v3665, 16
      %v3738 = vpop.permute.xlu0 %3737
      %3739 = vrot.lane.b32.xlu0 %v3667, 16
      %v3740 = vpop.permute.xlu0 %3739
      %3741 = vrot.lane.b32.xlu0 %v3670, 16
      %v3742 = vpop.permute.xlu0 %3741
      %3743 = vrot.lane.b32.xlu0 %v3672, 16
      %v3744 = vpop.permute.xlu0 %3743
      %3745 = vrot.lane.b32.xlu0 %v3675, 16
      %v3746 = vpop.permute.xlu0 %3745
      %3747 = vrot.lane.b32.xlu0 %v3677, 16
      %v3748 = vpop.permute.xlu0 %3747
      %3749 = vrot.lane.b32.xlu0 %v3680, 16
      %v3750 = vpop.permute.xlu0 %3749
      %3751 = vrot.lane.b32.xlu0 %v3682, 16
      %v3752 = vpop.permute.xlu0 %3751
      %3753 = vrot.lane.b32.xlu0 %v3685, 16
      %v3754 = vpop.permute.xlu0 %3753
      %3755 = vrot.lane.b32.xlu0 %v3687, 16
      %v3756 = vpop.permute.xlu0 %3755
      %3757 = vrot.lane.b32.xlu0 %v3690, 16
      %v3758 = vpop.permute.xlu0 %3757
      %3759 = vrot.lane.b32.xlu0 %v3692, 16
      %v3760 = vpop.permute.xlu0 %3759
      %3761 = vrot.lane.b32.xlu0 %v3695, 16
      %v3762 = vpop.permute.xlu0 %3761
      %3763 = vrot.lane.b32.xlu0 %v3697, 16
      %v3764 = vpop.permute.xlu0 %3763
      %3765 = vrot.lane.b32.xlu0 %v3700, 16
      %v3766 = vpop.permute.xlu0 %3765
      %3767 = vrot.lane.b32.xlu0 %v3702, 16
      %v3768 = vpop.permute.xlu0 %3767
      %3769 = vrot.lane.b32.xlu0 %v3705, 16
      %v3770 = vpop.permute.xlu0 %3769
      %3771 = vrot.lane.b32.xlu0 %v3707, 16
      %v3772 = vpop.permute.xlu0 %3771
      %3773 = vrot.lane.b32.xlu0 %v3710, 16
      %v3774 = vpop.permute.xlu0 %3773
      %3775 = vrot.lane.b32.xlu0 %v3712, 16
      %v3776 = vpop.permute.xlu0 %3775
      %3811 = vrot.lane.b32.xlu0 %v3358, 24
      %v3812 = vpop.permute.xlu0 %3811
      %3813 = vrot.lane.b32.xlu0 %v3359, 24
      %v3814 = vpop.permute.xlu0 %3813
      %3815 = vrot.lane.b32.xlu0 %v3361, 24
      %v3816 = vpop.permute.xlu0 %3815
      %3817 = vrot.lane.b32.xlu0 %v3362, 24
      %v3818 = vpop.permute.xlu0 %3817
      %3819 = vrot.lane.b32.xlu0 %v3364, 24
      %v3820 = vpop.permute.xlu0 %3819
      %3821 = vrot.lane.b32.xlu0 %v3365, 24
      %v3822 = vpop.permute.xlu0 %3821
      %3823 = vrot.lane.b32.xlu0 %v3367, 24
      %v3824 = vpop.permute.xlu0 %3823
      %3825 = vrot.lane.b32.xlu0 %v3368, 24
      %v3826 = vpop.permute.xlu0 %3825
      %3827 = vrot.lane.b32.xlu0 %v3370, 24
      %v3828 = vpop.permute.xlu0 %3827
      %3829 = vrot.lane.b32.xlu0 %v3371, 24
      %v3830 = vpop.permute.xlu0 %3829
      %3831 = vrot.lane.b32.xlu0 %v3373, 24
      %v3832 = vpop.permute.xlu0 %3831
      %3833 = vrot.lane.b32.xlu0 %v3374, 24
      %v3834 = vpop.permute.xlu0 %3833
      %3835 = vrot.lane.b32.xlu0 %v3376, 24
      %v3836 = vpop.permute.xlu0 %3835
      %3837 = vrot.lane.b32.xlu0 %v3377, 24
      %v3838 = vpop.permute.xlu0 %3837
      %3839 = vrot.lane.b32.xlu0 %v3379, 24
      %v3840 = vpop.permute.xlu0 %3839
      %3841 = vrot.lane.b32.xlu0 %v3380, 24
      %v3842 = vpop.permute.xlu0 %3841
      %3843 = vrot.lane.b32.xlu0 %v3382, 24
      %v3844 = vpop.permute.xlu0 %3843
      %3845 = vrot.lane.b32.xlu0 %v3383, 24
      %v3846 = vpop.permute.xlu0 %3845
      %3847 = vrot.lane.b32.xlu0 %v3385, 24
      %v3848 = vpop.permute.xlu0 %3847
      %3849 = vrot.lane.b32.xlu0 %v3386, 24
      %v3850 = vpop.permute.xlu0 %3849
      %3851 = vrot.lane.b32.xlu0 %v3388, 24
      %v3852 = vpop.permute.xlu0 %3851
      %3853 = vrot.lane.b32.xlu0 %v3389, 24
      %v3854 = vpop.permute.xlu0 %3853
      %3855 = vrot.lane.b32.xlu0 %v3391, 24
      %v3856 = vpop.permute.xlu0 %3855
      %3857 = vrot.lane.b32.xlu0 %v3392, 24
      %v3858 = vpop.permute.xlu0 %3857
      %3859 = vrot.lane.b32.xlu0 %v3394, 24
      %v3860 = vpop.permute.xlu0 %3859
      %3861 = vrot.lane.b32.xlu0 %v3395, 24
      %v3862 = vpop.permute.xlu0 %3861
      %3863 = vrot.lane.b32.xlu0 %v3397, 24
      %v3864 = vpop.permute.xlu0 %3863
      %3865 = vrot.lane.b32.xlu0 %v3398, 24
      %v3866 = vpop.permute.xlu0 %3865
      %3867 = vrot.lane.b32.xlu0 %v3400, 24
      %v3868 = vpop.permute.xlu0 %3867
      %3869 = vrot.lane.b32.xlu0 %v3401, 24
      %v3870 = vpop.permute.xlu0 %3869
      %3871 = vrot.lane.b32.xlu0 %v3403, 24
      %v3872 = vpop.permute.xlu0 %3871
      %3873 = vrot.lane.b32.xlu0 %v3404, 24
      %v3874 = vpop.permute.xlu0 %3873
      %v3908 = vrot.slane %v3403, 1
      %v3909 = vrot.slane %v3404, 1
      %v3910 = vsel %vm1275, %v3908, %v3909
      %v3911 = vrot.slane %v3405, 1
      %v3912 = vsel %vm1275, %v3909, %v3911
      %3913 = vrot.lane.b32.xlu0 %v3464, 32
      %v3914 = vpop.permute.xlu0 %3913
      %3915 = vrot.lane.b32.xlu0 %v3466, 32
      %v3916 = vpop.permute.xlu0 %3915
      %3917 = vrot.lane.b32.xlu0 %v3469, 32
      %v3918 = vpop.permute.xlu0 %3917
      %3919 = vrot.lane.b32.xlu0 %v3471, 32
      %v3920 = vpop.permute.xlu0 %3919
      %3921 = vrot.lane.b32.xlu0 %v3474, 32
      %v3922 = vpop.permute.xlu0 %3921
      %3923 = vrot.lane.b32.xlu0 %v3476, 32
      %v3924 = vpop.permute.xlu0 %3923
      %3925 = vrot.lane.b32.xlu0 %v3479, 32
      %v3926 = vpop.permute.xlu0 %3925
      %3927 = vrot.lane.b32.xlu0 %v3481, 32
      %v3928 = vpop.permute.xlu0 %3927
      %3929 = vrot.lane.b32.xlu0 %v3484, 32
      %v3930 = vpop.permute.xlu0 %3929
      %3931 = vrot.lane.b32.xlu0 %v3486, 32
      %v3932 = vpop.permute.xlu0 %3931
      %3933 = vrot.lane.b32.xlu0 %v3489, 32
      %v3934 = vpop.permute.xlu0 %3933
      %3935 = vrot.lane.b32.xlu0 %v3491, 32
      %v3936 = vpop.permute.xlu0 %3935
      %3937 = vrot.lane.b32.xlu0 %v3494, 32
      %v3938 = vpop.permute.xlu0 %3937
      %3939 = vrot.lane.b32.xlu0 %v3496, 32
      %v3940 = vpop.permute.xlu0 %3939
      %3941 = vrot.lane.b32.xlu0 %v3499, 32
      %v3942 = vpop.permute.xlu0 %3941
      %3943 = vrot.lane.b32.xlu0 %v3501, 32
      %v3944 = vpop.permute.xlu0 %3943
      %3945 = vrot.lane.b32.xlu0 %v3504, 32
      %v3946 = vpop.permute.xlu0 %3945
      %3947 = vrot.lane.b32.xlu0 %v3506, 32
      %v3948 = vpop.permute.xlu0 %3947
      %3949 = vrot.lane.b32.xlu0 %v3509, 32
      %v3950 = vpop.permute.xlu0 %3949
      %3951 = vrot.lane.b32.xlu0 %v3511, 32
      %v3952 = vpop.permute.xlu0 %3951
      %3953 = vrot.lane.b32.xlu0 %v3514, 32
      %v3954 = vpop.permute.xlu0 %3953
      %3955 = vrot.lane.b32.xlu0 %v3516, 32
      %v3956 = vpop.permute.xlu0 %3955
      %3957 = vrot.lane.b32.xlu0 %v3519, 32
      %v3958 = vpop.permute.xlu0 %3957
      %3959 = vrot.lane.b32.xlu0 %v3521, 32
      %v3960 = vpop.permute.xlu0 %3959
      %3961 = vrot.lane.b32.xlu0 %v3524, 32
      %v3962 = vpop.permute.xlu0 %3961
      %3963 = vrot.lane.b32.xlu0 %v3526, 32
      %v3964 = vpop.permute.xlu0 %3963
      %3965 = vrot.lane.b32.xlu0 %v3529, 32
      %v3966 = vpop.permute.xlu0 %3965
      %3967 = vrot.lane.b32.xlu0 %v3531, 32
      %v3968 = vpop.permute.xlu0 %3967
      %3969 = vrot.lane.b32.xlu0 %v3534, 32
      %v3970 = vpop.permute.xlu0 %3969
      %3971 = vrot.lane.b32.xlu0 %v3536, 32
      %v3972 = vpop.permute.xlu0 %3971
      %3973 = vrot.lane.b32.xlu0 %v3910, 32
      %v3974 = vpop.permute.xlu0 %3973
      %3975 = vrot.lane.b32.xlu0 %v3912, 32
      %v3976 = vpop.permute.xlu0 %3975
      %v4009 = vrot.slane %v3403, 2
      %v4010 = vrot.slane %v3404, 2
      %v4011 = vsel %vm1452, %v4009, %v4010
      %v4012 = vrot.slane %v3405, 2
      %v4013 = vsel %vm1452, %v4010, %v4012
      %4014 = vrot.lane.b32.xlu0 %v3640, 40
      %v4015 = vpop.permute.xlu0 %4014
      %4016 = vrot.lane.b32.xlu0 %v3642, 40
      %v4017 = vpop.permute.xlu0 %4016
      %4018 = vrot.lane.b32.xlu0 %v3645, 40
      %v4019 = vpop.permute.xlu0 %4018
      %4020 = vrot.lane.b32.xlu0 %v3647, 40
      %v4021 = vpop.permute.xlu0 %4020
      %4022 = vrot.lane.b32.xlu0 %v3650, 40
      %v4023 = vpop.permute.xlu0 %4022
      %4024 = vrot.lane.b32.xlu0 %v3652, 40
      %v4025 = vpop.permute.xlu0 %4024
      %4026 = vrot.lane.b32.xlu0 %v3655, 40
      %v4027 = vpop.permute.xlu0 %4026
      %4028 = vrot.lane.b32.xlu0 %v3657, 40
      %v4029 = vpop.permute.xlu0 %4028
      %4030 = vrot.lane.b32.xlu0 %v3660, 40
      %v4031 = vpop.permute.xlu0 %4030
      %4032 = vrot.lane.b32.xlu0 %v3662, 40
      %v4033 = vpop.permute.xlu0 %4032
      %4034 = vrot.lane.b32.xlu0 %v3665, 40
      %v4035 = vpop.permute.xlu0 %4034
      %4036 = vrot.lane.b32.xlu0 %v3667, 40
      %v4037 = vpop.permute.xlu0 %4036
      %4038 = vrot.lane.b32.xlu0 %v3670, 40
      %v4039 = vpop.permute.xlu0 %4038
      %4040 = vrot.lane.b32.xlu0 %v3672, 40
      %v4041 = vpop.permute.xlu0 %4040
      %4042 = vrot.lane.b32.xlu0 %v3675, 40
      %v4043 = vpop.permute.xlu0 %4042
      %4044 = vrot.lane.b32.xlu0 %v3677, 40
      %v4045 = vpop.permute.xlu0 %4044
      %4046 = vrot.lane.b32.xlu0 %v3680, 40
      %v4047 = vpop.permute.xlu0 %4046
      %4048 = vrot.lane.b32.xlu0 %v3682, 40
      %v4049 = vpop.permute.xlu0 %4048
      %4050 = vrot.lane.b32.xlu0 %v3685, 40
      %v4051 = vpop.permute.xlu0 %4050
      %4052 = vrot.lane.b32.xlu0 %v3687, 40
      %v4053 = vpop.permute.xlu0 %4052
      %4054 = vrot.lane.b32.xlu0 %v3690, 40
      %v4055 = vpop.permute.xlu0 %4054
      %4056 = vrot.lane.b32.xlu0 %v3692, 40
      %v4057 = vpop.permute.xlu0 %4056
      %4058 = vrot.lane.b32.xlu0 %v3695, 40
      %v4059 = vpop.permute.xlu0 %4058
      %4060 = vrot.lane.b32.xlu0 %v3697, 40
      %v4061 = vpop.permute.xlu0 %4060
      %4062 = vrot.lane.b32.xlu0 %v3700, 40
      %v4063 = vpop.permute.xlu0 %4062
      %4064 = vrot.lane.b32.xlu0 %v3702, 40
      %v4065 = vpop.permute.xlu0 %4064
      %4066 = vrot.lane.b32.xlu0 %v3705, 40
      %v4067 = vpop.permute.xlu0 %4066
      %4068 = vrot.lane.b32.xlu0 %v3707, 40
      %v4069 = vpop.permute.xlu0 %4068
      %4070 = vrot.lane.b32.xlu0 %v3710, 40
      %v4071 = vpop.permute.xlu0 %4070
      %4072 = vrot.lane.b32.xlu0 %v3712, 40
      %v4073 = vpop.permute.xlu0 %4072
      %4074 = vrot.lane.b32.xlu0 %v4011, 40
      %v4075 = vpop.permute.xlu0 %4074
      %4076 = vrot.lane.b32.xlu0 %v4013, 40
      %v4077 = vpop.permute.xlu0 %4076
      %4112 = vrot.lane.b32.xlu0 %v3361, 48
      %v4113 = vpop.permute.xlu0 %4112
      %4114 = vrot.lane.b32.xlu0 %v3362, 48
      %v4115 = vpop.permute.xlu0 %4114
      %4116 = vrot.lane.b32.xlu0 %v3364, 48
      %v4117 = vpop.permute.xlu0 %4116
      %4118 = vrot.lane.b32.xlu0 %v3365, 48
      %v4119 = vpop.permute.xlu0 %4118
      %4120 = vrot.lane.b32.xlu0 %v3367, 48
      %v4121 = vpop.permute.xlu0 %4120
      %4122 = vrot.lane.b32.xlu0 %v3368, 48
      %v4123 = vpop.permute.xlu0 %4122
      %4124 = vrot.lane.b32.xlu0 %v3370, 48
      %v4125 = vpop.permute.xlu0 %4124
      %4126 = vrot.lane.b32.xlu0 %v3371, 48
      %v4127 = vpop.permute.xlu0 %4126
      %4128 = vrot.lane.b32.xlu0 %v3373, 48
      %v4129 = vpop.permute.xlu0 %4128
      %4130 = vrot.lane.b32.xlu0 %v3374, 48
      %v4131 = vpop.permute.xlu0 %4130
      %4132 = vrot.lane.b32.xlu0 %v3376, 48
      %v4133 = vpop.permute.xlu0 %4132
      %4134 = vrot.lane.b32.xlu0 %v3377, 48
      %v4135 = vpop.permute.xlu0 %4134
      %4136 = vrot.lane.b32.xlu0 %v3379, 48
      %v4137 = vpop.permute.xlu0 %4136
      %4138 = vrot.lane.b32.xlu0 %v3380, 48
      %v4139 = vpop.permute.xlu0 %4138
      %4140 = vrot.lane.b32.xlu0 %v3382, 48
      %v4141 = vpop.permute.xlu0 %4140
      %4142 = vrot.lane.b32.xlu0 %v3383, 48
      %v4143 = vpop.permute.xlu0 %4142
      %4144 = vrot.lane.b32.xlu0 %v3385, 48
      %v4145 = vpop.permute.xlu0 %4144
      %4146 = vrot.lane.b32.xlu0 %v3386, 48
      %v4147 = vpop.permute.xlu0 %4146
      %4148 = vrot.lane.b32.xlu0 %v3388, 48
      %v4149 = vpop.permute.xlu0 %4148
      %4150 = vrot.lane.b32.xlu0 %v3389, 48
      %v4151 = vpop.permute.xlu0 %4150
      %4152 = vrot.lane.b32.xlu0 %v3391, 48
      %v4153 = vpop.permute.xlu0 %4152
      %4154 = vrot.lane.b32.xlu0 %v3392, 48
      %v4155 = vpop.permute.xlu0 %4154
      %4156 = vrot.lane.b32.xlu0 %v3394, 48
      %v4157 = vpop.permute.xlu0 %4156
      %4158 = vrot.lane.b32.xlu0 %v3395, 48
      %v4159 = vpop.permute.xlu0 %4158
      %4160 = vrot.lane.b32.xlu0 %v3397, 48
      %v4161 = vpop.permute.xlu0 %4160
      %4162 = vrot.lane.b32.xlu0 %v3398, 48
      %v4163 = vpop.permute.xlu0 %4162
      %4164 = vrot.lane.b32.xlu0 %v3400, 48
      %v4165 = vpop.permute.xlu0 %4164
      %4166 = vrot.lane.b32.xlu0 %v3401, 48
      %v4167 = vpop.permute.xlu0 %4166
      %4168 = vrot.lane.b32.xlu0 %v3403, 48
      %v4169 = vpop.permute.xlu0 %4168
      %4170 = vrot.lane.b32.xlu0 %v3404, 48
      %v4171 = vpop.permute.xlu0 %4170
      %4172 = vrot.lane.b32.xlu0 %v3406, 48
      %v4173 = vpop.permute.xlu0 %4172
      %4174 = vrot.lane.b32.xlu0 %v3407, 48
      %v4175 = vpop.permute.xlu0 %4174
      %v4209 = vrot.slane %v3406, 1
      %v4210 = vrot.slane %v3407, 1
      %v4211 = vsel %vm1275, %v4209, %v4210
      %v4212 = vrot.slane %v3408, 1
      %v4213 = vsel %vm1275, %v4210, %v4212
      %4214 = vrot.lane.b32.xlu0 %v3469, 56
      %v4215 = vpop.permute.xlu0 %4214
      %4216 = vrot.lane.b32.xlu0 %v3471, 56
      %v4217 = vpop.permute.xlu0 %4216
      %4218 = vrot.lane.b32.xlu0 %v3474, 56
      %v4219 = vpop.permute.xlu0 %4218
      %4220 = vrot.lane.b32.xlu0 %v3476, 56
      %v4221 = vpop.permute.xlu0 %4220
      %4222 = vrot.lane.b32.xlu0 %v3479, 56
      %v4223 = vpop.permute.xlu0 %4222
      %4224 = vrot.lane.b32.xlu0 %v3481, 56
      %v4225 = vpop.permute.xlu0 %4224
      %4226 = vrot.lane.b32.xlu0 %v3484, 56
      %v4227 = vpop.permute.xlu0 %4226
      %4228 = vrot.lane.b32.xlu0 %v3486, 56
      %v4229 = vpop.permute.xlu0 %4228
      %4230 = vrot.lane.b32.xlu0 %v3489, 56
      %v4231 = vpop.permute.xlu0 %4230
      %4232 = vrot.lane.b32.xlu0 %v3491, 56
      %v4233 = vpop.permute.xlu0 %4232
      %4234 = vrot.lane.b32.xlu0 %v3494, 56
      %v4235 = vpop.permute.xlu0 %4234
      %4236 = vrot.lane.b32.xlu0 %v3496, 56
      %v4237 = vpop.permute.xlu0 %4236
      %4238 = vrot.lane.b32.xlu0 %v3499, 56
      %v4239 = vpop.permute.xlu0 %4238
      %4240 = vrot.lane.b32.xlu0 %v3501, 56
      %v4241 = vpop.permute.xlu0 %4240
      %4242 = vrot.lane.b32.xlu0 %v3504, 56
      %v4243 = vpop.permute.xlu0 %4242
      %4244 = vrot.lane.b32.xlu0 %v3506, 56
      %v4245 = vpop.permute.xlu0 %4244
      %4246 = vrot.lane.b32.xlu0 %v3509, 56
      %v4247 = vpop.permute.xlu0 %4246
      %4248 = vrot.lane.b32.xlu0 %v3511, 56
      %v4249 = vpop.permute.xlu0 %4248
      %4250 = vrot.lane.b32.xlu0 %v3514, 56
      %v4251 = vpop.permute.xlu0 %4250
      %4252 = vrot.lane.b32.xlu0 %v3516, 56
      %v4253 = vpop.permute.xlu0 %4252
      %4254 = vrot.lane.b32.xlu0 %v3519, 56
      %v4255 = vpop.permute.xlu0 %4254
      %4256 = vrot.lane.b32.xlu0 %v3521, 56
      %v4257 = vpop.permute.xlu0 %4256
      %4258 = vrot.lane.b32.xlu0 %v3524, 56
      %v4259 = vpop.permute.xlu0 %4258
      %4260 = vrot.lane.b32.xlu0 %v3526, 56
      %v4261 = vpop.permute.xlu0 %4260
      %4262 = vrot.lane.b32.xlu0 %v3529, 56
      %v4263 = vpop.permute.xlu0 %4262
      %4264 = vrot.lane.b32.xlu0 %v3531, 56
      %v4265 = vpop.permute.xlu0 %4264
      %4266 = vrot.lane.b32.xlu0 %v3534, 56
      %v4267 = vpop.permute.xlu0 %4266
      %4268 = vrot.lane.b32.xlu0 %v3536, 56
      %v4269 = vpop.permute.xlu0 %4268
      %4270 = vrot.lane.b32.xlu0 %v3910, 56
      %v4271 = vpop.permute.xlu0 %4270
      %4272 = vrot.lane.b32.xlu0 %v3912, 56
      %v4273 = vpop.permute.xlu0 %4272
      %4274 = vrot.lane.b32.xlu0 %v4211, 56
      %v4275 = vpop.permute.xlu0 %4274
      %4276 = vrot.lane.b32.xlu0 %v4213, 56
      %v4277 = vpop.permute.xlu0 %4276
      %v4310 = vrot.slane %v3406, 2
      %v4311 = vrot.slane %v3407, 2
      %v4312 = vsel %vm1452, %v4310, %v4311
      %v4313 = vrot.slane %v3408, 2
      %v4314 = vsel %vm1452, %v4311, %v4313
      %4315 = vrot.lane.b32.xlu0 %v3645, 64
      %v4316 = vpop.permute.xlu0 %4315
      %4317 = vrot.lane.b32.xlu0 %v3647, 64
      %v4318 = vpop.permute.xlu0 %4317
      %4319 = vrot.lane.b32.xlu0 %v3650, 64
      %v4320 = vpop.permute.xlu0 %4319
      %4321 = vrot.lane.b32.xlu0 %v3652, 64
      %v4322 = vpop.permute.xlu0 %4321
      %4323 = vrot.lane.b32.xlu0 %v3655, 64
      %v4324 = vpop.permute.xlu0 %4323
      %4325 = vrot.lane.b32.xlu0 %v3657, 64
      %v4326 = vpop.permute.xlu0 %4325
      %4327 = vrot.lane.b32.xlu0 %v3660, 64
      %v4328 = vpop.permute.xlu0 %4327
      %4329 = vrot.lane.b32.xlu0 %v3662, 64
      %v4330 = vpop.permute.xlu0 %4329
      %4331 = vrot.lane.b32.xlu0 %v3665, 64
      %v4332 = vpop.permute.xlu0 %4331
      %4333 = vrot.lane.b32.xlu0 %v3667, 64
      %v4334 = vpop.permute.xlu0 %4333
      %4335 = vrot.lane.b32.xlu0 %v3670, 64
      %v4336 = vpop.permute.xlu0 %4335
      %4337 = vrot.lane.b32.xlu0 %v3672, 64
      %v4338 = vpop.permute.xlu0 %4337
      %4339 = vrot.lane.b32.xlu0 %v3675, 64
      %v4340 = vpop.permute.xlu0 %4339
      %4341 = vrot.lane.b32.xlu0 %v3677, 64
      %v4342 = vpop.permute.xlu0 %4341
      %4343 = vrot.lane.b32.xlu0 %v3680, 64
      %v4344 = vpop.permute.xlu0 %4343
      %4345 = vrot.lane.b32.xlu0 %v3682, 64
      %v4346 = vpop.permute.xlu0 %4345
      %4347 = vrot.lane.b32.xlu0 %v3685, 64
      %v4348 = vpop.permute.xlu0 %4347
      %4349 = vrot.lane.b32.xlu0 %v3687, 64
      %v4350 = vpop.permute.xlu0 %4349
      %4351 = vrot.lane.b32.xlu0 %v3690, 64
      %v4352 = vpop.permute.xlu0 %4351
      %4353 = vrot.lane.b32.xlu0 %v3692, 64
      %v4354 = vpop.permute.xlu0 %4353
      %4355 = vrot.lane.b32.xlu0 %v3695, 64
      %v4356 = vpop.permute.xlu0 %4355
      %4357 = vrot.lane.b32.xlu0 %v3697, 64
      %v4358 = vpop.permute.xlu0 %4357
      %4359 = vrot.lane.b32.xlu0 %v3700, 64
      %v4360 = vpop.permute.xlu0 %4359
      %4361 = vrot.lane.b32.xlu0 %v3702, 64
      %v4362 = vpop.permute.xlu0 %4361
      %4363 = vrot.lane.b32.xlu0 %v3705, 64
      %v4364 = vpop.permute.xlu0 %4363
      %4365 = vrot.lane.b32.xlu0 %v3707, 64
      %v4366 = vpop.permute.xlu0 %4365
      %4367 = vrot.lane.b32.xlu0 %v3710, 64
      %v4368 = vpop.permute.xlu0 %4367
      %4369 = vrot.lane.b32.xlu0 %v3712, 64
      %v4370 = vpop.permute.xlu0 %4369
      %4371 = vrot.lane.b32.xlu0 %v4011, 64
      %v4372 = vpop.permute.xlu0 %4371
      %4373 = vrot.lane.b32.xlu0 %v4013, 64
      %v4374 = vpop.permute.xlu0 %4373
      %4375 = vrot.lane.b32.xlu0 %v4312, 64
      %v4376 = vpop.permute.xlu0 %4375
      %4377 = vrot.lane.b32.xlu0 %v4314, 64
      %v4378 = vpop.permute.xlu0 %4377
      %v4411 = vsel %vm746, %v3355, %v3538
      %v4412 = vsel %vm746, %v3356, %v3540
      %v4413 = vsel %vm746, %v3358, %v3542
      %v4414 = vsel %vm746, %v3359, %v3544
      %v4415 = vsel %vm746, %v3361, %v3546
      %v4416 = vsel %vm746, %v3362, %v3548
      %v4417 = vsel %vm746, %v3364, %v3550
      %v4418 = vsel %vm746, %v3365, %v3552
      %v4419 = vsel %vm746, %v3367, %v3554
      %v4420 = vsel %vm746, %v3368, %v3556
      %v4421 = vsel %vm746, %v3370, %v3558
      %v4422 = vsel %vm746, %v3371, %v3560
      %v4423 = vsel %vm746, %v3373, %v3562
      %v4424 = vsel %vm746, %v3374, %v3564
      %v4425 = vsel %vm746, %v3376, %v3566
      %v4426 = vsel %vm746, %v3377, %v3568
      %v4427 = vsel %vm746, %v3379, %v3570
      %v4428 = vsel %vm746, %v3380, %v3572
      %v4429 = vsel %vm746, %v3382, %v3574
      %v4430 = vsel %vm746, %v3383, %v3576
      %v4431 = vsel %vm746, %v3385, %v3578
      %v4432 = vsel %vm746, %v3386, %v3580
      %v4433 = vsel %vm746, %v3388, %v3582
      %v4434 = vsel %vm746, %v3389, %v3584
      %v4435 = vsel %vm746, %v3391, %v3586
      %v4436 = vsel %vm746, %v3392, %v3588
      %v4437 = vsel %vm746, %v3394, %v3590
      %v4438 = vsel %vm746, %v3395, %v3592
      %v4439 = vsel %vm746, %v3397, %v3594
      %v4440 = vsel %vm746, %v3398, %v3596
      %v4441 = vsel %vm746, %v3400, %v3598
      %v4442 = vsel %vm746, %v3401, %v3600
      %v4443 = vsel %vm2328, %v4411, %v3714
      %v4444 = vsel %vm2328, %v4412, %v3716
      %v4445 = vsel %vm2328, %v4413, %v3718
      %v4446 = vsel %vm2328, %v4414, %v3720
      %v4447 = vsel %vm2328, %v4415, %v3722
      %v4448 = vsel %vm2328, %v4416, %v3724
      %v4449 = vsel %vm2328, %v4417, %v3726
      %v4450 = vsel %vm2328, %v4418, %v3728
      %v4451 = vsel %vm2328, %v4419, %v3730
      %v4452 = vsel %vm2328, %v4420, %v3732
      %v4453 = vsel %vm2328, %v4421, %v3734
      %v4454 = vsel %vm2328, %v4422, %v3736
      %v4455 = vsel %vm2328, %v4423, %v3738
      %v4456 = vsel %vm2328, %v4424, %v3740
      %v4457 = vsel %vm2328, %v4425, %v3742
      %v4458 = vsel %vm2328, %v4426, %v3744
      %v4459 = vsel %vm2328, %v4427, %v3746
      %v4460 = vsel %vm2328, %v4428, %v3748
      %v4461 = vsel %vm2328, %v4429, %v3750
      %v4462 = vsel %vm2328, %v4430, %v3752
      %v4463 = vsel %vm2328, %v4431, %v3754
      %v4464 = vsel %vm2328, %v4432, %v3756
      %v4465 = vsel %vm2328, %v4433, %v3758
      %v4466 = vsel %vm2328, %v4434, %v3760
      %v4467 = vsel %vm2328, %v4435, %v3762
      %v4468 = vsel %vm2328, %v4436, %v3764
      %v4469 = vsel %vm2328, %v4437, %v3766
      %v4470 = vsel %vm2328, %v4438, %v3768
      %v4471 = vsel %vm2328, %v4439, %v3770
      %v4472 = vsel %vm2328, %v4440, %v3772
      %v4473 = vsel %vm2328, %v4441, %v3774
      %v4474 = vsel %vm2328, %v4442, %v3776
      %v4475 = vsel %vm2394, %v4443, %v3812
      %v4476 = vsel %vm2394, %v4444, %v3814
      %v4477 = vsel %vm2394, %v4445, %v3816
      %v4478 = vsel %vm2394, %v4446, %v3818
      %v4479 = vsel %vm2394, %v4447, %v3820
      %v4480 = vsel %vm2394, %v4448, %v3822
      %v4481 = vsel %vm2394, %v4449, %v3824
      %v4482 = vsel %vm2394, %v4450, %v3826
      %v4483 = vsel %vm2394, %v4451, %v3828
      %v4484 = vsel %vm2394, %v4452, %v3830
      %v4485 = vsel %vm2394, %v4453, %v3832
      %v4486 = vsel %vm2394, %v4454, %v3834
      %v4487 = vsel %vm2394, %v4455, %v3836
      %v4488 = vsel %vm2394, %v4456, %v3838
      %v4489 = vsel %vm2394, %v4457, %v3840
      %v4490 = vsel %vm2394, %v4458, %v3842
      %v4491 = vsel %vm2394, %v4459, %v3844
      %v4492 = vsel %vm2394, %v4460, %v3846
      %v4493 = vsel %vm2394, %v4461, %v3848
      %v4494 = vsel %vm2394, %v4462, %v3850
      %v4495 = vsel %vm2394, %v4463, %v3852
      %v4496 = vsel %vm2394, %v4464, %v3854
      %v4497 = vsel %vm2394, %v4465, %v3856
      %v4498 = vsel %vm2394, %v4466, %v3858
      %v4499 = vsel %vm2394, %v4467, %v3860
      %v4500 = vsel %vm2394, %v4468, %v3862
      %v4501 = vsel %vm2394, %v4469, %v3864
      %v4502 = vsel %vm2394, %v4470, %v3866
      %v4503 = vsel %vm2394, %v4471, %v3868
      %v4504 = vsel %vm2394, %v4472, %v3870
      %v4505 = vsel %vm2394, %v4473, %v3872
      %v4506 = vsel %vm2394, %v4474, %v3874
      %v4507 = vsel %vm2460, %v4475, %v3914
      %v4508 = vsel %vm2460, %v4476, %v3916
      %v4509 = vsel %vm2460, %v4477, %v3918
      %v4510 = vsel %vm2460, %v4478, %v3920
      %v4511 = vsel %vm2460, %v4479, %v3922
      %v4512 = vsel %vm2460, %v4480, %v3924
      %v4513 = vsel %vm2460, %v4481, %v3926
      %v4514 = vsel %vm2460, %v4482, %v3928
      %v4515 = vsel %vm2460, %v4483, %v3930
      %v4516 = vsel %vm2460, %v4484, %v3932
      %v4517 = vsel %vm2460, %v4485, %v3934
      %v4518 = vsel %vm2460, %v4486, %v3936
      %v4519 = vsel %vm2460, %v4487, %v3938
      %v4520 = vsel %vm2460, %v4488, %v3940
      %v4521 = vsel %vm2460, %v4489, %v3942
      %v4522 = vsel %vm2460, %v4490, %v3944
      %v4523 = vsel %vm2460, %v4491, %v3946
      %v4524 = vsel %vm2460, %v4492, %v3948
      %v4525 = vsel %vm2460, %v4493, %v3950
      %v4526 = vsel %vm2460, %v4494, %v3952
      %v4527 = vsel %vm2460, %v4495, %v3954
      %v4528 = vsel %vm2460, %v4496, %v3956
      %v4529 = vsel %vm2460, %v4497, %v3958
      %v4530 = vsel %vm2460, %v4498, %v3960
      %v4531 = vsel %vm2460, %v4499, %v3962
      %v4532 = vsel %vm2460, %v4500, %v3964
      %v4533 = vsel %vm2460, %v4501, %v3966
      %v4534 = vsel %vm2460, %v4502, %v3968
      %v4535 = vsel %vm2460, %v4503, %v3970
      %v4536 = vsel %vm2460, %v4504, %v3972
      %v4537 = vsel %vm2460, %v4505, %v3974
      %v4538 = vsel %vm2460, %v4506, %v3976
      %vm4539 = vcmask 326656
      %v4540 = vsel %vm4539, %v4507, %v4015
      %v4541 = vsel %vm4539, %v4508, %v4017
      %v4542 = vsel %vm4539, %v4509, %v4019
      %v4543 = vsel %vm4539, %v4510, %v4021
      %v4544 = vsel %vm4539, %v4511, %v4023
      %v4545 = vsel %vm4539, %v4512, %v4025
      %v4546 = vsel %vm4539, %v4513, %v4027
      %v4547 = vsel %vm4539, %v4514, %v4029
      %v4548 = vsel %vm4539, %v4515, %v4031
      %v4549 = vsel %vm4539, %v4516, %v4033
      %v4550 = vsel %vm4539, %v4517, %v4035
      %v4551 = vsel %vm4539, %v4518, %v4037
      %v4552 = vsel %vm4539, %v4519, %v4039
      %v4553 = vsel %vm4539, %v4520, %v4041
      %v4554 = vsel %vm4539, %v4521, %v4043
      %v4555 = vsel %vm4539, %v4522, %v4045
      %v4556 = vsel %vm4539, %v4523, %v4047
      %v4557 = vsel %vm4539, %v4524, %v4049
      %v4558 = vsel %vm4539, %v4525, %v4051
      %v4559 = vsel %vm4539, %v4526, %v4053
      %v4560 = vsel %vm4539, %v4527, %v4055
      %v4561 = vsel %vm4539, %v4528, %v4057
      %v4562 = vsel %vm4539, %v4529, %v4059
      %v4563 = vsel %vm4539, %v4530, %v4061
      %v4564 = vsel %vm4539, %v4531, %v4063
      %v4565 = vsel %vm4539, %v4532, %v4065
      %v4566 = vsel %vm4539, %v4533, %v4067
      %v4567 = vsel %vm4539, %v4534, %v4069
      %v4568 = vsel %vm4539, %v4535, %v4071
      %v4569 = vsel %vm4539, %v4536, %v4073
      %v4570 = vsel %vm4539, %v4537, %v4075
      %v4571 = vsel %vm4539, %v4538, %v4077
      %vm4572 = vcmask 392192
      %v4573 = vsel %vm4572, %v4540, %v4113
      %v4574 = vsel %vm4572, %v4541, %v4115
      %v4575 = vsel %vm4572, %v4542, %v4117
      %v4576 = vsel %vm4572, %v4543, %v4119
      %v4577 = vsel %vm4572, %v4544, %v4121
      %v4578 = vsel %vm4572, %v4545, %v4123
      %v4579 = vsel %vm4572, %v4546, %v4125
      %v4580 = vsel %vm4572, %v4547, %v4127
      %v4581 = vsel %vm4572, %v4548, %v4129
      %v4582 = vsel %vm4572, %v4549, %v4131
      %v4583 = vsel %vm4572, %v4550, %v4133
      %v4584 = vsel %vm4572, %v4551, %v4135
      %v4585 = vsel %vm4572, %v4552, %v4137
      %v4586 = vsel %vm4572, %v4553, %v4139
      %v4587 = vsel %vm4572, %v4554, %v4141
      %v4588 = vsel %vm4572, %v4555, %v4143
      %v4589 = vsel %vm4572, %v4556, %v4145
      %v4590 = vsel %vm4572, %v4557, %v4147
      %v4591 = vsel %vm4572, %v4558, %v4149
      %v4592 = vsel %vm4572, %v4559, %v4151
      %v4593 = vsel %vm4572, %v4560, %v4153
      %v4594 = vsel %vm4572, %v4561, %v4155
      %v4595 = vsel %vm4572, %v4562, %v4157
      %v4596 = vsel %vm4572, %v4563, %v4159
      %v4597 = vsel %vm4572, %v4564, %v4161
      %v4598 = vsel %vm4572, %v4565, %v4163
      %v4599 = vsel %vm4572, %v4566, %v4165
      %v4600 = vsel %vm4572, %v4567, %v4167
      %v4601 = vsel %vm4572, %v4568, %v4169
      %v4602 = vsel %vm4572, %v4569, %v4171
      %v4603 = vsel %vm4572, %v4570, %v4173
      %v4604 = vsel %vm4572, %v4571, %v4175
      %vm4605 = vcmask 457728
      %v4606 = vsel %vm4605, %v4573, %v4215
      %v4607 = vsel %vm4605, %v4574, %v4217
      %v4608 = vsel %vm4605, %v4575, %v4219
      %v4609 = vsel %vm4605, %v4576, %v4221
      %v4610 = vsel %vm4605, %v4577, %v4223
      %v4611 = vsel %vm4605, %v4578, %v4225
      %v4612 = vsel %vm4605, %v4579, %v4227
      %v4613 = vsel %vm4605, %v4580, %v4229
      %v4614 = vsel %vm4605, %v4581, %v4231
      %v4615 = vsel %vm4605, %v4582, %v4233
      %v4616 = vsel %vm4605, %v4583, %v4235
      %v4617 = vsel %vm4605, %v4584, %v4237
      %v4618 = vsel %vm4605, %v4585, %v4239
      %v4619 = vsel %vm4605, %v4586, %v4241
      %v4620 = vsel %vm4605, %v4587, %v4243
      %v4621 = vsel %vm4605, %v4588, %v4245
      %v4622 = vsel %vm4605, %v4589, %v4247
      %v4623 = vsel %vm4605, %v4590, %v4249
      %v4624 = vsel %vm4605, %v4591, %v4251
      %v4625 = vsel %vm4605, %v4592, %v4253
      %v4626 = vsel %vm4605, %v4593, %v4255
      %v4627 = vsel %vm4605, %v4594, %v4257
      %v4628 = vsel %vm4605, %v4595, %v4259
      %v4629 = vsel %vm4605, %v4596, %v4261
      %v4630 = vsel %vm4605, %v4597, %v4263
      %v4631 = vsel %vm4605, %v4598, %v4265
      %v4632 = vsel %vm4605, %v4599, %v4267
      %v4633 = vsel %vm4605, %v4600, %v4269
      %v4634 = vsel %vm4605, %v4601, %v4271
      %v4635 = vsel %vm4605, %v4602, %v4273
      %v4636 = vsel %vm4605, %v4603, %v4275
      %v4637 = vsel %vm4605, %v4604, %v4277
      %vm4638 = vcmask 523264
      %v4639 = vsel %vm4638, %v4606, %v4316
      %v4640 = vsel %vm4638, %v4607, %v4318
      %v4641 = vsel %vm4638, %v4608, %v4320
      %v4642 = vsel %vm4638, %v4609, %v4322
      %v4643 = vsel %vm4638, %v4610, %v4324
      %v4644 = vsel %vm4638, %v4611, %v4326
      %v4645 = vsel %vm4638, %v4612, %v4328
      %v4646 = vsel %vm4638, %v4613, %v4330
      %v4647 = vsel %vm4638, %v4614, %v4332
      %v4648 = vsel %vm4638, %v4615, %v4334
      %v4649 = vsel %vm4638, %v4616, %v4336
      %v4650 = vsel %vm4638, %v4617, %v4338
      %v4651 = vsel %vm4638, %v4618, %v4340
      %v4652 = vsel %vm4638, %v4619, %v4342
      %v4653 = vsel %vm4638, %v4620, %v4344
      %v4654 = vsel %vm4638, %v4621, %v4346
      %v4655 = vsel %vm4638, %v4622, %v4348
      %v4656 = vsel %vm4638, %v4623, %v4350
      %v4657 = vsel %vm4638, %v4624, %v4352
      %v4658 = vsel %vm4638, %v4625, %v4354
      %v4659 = vsel %vm4638, %v4626, %v4356
      %v4660 = vsel %vm4638, %v4627, %v4358
      %v4661 = vsel %vm4638, %v4628, %v4360
      %v4662 = vsel %vm4638, %v4629, %v4362
      %v4663 = vsel %vm4638, %v4630, %v4364
      %v4664 = vsel %vm4638, %v4631, %v4366
      %v4665 = vsel %vm4638, %v4632, %v4368
      %v4666 = vsel %vm4638, %v4633, %v4370
      %v4667 = vsel %vm4638, %v4634, %v4372
      %v4668 = vsel %vm4638, %v4635, %v4374
      %v4669 = vsel %vm4638, %v4636, %v4376
      %v4670 = vsel %vm4638, %v4637, %v4378
      %v4671 = vld [vmem:[%s7] sm:$0xff]
      %v4672 = vld [vmem:[%s7 + $0x8] sm:$0xff]
      %v4673 = vld [vmem:[%s7 + $0x10] sm:$0xff]
      %v4674 = vld [vmem:[%s7 + $0x18] sm:$0xff]
      %v4675 = vld [vmem:[%s7 + $0x20] sm:$0xff]
      %v4676 = vld [vmem:[%s7 + $0x28] sm:$0xff]
      %v4677 = vld [vmem:[%s7 + $0x30] sm:$0xff]
      %v4678 = vld [vmem:[%s7 + $0x38] sm:$0xff]
      %v4679 = vld [vmem:[%s7 + $0x40] sm:$0xff]
      %v4680 = vld [vmem:[%s8] sm:$0x1]
      %v4682 = vperm.slane %v4680, 0
      %vm4684 = vcmask 588800
      %v4686 = vsel %vm4684, %v4639, 0
      %v4689 = vsel %vm4684, %v4640, 0
      %v4692 = vsel %vm4684, %v4641, 0
      %v4695 = vsel %vm4684, %v4642, 0
      %v4698 = vsel %vm4684, %v4643, 0
      %v4701 = vsel %vm4684, %v4644, 0
      %v4704 = vsel %vm4684, %v4645, 0
      %v4707 = vsel %vm4684, %v4646, 0
      %v4710 = vsel %vm4684, %v4647, 0
      %v4713 = vsel %vm4684, %v4648, 0
      %v4716 = vsel %vm4684, %v4649, 0
      %v4719 = vsel %vm4684, %v4650, 0
      %v4722 = vsel %vm4684, %v4651, 0
      %v4725 = vsel %vm4684, %v4652, 0
      %v4728 = vsel %vm4684, %v4653, 0
      %v4731 = vsel %vm4684, %v4654, 0
      %v4734 = vsel %vm4684, %v4655, 0
      %v4737 = vsel %vm4684, %v4656, 0
      %v4740 = vsel %vm4684, %v4657, 0
      %v4743 = vsel %vm4684, %v4658, 0
      %v4746 = vsel %vm4684, %v4659, 0
      %v4749 = vsel %vm4684, %v4660, 0
      %v4752 = vsel %vm4684, %v4661, 0
      %v4755 = vsel %vm4684, %v4662, 0
      %v4758 = vsel %vm4684, %v4663, 0
      %v4761 = vsel %vm4684, %v4664, 0
      %v4764 = vsel %vm4684, %v4665, 0
      %v4767 = vsel %vm4684, %v4666, 0
      %v4770 = vsel %vm4684, %v4667, 0
      %v4773 = vsel %vm4684, %v4668, 0
      %v4776 = vsel %vm4684, %v4669, 0
      %v4779 = vsel %vm4684, %v4670, 0
      %4781 = vmatpush.msra.mxu0 0.0
      %4782 = vmatpush.msra.mxu0 0.0
      %4783 = vmatpush.msra.mxu0 0.0
      %4784 = vmatpush.msra.mxu0 0.0
      %4785 = vmatpush.msra.mxu0 0.0
      %4786 = vmatpush.msra.mxu0 0.0
      %4787 = vmatpush.msra.mxu0 0.0
      %4788 = vmatpush.msra.mxu0 %v4679
      %4789 = vmatpush.msra.mxu0 %v4678
      %4790 = vmatpush.msra.mxu0 %v4677
      %4791 = vmatpush.msra.mxu0 %v4676
      %4792 = vmatpush.msra.mxu0 %v4675
      %4793 = vmatpush.msra.mxu0 %v4674
      %4794 = vmatpush.msra.mxu0 %v4673
      %4795 = vmatpush.msra.mxu0 %v4672
      %4796 = vmatpush.msra.mxu0 %v4671
      %4797 = vmatmul.f32.gmra.mxu0 %v4686
      %v4798 = vpop.f32.mrf.mxu0
      %v4799 = vadd.f32 %v4682, %v4798
      %4800 = vmatmul.f32.gmra.mxu0 %v4689
      %v4801 = vpop.f32.mrf.mxu0
      %v4802 = vadd.f32 %v4682, %v4801
      %4803 = vmatmul.f32.gmra.mxu0 %v4692
      %v4804 = vpop.f32.mrf.mxu0
      %v4805 = vadd.f32 %v4682, %v4804
      %4806 = vmatmul.f32.gmra.mxu0 %v4695
      %v4807 = vpop.f32.mrf.mxu0
      %v4808 = vadd.f32 %v4682, %v4807
      %4809 = vmatmul.f32.gmra.mxu0 %v4698
      %v4810 = vpop.f32.mrf.mxu0
      %v4811 = vadd.f32 %v4682, %v4810
      %4812 = vmatmul.f32.gmra.mxu0 %v4701
      %v4813 = vpop.f32.mrf.mxu0
      %v4814 = vadd.f32 %v4682, %v4813
      %4815 = vmatmul.f32.gmra.mxu0 %v4704
      %v4816 = vpop.f32.mrf.mxu0
      %v4817 = vadd.f32 %v4682, %v4816
      %4818 = vmatmul.f32.gmra.mxu0 %v4707
      %v4819 = vpop.f32.mrf.mxu0
      %v4820 = vadd.f32 %v4682, %v4819
      %4821 = vmatmul.f32.gmra.mxu0 %v4710
      %v4822 = vpop.f32.mrf.mxu0
      %v4823 = vadd.f32 %v4682, %v4822
      %4824 = vmatmul.f32.gmra.mxu0 %v4713
      %v4825 = vpop.f32.mrf.mxu0
      %v4826 = vadd.f32 %v4682, %v4825
      %4827 = vmatmul.f32.gmra.mxu0 %v4716
      %v4828 = vpop.f32.mrf.mxu0
      %v4829 = vadd.f32 %v4682, %v4828
      %4830 = vmatmul.f32.gmra.mxu0 %v4719
      %v4831 = vpop.f32.mrf.mxu0
      %v4832 = vadd.f32 %v4682, %v4831
      %4833 = vmatmul.f32.gmra.mxu0 %v4722
      %v4834 = vpop.f32.mrf.mxu0
      %v4835 = vadd.f32 %v4682, %v4834
      %4836 = vmatmul.f32.gmra.mxu0 %v4725
      %v4837 = vpop.f32.mrf.mxu0
      %v4838 = vadd.f32 %v4682, %v4837
      %4839 = vmatmul.f32.gmra.mxu0 %v4728
      %v4840 = vpop.f32.mrf.mxu0
      %v4841 = vadd.f32 %v4682, %v4840
      %4842 = vmatmul.f32.gmra.mxu0 %v4731
      %v4843 = vpop.f32.mrf.mxu0
      %v4844 = vadd.f32 %v4682, %v4843
      %4845 = vmatmul.f32.gmra.mxu0 %v4734
      %v4846 = vpop.f32.mrf.mxu0
      %v4847 = vadd.f32 %v4682, %v4846
      %4848 = vmatmul.f32.gmra.mxu0 %v4737
      %v4849 = vpop.f32.mrf.mxu0
      %v4850 = vadd.f32 %v4682, %v4849
      %4851 = vmatmul.f32.gmra.mxu0 %v4740
      %v4852 = vpop.f32.mrf.mxu0
      %v4853 = vadd.f32 %v4682, %v4852
      %4854 = vmatmul.f32.gmra.mxu0 %v4743
      %v4855 = vpop.f32.mrf.mxu0
      %v4856 = vadd.f32 %v4682, %v4855
      %4857 = vmatmul.f32.gmra.mxu0 %v4746
      %v4858 = vpop.f32.mrf.mxu0
      %v4859 = vadd.f32 %v4682, %v4858
      %4860 = vmatmul.f32.gmra.mxu0 %v4749
      %v4861 = vpop.f32.mrf.mxu0
      %v4862 = vadd.f32 %v4682, %v4861
      %4863 = vmatmul.f32.gmra.mxu0 %v4752
      %v4864 = vpop.f32.mrf.mxu0
      %v4865 = vadd.f32 %v4682, %v4864
      %4866 = vmatmul.f32.gmra.mxu0 %v4755
      %v4867 = vpop.f32.mrf.mxu0
      %v4868 = vadd.f32 %v4682, %v4867
      %4869 = vmatmul.f32.gmra.mxu0 %v4758
      %v4870 = vpop.f32.mrf.mxu0
      %v4871 = vadd.f32 %v4682, %v4870
      %4872 = vmatmul.f32.gmra.mxu0 %v4761
      %v4873 = vpop.f32.mrf.mxu0
      %v4874 = vadd.f32 %v4682, %v4873
      %4875 = vmatmul.f32.gmra.mxu0 %v4764
      %v4876 = vpop.f32.mrf.mxu0
      %v4877 = vadd.f32 %v4682, %v4876
      %4878 = vmatmul.f32.gmra.mxu0 %v4767
      %v4879 = vpop.f32.mrf.mxu0
      %v4880 = vadd.f32 %v4682, %v4879
      %4881 = vmatmul.f32.gmra.mxu0 %v4770
      %v4882 = vpop.f32.mrf.mxu0
      %v4883 = vadd.f32 %v4682, %v4882
      %4884 = vmatmul.f32.gmra.mxu0 %v4773
      %v4885 = vpop.f32.mrf.mxu0
      %v4886 = vadd.f32 %v4682, %v4885
      %4887 = vmatmul.f32.gmra.mxu0 %v4776
      %v4888 = vpop.f32.mrf.mxu0
      %v4889 = vadd.f32 %v4682, %v4888
      %4890 = vmatmul.f32.gmra.mxu0 %v4779
      %v4891 = vpop.f32.mrf.mxu0
      %v4892 = vadd.f32 %v4682, %v4891
      %4893 = vdwg.mxu0
      %v4894 = vadd.f32 %v4799, %v651
      %v4895 = vadd.f32 %v4802, %v654
      %v4896 = vadd.f32 %v4805, %v657
      %v4897 = vadd.f32 %v4808, %v660
      %v4898 = vadd.f32 %v4811, %v663
      %v4899 = vadd.f32 %v4814, %v666
      %v4900 = vadd.f32 %v4817, %v669
      %v4901 = vadd.f32 %v4820, %v672
      %v4902 = vadd.f32 %v4823, %v675
      %v4903 = vadd.f32 %v4826, %v678
      %v4904 = vadd.f32 %v4829, %v681
      %v4905 = vadd.f32 %v4832, %v684
      %v4906 = vadd.f32 %v4835, %v687
      %v4907 = vadd.f32 %v4838, %v690
      %v4908 = vadd.f32 %v4841, %v693
      %v4909 = vadd.f32 %v4844, %v696
      %v4910 = vadd.f32 %v4847, %v699
      %v4911 = vadd.f32 %v4850, %v702
      %v4912 = vadd.f32 %v4853, %v705
      %v4913 = vadd.f32 %v4856, %v708
      %v4914 = vadd.f32 %v4859, %v711
      %v4915 = vadd.f32 %v4862, %v714
      %v4916 = vadd.f32 %v4865, %v717
      %v4917 = vadd.f32 %v4868, %v720
      %v4918 = vadd.f32 %v4871, %v723
      %v4919 = vadd.f32 %v4874, %v726
      %v4920 = vadd.f32 %v4877, %v729
      %v4921 = vadd.f32 %v4880, %v732
      %v4922 = vadd.f32 %v4883, %v735
      %v4923 = vadd.f32 %v4886, %v738
      %v4924 = vadd.f32 %v4889, %v741
      %v4925 = vadd.f32 %v4892, %v744
      %v4926 = vsel %vm746, %v4894, 0.0
      %v4927 = vsel %vm746, %v4895, 0.0
      %v4928 = vadd.f32 %v4926, %v4927
      %v4929 = vsel %vm746, %v4896, 0.0
      %v4930 = vadd.f32 %v4928, %v4929
      %v4931 = vsel %vm746, %v4897, 0.0
      %v4932 = vadd.f32 %v4930, %v4931
      %v4933 = vsel %vm746, %v4898, 0.0
      %v4934 = vadd.f32 %v4932, %v4933
      %v4935 = vsel %vm746, %v4899, 0.0
      %v4936 = vadd.f32 %v4934, %v4935
      %v4937 = vsel %vm746, %v4900, 0.0
      %v4938 = vadd.f32 %v4936, %v4937
      %v4939 = vsel %vm746, %v4901, 0.0
      %v4940 = vadd.f32 %v4938, %v4939
      %v4941 = vsel %vm746, %v4902, 0.0
      %v4942 = vadd.f32 %v4940, %v4941
      %v4943 = vsel %vm746, %v4903, 0.0
      %v4944 = vadd.f32 %v4942, %v4943
      %v4945 = vsel %vm746, %v4904, 0.0
      %v4946 = vadd.f32 %v4944, %v4945
      %v4947 = vsel %vm746, %v4905, 0.0
      %v4948 = vadd.f32 %v4946, %v4947
      %v4949 = vsel %vm746, %v4906, 0.0
      %v4950 = vadd.f32 %v4948, %v4949
      %v4951 = vsel %vm746, %v4907, 0.0
      %v4952 = vadd.f32 %v4950, %v4951
      %v4953 = vsel %vm746, %v4908, 0.0
      %v4954 = vadd.f32 %v4952, %v4953
      %v4955 = vsel %vm746, %v4909, 0.0
      %v4956 = vadd.f32 %v4954, %v4955
      %v4957 = vsel %vm746, %v4910, 0.0
      %v4958 = vadd.f32 %v4956, %v4957
      %v4959 = vsel %vm746, %v4911, 0.0
      %v4960 = vadd.f32 %v4958, %v4959
      %v4961 = vsel %vm746, %v4912, 0.0
      %v4962 = vadd.f32 %v4960, %v4961
      %v4963 = vsel %vm746, %v4913, 0.0
      %v4964 = vadd.f32 %v4962, %v4963
      %v4965 = vsel %vm746, %v4914, 0.0
      %v4966 = vadd.f32 %v4964, %v4965
      %v4967 = vsel %vm746, %v4915, 0.0
      %v4968 = vadd.f32 %v4966, %v4967
      %v4969 = vsel %vm746, %v4916, 0.0
      %v4970 = vadd.f32 %v4968, %v4969
      %v4971 = vsel %vm746, %v4917, 0.0
      %v4972 = vadd.f32 %v4970, %v4971
      %v4973 = vsel %vm746, %v4918, 0.0
      %v4974 = vadd.f32 %v4972, %v4973
      %v4975 = vsel %vm746, %v4919, 0.0
      %v4976 = vadd.f32 %v4974, %v4975
      %v4977 = vsel %vm746, %v4920, 0.0
      %v4978 = vadd.f32 %v4976, %v4977
      %v4979 = vsel %vm746, %v4921, 0.0
      %v4980 = vadd.f32 %v4978, %v4979
      %v4981 = vsel %vm746, %v4922, 0.0
      %v4982 = vadd.f32 %v4980, %v4981
      %v4983 = vsel %vm746, %v4923, 0.0
      %v4984 = vadd.f32 %v4982, %v4983
      %v4985 = vsel %vm746, %v4924, 0.0
      %v4986 = vadd.f32 %v4984, %v4985
      %v4987 = vsel %vm746, %v4925, 0.0
      %v4988 = vadd.f32 %v4986, %v4987
      %4989 = vadd.xlane.f32.xlu0 %v4988
      %v4990 = vpop.xlane.xlu0 %4989
      %v4991 = vrot.slane %v4990, 4
      %v4992 = vadd.f32 %v4990, %v4991
      %v4993 = vrot.slane %v4992, 2
      %v4994 = vadd.f32 %v4992, %v4993
      %v4995 = vrot.slane %v4994, 1
      %v4996 = vadd.f32 %v4994, %v4995
      %s4997 = vtos %v4996
      %v4998 = vmul.f32 %v4894, %v4894
      %v4999 = vmul.f32 %v4895, %v4895
      %v5000 = vmul.f32 %v4896, %v4896
      %v5001 = vmul.f32 %v4897, %v4897
      %v5002 = vmul.f32 %v4898, %v4898
      %v5003 = vmul.f32 %v4899, %v4899
      %v5004 = vmul.f32 %v4900, %v4900
      %v5005 = vmul.f32 %v4901, %v4901
      %v5006 = vmul.f32 %v4902, %v4902
      %v5007 = vmul.f32 %v4903, %v4903
      %v5008 = vmul.f32 %v4904, %v4904
      %v5009 = vmul.f32 %v4905, %v4905
      %v5010 = vmul.f32 %v4906, %v4906
      %v5011 = vmul.f32 %v4907, %v4907
      %v5012 = vmul.f32 %v4908, %v4908
      %v5013 = vmul.f32 %v4909, %v4909
      %v5014 = vmul.f32 %v4910, %v4910
      %v5015 = vmul.f32 %v4911, %v4911
      %v5016 = vmul.f32 %v4912, %v4912
      %v5017 = vmul.f32 %v4913, %v4913
      %v5018 = vmul.f32 %v4914, %v4914
      %v5019 = vmul.f32 %v4915, %v4915
      %v5020 = vmul.f32 %v4916, %v4916
      %v5021 = vmul.f32 %v4917, %v4917
      %v5022 = vmul.f32 %v4918, %v4918
      %v5023 = vmul.f32 %v4919, %v4919
      %v5024 = vmul.f32 %v4920, %v4920
      %v5025 = vmul.f32 %v4921, %v4921
      %v5026 = vmul.f32 %v4922, %v4922
      %v5027 = vmul.f32 %v4923, %v4923
      %v5028 = vmul.f32 %v4924, %v4924
      %v5029 = vmul.f32 %v4925, %v4925
      %v5030 = vsel %vm746, %v4998, 0.0
      %v5031 = vsel %vm746, %v4999, 0.0
      %v5032 = vadd.f32 %v5030, %v5031
      %v5033 = vsel %vm746, %v5000, 0.0
      %v5034 = vadd.f32 %v5032, %v5033
      %v5035 = vsel %vm746, %v5001, 0.0
      %v5036 = vadd.f32 %v5034, %v5035
      %v5037 = vsel %vm746, %v5002, 0.0
      %v5038 = vadd.f32 %v5036, %v5037
      %v5039 = vsel %vm746, %v5003, 0.0
      %v5040 = vadd.f32 %v5038, %v5039
      %v5041 = vsel %vm746, %v5004, 0.0
      %v5042 = vadd.f32 %v5040, %v5041
      %v5043 = vsel %vm746, %v5005, 0.0
      %v5044 = vadd.f32 %v5042, %v5043
      %v5045 = vsel %vm746, %v5006, 0.0
      %v5046 = vadd.f32 %v5044, %v5045
      %v5047 = vsel %vm746, %v5007, 0.0
      %v5048 = vadd.f32 %v5046, %v5047
      %v5049 = vsel %vm746, %v5008, 0.0
      %v5050 = vadd.f32 %v5048, %v5049
      %v5051 = vsel %vm746, %v5009, 0.0
      %v5052 = vadd.f32 %v5050, %v5051
      %v5053 = vsel %vm746, %v5010, 0.0
      %v5054 = vadd.f32 %v5052, %v5053
      %v5055 = vsel %vm746, %v5011, 0.0
      %v5056 = vadd.f32 %v5054, %v5055
      %v5057 = vsel %vm746, %v5012, 0.0
      %v5058 = vadd.f32 %v5056, %v5057
      %v5059 = vsel %vm746, %v5013, 0.0
      %v5060 = vadd.f32 %v5058, %v5059
      %v5061 = vsel %vm746, %v5014, 0.0
      %v5062 = vadd.f32 %v5060, %v5061
      %v5063 = vsel %vm746, %v5015, 0.0
      %v5064 = vadd.f32 %v5062, %v5063
      %v5065 = vsel %vm746, %v5016, 0.0
      %v5066 = vadd.f32 %v5064, %v5065
      %v5067 = vsel %vm746, %v5017, 0.0
      %v5068 = vadd.f32 %v5066, %v5067
      %v5069 = vsel %vm746, %v5018, 0.0
      %v5070 = vadd.f32 %v5068, %v5069
      %v5071 = vsel %vm746, %v5019, 0.0
      %v5072 = vadd.f32 %v5070, %v5071
      %v5073 = vsel %vm746, %v5020, 0.0
      %v5074 = vadd.f32 %v5072, %v5073
      %v5075 = vsel %vm746, %v5021, 0.0
      %v5076 = vadd.f32 %v5074, %v5075
      %v5077 = vsel %vm746, %v5022, 0.0
      %v5078 = vadd.f32 %v5076, %v5077
      %v5079 = vsel %vm746, %v5023, 0.0
      %v5080 = vadd.f32 %v5078, %v5079
      %v5081 = vsel %vm746, %v5024, 0.0
      %v5082 = vadd.f32 %v5080, %v5081
      %v5083 = vsel %vm746, %v5025, 0.0
      %v5084 = vadd.f32 %v5082, %v5083
      %v5085 = vsel %vm746, %v5026, 0.0
      %v5086 = vadd.f32 %v5084, %v5085
      %v5087 = vsel %vm746, %v5027, 0.0
      %v5088 = vadd.f32 %v5086, %v5087
      %v5089 = vsel %vm746, %v5028, 0.0
      %v5090 = vadd.f32 %v5088, %v5089
      %v5091 = vsel %vm746, %v5029, 0.0
      %v5092 = vadd.f32 %v5090, %v5091
      %5093 = vadd.xlane.f32.xlu0 %v5092
      %v5094 = vpop.xlane.xlu0 %5093
      %v5095 = vrot.slane %v5094, 4
      %v5096 = vadd.f32 %v5094, %v5095
      %v5097 = vrot.slane %v5096, 2
      %v5098 = vadd.f32 %v5096, %v5097
      %v5099 = vrot.slane %v5098, 1
      %v5100 = vadd.f32 %v5098, %v5099
      %s5101 = vtos %v5100
      %v5102 = vrcp.pop 2048.0
      %v5103 = vmul.f32 2048.0, %v5102
      %v5104 = vsub.f32 1.0, %v5103
      %v5105 = vmul.f32 %v5102, %v5104
      %v5106 = vadd.f32 %v5102, %v5105
      %vm5107 = vweird.f32 %v5102
      %v5108 = vsel %vm5107, %v5102, %v5106
      %s5109 = vtos %v5108
      %s5110 = smul.f32 %s4997, %s5109
      %v5111 = vrcp.pop 2048.0
      %v5112 = vmul.f32 2048.0, %v5111
      %v5113 = vsub.f32 1.0, %v5112
      %v5114 = vmul.f32 %v5111, %v5113
      %v5115 = vadd.f32 %v5111, %v5114
      %vm5116 = vweird.f32 %v5111
      %v5117 = vsel %vm5116, %v5111, %v5115
      %s5118 = vtos %v5117
      %s5119 = smul.f32 %s5101, %s5118
      %s5120 = smul.f32 %s5110, %s5110
      %s5121 = ssub.f32 %s5119, %s5120
      %s5122 = smax.f32 %s5121, 0.0
      %v5123 = vstv %s5110
      %v5124 = vsub.f32 %v4894, %v5123
      %v5125 = vsub.f32 %v4895, %v5123
      %v5126 = vsub.f32 %v4896, %v5123
      %v5127 = vsub.f32 %v4897, %v5123
      %v5128 = vsub.f32 %v4898, %v5123
      %v5129 = vsub.f32 %v4899, %v5123
      %v5130 = vsub.f32 %v4900, %v5123
      %v5131 = vsub.f32 %v4901, %v5123
      %v5132 = vsub.f32 %v4902, %v5123
      %v5133 = vsub.f32 %v4903, %v5123
      %v5134 = vsub.f32 %v4904, %v5123
      %v5135 = vsub.f32 %v4905, %v5123
      %v5136 = vsub.f32 %v4906, %v5123
      %v5137 = vsub.f32 %v4907, %v5123
      %v5138 = vsub.f32 %v4908, %v5123
      %v5139 = vsub.f32 %v4909, %v5123
      %v5140 = vsub.f32 %v4910, %v5123
      %v5141 = vsub.f32 %v4911, %v5123
      %v5142 = vsub.f32 %v4912, %v5123
      %v5143 = vsub.f32 %v4913, %v5123
      %v5144 = vsub.f32 %v4914, %v5123
      %v5145 = vsub.f32 %v4915, %v5123
      %v5146 = vsub.f32 %v4916, %v5123
      %v5147 = vsub.f32 %v4917, %v5123
      %v5148 = vsub.f32 %v4918, %v5123
      %v5149 = vsub.f32 %v4919, %v5123
      %v5150 = vsub.f32 %v4920, %v5123
      %v5151 = vsub.f32 %v4921, %v5123
      %v5152 = vsub.f32 %v4922, %v5123
      %v5153 = vsub.f32 %v4923, %v5123
      %v5154 = vsub.f32 %v4924, %v5123
      %v5155 = vsub.f32 %v4925, %v5123
      %s5156 = sadd.f32 %s5122, 1e-05
      %v5157 = vstv %s5156
      %v5158 = vrsqrt.pop %v5157
      %v5159 = vmul.f32 %v5158, %v5157
      %v5160 = vmul.f32 %v5159, %v5158
      %v5161 = vmul.f32 0.5, %v5160
      %v5162 = vsub.f32 1.5, %v5161
      %v5163 = vmul.f32 %v5158, %v5162
      %vm5164 = vweird.f32 %v5157
      %vm5165 = vweird.f32 %v5158
      %vm5166 = vmor %vm5164, %vm5165
      %v5167 = vsel %vm5166, %v5158, %v5163
      %s5168 = vtos %v5167
      %v5169 = vstv %s5168
      %v5170 = vmul.f32 %v5124, %v5169
      %v5171 = vmul.f32 %v5125, %v5169
      %v5172 = vmul.f32 %v5126, %v5169
      %v5173 = vmul.f32 %v5127, %v5169
      %v5174 = vmul.f32 %v5128, %v5169
      %v5175 = vmul.f32 %v5129, %v5169
      %v5176 = vmul.f32 %v5130, %v5169
      %v5177 = vmul.f32 %v5131, %v5169
      %v5178 = vmul.f32 %v5132, %v5169
      %v5179 = vmul.f32 %v5133, %v5169
      %v5180 = vmul.f32 %v5134, %v5169
      %v5181 = vmul.f32 %v5135, %v5169
      %v5182 = vmul.f32 %v5136, %v5169
      %v5183 = vmul.f32 %v5137, %v5169
      %v5184 = vmul.f32 %v5138, %v5169
      %v5185 = vmul.f32 %v5139, %v5169
      %v5186 = vmul.f32 %v5140, %v5169
      %v5187 = vmul.f32 %v5141, %v5169
      %v5188 = vmul.f32 %v5142, %v5169
      %v5189 = vmul.f32 %v5143, %v5169
      %v5190 = vmul.f32 %v5144, %v5169
      %v5191 = vmul.f32 %v5145, %v5169
      %v5192 = vmul.f32 %v5146, %v5169
      %v5193 = vmul.f32 %v5147, %v5169
      %v5194 = vmul.f32 %v5148, %v5169
      %v5195 = vmul.f32 %v5149, %v5169
      %v5196 = vmul.f32 %v5150, %v5169
      %v5197 = vmul.f32 %v5151, %v5169
      %v5198 = vmul.f32 %v5152, %v5169
      %v5199 = vmul.f32 %v5153, %v5169
      %v5200 = vmul.f32 %v5154, %v5169
      %v5201 = vmul.f32 %v5155, %v5169
      %v5202 = vld [vmem:[%s9] sm:$0x1]
      %v5204 = vperm.slane %v5202, 0
      %v5206 = vmul.f32 %v5170, %v5204
      %v5207 = vmul.f32 %v5171, %v5204
      %v5208 = vmul.f32 %v5172, %v5204
      %v5209 = vmul.f32 %v5173, %v5204
      %v5210 = vmul.f32 %v5174, %v5204
      %v5211 = vmul.f32 %v5175, %v5204
      %v5212 = vmul.f32 %v5176, %v5204
      %v5213 = vmul.f32 %v5177, %v5204
      %v5214 = vmul.f32 %v5178, %v5204
      %v5215 = vmul.f32 %v5179, %v5204
      %v5216 = vmul.f32 %v5180, %v5204
      %v5217 = vmul.f32 %v5181, %v5204
      %v5218 = vmul.f32 %v5182, %v5204
      %v5219 = vmul.f32 %v5183, %v5204
      %v5220 = vmul.f32 %v5184, %v5204
      %v5221 = vmul.f32 %v5185, %v5204
      %v5222 = vmul.f32 %v5186, %v5204
      %v5223 = vmul.f32 %v5187, %v5204
      %v5224 = vmul.f32 %v5188, %v5204
      %v5225 = vmul.f32 %v5189, %v5204
      %v5226 = vmul.f32 %v5190, %v5204
      %v5227 = vmul.f32 %v5191, %v5204
      %v5228 = vmul.f32 %v5192, %v5204
      %v5229 = vmul.f32 %v5193, %v5204
      %v5230 = vmul.f32 %v5194, %v5204
      %v5231 = vmul.f32 %v5195, %v5204
      %v5232 = vmul.f32 %v5196, %v5204
      %v5233 = vmul.f32 %v5197, %v5204
      %v5234 = vmul.f32 %v5198, %v5204
      %v5235 = vmul.f32 %v5199, %v5204
      %v5236 = vmul.f32 %v5200, %v5204
      %v5237 = vmul.f32 %v5201, %v5204
      %v5238 = vld [vmem:[%s10] sm:$0x1]
      %v5240 = vperm.slane %v5238, 0
      %v5242 = vadd.f32 %v5206, %v5240
      %v5243 = vadd.f32 %v5207, %v5240
      %v5244 = vadd.f32 %v5208, %v5240
      %v5245 = vadd.f32 %v5209, %v5240
      %v5246 = vadd.f32 %v5210, %v5240
      %v5247 = vadd.f32 %v5211, %v5240
      %v5248 = vadd.f32 %v5212, %v5240
      %v5249 = vadd.f32 %v5213, %v5240
      %v5250 = vadd.f32 %v5214, %v5240
      %v5251 = vadd.f32 %v5215, %v5240
      %v5252 = vadd.f32 %v5216, %v5240
      %v5253 = vadd.f32 %v5217, %v5240
      %v5254 = vadd.f32 %v5218, %v5240
      %v5255 = vadd.f32 %v5219, %v5240
      %v5256 = vadd.f32 %v5220, %v5240
      %v5257 = vadd.f32 %v5221, %v5240
      %v5258 = vadd.f32 %v5222, %v5240
      %v5259 = vadd.f32 %v5223, %v5240
      %v5260 = vadd.f32 %v5224, %v5240
      %v5261 = vadd.f32 %v5225, %v5240
      %v5262 = vadd.f32 %v5226, %v5240
      %v5263 = vadd.f32 %v5227, %v5240
      %v5264 = vadd.f32 %v5228, %v5240
      %v5265 = vadd.f32 %v5229, %v5240
      %v5266 = vadd.f32 %v5230, %v5240
      %v5267 = vadd.f32 %v5231, %v5240
      %v5268 = vadd.f32 %v5232, %v5240
      %v5269 = vadd.f32 %v5233, %v5240
      %v5270 = vadd.f32 %v5234, %v5240
      %v5271 = vadd.f32 %v5235, %v5240
      %v5272 = vadd.f32 %v5236, %v5240
      %v5273 = vadd.f32 %v5237, %v5240
      %5274 = vst.msk [vmem:[%s1140 + $0x1] sm:$0xff] %vm746, %v5242
      %5275 = vst.msk [vmem:[%s1140 + $0x9] sm:$0xff] %vm746, %v5243
      %5276 = vst.msk [vmem:[%s1140 + $0x19] sm:$0xff] %vm746, %v5244
      %5277 = vst.msk [vmem:[%s1140 + $0x21] sm:$0xff] %vm746, %v5245
      %5278 = vst.msk [vmem:[%s1140 + $0x31] sm:$0xff] %vm746, %v5246
      %5279 = vst.msk [vmem:[%s1140 + $0x39] sm:$0xff] %vm746, %v5247
      %5280 = vst.msk [vmem:[%s1140 + $0x49] sm:$0xff] %vm746, %v5248
      %5281 = vst.msk [vmem:[%s1140 + $0x51] sm:$0xff] %vm746, %v5249
      %5282 = vst.msk [vmem:[%s1140 + $0x61] sm:$0xff] %vm746, %v5250
      %5283 = vst.msk [vmem:[%s1140 + $0x69] sm:$0xff] %vm746, %v5251
      %5284 = vst.msk [vmem:[%s1140 + $0x79] sm:$0xff] %vm746, %v5252
      %5285 = vst.msk [vmem:[%s1140 + $0x81] sm:$0xff] %vm746, %v5253
      %5286 = vst.msk [vmem:[%s1140 + $0x91] sm:$0xff] %vm746, %v5254
      %5287 = vst.msk [vmem:[%s1140 + $0x99] sm:$0xff] %vm746, %v5255
      %5288 = vst.msk [vmem:[%s1140 + $0xa9] sm:$0xff] %vm746, %v5256
      %5289 = vst.msk [vmem:[%s1140 + $0xb1] sm:$0xff] %vm746, %v5257
      %5290 = vst.msk [vmem:[%s1140 + $0xc1] sm:$0xff] %vm746, %v5258
      %5291 = vst.msk [vmem:[%s1140 + $0xc9] sm:$0xff] %vm746, %v5259
      %5292 = vst.msk [vmem:[%s1140 + $0xd9] sm:$0xff] %vm746, %v5260
      %5293 = vst.msk [vmem:[%s1140 + $0xe1] sm:$0xff] %vm746, %v5261
      %5294 = vst.msk [vmem:[%s1140 + $0xf1] sm:$0xff] %vm746, %v5262
      %5295 = vst.msk [vmem:[%s1140 + $0xf9] sm:$0xff] %vm746, %v5263
      %5296 = vst.msk [vmem:[%s1140 + $0x109] sm:$0xff] %vm746, %v5264
      %5297 = vst.msk [vmem:[%s1140 + $0x111] sm:$0xff] %vm746, %v5265
      %5298 = vst.msk [vmem:[%s1140 + $0x121] sm:$0xff] %vm746, %v5266
      %5299 = vst.msk [vmem:[%s1140 + $0x129] sm:$0xff] %vm746, %v5267
      %5300 = vst.msk [vmem:[%s1140 + $0x139] sm:$0xff] %vm746, %v5268
      %5301 = vst.msk [vmem:[%s1140 + $0x141] sm:$0xff] %vm746, %v5269
      %5302 = vst.msk [vmem:[%s1140 + $0x151] sm:$0xff] %vm746, %v5270
      %5303 = vst.msk [vmem:[%s1140 + $0x159] sm:$0xff] %vm746, %v5271
      %5304 = vst.msk [vmem:[%s1140 + $0x169] sm:$0xff] %vm746, %v5272
      %5305 = vst.msk [vmem:[%s1140 + $0x171] sm:$0xff] %vm746, %v5273
      %v5306 = vld [vmem:[#allocation2] sm:$0xff]
      %v5307 = vld [vmem:[#allocation2 + $0x8] sm:$0xff]
      %v5308 = vld [vmem:[#allocation2 + $0x10] sm:$0x3]
      %v5309 = vld [vmem:[#allocation2 + $0x18] sm:$0xff]
      %v5310 = vld [vmem:[#allocation2 + $0x20] sm:$0xff]
      %v5311 = vld [vmem:[#allocation2 + $0x28] sm:$0x3]
      %v5312 = vld [vmem:[#allocation2 + $0x30] sm:$0xff]
      %v5313 = vld [vmem:[#allocation2 + $0x38] sm:$0xff]
      %v5314 = vld [vmem:[#allocation2 + $0x40] sm:$0x3]
      %v5315 = vld [vmem:[#allocation2 + $0x48] sm:$0xff]
      %v5316 = vld [vmem:[#allocation2 + $0x50] sm:$0xff]
      %v5317 = vld [vmem:[#allocation2 + $0x58] sm:$0x3]
      %v5318 = vld [vmem:[#allocation2 + $0x60] sm:$0xff]
      %v5319 = vld [vmem:[#allocation2 + $0x68] sm:$0xff]
      %v5320 = vld [vmem:[#allocation2 + $0x70] sm:$0x3]
      %v5321 = vld [vmem:[#allocation2 + $0x78] sm:$0xff]
      %v5322 = vld [vmem:[#allocation2 + $0x80] sm:$0xff]
      %v5323 = vld [vmem:[#allocation2 + $0x88] sm:$0x3]
      %v5324 = vld [vmem:[#allocation2 + $0x90] sm:$0xff]
      %v5325 = vld [vmem:[#allocation2 + $0x98] sm:$0xff]
      %v5326 = vld [vmem:[#allocation2 + $0xa0] sm:$0x3]
      %v5327 = vld [vmem:[#allocation2 + $0xa8] sm:$0xff]
      %v5328 = vld [vmem:[#allocation2 + $0xb0] sm:$0xff]
      %v5329 = vld [vmem:[#allocation2 + $0xb8] sm:$0x3]
      %v5330 = vld [vmem:[#allocation2 + $0xc0] sm:$0xff]
      %v5331 = vld [vmem:[#allocation2 + $0xc8] sm:$0xff]
      %v5332 = vld [vmem:[#allocation2 + $0xd0] sm:$0x3]
      %v5333 = vld [vmem:[#allocation2 + $0xd8] sm:$0xff]
      %v5334 = vld [vmem:[#allocation2 + $0xe0] sm:$0xff]
      %v5335 = vld [vmem:[#allocation2 + $0xe8] sm:$0x3]
      %v5336 = vld [vmem:[#allocation2 + $0xf0] sm:$0xff]
      %v5337 = vld [vmem:[#allocation2 + $0xf8] sm:$0xff]
      %v5338 = vld [vmem:[#allocation2 + $0x100] sm:$0x3]
      %v5339 = vld [vmem:[#allocation2 + $0x108] sm:$0xff]
      %v5340 = vld [vmem:[#allocation2 + $0x110] sm:$0xff]
      %v5341 = vld [vmem:[#allocation2 + $0x118] sm:$0x3]
      %v5342 = vld [vmem:[#allocation2 + $0x120] sm:$0xff]
      %v5343 = vld [vmem:[#allocation2 + $0x128] sm:$0xff]
      %v5344 = vld [vmem:[#allocation2 + $0x130] sm:$0x3]
      %v5345 = vld [vmem:[#allocation2 + $0x138] sm:$0xff]
      %v5346 = vld [vmem:[#allocation2 + $0x140] sm:$0xff]
      %v5347 = vld [vmem:[#allocation2 + $0x148] sm:$0x3]
      %v5348 = vld [vmem:[#allocation2 + $0x150] sm:$0xff]
      %v5349 = vld [vmem:[#allocation2 + $0x158] sm:$0xff]
      %v5350 = vld [vmem:[#allocation2 + $0x160] sm:$0x3]
      %v5351 = vld [vmem:[#allocation2 + $0x168] sm:$0xff]
      %v5352 = vld [vmem:[#allocation2 + $0x170] sm:$0xff]
      %v5353 = vld [vmem:[#allocation2 + $0x178] sm:$0x3]
      %v5354 = vld [vmem:[#allocation2 + $0x180] sm:$0xff]
      %v5355 = vld [vmem:[#allocation2 + $0x188] sm:$0xff]
      %v5356 = vld [vmem:[#allocation2 + $0x190] sm:$0x3]
      %v5357 = vld [vmem:[#allocation2 + $0x198] sm:$0xff]
      %v5358 = vld [vmem:[#allocation2 + $0x1a0] sm:$0xff]
      %v5359 = vld [vmem:[#allocation2 + $0x1a8] sm:$0x3]
      %v5408 = vrot.slane %v5306, 1
      %v5409 = vrot.slane %v5307, 1
      %v5410 = vsel %vm1275, %v5408, %v5409
      %v5411 = vrot.slane %v5308, 1
      %v5412 = vsel %vm1275, %v5409, %v5411
      %v5413 = vrot.slane %v5309, 1
      %v5414 = vrot.slane %v5310, 1
      %v5415 = vsel %vm1275, %v5413, %v5414
      %v5416 = vrot.slane %v5311, 1
      %v5417 = vsel %vm1275, %v5414, %v5416
      %v5418 = vrot.slane %v5312, 1
      %v5419 = vrot.slane %v5313, 1
      %v5420 = vsel %vm1275, %v5418, %v5419
      %v5421 = vrot.slane %v5314, 1
      %v5422 = vsel %vm1275, %v5419, %v5421
      %v5423 = vrot.slane %v5315, 1
      %v5424 = vrot.slane %v5316, 1
      %v5425 = vsel %vm1275, %v5423, %v5424
      %v5426 = vrot.slane %v5317, 1
      %v5427 = vsel %vm1275, %v5424, %v5426
      %v5428 = vrot.slane %v5318, 1
      %v5429 = vrot.slane %v5319, 1
      %v5430 = vsel %vm1275, %v5428, %v5429
      %v5431 = vrot.slane %v5320, 1
      %v5432 = vsel %vm1275, %v5429, %v5431
      %v5433 = vrot.slane %v5321, 1
      %v5434 = vrot.slane %v5322, 1
      %v5435 = vsel %vm1275, %v5433, %v5434
      %v5436 = vrot.slane %v5323, 1
      %v5437 = vsel %vm1275, %v5434, %v5436
      %v5438 = vrot.slane %v5324, 1
      %v5439 = vrot.slane %v5325, 1
      %v5440 = vsel %vm1275, %v5438, %v5439
      %v5441 = vrot.slane %v5326, 1
      %v5442 = vsel %vm1275, %v5439, %v5441
      %v5443 = vrot.slane %v5327, 1
      %v5444 = vrot.slane %v5328, 1
      %v5445 = vsel %vm1275, %v5443, %v5444
      %v5446 = vrot.slane %v5329, 1
      %v5447 = vsel %vm1275, %v5444, %v5446
      %v5448 = vrot.slane %v5330, 1
      %v5449 = vrot.slane %v5331, 1
      %v5450 = vsel %vm1275, %v5448, %v5449
      %v5451 = vrot.slane %v5332, 1
      %v5452 = vsel %vm1275, %v5449, %v5451
      %v5453 = vrot.slane %v5333, 1
      %v5454 = vrot.slane %v5334, 1
      %v5455 = vsel %vm1275, %v5453, %v5454
      %v5456 = vrot.slane %v5335, 1
      %v5457 = vsel %vm1275, %v5454, %v5456
      %v5458 = vrot.slane %v5336, 1
      %v5459 = vrot.slane %v5337, 1
      %v5460 = vsel %vm1275, %v5458, %v5459
      %v5461 = vrot.slane %v5338, 1
      %v5462 = vsel %vm1275, %v5459, %v5461
      %v5463 = vrot.slane %v5339, 1
      %v5464 = vrot.slane %v5340, 1
      %v5465 = vsel %vm1275, %v5463, %v5464
      %v5466 = vrot.slane %v5341, 1
      %v5467 = vsel %vm1275, %v5464, %v5466
      %v5468 = vrot.slane %v5342, 1
      %v5469 = vrot.slane %v5343, 1
      %v5470 = vsel %vm1275, %v5468, %v5469
      %v5471 = vrot.slane %v5344, 1
      %v5472 = vsel %vm1275, %v5469, %v5471
      %v5473 = vrot.slane %v5345, 1
      %v5474 = vrot.slane %v5346, 1
      %v5475 = vsel %vm1275, %v5473, %v5474
      %v5476 = vrot.slane %v5347, 1
      %v5477 = vsel %vm1275, %v5474, %v5476
      %v5478 = vrot.slane %v5348, 1
      %v5479 = vrot.slane %v5349, 1
      %v5480 = vsel %vm1275, %v5478, %v5479
      %v5481 = vrot.slane %v5350, 1
      %v5482 = vsel %vm1275, %v5479, %v5481
      %v5483 = vrot.slane %v5351, 1
      %v5484 = vrot.slane %v5352, 1
      %v5485 = vsel %vm1275, %v5483, %v5484
      %v5486 = vrot.slane %v5353, 1
      %v5487 = vsel %vm1275, %v5484, %v5486
      %5488 = vrot.lane.b32.xlu0 %v5410, 8
      %v5489 = vpop.permute.xlu0 %5488
      %5490 = vrot.lane.b32.xlu0 %v5412, 8
      %v5491 = vpop.permute.xlu0 %5490
      %5492 = vrot.lane.b32.xlu0 %v5415, 8
      %v5493 = vpop.permute.xlu0 %5492
      %5494 = vrot.lane.b32.xlu0 %v5417, 8
      %v5495 = vpop.permute.xlu0 %5494
      %5496 = vrot.lane.b32.xlu0 %v5420, 8
      %v5497 = vpop.permute.xlu0 %5496
      %5498 = vrot.lane.b32.xlu0 %v5422, 8
      %v5499 = vpop.permute.xlu0 %5498
      %5500 = vrot.lane.b32.xlu0 %v5425, 8
      %v5501 = vpop.permute.xlu0 %5500
      %5502 = vrot.lane.b32.xlu0 %v5427, 8
      %v5503 = vpop.permute.xlu0 %5502
      %5504 = vrot.lane.b32.xlu0 %v5430, 8
      %v5505 = vpop.permute.xlu0 %5504
      %5506 = vrot.lane.b32.xlu0 %v5432, 8
      %v5507 = vpop.permute.xlu0 %5506
      %5508 = vrot.lane.b32.xlu0 %v5435, 8
      %v5509 = vpop.permute.xlu0 %5508
      %5510 = vrot.lane.b32.xlu0 %v5437, 8
      %v5511 = vpop.permute.xlu0 %5510
      %5512 = vrot.lane.b32.xlu0 %v5440, 8
      %v5513 = vpop.permute.xlu0 %5512
      %5514 = vrot.lane.b32.xlu0 %v5442, 8
      %v5515 = vpop.permute.xlu0 %5514
      %5516 = vrot.lane.b32.xlu0 %v5445, 8
      %v5517 = vpop.permute.xlu0 %5516
      %5518 = vrot.lane.b32.xlu0 %v5447, 8
      %v5519 = vpop.permute.xlu0 %5518
      %5520 = vrot.lane.b32.xlu0 %v5450, 8
      %v5521 = vpop.permute.xlu0 %5520
      %5522 = vrot.lane.b32.xlu0 %v5452, 8
      %v5523 = vpop.permute.xlu0 %5522
      %5524 = vrot.lane.b32.xlu0 %v5455, 8
      %v5525 = vpop.permute.xlu0 %5524
      %5526 = vrot.lane.b32.xlu0 %v5457, 8
      %v5527 = vpop.permute.xlu0 %5526
      %5528 = vrot.lane.b32.xlu0 %v5460, 8
      %v5529 = vpop.permute.xlu0 %5528
      %5530 = vrot.lane.b32.xlu0 %v5462, 8
      %v5531 = vpop.permute.xlu0 %5530
      %5532 = vrot.lane.b32.xlu0 %v5465, 8
      %v5533 = vpop.permute.xlu0 %5532
      %5534 = vrot.lane.b32.xlu0 %v5467, 8
      %v5535 = vpop.permute.xlu0 %5534
      %5536 = vrot.lane.b32.xlu0 %v5470, 8
      %v5537 = vpop.permute.xlu0 %5536
      %5538 = vrot.lane.b32.xlu0 %v5472, 8
      %v5539 = vpop.permute.xlu0 %5538
      %5540 = vrot.lane.b32.xlu0 %v5475, 8
      %v5541 = vpop.permute.xlu0 %5540
      %5542 = vrot.lane.b32.xlu0 %v5477, 8
      %v5543 = vpop.permute.xlu0 %5542
      %5544 = vrot.lane.b32.xlu0 %v5480, 8
      %v5545 = vpop.permute.xlu0 %5544
      %5546 = vrot.lane.b32.xlu0 %v5482, 8
      %v5547 = vpop.permute.xlu0 %5546
      %5548 = vrot.lane.b32.xlu0 %v5485, 8
      %v5549 = vpop.permute.xlu0 %5548
      %5550 = vrot.lane.b32.xlu0 %v5487, 8
      %v5551 = vpop.permute.xlu0 %5550
      %v5584 = vrot.slane %v5306, 2
      %v5585 = vrot.slane %v5307, 2
      %v5586 = vsel %vm1452, %v5584, %v5585
      %v5587 = vrot.slane %v5308, 2
      %v5588 = vsel %vm1452, %v5585, %v5587
      %v5589 = vrot.slane %v5309, 2
      %v5590 = vrot.slane %v5310, 2
      %v5591 = vsel %vm1452, %v5589, %v5590
      %v5592 = vrot.slane %v5311, 2
      %v5593 = vsel %vm1452, %v5590, %v5592
      %v5594 = vrot.slane %v5312, 2
      %v5595 = vrot.slane %v5313, 2
      %v5596 = vsel %vm1452, %v5594, %v5595
      %v5597 = vrot.slane %v5314, 2
      %v5598 = vsel %vm1452, %v5595, %v5597
      %v5599 = vrot.slane %v5315, 2
      %v5600 = vrot.slane %v5316, 2
      %v5601 = vsel %vm1452, %v5599, %v5600
      %v5602 = vrot.slane %v5317, 2
      %v5603 = vsel %vm1452, %v5600, %v5602
      %v5604 = vrot.slane %v5318, 2
      %v5605 = vrot.slane %v5319, 2
      %v5606 = vsel %vm1452, %v5604, %v5605
      %v5607 = vrot.slane %v5320, 2
      %v5608 = vsel %vm1452, %v5605, %v5607
      %v5609 = vrot.slane %v5321, 2
      %v5610 = vrot.slane %v5322, 2
      %v5611 = vsel %vm1452, %v5609, %v5610
      %v5612 = vrot.slane %v5323, 2
      %v5613 = vsel %vm1452, %v5610, %v5612
      %v5614 = vrot.slane %v5324, 2
      %v5615 = vrot.slane %v5325, 2
      %v5616 = vsel %vm1452, %v5614, %v5615
      %v5617 = vrot.slane %v5326, 2
      %v5618 = vsel %vm1452, %v5615, %v5617
      %v5619 = vrot.slane %v5327, 2
      %v5620 = vrot.slane %v5328, 2
      %v5621 = vsel %vm1452, %v5619, %v5620
      %v5622 = vrot.slane %v5329, 2
      %v5623 = vsel %vm1452, %v5620, %v5622
      %v5624 = vrot.slane %v5330, 2
      %v5625 = vrot.slane %v5331, 2
      %v5626 = vsel %vm1452, %v5624, %v5625
      %v5627 = vrot.slane %v5332, 2
      %v5628 = vsel %vm1452, %v5625, %v5627
      %v5629 = vrot.slane %v5333, 2
      %v5630 = vrot.slane %v5334, 2
      %v5631 = vsel %vm1452, %v5629, %v5630
      %v5632 = vrot.slane %v5335, 2
      %v5633 = vsel %vm1452, %v5630, %v5632
      %v5634 = vrot.slane %v5336, 2
      %v5635 = vrot.slane %v5337, 2
      %v5636 = vsel %vm1452, %v5634, %v5635
      %v5637 = vrot.slane %v5338, 2
      %v5638 = vsel %vm1452, %v5635, %v5637
      %v5639 = vrot.slane %v5339, 2
      %v5640 = vrot.slane %v5340, 2
      %v5641 = vsel %vm1452, %v5639, %v5640
      %v5642 = vrot.slane %v5341, 2
      %v5643 = vsel %vm1452, %v5640, %v5642
      %v5644 = vrot.slane %v5342, 2
      %v5645 = vrot.slane %v5343, 2
      %v5646 = vsel %vm1452, %v5644, %v5645
      %v5647 = vrot.slane %v5344, 2
      %v5648 = vsel %vm1452, %v5645, %v5647
      %v5649 = vrot.slane %v5345, 2
      %v5650 = vrot.slane %v5346, 2
      %v5651 = vsel %vm1452, %v5649, %v5650
      %v5652 = vrot.slane %v5347, 2
      %v5653 = vsel %vm1452, %v5650, %v5652
      %v5654 = vrot.slane %v5348, 2
      %v5655 = vrot.slane %v5349, 2
      %v5656 = vsel %vm1452, %v5654, %v5655
      %v5657 = vrot.slane %v5350, 2
      %v5658 = vsel %vm1452, %v5655, %v5657
      %v5659 = vrot.slane %v5351, 2
      %v5660 = vrot.slane %v5352, 2
      %v5661 = vsel %vm1452, %v5659, %v5660
      %v5662 = vrot.slane %v5353, 2
      %v5663 = vsel %vm1452, %v5660, %v5662
      %5664 = vrot.lane.b32.xlu0 %v5586, 16
      %v5665 = vpop.permute.xlu0 %5664
      %5666 = vrot.lane.b32.xlu0 %v5588, 16
      %v5667 = vpop.permute.xlu0 %5666
      %5668 = vrot.lane.b32.xlu0 %v5591, 16
      %v5669 = vpop.permute.xlu0 %5668
      %5670 = vrot.lane.b32.xlu0 %v5593, 16
      %v5671 = vpop.permute.xlu0 %5670
      %5672 = vrot.lane.b32.xlu0 %v5596, 16
      %v5673 = vpop.permute.xlu0 %5672
      %5674 = vrot.lane.b32.xlu0 %v5598, 16
      %v5675 = vpop.permute.xlu0 %5674
      %5676 = vrot.lane.b32.xlu0 %v5601, 16
      %v5677 = vpop.permute.xlu0 %5676
      %5678 = vrot.lane.b32.xlu0 %v5603, 16
      %v5679 = vpop.permute.xlu0 %5678
      %5680 = vrot.lane.b32.xlu0 %v5606, 16
      %v5681 = vpop.permute.xlu0 %5680
      %5682 = vrot.lane.b32.xlu0 %v5608, 16
      %v5683 = vpop.permute.xlu0 %5682
      %5684 = vrot.lane.b32.xlu0 %v5611, 16
      %v5685 = vpop.permute.xlu0 %5684
      %5686 = vrot.lane.b32.xlu0 %v5613, 16
      %v5687 = vpop.permute.xlu0 %5686
      %5688 = vrot.lane.b32.xlu0 %v5616, 16
      %v5689 = vpop.permute.xlu0 %5688
      %5690 = vrot.lane.b32.xlu0 %v5618, 16
      %v5691 = vpop.permute.xlu0 %5690
      %5692 = vrot.lane.b32.xlu0 %v5621, 16
      %v5693 = vpop.permute.xlu0 %5692
      %5694 = vrot.lane.b32.xlu0 %v5623, 16
      %v5695 = vpop.permute.xlu0 %5694
      %5696 = vrot.lane.b32.xlu0 %v5626, 16
      %v5697 = vpop.permute.xlu0 %5696
      %5698 = vrot.lane.b32.xlu0 %v5628, 16
      %v5699 = vpop.permute.xlu0 %5698
      %5700 = vrot.lane.b32.xlu0 %v5631, 16
      %v5701 = vpop.permute.xlu0 %5700
      %5702 = vrot.lane.b32.xlu0 %v5633, 16
      %v5703 = vpop.permute.xlu0 %5702
      %5704 = vrot.lane.b32.xlu0 %v5636, 16
      %v5705 = vpop.permute.xlu0 %5704
      %5706 = vrot.lane.b32.xlu0 %v5638, 16
      %v5707 = vpop.permute.xlu0 %5706
      %5708 = vrot.lane.b32.xlu0 %v5641, 16
      %v5709 = vpop.permute.xlu0 %5708
      %5710 = vrot.lane.b32.xlu0 %v5643, 16
      %v5711 = vpop.permute.xlu0 %5710
      %5712 = vrot.lane.b32.xlu0 %v5646, 16
      %v5713 = vpop.permute.xlu0 %5712
      %5714 = vrot.lane.b32.xlu0 %v5648, 16
      %v5715 = vpop.permute.xlu0 %5714
      %5716 = vrot.lane.b32.xlu0 %v5651, 16
      %v5717 = vpop.permute.xlu0 %5716
      %5718 = vrot.lane.b32.xlu0 %v5653, 16
      %v5719 = vpop.permute.xlu0 %5718
      %5720 = vrot.lane.b32.xlu0 %v5656, 16
      %v5721 = vpop.permute.xlu0 %5720
      %5722 = vrot.lane.b32.xlu0 %v5658, 16
      %v5723 = vpop.permute.xlu0 %5722
      %5724 = vrot.lane.b32.xlu0 %v5661, 16
      %v5725 = vpop.permute.xlu0 %5724
      %5726 = vrot.lane.b32.xlu0 %v5663, 16
      %v5727 = vpop.permute.xlu0 %5726
      %5762 = vrot.lane.b32.xlu0 %v5309, 24
      %v5763 = vpop.permute.xlu0 %5762
      %5764 = vrot.lane.b32.xlu0 %v5310, 24
      %v5765 = vpop.permute.xlu0 %5764
      %5766 = vrot.lane.b32.xlu0 %v5312, 24
      %v5767 = vpop.permute.xlu0 %5766
      %5768 = vrot.lane.b32.xlu0 %v5313, 24
      %v5769 = vpop.permute.xlu0 %5768
      %5770 = vrot.lane.b32.xlu0 %v5315, 24
      %v5771 = vpop.permute.xlu0 %5770
      %5772 = vrot.lane.b32.xlu0 %v5316, 24
      %v5773 = vpop.permute.xlu0 %5772
      %5774 = vrot.lane.b32.xlu0 %v5318, 24
      %v5775 = vpop.permute.xlu0 %5774
      %5776 = vrot.lane.b32.xlu0 %v5319, 24
      %v5777 = vpop.permute.xlu0 %5776
      %5778 = vrot.lane.b32.xlu0 %v5321, 24
      %v5779 = vpop.permute.xlu0 %5778
      %5780 = vrot.lane.b32.xlu0 %v5322, 24
      %v5781 = vpop.permute.xlu0 %5780
      %5782 = vrot.lane.b32.xlu0 %v5324, 24
      %v5783 = vpop.permute.xlu0 %5782
      %5784 = vrot.lane.b32.xlu0 %v5325, 24
      %v5785 = vpop.permute.xlu0 %5784
      %5786 = vrot.lane.b32.xlu0 %v5327, 24
      %v5787 = vpop.permute.xlu0 %5786
      %5788 = vrot.lane.b32.xlu0 %v5328, 24
      %v5789 = vpop.permute.xlu0 %5788
      %5790 = vrot.lane.b32.xlu0 %v5330, 24
      %v5791 = vpop.permute.xlu0 %5790
      %5792 = vrot.lane.b32.xlu0 %v5331, 24
      %v5793 = vpop.permute.xlu0 %5792
      %5794 = vrot.lane.b32.xlu0 %v5333, 24
      %v5795 = vpop.permute.xlu0 %5794
      %5796 = vrot.lane.b32.xlu0 %v5334, 24
      %v5797 = vpop.permute.xlu0 %5796
      %5798 = vrot.lane.b32.xlu0 %v5336, 24
      %v5799 = vpop.permute.xlu0 %5798
      %5800 = vrot.lane.b32.xlu0 %v5337, 24
      %v5801 = vpop.permute.xlu0 %5800
      %5802 = vrot.lane.b32.xlu0 %v5339, 24
      %v5803 = vpop.permute.xlu0 %5802
      %5804 = vrot.lane.b32.xlu0 %v5340, 24
      %v5805 = vpop.permute.xlu0 %5804
      %5806 = vrot.lane.b32.xlu0 %v5342, 24
      %v5807 = vpop.permute.xlu0 %5806
      %5808 = vrot.lane.b32.xlu0 %v5343, 24
      %v5809 = vpop.permute.xlu0 %5808
      %5810 = vrot.lane.b32.xlu0 %v5345, 24
      %v5811 = vpop.permute.xlu0 %5810
      %5812 = vrot.lane.b32.xlu0 %v5346, 24
      %v5813 = vpop.permute.xlu0 %5812
      %5814 = vrot.lane.b32.xlu0 %v5348, 24
      %v5815 = vpop.permute.xlu0 %5814
      %5816 = vrot.lane.b32.xlu0 %v5349, 24
      %v5817 = vpop.permute.xlu0 %5816
      %5818 = vrot.lane.b32.xlu0 %v5351, 24
      %v5819 = vpop.permute.xlu0 %5818
      %5820 = vrot.lane.b32.xlu0 %v5352, 24
      %v5821 = vpop.permute.xlu0 %5820
      %5822 = vrot.lane.b32.xlu0 %v5354, 24
      %v5823 = vpop.permute.xlu0 %5822
      %5824 = vrot.lane.b32.xlu0 %v5355, 24
      %v5825 = vpop.permute.xlu0 %5824
      %v5859 = vrot.slane %v5354, 1
      %v5860 = vrot.slane %v5355, 1
      %v5861 = vsel %vm1275, %v5859, %v5860
      %v5862 = vrot.slane %v5356, 1
      %v5863 = vsel %vm1275, %v5860, %v5862
      %5864 = vrot.lane.b32.xlu0 %v5415, 32
      %v5865 = vpop.permute.xlu0 %5864
      %5866 = vrot.lane.b32.xlu0 %v5417, 32
      %v5867 = vpop.permute.xlu0 %5866
      %5868 = vrot.lane.b32.xlu0 %v5420, 32
      %v5869 = vpop.permute.xlu0 %5868
      %5870 = vrot.lane.b32.xlu0 %v5422, 32
      %v5871 = vpop.permute.xlu0 %5870
      %5872 = vrot.lane.b32.xlu0 %v5425, 32
      %v5873 = vpop.permute.xlu0 %5872
      %5874 = vrot.lane.b32.xlu0 %v5427, 32
      %v5875 = vpop.permute.xlu0 %5874
      %5876 = vrot.lane.b32.xlu0 %v5430, 32
      %v5877 = vpop.permute.xlu0 %5876
      %5878 = vrot.lane.b32.xlu0 %v5432, 32
      %v5879 = vpop.permute.xlu0 %5878
      %5880 = vrot.lane.b32.xlu0 %v5435, 32
      %v5881 = vpop.permute.xlu0 %5880
      %5882 = vrot.lane.b32.xlu0 %v5437, 32
      %v5883 = vpop.permute.xlu0 %5882
      %5884 = vrot.lane.b32.xlu0 %v5440, 32
      %v5885 = vpop.permute.xlu0 %5884
      %5886 = vrot.lane.b32.xlu0 %v5442, 32
      %v5887 = vpop.permute.xlu0 %5886
      %5888 = vrot.lane.b32.xlu0 %v5445, 32
      %v5889 = vpop.permute.xlu0 %5888
      %5890 = vrot.lane.b32.xlu0 %v5447, 32
      %v5891 = vpop.permute.xlu0 %5890
      %5892 = vrot.lane.b32.xlu0 %v5450, 32
      %v5893 = vpop.permute.xlu0 %5892
      %5894 = vrot.lane.b32.xlu0 %v5452, 32
      %v5895 = vpop.permute.xlu0 %5894
      %5896 = vrot.lane.b32.xlu0 %v5455, 32
      %v5897 = vpop.permute.xlu0 %5896
      %5898 = vrot.lane.b32.xlu0 %v5457, 32
      %v5899 = vpop.permute.xlu0 %5898
      %5900 = vrot.lane.b32.xlu0 %v5460, 32
      %v5901 = vpop.permute.xlu0 %5900
      %5902 = vrot.lane.b32.xlu0 %v5462, 32
      %v5903 = vpop.permute.xlu0 %5902
      %5904 = vrot.lane.b32.xlu0 %v5465, 32
      %v5905 = vpop.permute.xlu0 %5904
      %5906 = vrot.lane.b32.xlu0 %v5467, 32
      %v5907 = vpop.permute.xlu0 %5906
      %5908 = vrot.lane.b32.xlu0 %v5470, 32
      %v5909 = vpop.permute.xlu0 %5908
      %5910 = vrot.lane.b32.xlu0 %v5472, 32
      %v5911 = vpop.permute.xlu0 %5910
      %5912 = vrot.lane.b32.xlu0 %v5475, 32
      %v5913 = vpop.permute.xlu0 %5912
      %5914 = vrot.lane.b32.xlu0 %v5477, 32
      %v5915 = vpop.permute.xlu0 %5914
      %5916 = vrot.lane.b32.xlu0 %v5480, 32
      %v5917 = vpop.permute.xlu0 %5916
      %5918 = vrot.lane.b32.xlu0 %v5482, 32
      %v5919 = vpop.permute.xlu0 %5918
      %5920 = vrot.lane.b32.xlu0 %v5485, 32
      %v5921 = vpop.permute.xlu0 %5920
      %5922 = vrot.lane.b32.xlu0 %v5487, 32
      %v5923 = vpop.permute.xlu0 %5922
      %5924 = vrot.lane.b32.xlu0 %v5861, 32
      %v5925 = vpop.permute.xlu0 %5924
      %5926 = vrot.lane.b32.xlu0 %v5863, 32
      %v5927 = vpop.permute.xlu0 %5926
      %v5960 = vrot.slane %v5354, 2
      %v5961 = vrot.slane %v5355, 2
      %v5962 = vsel %vm1452, %v5960, %v5961
      %v5963 = vrot.slane %v5356, 2
      %v5964 = vsel %vm1452, %v5961, %v5963
      %5965 = vrot.lane.b32.xlu0 %v5591, 40
      %v5966 = vpop.permute.xlu0 %5965
      %5967 = vrot.lane.b32.xlu0 %v5593, 40
      %v5968 = vpop.permute.xlu0 %5967
      %5969 = vrot.lane.b32.xlu0 %v5596, 40
      %v5970 = vpop.permute.xlu0 %5969
      %5971 = vrot.lane.b32.xlu0 %v5598, 40
      %v5972 = vpop.permute.xlu0 %5971
      %5973 = vrot.lane.b32.xlu0 %v5601, 40
      %v5974 = vpop.permute.xlu0 %5973
      %5975 = vrot.lane.b32.xlu0 %v5603, 40
      %v5976 = vpop.permute.xlu0 %5975
      %5977 = vrot.lane.b32.xlu0 %v5606, 40
      %v5978 = vpop.permute.xlu0 %5977
      %5979 = vrot.lane.b32.xlu0 %v5608, 40
      %v5980 = vpop.permute.xlu0 %5979
      %5981 = vrot.lane.b32.xlu0 %v5611, 40
      %v5982 = vpop.permute.xlu0 %5981
      %5983 = vrot.lane.b32.xlu0 %v5613, 40
      %v5984 = vpop.permute.xlu0 %5983
      %5985 = vrot.lane.b32.xlu0 %v5616, 40
      %v5986 = vpop.permute.xlu0 %5985
      %5987 = vrot.lane.b32.xlu0 %v5618, 40
      %v5988 = vpop.permute.xlu0 %5987
      %5989 = vrot.lane.b32.xlu0 %v5621, 40
      %v5990 = vpop.permute.xlu0 %5989
      %5991 = vrot.lane.b32.xlu0 %v5623, 40
      %v5992 = vpop.permute.xlu0 %5991
      %5993 = vrot.lane.b32.xlu0 %v5626, 40
      %v5994 = vpop.permute.xlu0 %5993
      %5995 = vrot.lane.b32.xlu0 %v5628, 40
      %v5996 = vpop.permute.xlu0 %5995
      %5997 = vrot.lane.b32.xlu0 %v5631, 40
      %v5998 = vpop.permute.xlu0 %5997
      %5999 = vrot.lane.b32.xlu0 %v5633, 40
      %v6000 = vpop.permute.xlu0 %5999
      %6001 = vrot.lane.b32.xlu0 %v5636, 40
      %v6002 = vpop.permute.xlu0 %6001
      %6003 = vrot.lane.b32.xlu0 %v5638, 40
      %v6004 = vpop.permute.xlu0 %6003
      %6005 = vrot.lane.b32.xlu0 %v5641, 40
      %v6006 = vpop.permute.xlu0 %6005
      %6007 = vrot.lane.b32.xlu0 %v5643, 40
      %v6008 = vpop.permute.xlu0 %6007
      %6009 = vrot.lane.b32.xlu0 %v5646, 40
      %v6010 = vpop.permute.xlu0 %6009
      %6011 = vrot.lane.b32.xlu0 %v5648, 40
      %v6012 = vpop.permute.xlu0 %6011
      %6013 = vrot.lane.b32.xlu0 %v5651, 40
      %v6014 = vpop.permute.xlu0 %6013
      %6015 = vrot.lane.b32.xlu0 %v5653, 40
      %v6016 = vpop.permute.xlu0 %6015
      %6017 = vrot.lane.b32.xlu0 %v5656, 40
      %v6018 = vpop.permute.xlu0 %6017
      %6019 = vrot.lane.b32.xlu0 %v5658, 40
      %v6020 = vpop.permute.xlu0 %6019
      %6021 = vrot.lane.b32.xlu0 %v5661, 40
      %v6022 = vpop.permute.xlu0 %6021
      %6023 = vrot.lane.b32.xlu0 %v5663, 40
      %v6024 = vpop.permute.xlu0 %6023
      %6025 = vrot.lane.b32.xlu0 %v5962, 40
      %v6026 = vpop.permute.xlu0 %6025
      %6027 = vrot.lane.b32.xlu0 %v5964, 40
      %v6028 = vpop.permute.xlu0 %6027
      %6063 = vrot.lane.b32.xlu0 %v5312, 48
      %v6064 = vpop.permute.xlu0 %6063
      %6065 = vrot.lane.b32.xlu0 %v5313, 48
      %v6066 = vpop.permute.xlu0 %6065
      %6067 = vrot.lane.b32.xlu0 %v5315, 48
      %v6068 = vpop.permute.xlu0 %6067
      %6069 = vrot.lane.b32.xlu0 %v5316, 48
      %v6070 = vpop.permute.xlu0 %6069
      %6071 = vrot.lane.b32.xlu0 %v5318, 48
      %v6072 = vpop.permute.xlu0 %6071
      %6073 = vrot.lane.b32.xlu0 %v5319, 48
      %v6074 = vpop.permute.xlu0 %6073
      %6075 = vrot.lane.b32.xlu0 %v5321, 48
      %v6076 = vpop.permute.xlu0 %6075
      %6077 = vrot.lane.b32.xlu0 %v5322, 48
      %v6078 = vpop.permute.xlu0 %6077
      %6079 = vrot.lane.b32.xlu0 %v5324, 48
      %v6080 = vpop.permute.xlu0 %6079
      %6081 = vrot.lane.b32.xlu0 %v5325, 48
      %v6082 = vpop.permute.xlu0 %6081
      %6083 = vrot.lane.b32.xlu0 %v5327, 48
      %v6084 = vpop.permute.xlu0 %6083
      %6085 = vrot.lane.b32.xlu0 %v5328, 48
      %v6086 = vpop.permute.xlu0 %6085
      %6087 = vrot.lane.b32.xlu0 %v5330, 48
      %v6088 = vpop.permute.xlu0 %6087
      %6089 = vrot.lane.b32.xlu0 %v5331, 48
      %v6090 = vpop.permute.xlu0 %6089
      %6091 = vrot.lane.b32.xlu0 %v5333, 48
      %v6092 = vpop.permute.xlu0 %6091
      %6093 = vrot.lane.b32.xlu0 %v5334, 48
      %v6094 = vpop.permute.xlu0 %6093
      %6095 = vrot.lane.b32.xlu0 %v5336, 48
      %v6096 = vpop.permute.xlu0 %6095
      %6097 = vrot.lane.b32.xlu0 %v5337, 48
      %v6098 = vpop.permute.xlu0 %6097
      %6099 = vrot.lane.b32.xlu0 %v5339, 48
      %v6100 = vpop.permute.xlu0 %6099
      %6101 = vrot.lane.b32.xlu0 %v5340, 48
      %v6102 = vpop.permute.xlu0 %6101
      %6103 = vrot.lane.b32.xlu0 %v5342, 48
      %v6104 = vpop.permute.xlu0 %6103
      %6105 = vrot.lane.b32.xlu0 %v5343, 48
      %v6106 = vpop.permute.xlu0 %6105
      %6107 = vrot.lane.b32.xlu0 %v5345, 48
      %v6108 = vpop.permute.xlu0 %6107
      %6109 = vrot.lane.b32.xlu0 %v5346, 48
      %v6110 = vpop.permute.xlu0 %6109
      %6111 = vrot.lane.b32.xlu0 %v5348, 48
      %v6112 = vpop.permute.xlu0 %6111
      %6113 = vrot.lane.b32.xlu0 %v5349, 48
      %v6114 = vpop.permute.xlu0 %6113
      %6115 = vrot.lane.b32.xlu0 %v5351, 48
      %v6116 = vpop.permute.xlu0 %6115
      %6117 = vrot.lane.b32.xlu0 %v5352, 48
      %v6118 = vpop.permute.xlu0 %6117
      %6119 = vrot.lane.b32.xlu0 %v5354, 48
      %v6120 = vpop.permute.xlu0 %6119
      %6121 = vrot.lane.b32.xlu0 %v5355, 48
      %v6122 = vpop.permute.xlu0 %6121
      %6123 = vrot.lane.b32.xlu0 %v5357, 48
      %v6124 = vpop.permute.xlu0 %6123
      %6125 = vrot.lane.b32.xlu0 %v5358, 48
      %v6126 = vpop.permute.xlu0 %6125
      %v6160 = vrot.slane %v5357, 1
      %v6161 = vrot.slane %v5358, 1
      %v6162 = vsel %vm1275, %v6160, %v6161
      %v6163 = vrot.slane %v5359, 1
      %v6164 = vsel %vm1275, %v6161, %v6163
      %6165 = vrot.lane.b32.xlu0 %v5420, 56
      %v6166 = vpop.permute.xlu0 %6165
      %6167 = vrot.lane.b32.xlu0 %v5422, 56
      %v6168 = vpop.permute.xlu0 %6167
      %6169 = vrot.lane.b32.xlu0 %v5425, 56
      %v6170 = vpop.permute.xlu0 %6169
      %6171 = vrot.lane.b32.xlu0 %v5427, 56
      %v6172 = vpop.permute.xlu0 %6171
      %6173 = vrot.lane.b32.xlu0 %v5430, 56
      %v6174 = vpop.permute.xlu0 %6173
      %6175 = vrot.lane.b32.xlu0 %v5432, 56
      %v6176 = vpop.permute.xlu0 %6175
      %6177 = vrot.lane.b32.xlu0 %v5435, 56
      %v6178 = vpop.permute.xlu0 %6177
      %6179 = vrot.lane.b32.xlu0 %v5437, 56
      %v6180 = vpop.permute.xlu0 %6179
      %6181 = vrot.lane.b32.xlu0 %v5440, 56
      %v6182 = vpop.permute.xlu0 %6181
      %6183 = vrot.lane.b32.xlu0 %v5442, 56
      %v6184 = vpop.permute.xlu0 %6183
      %6185 = vrot.lane.b32.xlu0 %v5445, 56
      %v6186 = vpop.permute.xlu0 %6185
      %6187 = vrot.lane.b32.xlu0 %v5447, 56
      %v6188 = vpop.permute.xlu0 %6187
      %6189 = vrot.lane.b32.xlu0 %v5450, 56
      %v6190 = vpop.permute.xlu0 %6189
      %6191 = vrot.lane.b32.xlu0 %v5452, 56
      %v6192 = vpop.permute.xlu0 %6191
      %6193 = vrot.lane.b32.xlu0 %v5455, 56
      %v6194 = vpop.permute.xlu0 %6193
      %6195 = vrot.lane.b32.xlu0 %v5457, 56
      %v6196 = vpop.permute.xlu0 %6195
      %6197 = vrot.lane.b32.xlu0 %v5460, 56
      %v6198 = vpop.permute.xlu0 %6197
      %6199 = vrot.lane.b32.xlu0 %v5462, 56
      %v6200 = vpop.permute.xlu0 %6199
      %6201 = vrot.lane.b32.xlu0 %v5465, 56
      %v6202 = vpop.permute.xlu0 %6201
      %6203 = vrot.lane.b32.xlu0 %v5467, 56
      %v6204 = vpop.permute.xlu0 %6203
      %6205 = vrot.lane.b32.xlu0 %v5470, 56
      %v6206 = vpop.permute.xlu0 %6205
      %6207 = vrot.lane.b32.xlu0 %v5472, 56
      %v6208 = vpop.permute.xlu0 %6207
      %6209 = vrot.lane.b32.xlu0 %v5475, 56
      %v6210 = vpop.permute.xlu0 %6209
      %6211 = vrot.lane.b32.xlu0 %v5477, 56
      %v6212 = vpop.permute.xlu0 %6211
      %6213 = vrot.lane.b32.xlu0 %v5480, 56
      %v6214 = vpop.permute.xlu0 %6213
      %6215 = vrot.lane.b32.xlu0 %v5482, 56
      %v6216 = vpop.permute.xlu0 %6215
      %6217 = vrot.lane.b32.xlu0 %v5485, 56
      %v6218 = vpop.permute.xlu0 %6217
      %6219 = vrot.lane.b32.xlu0 %v5487, 56
      %v6220 = vpop.permute.xlu0 %6219
      %6221 = vrot.lane.b32.xlu0 %v5861, 56
      %v6222 = vpop.permute.xlu0 %6221
      %6223 = vrot.lane.b32.xlu0 %v5863, 56
      %v6224 = vpop.permute.xlu0 %6223
      %6225 = vrot.lane.b32.xlu0 %v6162, 56
      %v6226 = vpop.permute.xlu0 %6225
      %6227 = vrot.lane.b32.xlu0 %v6164, 56
      %v6228 = vpop.permute.xlu0 %6227
      %v6261 = vrot.slane %v5357, 2
      %v6262 = vrot.slane %v5358, 2
      %v6263 = vsel %vm1452, %v6261, %v6262
      %v6264 = vrot.slane %v5359, 2
      %v6265 = vsel %vm1452, %v6262, %v6264
      %6266 = vrot.lane.b32.xlu0 %v5596, 64
      %v6267 = vpop.permute.xlu0 %6266
      %6268 = vrot.lane.b32.xlu0 %v5598, 64
      %v6269 = vpop.permute.xlu0 %6268
      %6270 = vrot.lane.b32.xlu0 %v5601, 64
      %v6271 = vpop.permute.xlu0 %6270
      %6272 = vrot.lane.b32.xlu0 %v5603, 64
      %v6273 = vpop.permute.xlu0 %6272
      %6274 = vrot.lane.b32.xlu0 %v5606, 64
      %v6275 = vpop.permute.xlu0 %6274
      %6276 = vrot.lane.b32.xlu0 %v5608, 64
      %v6277 = vpop.permute.xlu0 %6276
      %6278 = vrot.lane.b32.xlu0 %v5611, 64
      %v6279 = vpop.permute.xlu0 %6278
      %6280 = vrot.lane.b32.xlu0 %v5613, 64
      %v6281 = vpop.permute.xlu0 %6280
      %6282 = vrot.lane.b32.xlu0 %v5616, 64
      %v6283 = vpop.permute.xlu0 %6282
      %6284 = vrot.lane.b32.xlu0 %v5618, 64
      %v6285 = vpop.permute.xlu0 %6284
      %6286 = vrot.lane.b32.xlu0 %v5621, 64
      %v6287 = vpop.permute.xlu0 %6286
      %6288 = vrot.lane.b32.xlu0 %v5623, 64
      %v6289 = vpop.permute.xlu0 %6288
      %6290 = vrot.lane.b32.xlu0 %v5626, 64
      %v6291 = vpop.permute.xlu0 %6290
      %6292 = vrot.lane.b32.xlu0 %v5628, 64
      %v6293 = vpop.permute.xlu0 %6292
      %6294 = vrot.lane.b32.xlu0 %v5631, 64
      %v6295 = vpop.permute.xlu0 %6294
      %6296 = vrot.lane.b32.xlu0 %v5633, 64
      %v6297 = vpop.permute.xlu0 %6296
      %6298 = vrot.lane.b32.xlu0 %v5636, 64
      %v6299 = vpop.permute.xlu0 %6298
      %6300 = vrot.lane.b32.xlu0 %v5638, 64
      %v6301 = vpop.permute.xlu0 %6300
      %6302 = vrot.lane.b32.xlu0 %v5641, 64
      %v6303 = vpop.permute.xlu0 %6302
      %6304 = vrot.lane.b32.xlu0 %v5643, 64
      %v6305 = vpop.permute.xlu0 %6304
      %6306 = vrot.lane.b32.xlu0 %v5646, 64
      %v6307 = vpop.permute.xlu0 %6306
      %6308 = vrot.lane.b32.xlu0 %v5648, 64
      %v6309 = vpop.permute.xlu0 %6308
      %6310 = vrot.lane.b32.xlu0 %v5651, 64
      %v6311 = vpop.permute.xlu0 %6310
      %6312 = vrot.lane.b32.xlu0 %v5653, 64
      %v6313 = vpop.permute.xlu0 %6312
      %6314 = vrot.lane.b32.xlu0 %v5656, 64
      %v6315 = vpop.permute.xlu0 %6314
      %6316 = vrot.lane.b32.xlu0 %v5658, 64
      %v6317 = vpop.permute.xlu0 %6316
      %6318 = vrot.lane.b32.xlu0 %v5661, 64
      %v6319 = vpop.permute.xlu0 %6318
      %6320 = vrot.lane.b32.xlu0 %v5663, 64
      %v6321 = vpop.permute.xlu0 %6320
      %6322 = vrot.lane.b32.xlu0 %v5962, 64
      %v6323 = vpop.permute.xlu0 %6322
      %6324 = vrot.lane.b32.xlu0 %v5964, 64
      %v6325 = vpop.permute.xlu0 %6324
      %6326 = vrot.lane.b32.xlu0 %v6263, 64
      %v6327 = vpop.permute.xlu0 %6326
      %6328 = vrot.lane.b32.xlu0 %v6265, 64
      %v6329 = vpop.permute.xlu0 %6328
      %v6362 = vsel %vm746, %v5306, %v5489
      %v6363 = vsel %vm746, %v5307, %v5491
      %v6364 = vsel %vm746, %v5309, %v5493
      %v6365 = vsel %vm746, %v5310, %v5495
      %v6366 = vsel %vm746, %v5312, %v5497
      %v6367 = vsel %vm746, %v5313, %v5499
      %v6368 = vsel %vm746, %v5315, %v5501
      %v6369 = vsel %vm746, %v5316, %v5503
      %v6370 = vsel %vm746, %v5318, %v5505
      %v6371 = vsel %vm746, %v5319, %v5507
      %v6372 = vsel %vm746, %v5321, %v5509
      %v6373 = vsel %vm746, %v5322, %v5511
      %v6374 = vsel %vm746, %v5324, %v5513
      %v6375 = vsel %vm746, %v5325, %v5515
      %v6376 = vsel %vm746, %v5327, %v5517
      %v6377 = vsel %vm746, %v5328, %v5519
      %v6378 = vsel %vm746, %v5330, %v5521
      %v6379 = vsel %vm746, %v5331, %v5523
      %v6380 = vsel %vm746, %v5333, %v5525
      %v6381 = vsel %vm746, %v5334, %v5527
      %v6382 = vsel %vm746, %v5336, %v5529
      %v6383 = vsel %vm746, %v5337, %v5531
      %v6384 = vsel %vm746, %v5339, %v5533
      %v6385 = vsel %vm746, %v5340, %v5535
      %v6386 = vsel %vm746, %v5342, %v5537
      %v6387 = vsel %vm746, %v5343, %v5539
      %v6388 = vsel %vm746, %v5345, %v5541
      %v6389 = vsel %vm746, %v5346, %v5543
      %v6390 = vsel %vm746, %v5348, %v5545
      %v6391 = vsel %vm746, %v5349, %v5547
      %v6392 = vsel %vm746, %v5351, %v5549
      %v6393 = vsel %vm746, %v5352, %v5551
      %v6394 = vsel %vm2328, %v6362, %v5665
      %v6395 = vsel %vm2328, %v6363, %v5667
      %v6396 = vsel %vm2328, %v6364, %v5669
      %v6397 = vsel %vm2328, %v6365, %v5671
      %v6398 = vsel %vm2328, %v6366, %v5673
      %v6399 = vsel %vm2328, %v6367, %v5675
      %v6400 = vsel %vm2328, %v6368, %v5677
      %v6401 = vsel %vm2328, %v6369, %v5679
      %v6402 = vsel %vm2328, %v6370, %v5681
      %v6403 = vsel %vm2328, %v6371, %v5683
      %v6404 = vsel %vm2328, %v6372, %v5685
      %v6405 = vsel %vm2328, %v6373, %v5687
      %v6406 = vsel %vm2328, %v6374, %v5689
      %v6407 = vsel %vm2328, %v6375, %v5691
      %v6408 = vsel %vm2328, %v6376, %v5693
      %v6409 = vsel %vm2328, %v6377, %v5695
      %v6410 = vsel %vm2328, %v6378, %v5697
      %v6411 = vsel %vm2328, %v6379, %v5699
      %v6412 = vsel %vm2328, %v6380, %v5701
      %v6413 = vsel %vm2328, %v6381, %v5703
      %v6414 = vsel %vm2328, %v6382, %v5705
      %v6415 = vsel %vm2328, %v6383, %v5707
      %v6416 = vsel %vm2328, %v6384, %v5709
      %v6417 = vsel %vm2328, %v6385, %v5711
      %v6418 = vsel %vm2328, %v6386, %v5713
      %v6419 = vsel %vm2328, %v6387, %v5715
      %v6420 = vsel %vm2328, %v6388, %v5717
      %v6421 = vsel %vm2328, %v6389, %v5719
      %v6422 = vsel %vm2328, %v6390, %v5721
      %v6423 = vsel %vm2328, %v6391, %v5723
      %v6424 = vsel %vm2328, %v6392, %v5725
      %v6425 = vsel %vm2328, %v6393, %v5727
      %v6426 = vsel %vm2394, %v6394, %v5763
      %v6427 = vsel %vm2394, %v6395, %v5765
      %v6428 = vsel %vm2394, %v6396, %v5767
      %v6429 = vsel %vm2394, %v6397, %v5769
      %v6430 = vsel %vm2394, %v6398, %v5771
      %v6431 = vsel %vm2394, %v6399, %v5773
      %v6432 = vsel %vm2394, %v6400, %v5775
      %v6433 = vsel %vm2394, %v6401, %v5777
      %v6434 = vsel %vm2394, %v6402, %v5779
      %v6435 = vsel %vm2394, %v6403, %v5781
      %v6436 = vsel %vm2394, %v6404, %v5783
      %v6437 = vsel %vm2394, %v6405, %v5785
      %v6438 = vsel %vm2394, %v6406, %v5787
      %v6439 = vsel %vm2394, %v6407, %v5789
      %v6440 = vsel %vm2394, %v6408, %v5791
      %v6441 = vsel %vm2394, %v6409, %v5793
      %v6442 = vsel %vm2394, %v6410, %v5795
      %v6443 = vsel %vm2394, %v6411, %v5797
      %v6444 = vsel %vm2394, %v6412, %v5799
      %v6445 = vsel %vm2394, %v6413, %v5801
      %v6446 = vsel %vm2394, %v6414, %v5803
      %v6447 = vsel %vm2394, %v6415, %v5805
      %v6448 = vsel %vm2394, %v6416, %v5807
      %v6449 = vsel %vm2394, %v6417, %v5809
      %v6450 = vsel %vm2394, %v6418, %v5811
      %v6451 = vsel %vm2394, %v6419, %v5813
      %v6452 = vsel %vm2394, %v6420, %v5815
      %v6453 = vsel %vm2394, %v6421, %v5817
      %v6454 = vsel %vm2394, %v6422, %v5819
      %v6455 = vsel %vm2394, %v6423, %v5821
      %v6456 = vsel %vm2394, %v6424, %v5823
      %v6457 = vsel %vm2394, %v6425, %v5825
      %v6458 = vsel %vm2460, %v6426, %v5865
      %v6459 = vsel %vm2460, %v6427, %v5867
      %v6460 = vsel %vm2460, %v6428, %v5869
      %v6461 = vsel %vm2460, %v6429, %v5871
      %v6462 = vsel %vm2460, %v6430, %v5873
      %v6463 = vsel %vm2460, %v6431, %v5875
      %v6464 = vsel %vm2460, %v6432, %v5877
      %v6465 = vsel %vm2460, %v6433, %v5879
      %v6466 = vsel %vm2460, %v6434, %v5881
      %v6467 = vsel %vm2460, %v6435, %v5883
      %v6468 = vsel %vm2460, %v6436, %v5885
      %v6469 = vsel %vm2460, %v6437, %v5887
      %v6470 = vsel %vm2460, %v6438, %v5889
      %v6471 = vsel %vm2460, %v6439, %v5891
      %v6472 = vsel %vm2460, %v6440, %v5893
      %v6473 = vsel %vm2460, %v6441, %v5895
      %v6474 = vsel %vm2460, %v6442, %v5897
      %v6475 = vsel %vm2460, %v6443, %v5899
      %v6476 = vsel %vm2460, %v6444, %v5901
      %v6477 = vsel %vm2460, %v6445, %v5903
      %v6478 = vsel %vm2460, %v6446, %v5905
      %v6479 = vsel %vm2460, %v6447, %v5907
      %v6480 = vsel %vm2460, %v6448, %v5909
      %v6481 = vsel %vm2460, %v6449, %v5911
      %v6482 = vsel %vm2460, %v6450, %v5913
      %v6483 = vsel %vm2460, %v6451, %v5915
      %v6484 = vsel %vm2460, %v6452, %v5917
      %v6485 = vsel %vm2460, %v6453, %v5919
      %v6486 = vsel %vm2460, %v6454, %v5921
      %v6487 = vsel %vm2460, %v6455, %v5923
      %v6488 = vsel %vm2460, %v6456, %v5925
      %v6489 = vsel %vm2460, %v6457, %v5927
      %v6490 = vsel %vm4539, %v6458, %v5966
      %v6491 = vsel %vm4539, %v6459, %v5968
      %v6492 = vsel %vm4539, %v6460, %v5970
      %v6493 = vsel %vm4539, %v6461, %v5972
      %v6494 = vsel %vm4539, %v6462, %v5974
      %v6495 = vsel %vm4539, %v6463, %v5976
      %v6496 = vsel %vm4539, %v6464, %v5978
      %v6497 = vsel %vm4539, %v6465, %v5980
      %v6498 = vsel %vm4539, %v6466, %v5982
      %v6499 = vsel %vm4539, %v6467, %v5984
      %v6500 = vsel %vm4539, %v6468, %v5986
      %v6501 = vsel %vm4539, %v6469, %v5988
      %v6502 = vsel %vm4539, %v6470, %v5990
      %v6503 = vsel %vm4539, %v6471, %v5992
      %v6504 = vsel %vm4539, %v6472, %v5994
      %v6505 = vsel %vm4539, %v6473, %v5996
      %v6506 = vsel %vm4539, %v6474, %v5998
      %v6507 = vsel %vm4539, %v6475, %v6000
      %v6508 = vsel %vm4539, %v6476, %v6002
      %v6509 = vsel %vm4539, %v6477, %v6004
      %v6510 = vsel %vm4539, %v6478, %v6006
      %v6511 = vsel %vm4539, %v6479, %v6008
      %v6512 = vsel %vm4539, %v6480, %v6010
      %v6513 = vsel %vm4539, %v6481, %v6012
      %v6514 = vsel %vm4539, %v6482, %v6014
      %v6515 = vsel %vm4539, %v6483, %v6016
      %v6516 = vsel %vm4539, %v6484, %v6018
      %v6517 = vsel %vm4539, %v6485, %v6020
      %v6518 = vsel %vm4539, %v6486, %v6022
      %v6519 = vsel %vm4539, %v6487, %v6024
      %v6520 = vsel %vm4539, %v6488, %v6026
      %v6521 = vsel %vm4539, %v6489, %v6028
      %v6522 = vsel %vm4572, %v6490, %v6064
      %v6523 = vsel %vm4572, %v6491, %v6066
      %v6524 = vsel %vm4572, %v6492, %v6068
      %v6525 = vsel %vm4572, %v6493, %v6070
      %v6526 = vsel %vm4572, %v6494, %v6072
      %v6527 = vsel %vm4572, %v6495, %v6074
      %v6528 = vsel %vm4572, %v6496, %v6076
      %v6529 = vsel %vm4572, %v6497, %v6078
      %v6530 = vsel %vm4572, %v6498, %v6080
      %v6531 = vsel %vm4572, %v6499, %v6082
      %v6532 = vsel %vm4572, %v6500, %v6084
      %v6533 = vsel %vm4572, %v6501, %v6086
      %v6534 = vsel %vm4572, %v6502, %v6088
      %v6535 = vsel %vm4572, %v6503, %v6090
      %v6536 = vsel %vm4572, %v6504, %v6092
      %v6537 = vsel %vm4572, %v6505, %v6094
      %v6538 = vsel %vm4572, %v6506, %v6096
      %v6539 = vsel %vm4572, %v6507, %v6098
      %v6540 = vsel %vm4572, %v6508, %v6100
      %v6541 = vsel %vm4572, %v6509, %v6102
      %v6542 = vsel %vm4572, %v6510, %v6104
      %v6543 = vsel %vm4572, %v6511, %v6106
      %v6544 = vsel %vm4572, %v6512, %v6108
      %v6545 = vsel %vm4572, %v6513, %v6110
      %v6546 = vsel %vm4572, %v6514, %v6112
      %v6547 = vsel %vm4572, %v6515, %v6114
      %v6548 = vsel %vm4572, %v6516, %v6116
      %v6549 = vsel %vm4572, %v6517, %v6118
      %v6550 = vsel %vm4572, %v6518, %v6120
      %v6551 = vsel %vm4572, %v6519, %v6122
      %v6552 = vsel %vm4572, %v6520, %v6124
      %v6553 = vsel %vm4572, %v6521, %v6126
      %v6554 = vsel %vm4605, %v6522, %v6166
      %v6555 = vsel %vm4605, %v6523, %v6168
      %v6556 = vsel %vm4605, %v6524, %v6170
      %v6557 = vsel %vm4605, %v6525, %v6172
      %v6558 = vsel %vm4605, %v6526, %v6174
      %v6559 = vsel %vm4605, %v6527, %v6176
      %v6560 = vsel %vm4605, %v6528, %v6178
      %v6561 = vsel %vm4605, %v6529, %v6180
      %v6562 = vsel %vm4605, %v6530, %v6182
      %v6563 = vsel %vm4605, %v6531, %v6184
      %v6564 = vsel %vm4605, %v6532, %v6186
      %v6565 = vsel %vm4605, %v6533, %v6188
      %v6566 = vsel %vm4605, %v6534, %v6190
      %v6567 = vsel %vm4605, %v6535, %v6192
      %v6568 = vsel %vm4605, %v6536, %v6194
      %v6569 = vsel %vm4605, %v6537, %v6196
      %v6570 = vsel %vm4605, %v6538, %v6198
      %v6571 = vsel %vm4605, %v6539, %v6200
      %v6572 = vsel %vm4605, %v6540, %v6202
      %v6573 = vsel %vm4605, %v6541, %v6204
      %v6574 = vsel %vm4605, %v6542, %v6206
      %v6575 = vsel %vm4605, %v6543, %v6208
      %v6576 = vsel %vm4605, %v6544, %v6210
      %v6577 = vsel %vm4605, %v6545, %v6212
      %v6578 = vsel %vm4605, %v6546, %v6214
      %v6579 = vsel %vm4605, %v6547, %v6216
      %v6580 = vsel %vm4605, %v6548, %v6218
      %v6581 = vsel %vm4605, %v6549, %v6220
      %v6582 = vsel %vm4605, %v6550, %v6222
      %v6583 = vsel %vm4605, %v6551, %v6224
      %v6584 = vsel %vm4605, %v6552, %v6226
      %v6585 = vsel %vm4605, %v6553, %v6228
      %v6586 = vsel %vm4638, %v6554, %v6267
      %v6587 = vsel %vm4638, %v6555, %v6269
      %v6588 = vsel %vm4638, %v6556, %v6271
      %v6589 = vsel %vm4638, %v6557, %v6273
      %v6590 = vsel %vm4638, %v6558, %v6275
      %v6591 = vsel %vm4638, %v6559, %v6277
      %v6592 = vsel %vm4638, %v6560, %v6279
      %v6593 = vsel %vm4638, %v6561, %v6281
      %v6594 = vsel %vm4638, %v6562, %v6283
      %v6595 = vsel %vm4638, %v6563, %v6285
      %v6596 = vsel %vm4638, %v6564, %v6287
      %v6597 = vsel %vm4638, %v6565, %v6289
      %v6598 = vsel %vm4638, %v6566, %v6291
      %v6599 = vsel %vm4638, %v6567, %v6293
      %v6600 = vsel %vm4638, %v6568, %v6295
      %v6601 = vsel %vm4638, %v6569, %v6297
      %v6602 = vsel %vm4638, %v6570, %v6299
      %v6603 = vsel %vm4638, %v6571, %v6301
      %v6604 = vsel %vm4638, %v6572, %v6303
      %v6605 = vsel %vm4638, %v6573, %v6305
      %v6606 = vsel %vm4638, %v6574, %v6307
      %v6607 = vsel %vm4638, %v6575, %v6309
      %v6608 = vsel %vm4638, %v6576, %v6311
      %v6609 = vsel %vm4638, %v6577, %v6313
      %v6610 = vsel %vm4638, %v6578, %v6315
      %v6611 = vsel %vm4638, %v6579, %v6317
      %v6612 = vsel %vm4638, %v6580, %v6319
      %v6613 = vsel %vm4638, %v6581, %v6321
      %v6614 = vsel %vm4638, %v6582, %v6323
      %v6615 = vsel %vm4638, %v6583, %v6325
      %v6616 = vsel %vm4638, %v6584, %v6327
      %v6617 = vsel %vm4638, %v6585, %v6329
      %v6618 = vld [vmem:[%s11] sm:$0xff]
      %v6619 = vld [vmem:[%s11 + $0x8] sm:$0xff]
      %v6620 = vld [vmem:[%s11 + $0x10] sm:$0xff]
      %v6621 = vld [vmem:[%s11 + $0x18] sm:$0xff]
      %v6622 = vld [vmem:[%s11 + $0x20] sm:$0xff]
      %v6623 = vld [vmem:[%s11 + $0x28] sm:$0xff]
      %v6624 = vld [vmem:[%s11 + $0x30] sm:$0xff]
      %v6625 = vld [vmem:[%s11 + $0x38] sm:$0xff]
      %v6626 = vld [vmem:[%s11 + $0x40] sm:$0xff]
      %v6627 = vld [vmem:[%s12] sm:$0x1]
      %v6629 = vperm.slane %v6627, 0
      %v6632 = vsel %vm4684, %v6586, 0
      %v6635 = vsel %vm4684, %v6587, 0
      %v6638 = vsel %vm4684, %v6588, 0
      %v6641 = vsel %vm4684, %v6589, 0
      %v6644 = vsel %vm4684, %v6590, 0
      %v6647 = vsel %vm4684, %v6591, 0
      %v6650 = vsel %vm4684, %v6592, 0
      %v6653 = vsel %vm4684, %v6593, 0
      %v6656 = vsel %vm4684, %v6594, 0
      %v6659 = vsel %vm4684, %v6595, 0
      %v6662 = vsel %vm4684, %v6596, 0
      %v6665 = vsel %vm4684, %v6597, 0
      %v6668 = vsel %vm4684, %v6598, 0
      %v6671 = vsel %vm4684, %v6599, 0
      %v6674 = vsel %vm4684, %v6600, 0
      %v6677 = vsel %vm4684, %v6601, 0
      %v6680 = vsel %vm4684, %v6602, 0
      %v6683 = vsel %vm4684, %v6603, 0
      %v6686 = vsel %vm4684, %v6604, 0
      %v6689 = vsel %vm4684, %v6605, 0
      %v6692 = vsel %vm4684, %v6606, 0
      %v6695 = vsel %vm4684, %v6607, 0
      %v6698 = vsel %vm4684, %v6608, 0
      %v6701 = vsel %vm4684, %v6609, 0
      %v6704 = vsel %vm4684, %v6610, 0
      %v6707 = vsel %vm4684, %v6611, 0
      %v6710 = vsel %vm4684, %v6612, 0
      %v6713 = vsel %vm4684, %v6613, 0
      %v6716 = vsel %vm4684, %v6614, 0
      %v6719 = vsel %vm4684, %v6615, 0
      %v6722 = vsel %vm4684, %v6616, 0
      %v6725 = vsel %vm4684, %v6617, 0
      %6727 = vmatpush.msra.mxu0 0.0
      %6728 = vmatpush.msra.mxu0 0.0
      %6729 = vmatpush.msra.mxu0 0.0
      %6730 = vmatpush.msra.mxu0 0.0
      %6731 = vmatpush.msra.mxu0 0.0
      %6732 = vmatpush.msra.mxu0 0.0
      %6733 = vmatpush.msra.mxu0 0.0
      %6734 = vmatpush.msra.mxu0 %v6626
      %6735 = vmatpush.msra.mxu0 %v6625
      %6736 = vmatpush.msra.mxu0 %v6624
      %6737 = vmatpush.msra.mxu0 %v6623
      %6738 = vmatpush.msra.mxu0 %v6622
      %6739 = vmatpush.msra.mxu0 %v6621
      %6740 = vmatpush.msra.mxu0 %v6620
      %6741 = vmatpush.msra.mxu0 %v6619
      %6742 = vmatpush.msra.mxu0 %v6618
      %6743 = vmatmul.f32.gmra.mxu0 %v6632
      %v6744 = vpop.f32.mrf.mxu0
      %v6745 = vadd.f32 %v6629, %v6744
      %6746 = vmatmul.f32.gmra.mxu0 %v6635
      %v6747 = vpop.f32.mrf.mxu0
      %v6748 = vadd.f32 %v6629, %v6747
      %6749 = vmatmul.f32.gmra.mxu0 %v6638
      %v6750 = vpop.f32.mrf.mxu0
      %v6751 = vadd.f32 %v6629, %v6750
      %6752 = vmatmul.f32.gmra.mxu0 %v6641
      %v6753 = vpop.f32.mrf.mxu0
      %v6754 = vadd.f32 %v6629, %v6753
      %6755 = vmatmul.f32.gmra.mxu0 %v6644
      %v6756 = vpop.f32.mrf.mxu0
      %v6757 = vadd.f32 %v6629, %v6756
      %6758 = vmatmul.f32.gmra.mxu0 %v6647
      %v6759 = vpop.f32.mrf.mxu0
      %v6760 = vadd.f32 %v6629, %v6759
      %6761 = vmatmul.f32.gmra.mxu0 %v6650
      %v6762 = vpop.f32.mrf.mxu0
      %v6763 = vadd.f32 %v6629, %v6762
      %6764 = vmatmul.f32.gmra.mxu0 %v6653
      %v6765 = vpop.f32.mrf.mxu0
      %v6766 = vadd.f32 %v6629, %v6765
      %6767 = vmatmul.f32.gmra.mxu0 %v6656
      %v6768 = vpop.f32.mrf.mxu0
      %v6769 = vadd.f32 %v6629, %v6768
      %6770 = vmatmul.f32.gmra.mxu0 %v6659
      %v6771 = vpop.f32.mrf.mxu0
      %v6772 = vadd.f32 %v6629, %v6771
      %6773 = vmatmul.f32.gmra.mxu0 %v6662
      %v6774 = vpop.f32.mrf.mxu0
      %v6775 = vadd.f32 %v6629, %v6774
      %6776 = vmatmul.f32.gmra.mxu0 %v6665
      %v6777 = vpop.f32.mrf.mxu0
      %v6778 = vadd.f32 %v6629, %v6777
      %6779 = vmatmul.f32.gmra.mxu0 %v6668
      %v6780 = vpop.f32.mrf.mxu0
      %v6781 = vadd.f32 %v6629, %v6780
      %6782 = vmatmul.f32.gmra.mxu0 %v6671
      %v6783 = vpop.f32.mrf.mxu0
      %v6784 = vadd.f32 %v6629, %v6783
      %6785 = vmatmul.f32.gmra.mxu0 %v6674
      %v6786 = vpop.f32.mrf.mxu0
      %v6787 = vadd.f32 %v6629, %v6786
      %6788 = vmatmul.f32.gmra.mxu0 %v6677
      %v6789 = vpop.f32.mrf.mxu0
      %v6790 = vadd.f32 %v6629, %v6789
      %6791 = vmatmul.f32.gmra.mxu0 %v6680
      %v6792 = vpop.f32.mrf.mxu0
      %v6793 = vadd.f32 %v6629, %v6792
      %6794 = vmatmul.f32.gmra.mxu0 %v6683
      %v6795 = vpop.f32.mrf.mxu0
      %v6796 = vadd.f32 %v6629, %v6795
      %6797 = vmatmul.f32.gmra.mxu0 %v6686
      %v6798 = vpop.f32.mrf.mxu0
      %v6799 = vadd.f32 %v6629, %v6798
      %6800 = vmatmul.f32.gmra.mxu0 %v6689
      %v6801 = vpop.f32.mrf.mxu0
      %v6802 = vadd.f32 %v6629, %v6801
      %6803 = vmatmul.f32.gmra.mxu0 %v6692
      %v6804 = vpop.f32.mrf.mxu0
      %v6805 = vadd.f32 %v6629, %v6804
      %6806 = vmatmul.f32.gmra.mxu0 %v6695
      %v6807 = vpop.f32.mrf.mxu0
      %v6808 = vadd.f32 %v6629, %v6807
      %6809 = vmatmul.f32.gmra.mxu0 %v6698
      %v6810 = vpop.f32.mrf.mxu0
      %v6811 = vadd.f32 %v6629, %v6810
      %6812 = vmatmul.f32.gmra.mxu0 %v6701
      %v6813 = vpop.f32.mrf.mxu0
      %v6814 = vadd.f32 %v6629, %v6813
      %6815 = vmatmul.f32.gmra.mxu0 %v6704
      %v6816 = vpop.f32.mrf.mxu0
      %v6817 = vadd.f32 %v6629, %v6816
      %6818 = vmatmul.f32.gmra.mxu0 %v6707
      %v6819 = vpop.f32.mrf.mxu0
      %v6820 = vadd.f32 %v6629, %v6819
      %6821 = vmatmul.f32.gmra.mxu0 %v6710
      %v6822 = vpop.f32.mrf.mxu0
      %v6823 = vadd.f32 %v6629, %v6822
      %6824 = vmatmul.f32.gmra.mxu0 %v6713
      %v6825 = vpop.f32.mrf.mxu0
      %v6826 = vadd.f32 %v6629, %v6825
      %6827 = vmatmul.f32.gmra.mxu0 %v6716
      %v6828 = vpop.f32.mrf.mxu0
      %v6829 = vadd.f32 %v6629, %v6828
      %6830 = vmatmul.f32.gmra.mxu0 %v6719
      %v6831 = vpop.f32.mrf.mxu0
      %v6832 = vadd.f32 %v6629, %v6831
      %6833 = vmatmul.f32.gmra.mxu0 %v6722
      %v6834 = vpop.f32.mrf.mxu0
      %v6835 = vadd.f32 %v6629, %v6834
      %6836 = vmatmul.f32.gmra.mxu0 %v6725
      %v6837 = vpop.f32.mrf.mxu0
      %v6838 = vadd.f32 %v6629, %v6837
      %6839 = vdwg.mxu0
      %v6840 = vsub.f32 0.0, %v6745
      %v6841 = vsub.f32 0.0, %v6748
      %v6842 = vsub.f32 0.0, %v6751
      %v6843 = vsub.f32 0.0, %v6754
      %v6844 = vsub.f32 0.0, %v6757
      %v6845 = vsub.f32 0.0, %v6760
      %v6846 = vsub.f32 0.0, %v6763
      %v6847 = vsub.f32 0.0, %v6766
      %v6848 = vsub.f32 0.0, %v6769
      %v6849 = vsub.f32 0.0, %v6772
      %v6850 = vsub.f32 0.0, %v6775
      %v6851 = vsub.f32 0.0, %v6778
      %v6852 = vsub.f32 0.0, %v6781
      %v6853 = vsub.f32 0.0, %v6784
      %v6854 = vsub.f32 0.0, %v6787
      %v6855 = vsub.f32 0.0, %v6790
      %v6856 = vsub.f32 0.0, %v6793
      %v6857 = vsub.f32 0.0, %v6796
      %v6858 = vsub.f32 0.0, %v6799
      %v6859 = vsub.f32 0.0, %v6802
      %v6860 = vsub.f32 0.0, %v6805
      %v6861 = vsub.f32 0.0, %v6808
      %v6862 = vsub.f32 0.0, %v6811
      %v6863 = vsub.f32 0.0, %v6814
      %v6864 = vsub.f32 0.0, %v6817
      %v6865 = vsub.f32 0.0, %v6820
      %v6866 = vsub.f32 0.0, %v6823
      %v6867 = vsub.f32 0.0, %v6826
      %v6868 = vsub.f32 0.0, %v6829
      %v6869 = vsub.f32 0.0, %v6832
      %v6870 = vsub.f32 0.0, %v6835
      %v6871 = vsub.f32 0.0, %v6838
      %v6872 = vmul.f32 %v6840, 1.442695
      %v6873 = vpow.pop %v6872
      %v6874 = vmul.f32 %v6841, 1.442695
      %v6875 = vpow.pop %v6874
      %v6876 = vmul.f32 %v6842, 1.442695
      %v6877 = vpow.pop %v6876
      %v6878 = vmul.f32 %v6843, 1.442695
      %v6879 = vpow.pop %v6878
      %v6880 = vmul.f32 %v6844, 1.442695
      %v6881 = vpow.pop %v6880
      %v6882 = vmul.f32 %v6845, 1.442695
      %v6883 = vpow.pop %v6882
      %v6884 = vmul.f32 %v6846, 1.442695
      %v6885 = vpow.pop %v6884
      %v6886 = vmul.f32 %v6847, 1.442695
      %v6887 = vpow.pop %v6886
      %v6888 = vmul.f32 %v6848, 1.442695
      %v6889 = vpow.pop %v6888
      %v6890 = vmul.f32 %v6849, 1.442695
      %v6891 = vpow.pop %v6890
      %v6892 = vmul.f32 %v6850, 1.442695
      %v6893 = vpow.pop %v6892
      %v6894 = vmul.f32 %v6851, 1.442695
      %v6895 = vpow.pop %v6894
      %v6896 = vmul.f32 %v6852, 1.442695
      %v6897 = vpow.pop %v6896
      %v6898 = vmul.f32 %v6853, 1.442695
      %v6899 = vpow.pop %v6898
      %v6900 = vmul.f32 %v6854, 1.442695
      %v6901 = vpow.pop %v6900
      %v6902 = vmul.f32 %v6855, 1.442695
      %v6903 = vpow.pop %v6902
      %v6904 = vmul.f32 %v6856, 1.442695
      %v6905 = vpow.pop %v6904
      %v6906 = vmul.f32 %v6857, 1.442695
      %v6907 = vpow.pop %v6906
      %v6908 = vmul.f32 %v6858, 1.442695
      %v6909 = vpow.pop %v6908
      %v6910 = vmul.f32 %v6859, 1.442695
      %v6911 = vpow.pop %v6910
      %v6912 = vmul.f32 %v6860, 1.442695
      %v6913 = vpow.pop %v6912
      %v6914 = vmul.f32 %v6861, 1.442695
      %v6915 = vpow.pop %v6914
      %v6916 = vmul.f32 %v6862, 1.442695
      %v6917 = vpow.pop %v6916
      %v6918 = vmul.f32 %v6863, 1.442695
      %v6919 = vpow.pop %v6918
      %v6920 = vmul.f32 %v6864, 1.442695
      %v6921 = vpow.pop %v6920
      %v6922 = vmul.f32 %v6865, 1.442695
      %v6923 = vpow.pop %v6922
      %v6924 = vmul.f32 %v6866, 1.442695
      %v6925 = vpow.pop %v6924
      %v6926 = vmul.f32 %v6867, 1.442695
      %v6927 = vpow.pop %v6926
      %v6928 = vmul.f32 %v6868, 1.442695
      %v6929 = vpow.pop %v6928
      %v6930 = vmul.f32 %v6869, 1.442695
      %v6931 = vpow.pop %v6930
      %v6932 = vmul.f32 %v6870, 1.442695
      %v6933 = vpow.pop %v6932
      %v6934 = vmul.f32 %v6871, 1.442695
      %v6935 = vpow.pop %v6934
      %v6936 = vadd.f32 %v6873, 1.0
      %v6937 = vadd.f32 %v6875, 1.0
      %v6938 = vadd.f32 %v6877, 1.0
      %v6939 = vadd.f32 %v6879, 1.0
      %v6940 = vadd.f32 %v6881, 1.0
      %v6941 = vadd.f32 %v6883, 1.0
      %v6942 = vadd.f32 %v6885, 1.0
      %v6943 = vadd.f32 %v6887, 1.0
      %v6944 = vadd.f32 %v6889, 1.0
      %v6945 = vadd.f32 %v6891, 1.0
      %v6946 = vadd.f32 %v6893, 1.0
      %v6947 = vadd.f32 %v6895, 1.0
      %v6948 = vadd.f32 %v6897, 1.0
      %v6949 = vadd.f32 %v6899, 1.0
      %v6950 = vadd.f32 %v6901, 1.0
      %v6951 = vadd.f32 %v6903, 1.0
      %v6952 = vadd.f32 %v6905, 1.0
      %v6953 = vadd.f32 %v6907, 1.0
      %v6954 = vadd.f32 %v6909, 1.0
      %v6955 = vadd.f32 %v6911, 1.0
      %v6956 = vadd.f32 %v6913, 1.0
      %v6957 = vadd.f32 %v6915, 1.0
      %v6958 = vadd.f32 %v6917, 1.0
      %v6959 = vadd.f32 %v6919, 1.0
      %v6960 = vadd.f32 %v6921, 1.0
      %v6961 = vadd.f32 %v6923, 1.0
      %v6962 = vadd.f32 %v6925, 1.0
      %v6963 = vadd.f32 %v6927, 1.0
      %v6964 = vadd.f32 %v6929, 1.0
      %v6965 = vadd.f32 %v6931, 1.0
      %v6966 = vadd.f32 %v6933, 1.0
      %v6967 = vadd.f32 %v6935, 1.0
      %v6968 = vrcp.pop %v6936
      %v6969 = vmul.f32 %v6936, %v6968
      %v6970 = vsub.f32 1.0, %v6969
      %v6971 = vmul.f32 %v6968, %v6970
      %v6972 = vadd.f32 %v6968, %v6971
      %vm6973 = vweird.f32 %v6936
      %vm6974 = vweird.f32 %v6968
      %vm6975 = vmor %vm6973, %vm6974
      %v6976 = vsel %vm6975, %v6968, %v6972
      %v6977 = vand.u32 2147483647, %v6936
      %vm6978 = vcmp.eq.f32.partialorder %v6977, 8.507059e+37
      %v6979 = vand.u32 %v6936, 2147483648
      %v6980 = vor.u32 1.1754944e-38, %v6979
      %v6981 = vsel %vm6978, %v6980, %v6976
      %v6982 = vmul.f32 %v6745, %v6981
      %v6983 = vrcp.pop %v6937
      %v6984 = vmul.f32 %v6937, %v6983
      %v6985 = vsub.f32 1.0, %v6984
      %v6986 = vmul.f32 %v6983, %v6985
      %v6987 = vadd.f32 %v6983, %v6986
      %vm6988 = vweird.f32 %v6937
      %vm6989 = vweird.f32 %v6983
      %vm6990 = vmor %vm6988, %vm6989
      %v6991 = vsel %vm6990, %v6983, %v6987
      %v6992 = vand.u32 2147483647, %v6937
      %vm6993 = vcmp.eq.f32.partialorder %v6992, 8.507059e+37
      %v6994 = vand.u32 %v6937, 2147483648
      %v6995 = vor.u32 1.1754944e-38, %v6994
      %v6996 = vsel %vm6993, %v6995, %v6991
      %v6997 = vmul.f32 %v6748, %v6996
      %v6998 = vrcp.pop %v6938
      %v6999 = vmul.f32 %v6938, %v6998
      %v7000 = vsub.f32 1.0, %v6999
      %v7001 = vmul.f32 %v6998, %v7000
      %v7002 = vadd.f32 %v6998, %v7001
      %vm7003 = vweird.f32 %v6938
      %vm7004 = vweird.f32 %v6998
      %vm7005 = vmor %vm7003, %vm7004
      %v7006 = vsel %vm7005, %v6998, %v7002
      %v7007 = vand.u32 2147483647, %v6938
      %vm7008 = vcmp.eq.f32.partialorder %v7007, 8.507059e+37
      %v7009 = vand.u32 %v6938, 2147483648
      %v7010 = vor.u32 1.1754944e-38, %v7009
      %v7011 = vsel %vm7008, %v7010, %v7006
      %v7012 = vmul.f32 %v6751, %v7011
      %v7013 = vrcp.pop %v6939
      %v7014 = vmul.f32 %v6939, %v7013
      %v7015 = vsub.f32 1.0, %v7014
      %v7016 = vmul.f32 %v7013, %v7015
      %v7017 = vadd.f32 %v7013, %v7016
      %vm7018 = vweird.f32 %v6939
      %vm7019 = vweird.f32 %v7013
      %vm7020 = vmor %vm7018, %vm7019
      %v7021 = vsel %vm7020, %v7013, %v7017
      %v7022 = vand.u32 2147483647, %v6939
      %vm7023 = vcmp.eq.f32.partialorder %v7022, 8.507059e+37
      %v7024 = vand.u32 %v6939, 2147483648
      %v7025 = vor.u32 1.1754944e-38, %v7024
      %v7026 = vsel %vm7023, %v7025, %v7021
      %v7027 = vmul.f32 %v6754, %v7026
      %v7028 = vrcp.pop %v6940
      %v7029 = vmul.f32 %v6940, %v7028
      %v7030 = vsub.f32 1.0, %v7029
      %v7031 = vmul.f32 %v7028, %v7030
      %v7032 = vadd.f32 %v7028, %v7031
      %vm7033 = vweird.f32 %v6940
      %vm7034 = vweird.f32 %v7028
      %vm7035 = vmor %vm7033, %vm7034
      %v7036 = vsel %vm7035, %v7028, %v7032
      %v7037 = vand.u32 2147483647, %v6940
      %vm7038 = vcmp.eq.f32.partialorder %v7037, 8.507059e+37
      %v7039 = vand.u32 %v6940, 2147483648
      %v7040 = vor.u32 1.1754944e-38, %v7039
      %v7041 = vsel %vm7038, %v7040, %v7036
      %v7042 = vmul.f32 %v6757, %v7041
      %v7043 = vrcp.pop %v6941
      %v7044 = vmul.f32 %v6941, %v7043
      %v7045 = vsub.f32 1.0, %v7044
      %v7046 = vmul.f32 %v7043, %v7045
      %v7047 = vadd.f32 %v7043, %v7046
      %vm7048 = vweird.f32 %v6941
      %vm7049 = vweird.f32 %v7043
      %vm7050 = vmor %vm7048, %vm7049
      %v7051 = vsel %vm7050, %v7043, %v7047
      %v7052 = vand.u32 2147483647, %v6941
      %vm7053 = vcmp.eq.f32.partialorder %v7052, 8.507059e+37
      %v7054 = vand.u32 %v6941, 2147483648
      %v7055 = vor.u32 1.1754944e-38, %v7054
      %v7056 = vsel %vm7053, %v7055, %v7051
      %v7057 = vmul.f32 %v6760, %v7056
      %v7058 = vrcp.pop %v6942
      %v7059 = vmul.f32 %v6942, %v7058
      %v7060 = vsub.f32 1.0, %v7059
      %v7061 = vmul.f32 %v7058, %v7060
      %v7062 = vadd.f32 %v7058, %v7061
      %vm7063 = vweird.f32 %v6942
      %vm7064 = vweird.f32 %v7058
      %vm7065 = vmor %vm7063, %vm7064
      %v7066 = vsel %vm7065, %v7058, %v7062
      %v7067 = vand.u32 2147483647, %v6942
      %vm7068 = vcmp.eq.f32.partialorder %v7067, 8.507059e+37
      %v7069 = vand.u32 %v6942, 2147483648
      %v7070 = vor.u32 1.1754944e-38, %v7069
      %v7071 = vsel %vm7068, %v7070, %v7066
      %v7072 = vmul.f32 %v6763, %v7071
      %v7073 = vrcp.pop %v6943
      %v7074 = vmul.f32 %v6943, %v7073
      %v7075 = vsub.f32 1.0, %v7074
      %v7076 = vmul.f32 %v7073, %v7075
      %v7077 = vadd.f32 %v7073, %v7076
      %vm7078 = vweird.f32 %v6943
      %vm7079 = vweird.f32 %v7073
      %vm7080 = vmor %vm7078, %vm7079
      %v7081 = vsel %vm7080, %v7073, %v7077
      %v7082 = vand.u32 2147483647, %v6943
      %vm7083 = vcmp.eq.f32.partialorder %v7082, 8.507059e+37
      %v7084 = vand.u32 %v6943, 2147483648
      %v7085 = vor.u32 1.1754944e-38, %v7084
      %v7086 = vsel %vm7083, %v7085, %v7081
      %v7087 = vmul.f32 %v6766, %v7086
      %v7088 = vrcp.pop %v6944
      %v7089 = vmul.f32 %v6944, %v7088
      %v7090 = vsub.f32 1.0, %v7089
      %v7091 = vmul.f32 %v7088, %v7090
      %v7092 = vadd.f32 %v7088, %v7091
      %vm7093 = vweird.f32 %v6944
      %vm7094 = vweird.f32 %v7088
      %vm7095 = vmor %vm7093, %vm7094
      %v7096 = vsel %vm7095, %v7088, %v7092
      %v7097 = vand.u32 2147483647, %v6944
      %vm7098 = vcmp.eq.f32.partialorder %v7097, 8.507059e+37
      %v7099 = vand.u32 %v6944, 2147483648
      %v7100 = vor.u32 1.1754944e-38, %v7099
      %v7101 = vsel %vm7098, %v7100, %v7096
      %v7102 = vmul.f32 %v6769, %v7101
      %v7103 = vrcp.pop %v6945
      %v7104 = vmul.f32 %v6945, %v7103
      %v7105 = vsub.f32 1.0, %v7104
      %v7106 = vmul.f32 %v7103, %v7105
      %v7107 = vadd.f32 %v7103, %v7106
      %vm7108 = vweird.f32 %v6945
      %vm7109 = vweird.f32 %v7103
      %vm7110 = vmor %vm7108, %vm7109
      %v7111 = vsel %vm7110, %v7103, %v7107
      %v7112 = vand.u32 2147483647, %v6945
      %vm7113 = vcmp.eq.f32.partialorder %v7112, 8.507059e+37
      %v7114 = vand.u32 %v6945, 2147483648
      %v7115 = vor.u32 1.1754944e-38, %v7114
      %v7116 = vsel %vm7113, %v7115, %v7111
      %v7117 = vmul.f32 %v6772, %v7116
      %v7118 = vrcp.pop %v6946
      %v7119 = vmul.f32 %v6946, %v7118
      %v7120 = vsub.f32 1.0, %v7119
      %v7121 = vmul.f32 %v7118, %v7120
      %v7122 = vadd.f32 %v7118, %v7121
      %vm7123 = vweird.f32 %v6946
      %vm7124 = vweird.f32 %v7118
      %vm7125 = vmor %vm7123, %vm7124
      %v7126 = vsel %vm7125, %v7118, %v7122
      %v7127 = vand.u32 2147483647, %v6946
      %vm7128 = vcmp.eq.f32.partialorder %v7127, 8.507059e+37
      %v7129 = vand.u32 %v6946, 2147483648
      %v7130 = vor.u32 1.1754944e-38, %v7129
      %v7131 = vsel %vm7128, %v7130, %v7126
      %v7132 = vmul.f32 %v6775, %v7131
      %v7133 = vrcp.pop %v6947
      %v7134 = vmul.f32 %v6947, %v7133
      %v7135 = vsub.f32 1.0, %v7134
      %v7136 = vmul.f32 %v7133, %v7135
      %v7137 = vadd.f32 %v7133, %v7136
      %vm7138 = vweird.f32 %v6947
      %vm7139 = vweird.f32 %v7133
      %vm7140 = vmor %vm7138, %vm7139
      %v7141 = vsel %vm7140, %v7133, %v7137
      %v7142 = vand.u32 2147483647, %v6947
      %vm7143 = vcmp.eq.f32.partialorder %v7142, 8.507059e+37
      %v7144 = vand.u32 %v6947, 2147483648
      %v7145 = vor.u32 1.1754944e-38, %v7144
      %v7146 = vsel %vm7143, %v7145, %v7141
      %v7147 = vmul.f32 %v6778, %v7146
      %v7148 = vrcp.pop %v6948
      %v7149 = vmul.f32 %v6948, %v7148
      %v7150 = vsub.f32 1.0, %v7149
      %v7151 = vmul.f32 %v7148, %v7150
      %v7152 = vadd.f32 %v7148, %v7151
      %vm7153 = vweird.f32 %v6948
      %vm7154 = vweird.f32 %v7148
      %vm7155 = vmor %vm7153, %vm7154
      %v7156 = vsel %vm7155, %v7148, %v7152
      %v7157 = vand.u32 2147483647, %v6948
      %vm7158 = vcmp.eq.f32.partialorder %v7157, 8.507059e+37
      %v7159 = vand.u32 %v6948, 2147483648
      %v7160 = vor.u32 1.1754944e-38, %v7159
      %v7161 = vsel %vm7158, %v7160, %v7156
      %v7162 = vmul.f32 %v6781, %v7161
      %v7163 = vrcp.pop %v6949
      %v7164 = vmul.f32 %v6949, %v7163
      %v7165 = vsub.f32 1.0, %v7164
      %v7166 = vmul.f32 %v7163, %v7165
      %v7167 = vadd.f32 %v7163, %v7166
      %vm7168 = vweird.f32 %v6949
      %vm7169 = vweird.f32 %v7163
      %vm7170 = vmor %vm7168, %vm7169
      %v7171 = vsel %vm7170, %v7163, %v7167
      %v7172 = vand.u32 2147483647, %v6949
      %vm7173 = vcmp.eq.f32.partialorder %v7172, 8.507059e+37
      %v7174 = vand.u32 %v6949, 2147483648
      %v7175 = vor.u32 1.1754944e-38, %v7174
      %v7176 = vsel %vm7173, %v7175, %v7171
      %v7177 = vmul.f32 %v6784, %v7176
      %v7178 = vrcp.pop %v6950
      %v7179 = vmul.f32 %v6950, %v7178
      %v7180 = vsub.f32 1.0, %v7179
      %v7181 = vmul.f32 %v7178, %v7180
      %v7182 = vadd.f32 %v7178, %v7181
      %vm7183 = vweird.f32 %v6950
      %vm7184 = vweird.f32 %v7178
      %vm7185 = vmor %vm7183, %vm7184
      %v7186 = vsel %vm7185, %v7178, %v7182
      %v7187 = vand.u32 2147483647, %v6950
      %vm7188 = vcmp.eq.f32.partialorder %v7187, 8.507059e+37
      %v7189 = vand.u32 %v6950, 2147483648
      %v7190 = vor.u32 1.1754944e-38, %v7189
      %v7191 = vsel %vm7188, %v7190, %v7186
      %v7192 = vmul.f32 %v6787, %v7191
      %v7193 = vrcp.pop %v6951
      %v7194 = vmul.f32 %v6951, %v7193
      %v7195 = vsub.f32 1.0, %v7194
      %v7196 = vmul.f32 %v7193, %v7195
      %v7197 = vadd.f32 %v7193, %v7196
      %vm7198 = vweird.f32 %v6951
      %vm7199 = vweird.f32 %v7193
      %vm7200 = vmor %vm7198, %vm7199
      %v7201 = vsel %vm7200, %v7193, %v7197
      %v7202 = vand.u32 2147483647, %v6951
      %vm7203 = vcmp.eq.f32.partialorder %v7202, 8.507059e+37
      %v7204 = vand.u32 %v6951, 2147483648
      %v7205 = vor.u32 1.1754944e-38, %v7204
      %v7206 = vsel %vm7203, %v7205, %v7201
      %v7207 = vmul.f32 %v6790, %v7206
      %v7208 = vrcp.pop %v6952
      %v7209 = vmul.f32 %v6952, %v7208
      %v7210 = vsub.f32 1.0, %v7209
      %v7211 = vmul.f32 %v7208, %v7210
      %v7212 = vadd.f32 %v7208, %v7211
      %vm7213 = vweird.f32 %v6952
      %vm7214 = vweird.f32 %v7208
      %vm7215 = vmor %vm7213, %vm7214
      %v7216 = vsel %vm7215, %v7208, %v7212
      %v7217 = vand.u32 2147483647, %v6952
      %vm7218 = vcmp.eq.f32.partialorder %v7217, 8.507059e+37
      %v7219 = vand.u32 %v6952, 2147483648
      %v7220 = vor.u32 1.1754944e-38, %v7219
      %v7221 = vsel %vm7218, %v7220, %v7216
      %v7222 = vmul.f32 %v6793, %v7221
      %v7223 = vrcp.pop %v6953
      %v7224 = vmul.f32 %v6953, %v7223
      %v7225 = vsub.f32 1.0, %v7224
      %v7226 = vmul.f32 %v7223, %v7225
      %v7227 = vadd.f32 %v7223, %v7226
      %vm7228 = vweird.f32 %v6953
      %vm7229 = vweird.f32 %v7223
      %vm7230 = vmor %vm7228, %vm7229
      %v7231 = vsel %vm7230, %v7223, %v7227
      %v7232 = vand.u32 2147483647, %v6953
      %vm7233 = vcmp.eq.f32.partialorder %v7232, 8.507059e+37
      %v7234 = vand.u32 %v6953, 2147483648
      %v7235 = vor.u32 1.1754944e-38, %v7234
      %v7236 = vsel %vm7233, %v7235, %v7231
      %v7237 = vmul.f32 %v6796, %v7236
      %v7238 = vrcp.pop %v6954
      %v7239 = vmul.f32 %v6954, %v7238
      %v7240 = vsub.f32 1.0, %v7239
      %v7241 = vmul.f32 %v7238, %v7240
      %v7242 = vadd.f32 %v7238, %v7241
      %vm7243 = vweird.f32 %v6954
      %vm7244 = vweird.f32 %v7238
      %vm7245 = vmor %vm7243, %vm7244
      %v7246 = vsel %vm7245, %v7238, %v7242
      %v7247 = vand.u32 2147483647, %v6954
      %vm7248 = vcmp.eq.f32.partialorder %v7247, 8.507059e+37
      %v7249 = vand.u32 %v6954, 2147483648
      %v7250 = vor.u32 1.1754944e-38, %v7249
      %v7251 = vsel %vm7248, %v7250, %v7246
      %v7252 = vmul.f32 %v6799, %v7251
      %v7253 = vrcp.pop %v6955
      %v7254 = vmul.f32 %v6955, %v7253
      %v7255 = vsub.f32 1.0, %v7254
      %v7256 = vmul.f32 %v7253, %v7255
      %v7257 = vadd.f32 %v7253, %v7256
      %vm7258 = vweird.f32 %v6955
      %vm7259 = vweird.f32 %v7253
      %vm7260 = vmor %vm7258, %vm7259
      %v7261 = vsel %vm7260, %v7253, %v7257
      %v7262 = vand.u32 2147483647, %v6955
      %vm7263 = vcmp.eq.f32.partialorder %v7262, 8.507059e+37
      %v7264 = vand.u32 %v6955, 2147483648
      %v7265 = vor.u32 1.1754944e-38, %v7264
      %v7266 = vsel %vm7263, %v7265, %v7261
      %v7267 = vmul.f32 %v6802, %v7266
      %v7268 = vrcp.pop %v6956
      %v7269 = vmul.f32 %v6956, %v7268
      %v7270 = vsub.f32 1.0, %v7269
      %v7271 = vmul.f32 %v7268, %v7270
      %v7272 = vadd.f32 %v7268, %v7271
      %vm7273 = vweird.f32 %v6956
      %vm7274 = vweird.f32 %v7268
      %vm7275 = vmor %vm7273, %vm7274
      %v7276 = vsel %vm7275, %v7268, %v7272
      %v7277 = vand.u32 2147483647, %v6956
      %vm7278 = vcmp.eq.f32.partialorder %v7277, 8.507059e+37
      %v7279 = vand.u32 %v6956, 2147483648
      %v7280 = vor.u32 1.1754944e-38, %v7279
      %v7281 = vsel %vm7278, %v7280, %v7276
      %v7282 = vmul.f32 %v6805, %v7281
      %v7283 = vrcp.pop %v6957
      %v7284 = vmul.f32 %v6957, %v7283
      %v7285 = vsub.f32 1.0, %v7284
      %v7286 = vmul.f32 %v7283, %v7285
      %v7287 = vadd.f32 %v7283, %v7286
      %vm7288 = vweird.f32 %v6957
      %vm7289 = vweird.f32 %v7283
      %vm7290 = vmor %vm7288, %vm7289
      %v7291 = vsel %vm7290, %v7283, %v7287
      %v7292 = vand.u32 2147483647, %v6957
      %vm7293 = vcmp.eq.f32.partialorder %v7292, 8.507059e+37
      %v7294 = vand.u32 %v6957, 2147483648
      %v7295 = vor.u32 1.1754944e-38, %v7294
      %v7296 = vsel %vm7293, %v7295, %v7291
      %v7297 = vmul.f32 %v6808, %v7296
      %v7298 = vrcp.pop %v6958
      %v7299 = vmul.f32 %v6958, %v7298
      %v7300 = vsub.f32 1.0, %v7299
      %v7301 = vmul.f32 %v7298, %v7300
      %v7302 = vadd.f32 %v7298, %v7301
      %vm7303 = vweird.f32 %v6958
      %vm7304 = vweird.f32 %v7298
      %vm7305 = vmor %vm7303, %vm7304
      %v7306 = vsel %vm7305, %v7298, %v7302
      %v7307 = vand.u32 2147483647, %v6958
      %vm7308 = vcmp.eq.f32.partialorder %v7307, 8.507059e+37
      %v7309 = vand.u32 %v6958, 2147483648
      %v7310 = vor.u32 1.1754944e-38, %v7309
      %v7311 = vsel %vm7308, %v7310, %v7306
      %v7312 = vmul.f32 %v6811, %v7311
      %v7313 = vrcp.pop %v6959
      %v7314 = vmul.f32 %v6959, %v7313
      %v7315 = vsub.f32 1.0, %v7314
      %v7316 = vmul.f32 %v7313, %v7315
      %v7317 = vadd.f32 %v7313, %v7316
      %vm7318 = vweird.f32 %v6959
      %vm7319 = vweird.f32 %v7313
      %vm7320 = vmor %vm7318, %vm7319
      %v7321 = vsel %vm7320, %v7313, %v7317
      %v7322 = vand.u32 2147483647, %v6959
      %vm7323 = vcmp.eq.f32.partialorder %v7322, 8.507059e+37
      %v7324 = vand.u32 %v6959, 2147483648
      %v7325 = vor.u32 1.1754944e-38, %v7324
      %v7326 = vsel %vm7323, %v7325, %v7321
      %v7327 = vmul.f32 %v6814, %v7326
      %v7328 = vrcp.pop %v6960
      %v7329 = vmul.f32 %v6960, %v7328
      %v7330 = vsub.f32 1.0, %v7329
      %v7331 = vmul.f32 %v7328, %v7330
      %v7332 = vadd.f32 %v7328, %v7331
      %vm7333 = vweird.f32 %v6960
      %vm7334 = vweird.f32 %v7328
      %vm7335 = vmor %vm7333, %vm7334
      %v7336 = vsel %vm7335, %v7328, %v7332
      %v7337 = vand.u32 2147483647, %v6960
      %vm7338 = vcmp.eq.f32.partialorder %v7337, 8.507059e+37
      %v7339 = vand.u32 %v6960, 2147483648
      %v7340 = vor.u32 1.1754944e-38, %v7339
      %v7341 = vsel %vm7338, %v7340, %v7336
      %v7342 = vmul.f32 %v6817, %v7341
      %v7343 = vrcp.pop %v6961
      %v7344 = vmul.f32 %v6961, %v7343
      %v7345 = vsub.f32 1.0, %v7344
      %v7346 = vmul.f32 %v7343, %v7345
      %v7347 = vadd.f32 %v7343, %v7346
      %vm7348 = vweird.f32 %v6961
      %vm7349 = vweird.f32 %v7343
      %vm7350 = vmor %vm7348, %vm7349
      %v7351 = vsel %vm7350, %v7343, %v7347
      %v7352 = vand.u32 2147483647, %v6961
      %vm7353 = vcmp.eq.f32.partialorder %v7352, 8.507059e+37
      %v7354 = vand.u32 %v6961, 2147483648
      %v7355 = vor.u32 1.1754944e-38, %v7354
      %v7356 = vsel %vm7353, %v7355, %v7351
      %v7357 = vmul.f32 %v6820, %v7356
      %v7358 = vrcp.pop %v6962
      %v7359 = vmul.f32 %v6962, %v7358
      %v7360 = vsub.f32 1.0, %v7359
      %v7361 = vmul.f32 %v7358, %v7360
      %v7362 = vadd.f32 %v7358, %v7361
      %vm7363 = vweird.f32 %v6962
      %vm7364 = vweird.f32 %v7358
      %vm7365 = vmor %vm7363, %vm7364
      %v7366 = vsel %vm7365, %v7358, %v7362
      %v7367 = vand.u32 2147483647, %v6962
      %vm7368 = vcmp.eq.f32.partialorder %v7367, 8.507059e+37
      %v7369 = vand.u32 %v6962, 2147483648
      %v7370 = vor.u32 1.1754944e-38, %v7369
      %v7371 = vsel %vm7368, %v7370, %v7366
      %v7372 = vmul.f32 %v6823, %v7371
      %v7373 = vrcp.pop %v6963
      %v7374 = vmul.f32 %v6963, %v7373
      %v7375 = vsub.f32 1.0, %v7374
      %v7376 = vmul.f32 %v7373, %v7375
      %v7377 = vadd.f32 %v7373, %v7376
      %vm7378 = vweird.f32 %v6963
      %vm7379 = vweird.f32 %v7373
      %vm7380 = vmor %vm7378, %vm7379
      %v7381 = vsel %vm7380, %v7373, %v7377
      %v7382 = vand.u32 2147483647, %v6963
      %vm7383 = vcmp.eq.f32.partialorder %v7382, 8.507059e+37
      %v7384 = vand.u32 %v6963, 2147483648
      %v7385 = vor.u32 1.1754944e-38, %v7384
      %v7386 = vsel %vm7383, %v7385, %v7381
      %v7387 = vmul.f32 %v6826, %v7386
      %v7388 = vrcp.pop %v6964
      %v7389 = vmul.f32 %v6964, %v7388
      %v7390 = vsub.f32 1.0, %v7389
      %v7391 = vmul.f32 %v7388, %v7390
      %v7392 = vadd.f32 %v7388, %v7391
      %vm7393 = vweird.f32 %v6964
      %vm7394 = vweird.f32 %v7388
      %vm7395 = vmor %vm7393, %vm7394
      %v7396 = vsel %vm7395, %v7388, %v7392
      %v7397 = vand.u32 2147483647, %v6964
      %vm7398 = vcmp.eq.f32.partialorder %v7397, 8.507059e+37
      %v7399 = vand.u32 %v6964, 2147483648
      %v7400 = vor.u32 1.1754944e-38, %v7399
      %v7401 = vsel %vm7398, %v7400, %v7396
      %v7402 = vmul.f32 %v6829, %v7401
      %v7403 = vrcp.pop %v6965
      %v7404 = vmul.f32 %v6965, %v7403
      %v7405 = vsub.f32 1.0, %v7404
      %v7406 = vmul.f32 %v7403, %v7405
      %v7407 = vadd.f32 %v7403, %v7406
      %vm7408 = vweird.f32 %v6965
      %vm7409 = vweird.f32 %v7403
      %vm7410 = vmor %vm7408, %vm7409
      %v7411 = vsel %vm7410, %v7403, %v7407
      %v7412 = vand.u32 2147483647, %v6965
      %vm7413 = vcmp.eq.f32.partialorder %v7412, 8.507059e+37
      %v7414 = vand.u32 %v6965, 2147483648
      %v7415 = vor.u32 1.1754944e-38, %v7414
      %v7416 = vsel %vm7413, %v7415, %v7411
      %v7417 = vmul.f32 %v6832, %v7416
      %v7418 = vrcp.pop %v6966
      %v7419 = vmul.f32 %v6966, %v7418
      %v7420 = vsub.f32 1.0, %v7419
      %v7421 = vmul.f32 %v7418, %v7420
      %v7422 = vadd.f32 %v7418, %v7421
      %vm7423 = vweird.f32 %v6966
      %vm7424 = vweird.f32 %v7418
      %vm7425 = vmor %vm7423, %vm7424
      %v7426 = vsel %vm7425, %v7418, %v7422
      %v7427 = vand.u32 2147483647, %v6966
      %vm7428 = vcmp.eq.f32.partialorder %v7427, 8.507059e+37
      %v7429 = vand.u32 %v6966, 2147483648
      %v7430 = vor.u32 1.1754944e-38, %v7429
      %v7431 = vsel %vm7428, %v7430, %v7426
      %v7432 = vmul.f32 %v6835, %v7431
      %v7433 = vrcp.pop %v6967
      %v7434 = vmul.f32 %v6967, %v7433
      %v7435 = vsub.f32 1.0, %v7434
      %v7436 = vmul.f32 %v7433, %v7435
      %v7437 = vadd.f32 %v7433, %v7436
      %vm7438 = vweird.f32 %v6967
      %vm7439 = vweird.f32 %v7433
      %vm7440 = vmor %vm7438, %vm7439
      %v7441 = vsel %vm7440, %v7433, %v7437
      %v7442 = vand.u32 2147483647, %v6967
      %vm7443 = vcmp.eq.f32.partialorder %v7442, 8.507059e+37
      %v7444 = vand.u32 %v6967, 2147483648
      %v7445 = vor.u32 1.1754944e-38, %v7444
      %v7446 = vsel %vm7443, %v7445, %v7441
      %v7447 = vmul.f32 %v6838, %v7446
      %7448 = vst.msk [vmem:[%s1140 + $0x1] sm:$0xff] %vm746, %v6982
      %7449 = vst.msk [vmem:[%s1140 + $0x9] sm:$0xff] %vm746, %v6997
      %7450 = vst.msk [vmem:[%s1140 + $0x19] sm:$0xff] %vm746, %v7012
      %7451 = vst.msk [vmem:[%s1140 + $0x21] sm:$0xff] %vm746, %v7027
      %7452 = vst.msk [vmem:[%s1140 + $0x31] sm:$0xff] %vm746, %v7042
      %7453 = vst.msk [vmem:[%s1140 + $0x39] sm:$0xff] %vm746, %v7057
      %7454 = vst.msk [vmem:[%s1140 + $0x49] sm:$0xff] %vm746, %v7072
      %7455 = vst.msk [vmem:[%s1140 + $0x51] sm:$0xff] %vm746, %v7087
      %7456 = vst.msk [vmem:[%s1140 + $0x61] sm:$0xff] %vm746, %v7102
      %7457 = vst.msk [vmem:[%s1140 + $0x69] sm:$0xff] %vm746, %v7117
      %7458 = vst.msk [vmem:[%s1140 + $0x79] sm:$0xff] %vm746, %v7132
      %7459 = vst.msk [vmem:[%s1140 + $0x81] sm:$0xff] %vm746, %v7147
      %7460 = vst.msk [vmem:[%s1140 + $0x91] sm:$0xff] %vm746, %v7162
      %7461 = vst.msk [vmem:[%s1140 + $0x99] sm:$0xff] %vm746, %v7177
      %7462 = vst.msk [vmem:[%s1140 + $0xa9] sm:$0xff] %vm746, %v7192
      %7463 = vst.msk [vmem:[%s1140 + $0xb1] sm:$0xff] %vm746, %v7207
      %7464 = vst.msk [vmem:[%s1140 + $0xc1] sm:$0xff] %vm746, %v7222
      %7465 = vst.msk [vmem:[%s1140 + $0xc9] sm:$0xff] %vm746, %v7237
      %7466 = vst.msk [vmem:[%s1140 + $0xd9] sm:$0xff] %vm746, %v7252
      %7467 = vst.msk [vmem:[%s1140 + $0xe1] sm:$0xff] %vm746, %v7267
      %7468 = vst.msk [vmem:[%s1140 + $0xf1] sm:$0xff] %vm746, %v7282
      %7469 = vst.msk [vmem:[%s1140 + $0xf9] sm:$0xff] %vm746, %v7297
      %7470 = vst.msk [vmem:[%s1140 + $0x109] sm:$0xff] %vm746, %v7312
      %7471 = vst.msk [vmem:[%s1140 + $0x111] sm:$0xff] %vm746, %v7327
      %7472 = vst.msk [vmem:[%s1140 + $0x121] sm:$0xff] %vm746, %v7342
      %7473 = vst.msk [vmem:[%s1140 + $0x129] sm:$0xff] %vm746, %v7357
      %7474 = vst.msk [vmem:[%s1140 + $0x139] sm:$0xff] %vm746, %v7372
      %7475 = vst.msk [vmem:[%s1140 + $0x141] sm:$0xff] %vm746, %v7387
      %7476 = vst.msk [vmem:[%s1140 + $0x151] sm:$0xff] %vm746, %v7402
      %7477 = vst.msk [vmem:[%s1140 + $0x159] sm:$0xff] %vm746, %v7417
      %7478 = vst.msk [vmem:[%s1140 + $0x169] sm:$0xff] %vm746, %v7432
      %7479 = vst.msk [vmem:[%s1140 + $0x171] sm:$0xff] %vm746, %v7447
      %v7480 = vld [vmem:[#allocation2] sm:$0xff]
      %v7481 = vld [vmem:[#allocation2 + $0x8] sm:$0xff]
      %v7482 = vld [vmem:[#allocation2 + $0x10] sm:$0x3]
      %v7483 = vld [vmem:[#allocation2 + $0x18] sm:$0xff]
      %v7484 = vld [vmem:[#allocation2 + $0x20] sm:$0xff]
      %v7485 = vld [vmem:[#allocation2 + $0x28] sm:$0x3]
      %v7486 = vld [vmem:[#allocation2 + $0x30] sm:$0xff]
      %v7487 = vld [vmem:[#allocation2 + $0x38] sm:$0xff]
      %v7488 = vld [vmem:[#allocation2 + $0x40] sm:$0x3]
      %v7489 = vld [vmem:[#allocation2 + $0x48] sm:$0xff]
      %v7490 = vld [vmem:[#allocation2 + $0x50] sm:$0xff]
      %v7491 = vld [vmem:[#allocation2 + $0x58] sm:$0x3]
      %v7492 = vld [vmem:[#allocation2 + $0x60] sm:$0xff]
      %v7493 = vld [vmem:[#allocation2 + $0x68] sm:$0xff]
      %v7494 = vld [vmem:[#allocation2 + $0x70] sm:$0x3]
      %v7495 = vld [vmem:[#allocation2 + $0x78] sm:$0xff]
      %v7496 = vld [vmem:[#allocation2 + $0x80] sm:$0xff]
      %v7497 = vld [vmem:[#allocation2 + $0x88] sm:$0x3]
      %v7498 = vld [vmem:[#allocation2 + $0x90] sm:$0xff]
      %v7499 = vld [vmem:[#allocation2 + $0x98] sm:$0xff]
      %v7500 = vld [vmem:[#allocation2 + $0xa0] sm:$0x3]
      %v7501 = vld [vmem:[#allocation2 + $0xa8] sm:$0xff]
      %v7502 = vld [vmem:[#allocation2 + $0xb0] sm:$0xff]
      %v7503 = vld [vmem:[#allocation2 + $0xb8] sm:$0x3]
      %v7504 = vld [vmem:[#allocation2 + $0xc0] sm:$0xff]
      %v7505 = vld [vmem:[#allocation2 + $0xc8] sm:$0xff]
      %v7506 = vld [vmem:[#allocation2 + $0xd0] sm:$0x3]
      %v7507 = vld [vmem:[#allocation2 + $0xd8] sm:$0xff]
      %v7508 = vld [vmem:[#allocation2 + $0xe0] sm:$0xff]
      %v7509 = vld [vmem:[#allocation2 + $0xe8] sm:$0x3]
      %v7510 = vld [vmem:[#allocation2 + $0xf0] sm:$0xff]
      %v7511 = vld [vmem:[#allocation2 + $0xf8] sm:$0xff]
      %v7512 = vld [vmem:[#allocation2 + $0x100] sm:$0x3]
      %v7513 = vld [vmem:[#allocation2 + $0x108] sm:$0xff]
      %v7514 = vld [vmem:[#allocation2 + $0x110] sm:$0xff]
      %v7515 = vld [vmem:[#allocation2 + $0x118] sm:$0x3]
      %v7516 = vld [vmem:[#allocation2 + $0x120] sm:$0xff]
      %v7517 = vld [vmem:[#allocation2 + $0x128] sm:$0xff]
      %v7518 = vld [vmem:[#allocation2 + $0x130] sm:$0x3]
      %v7519 = vld [vmem:[#allocation2 + $0x138] sm:$0xff]
      %v7520 = vld [vmem:[#allocation2 + $0x140] sm:$0xff]
      %v7521 = vld [vmem:[#allocation2 + $0x148] sm:$0x3]
      %v7522 = vld [vmem:[#allocation2 + $0x150] sm:$0xff]
      %v7523 = vld [vmem:[#allocation2 + $0x158] sm:$0xff]
      %v7524 = vld [vmem:[#allocation2 + $0x160] sm:$0x3]
      %v7525 = vld [vmem:[#allocation2 + $0x168] sm:$0xff]
      %v7526 = vld [vmem:[#allocation2 + $0x170] sm:$0xff]
      %v7527 = vld [vmem:[#allocation2 + $0x178] sm:$0x3]
      %v7528 = vld [vmem:[#allocation2 + $0x180] sm:$0xff]
      %v7529 = vld [vmem:[#allocation2 + $0x188] sm:$0xff]
      %v7530 = vld [vmem:[#allocation2 + $0x190] sm:$0x3]
      %v7531 = vld [vmem:[#allocation2 + $0x198] sm:$0xff]
      %v7532 = vld [vmem:[#allocation2 + $0x1a0] sm:$0xff]
      %v7533 = vld [vmem:[#allocation2 + $0x1a8] sm:$0x3]
      %v7582 = vrot.slane %v7480, 1
      %v7583 = vrot.slane %v7481, 1
      %v7584 = vsel %vm1275, %v7582, %v7583
      %v7585 = vrot.slane %v7482, 1
      %v7586 = vsel %vm1275, %v7583, %v7585
      %v7587 = vrot.slane %v7483, 1
      %v7588 = vrot.slane %v7484, 1
      %v7589 = vsel %vm1275, %v7587, %v7588
      %v7590 = vrot.slane %v7485, 1
      %v7591 = vsel %vm1275, %v7588, %v7590
      %v7592 = vrot.slane %v7486, 1
      %v7593 = vrot.slane %v7487, 1
      %v7594 = vsel %vm1275, %v7592, %v7593
      %v7595 = vrot.slane %v7488, 1
      %v7596 = vsel %vm1275, %v7593, %v7595
      %v7597 = vrot.slane %v7489, 1
      %v7598 = vrot.slane %v7490, 1
      %v7599 = vsel %vm1275, %v7597, %v7598
      %v7600 = vrot.slane %v7491, 1
      %v7601 = vsel %vm1275, %v7598, %v7600
      %v7602 = vrot.slane %v7492, 1
      %v7603 = vrot.slane %v7493, 1
      %v7604 = vsel %vm1275, %v7602, %v7603
      %v7605 = vrot.slane %v7494, 1
      %v7606 = vsel %vm1275, %v7603, %v7605
      %v7607 = vrot.slane %v7495, 1
      %v7608 = vrot.slane %v7496, 1
      %v7609 = vsel %vm1275, %v7607, %v7608
      %v7610 = vrot.slane %v7497, 1
      %v7611 = vsel %vm1275, %v7608, %v7610
      %v7612 = vrot.slane %v7498, 1
      %v7613 = vrot.slane %v7499, 1
      %v7614 = vsel %vm1275, %v7612, %v7613
      %v7615 = vrot.slane %v7500, 1
      %v7616 = vsel %vm1275, %v7613, %v7615
      %v7617 = vrot.slane %v7501, 1
      %v7618 = vrot.slane %v7502, 1
      %v7619 = vsel %vm1275, %v7617, %v7618
      %v7620 = vrot.slane %v7503, 1
      %v7621 = vsel %vm1275, %v7618, %v7620
      %v7622 = vrot.slane %v7504, 1
      %v7623 = vrot.slane %v7505, 1
      %v7624 = vsel %vm1275, %v7622, %v7623
      %v7625 = vrot.slane %v7506, 1
      %v7626 = vsel %vm1275, %v7623, %v7625
      %v7627 = vrot.slane %v7507, 1
      %v7628 = vrot.slane %v7508, 1
      %v7629 = vsel %vm1275, %v7627, %v7628
      %v7630 = vrot.slane %v7509, 1
      %v7631 = vsel %vm1275, %v7628, %v7630
      %v7632 = vrot.slane %v7510, 1
      %v7633 = vrot.slane %v7511, 1
      %v7634 = vsel %vm1275, %v7632, %v7633
      %v7635 = vrot.slane %v7512, 1
      %v7636 = vsel %vm1275, %v7633, %v7635
      %v7637 = vrot.slane %v7513, 1
      %v7638 = vrot.slane %v7514, 1
      %v7639 = vsel %vm1275, %v7637, %v7638
      %v7640 = vrot.slane %v7515, 1
      %v7641 = vsel %vm1275, %v7638, %v7640
      %v7642 = vrot.slane %v7516, 1
      %v7643 = vrot.slane %v7517, 1
      %v7644 = vsel %vm1275, %v7642, %v7643
      %v7645 = vrot.slane %v7518, 1
      %v7646 = vsel %vm1275, %v7643, %v7645
      %v7647 = vrot.slane %v7519, 1
      %v7648 = vrot.slane %v7520, 1
      %v7649 = vsel %vm1275, %v7647, %v7648
      %v7650 = vrot.slane %v7521, 1
      %v7651 = vsel %vm1275, %v7648, %v7650
      %v7652 = vrot.slane %v7522, 1
      %v7653 = vrot.slane %v7523, 1
      %v7654 = vsel %vm1275, %v7652, %v7653
      %v7655 = vrot.slane %v7524, 1
      %v7656 = vsel %vm1275, %v7653, %v7655
      %v7657 = vrot.slane %v7525, 1
      %v7658 = vrot.slane %v7526, 1
      %v7659 = vsel %vm1275, %v7657, %v7658
      %v7660 = vrot.slane %v7527, 1
      %v7661 = vsel %vm1275, %v7658, %v7660
      %7662 = vrot.lane.b32.xlu0 %v7584, 8
      %v7663 = vpop.permute.xlu0 %7662
      %7664 = vrot.lane.b32.xlu0 %v7586, 8
      %v7665 = vpop.permute.xlu0 %7664
      %7666 = vrot.lane.b32.xlu0 %v7589, 8
      %v7667 = vpop.permute.xlu0 %7666
      %7668 = vrot.lane.b32.xlu0 %v7591, 8
      %v7669 = vpop.permute.xlu0 %7668
      %7670 = vrot.lane.b32.xlu0 %v7594, 8
      %v7671 = vpop.permute.xlu0 %7670
      %7672 = vrot.lane.b32.xlu0 %v7596, 8
      %v7673 = vpop.permute.xlu0 %7672
      %7674 = vrot.lane.b32.xlu0 %v7599, 8
      %v7675 = vpop.permute.xlu0 %7674
      %7676 = vrot.lane.b32.xlu0 %v7601, 8
      %v7677 = vpop.permute.xlu0 %7676
      %7678 = vrot.lane.b32.xlu0 %v7604, 8
      %v7679 = vpop.permute.xlu0 %7678
      %7680 = vrot.lane.b32.xlu0 %v7606, 8
      %v7681 = vpop.permute.xlu0 %7680
      %7682 = vrot.lane.b32.xlu0 %v7609, 8
      %v7683 = vpop.permute.xlu0 %7682
      %7684 = vrot.lane.b32.xlu0 %v7611, 8
      %v7685 = vpop.permute.xlu0 %7684
      %7686 = vrot.lane.b32.xlu0 %v7614, 8
      %v7687 = vpop.permute.xlu0 %7686
      %7688 = vrot.lane.b32.xlu0 %v7616, 8
      %v7689 = vpop.permute.xlu0 %7688
      %7690 = vrot.lane.b32.xlu0 %v7619, 8
      %v7691 = vpop.permute.xlu0 %7690
      %7692 = vrot.lane.b32.xlu0 %v7621, 8
      %v7693 = vpop.permute.xlu0 %7692
      %7694 = vrot.lane.b32.xlu0 %v7624, 8
      %v7695 = vpop.permute.xlu0 %7694
      %7696 = vrot.lane.b32.xlu0 %v7626, 8
      %v7697 = vpop.permute.xlu0 %7696
      %7698 = vrot.lane.b32.xlu0 %v7629, 8
      %v7699 = vpop.permute.xlu0 %7698
      %7700 = vrot.lane.b32.xlu0 %v7631, 8
      %v7701 = vpop.permute.xlu0 %7700
      %7702 = vrot.lane.b32.xlu0 %v7634, 8
      %v7703 = vpop.permute.xlu0 %7702
      %7704 = vrot.lane.b32.xlu0 %v7636, 8
      %v7705 = vpop.permute.xlu0 %7704
      %7706 = vrot.lane.b32.xlu0 %v7639, 8
      %v7707 = vpop.permute.xlu0 %7706
      %7708 = vrot.lane.b32.xlu0 %v7641, 8
      %v7709 = vpop.permute.xlu0 %7708
      %7710 = vrot.lane.b32.xlu0 %v7644, 8
      %v7711 = vpop.permute.xlu0 %7710
      %7712 = vrot.lane.b32.xlu0 %v7646, 8
      %v7713 = vpop.permute.xlu0 %7712
      %7714 = vrot.lane.b32.xlu0 %v7649, 8
      %v7715 = vpop.permute.xlu0 %7714
      %7716 = vrot.lane.b32.xlu0 %v7651, 8
      %v7717 = vpop.permute.xlu0 %7716
      %7718 = vrot.lane.b32.xlu0 %v7654, 8
      %v7719 = vpop.permute.xlu0 %7718
      %7720 = vrot.lane.b32.xlu0 %v7656, 8
      %v7721 = vpop.permute.xlu0 %7720
      %7722 = vrot.lane.b32.xlu0 %v7659, 8
      %v7723 = vpop.permute.xlu0 %7722
      %7724 = vrot.lane.b32.xlu0 %v7661, 8
      %v7725 = vpop.permute.xlu0 %7724
      %v7758 = vrot.slane %v7480, 2
      %v7759 = vrot.slane %v7481, 2
      %v7760 = vsel %vm1452, %v7758, %v7759
      %v7761 = vrot.slane %v7482, 2
      %v7762 = vsel %vm1452, %v7759, %v7761
      %v7763 = vrot.slane %v7483, 2
      %v7764 = vrot.slane %v7484, 2
      %v7765 = vsel %vm1452, %v7763, %v7764
      %v7766 = vrot.slane %v7485, 2
      %v7767 = vsel %vm1452, %v7764, %v7766
      %v7768 = vrot.slane %v7486, 2
      %v7769 = vrot.slane %v7487, 2
      %v7770 = vsel %vm1452, %v7768, %v7769
      %v7771 = vrot.slane %v7488, 2
      %v7772 = vsel %vm1452, %v7769, %v7771
      %v7773 = vrot.slane %v7489, 2
      %v7774 = vrot.slane %v7490, 2
      %v7775 = vsel %vm1452, %v7773, %v7774
      %v7776 = vrot.slane %v7491, 2
      %v7777 = vsel %vm1452, %v7774, %v7776
      %v7778 = vrot.slane %v7492, 2
      %v7779 = vrot.slane %v7493, 2
      %v7780 = vsel %vm1452, %v7778, %v7779
      %v7781 = vrot.slane %v7494, 2
      %v7782 = vsel %vm1452, %v7779, %v7781
      %v7783 = vrot.slane %v7495, 2
      %v7784 = vrot.slane %v7496, 2
      %v7785 = vsel %vm1452, %v7783, %v7784
      %v7786 = vrot.slane %v7497, 2
      %v7787 = vsel %vm1452, %v7784, %v7786
      %v7788 = vrot.slane %v7498, 2
      %v7789 = vrot.slane %v7499, 2
      %v7790 = vsel %vm1452, %v7788, %v7789
      %v7791 = vrot.slane %v7500, 2
      %v7792 = vsel %vm1452, %v7789, %v7791
      %v7793 = vrot.slane %v7501, 2
      %v7794 = vrot.slane %v7502, 2
      %v7795 = vsel %vm1452, %v7793, %v7794
      %v7796 = vrot.slane %v7503, 2
      %v7797 = vsel %vm1452, %v7794, %v7796
      %v7798 = vrot.slane %v7504, 2
      %v7799 = vrot.slane %v7505, 2
      %v7800 = vsel %vm1452, %v7798, %v7799
      %v7801 = vrot.slane %v7506, 2
      %v7802 = vsel %vm1452, %v7799, %v7801
      %v7803 = vrot.slane %v7507, 2
      %v7804 = vrot.slane %v7508, 2
      %v7805 = vsel %vm1452, %v7803, %v7804
      %v7806 = vrot.slane %v7509, 2
      %v7807 = vsel %vm1452, %v7804, %v7806
      %v7808 = vrot.slane %v7510, 2
      %v7809 = vrot.slane %v7511, 2
      %v7810 = vsel %vm1452, %v7808, %v7809
      %v7811 = vrot.slane %v7512, 2
      %v7812 = vsel %vm1452, %v7809, %v7811
      %v7813 = vrot.slane %v7513, 2
      %v7814 = vrot.slane %v7514, 2
      %v7815 = vsel %vm1452, %v7813, %v7814
      %v7816 = vrot.slane %v7515, 2
      %v7817 = vsel %vm1452, %v7814, %v7816
      %v7818 = vrot.slane %v7516, 2
      %v7819 = vrot.slane %v7517, 2
      %v7820 = vsel %vm1452, %v7818, %v7819
      %v7821 = vrot.slane %v7518, 2
      %v7822 = vsel %vm1452, %v7819, %v7821
      %v7823 = vrot.slane %v7519, 2
      %v7824 = vrot.slane %v7520, 2
      %v7825 = vsel %vm1452, %v7823, %v7824
      %v7826 = vrot.slane %v7521, 2
      %v7827 = vsel %vm1452, %v7824, %v7826
      %v7828 = vrot.slane %v7522, 2
      %v7829 = vrot.slane %v7523, 2
      %v7830 = vsel %vm1452, %v7828, %v7829
      %v7831 = vrot.slane %v7524, 2
      %v7832 = vsel %vm1452, %v7829, %v7831
      %v7833 = vrot.slane %v7525, 2
      %v7834 = vrot.slane %v7526, 2
      %v7835 = vsel %vm1452, %v7833, %v7834
      %v7836 = vrot.slane %v7527, 2
      %v7837 = vsel %vm1452, %v7834, %v7836
      %7838 = vrot.lane.b32.xlu0 %v7760, 16
      %v7839 = vpop.permute.xlu0 %7838
      %7840 = vrot.lane.b32.xlu0 %v7762, 16
      %v7841 = vpop.permute.xlu0 %7840
      %7842 = vrot.lane.b32.xlu0 %v7765, 16
      %v7843 = vpop.permute.xlu0 %7842
      %7844 = vrot.lane.b32.xlu0 %v7767, 16
      %v7845 = vpop.permute.xlu0 %7844
      %7846 = vrot.lane.b32.xlu0 %v7770, 16
      %v7847 = vpop.permute.xlu0 %7846
      %7848 = vrot.lane.b32.xlu0 %v7772, 16
      %v7849 = vpop.permute.xlu0 %7848
      %7850 = vrot.lane.b32.xlu0 %v7775, 16
      %v7851 = vpop.permute.xlu0 %7850
      %7852 = vrot.lane.b32.xlu0 %v7777, 16
      %v7853 = vpop.permute.xlu0 %7852
      %7854 = vrot.lane.b32.xlu0 %v7780, 16
      %v7855 = vpop.permute.xlu0 %7854
      %7856 = vrot.lane.b32.xlu0 %v7782, 16
      %v7857 = vpop.permute.xlu0 %7856
      %7858 = vrot.lane.b32.xlu0 %v7785, 16
      %v7859 = vpop.permute.xlu0 %7858
      %7860 = vrot.lane.b32.xlu0 %v7787, 16
      %v7861 = vpop.permute.xlu0 %7860
      %7862 = vrot.lane.b32.xlu0 %v7790, 16
      %v7863 = vpop.permute.xlu0 %7862
      %7864 = vrot.lane.b32.xlu0 %v7792, 16
      %v7865 = vpop.permute.xlu0 %7864
      %7866 = vrot.lane.b32.xlu0 %v7795, 16
      %v7867 = vpop.permute.xlu0 %7866
      %7868 = vrot.lane.b32.xlu0 %v7797, 16
      %v7869 = vpop.permute.xlu0 %7868
      %7870 = vrot.lane.b32.xlu0 %v7800, 16
      %v7871 = vpop.permute.xlu0 %7870
      %7872 = vrot.lane.b32.xlu0 %v7802, 16
      %v7873 = vpop.permute.xlu0 %7872
      %7874 = vrot.lane.b32.xlu0 %v7805, 16
      %v7875 = vpop.permute.xlu0 %7874
      %7876 = vrot.lane.b32.xlu0 %v7807, 16
      %v7877 = vpop.permute.xlu0 %7876
      %7878 = vrot.lane.b32.xlu0 %v7810, 16
      %v7879 = vpop.permute.xlu0 %7878
      %7880 = vrot.lane.b32.xlu0 %v7812, 16
      %v7881 = vpop.permute.xlu0 %7880
      %7882 = vrot.lane.b32.xlu0 %v7815, 16
      %v7883 = vpop.permute.xlu0 %7882
      %7884 = vrot.lane.b32.xlu0 %v7817, 16
      %v7885 = vpop.permute.xlu0 %7884
      %7886 = vrot.lane.b32.xlu0 %v7820, 16
      %v7887 = vpop.permute.xlu0 %7886
      %7888 = vrot.lane.b32.xlu0 %v7822, 16
      %v7889 = vpop.permute.xlu0 %7888
      %7890 = vrot.lane.b32.xlu0 %v7825, 16
      %v7891 = vpop.permute.xlu0 %7890
      %7892 = vrot.lane.b32.xlu0 %v7827, 16
      %v7893 = vpop.permute.xlu0 %7892
      %7894 = vrot.lane.b32.xlu0 %v7830, 16
      %v7895 = vpop.permute.xlu0 %7894
      %7896 = vrot.lane.b32.xlu0 %v7832, 16
      %v7897 = vpop.permute.xlu0 %7896
      %7898 = vrot.lane.b32.xlu0 %v7835, 16
      %v7899 = vpop.permute.xlu0 %7898
      %7900 = vrot.lane.b32.xlu0 %v7837, 16
      %v7901 = vpop.permute.xlu0 %7900
      %7936 = vrot.lane.b32.xlu0 %v7483, 24
      %v7937 = vpop.permute.xlu0 %7936
      %7938 = vrot.lane.b32.xlu0 %v7484, 24
      %v7939 = vpop.permute.xlu0 %7938
      %7940 = vrot.lane.b32.xlu0 %v7486, 24
      %v7941 = vpop.permute.xlu0 %7940
      %7942 = vrot.lane.b32.xlu0 %v7487, 24
      %v7943 = vpop.permute.xlu0 %7942
      %7944 = vrot.lane.b32.xlu0 %v7489, 24
      %v7945 = vpop.permute.xlu0 %7944
      %7946 = vrot.lane.b32.xlu0 %v7490, 24
      %v7947 = vpop.permute.xlu0 %7946
      %7948 = vrot.lane.b32.xlu0 %v7492, 24
      %v7949 = vpop.permute.xlu0 %7948
      %7950 = vrot.lane.b32.xlu0 %v7493, 24
      %v7951 = vpop.permute.xlu0 %7950
      %7952 = vrot.lane.b32.xlu0 %v7495, 24
      %v7953 = vpop.permute.xlu0 %7952
      %7954 = vrot.lane.b32.xlu0 %v7496, 24
      %v7955 = vpop.permute.xlu0 %7954
      %7956 = vrot.lane.b32.xlu0 %v7498, 24
      %v7957 = vpop.permute.xlu0 %7956
      %7958 = vrot.lane.b32.xlu0 %v7499, 24
      %v7959 = vpop.permute.xlu0 %7958
      %7960 = vrot.lane.b32.xlu0 %v7501, 24
      %v7961 = vpop.permute.xlu0 %7960
      %7962 = vrot.lane.b32.xlu0 %v7502, 24
      %v7963 = vpop.permute.xlu0 %7962
      %7964 = vrot.lane.b32.xlu0 %v7504, 24
      %v7965 = vpop.permute.xlu0 %7964
      %7966 = vrot.lane.b32.xlu0 %v7505, 24
      %v7967 = vpop.permute.xlu0 %7966
      %7968 = vrot.lane.b32.xlu0 %v7507, 24
      %v7969 = vpop.permute.xlu0 %7968
      %7970 = vrot.lane.b32.xlu0 %v7508, 24
      %v7971 = vpop.permute.xlu0 %7970
      %7972 = vrot.lane.b32.xlu0 %v7510, 24
      %v7973 = vpop.permute.xlu0 %7972
      %7974 = vrot.lane.b32.xlu0 %v7511, 24
      %v7975 = vpop.permute.xlu0 %7974
      %7976 = vrot.lane.b32.xlu0 %v7513, 24
      %v7977 = vpop.permute.xlu0 %7976
      %7978 = vrot.lane.b32.xlu0 %v7514, 24
      %v7979 = vpop.permute.xlu0 %7978
      %7980 = vrot.lane.b32.xlu0 %v7516, 24
      %v7981 = vpop.permute.xlu0 %7980
      %7982 = vrot.lane.b32.xlu0 %v7517, 24
      %v7983 = vpop.permute.xlu0 %7982
      %7984 = vrot.lane.b32.xlu0 %v7519, 24
      %v7985 = vpop.permute.xlu0 %7984
      %7986 = vrot.lane.b32.xlu0 %v7520, 24
      %v7987 = vpop.permute.xlu0 %7986
      %7988 = vrot.lane.b32.xlu0 %v7522, 24
      %v7989 = vpop.permute.xlu0 %7988
      %7990 = vrot.lane.b32.xlu0 %v7523, 24
      %v7991 = vpop.permute.xlu0 %7990
      %7992 = vrot.lane.b32.xlu0 %v7525, 24
      %v7993 = vpop.permute.xlu0 %7992
      %7994 = vrot.lane.b32.xlu0 %v7526, 24
      %v7995 = vpop.permute.xlu0 %7994
      %7996 = vrot.lane.b32.xlu0 %v7528, 24
      %v7997 = vpop.permute.xlu0 %7996
      %7998 = vrot.lane.b32.xlu0 %v7529, 24
      %v7999 = vpop.permute.xlu0 %7998
      %v8033 = vrot.slane %v7528, 1
      %v8034 = vrot.slane %v7529, 1
      %v8035 = vsel %vm1275, %v8033, %v8034
      %v8036 = vrot.slane %v7530, 1
      %v8037 = vsel %vm1275, %v8034, %v8036
      %8038 = vrot.lane.b32.xlu0 %v7589, 32
      %v8039 = vpop.permute.xlu0 %8038
      %8040 = vrot.lane.b32.xlu0 %v7591, 32
      %v8041 = vpop.permute.xlu0 %8040
      %8042 = vrot.lane.b32.xlu0 %v7594, 32
      %v8043 = vpop.permute.xlu0 %8042
      %8044 = vrot.lane.b32.xlu0 %v7596, 32
      %v8045 = vpop.permute.xlu0 %8044
      %8046 = vrot.lane.b32.xlu0 %v7599, 32
      %v8047 = vpop.permute.xlu0 %8046
      %8048 = vrot.lane.b32.xlu0 %v7601, 32
      %v8049 = vpop.permute.xlu0 %8048
      %8050 = vrot.lane.b32.xlu0 %v7604, 32
      %v8051 = vpop.permute.xlu0 %8050
      %8052 = vrot.lane.b32.xlu0 %v7606, 32
      %v8053 = vpop.permute.xlu0 %8052
      %8054 = vrot.lane.b32.xlu0 %v7609, 32
      %v8055 = vpop.permute.xlu0 %8054
      %8056 = vrot.lane.b32.xlu0 %v7611, 32
      %v8057 = vpop.permute.xlu0 %8056
      %8058 = vrot.lane.b32.xlu0 %v7614, 32
      %v8059 = vpop.permute.xlu0 %8058
      %8060 = vrot.lane.b32.xlu0 %v7616, 32
      %v8061 = vpop.permute.xlu0 %8060
      %8062 = vrot.lane.b32.xlu0 %v7619, 32
      %v8063 = vpop.permute.xlu0 %8062
      %8064 = vrot.lane.b32.xlu0 %v7621, 32
      %v8065 = vpop.permute.xlu0 %8064
      %8066 = vrot.lane.b32.xlu0 %v7624, 32
      %v8067 = vpop.permute.xlu0 %8066
      %8068 = vrot.lane.b32.xlu0 %v7626, 32
      %v8069 = vpop.permute.xlu0 %8068
      %8070 = vrot.lane.b32.xlu0 %v7629, 32
      %v8071 = vpop.permute.xlu0 %8070
      %8072 = vrot.lane.b32.xlu0 %v7631, 32
      %v8073 = vpop.permute.xlu0 %8072
      %8074 = vrot.lane.b32.xlu0 %v7634, 32
      %v8075 = vpop.permute.xlu0 %8074
      %8076 = vrot.lane.b32.xlu0 %v7636, 32
      %v8077 = vpop.permute.xlu0 %8076
      %8078 = vrot.lane.b32.xlu0 %v7639, 32
      %v8079 = vpop.permute.xlu0 %8078
      %8080 = vrot.lane.b32.xlu0 %v7641, 32
      %v8081 = vpop.permute.xlu0 %8080
      %8082 = vrot.lane.b32.xlu0 %v7644, 32
      %v8083 = vpop.permute.xlu0 %8082
      %8084 = vrot.lane.b32.xlu0 %v7646, 32
      %v8085 = vpop.permute.xlu0 %8084
      %8086 = vrot.lane.b32.xlu0 %v7649, 32
      %v8087 = vpop.permute.xlu0 %8086
      %8088 = vrot.lane.b32.xlu0 %v7651, 32
      %v8089 = vpop.permute.xlu0 %8088
      %8090 = vrot.lane.b32.xlu0 %v7654, 32
      %v8091 = vpop.permute.xlu0 %8090
      %8092 = vrot.lane.b32.xlu0 %v7656, 32
      %v8093 = vpop.permute.xlu0 %8092
      %8094 = vrot.lane.b32.xlu0 %v7659, 32
      %v8095 = vpop.permute.xlu0 %8094
      %8096 = vrot.lane.b32.xlu0 %v7661, 32
      %v8097 = vpop.permute.xlu0 %8096
      %8098 = vrot.lane.b32.xlu0 %v8035, 32
      %v8099 = vpop.permute.xlu0 %8098
      %8100 = vrot.lane.b32.xlu0 %v8037, 32
      %v8101 = vpop.permute.xlu0 %8100
      %v8134 = vrot.slane %v7528, 2
      %v8135 = vrot.slane %v7529, 2
      %v8136 = vsel %vm1452, %v8134, %v8135
      %v8137 = vrot.slane %v7530, 2
      %v8138 = vsel %vm1452, %v8135, %v8137
      %8139 = vrot.lane.b32.xlu0 %v7765, 40
      %v8140 = vpop.permute.xlu0 %8139
      %8141 = vrot.lane.b32.xlu0 %v7767, 40
      %v8142 = vpop.permute.xlu0 %8141
      %8143 = vrot.lane.b32.xlu0 %v7770, 40
      %v8144 = vpop.permute.xlu0 %8143
      %8145 = vrot.lane.b32.xlu0 %v7772, 40
      %v8146 = vpop.permute.xlu0 %8145
      %8147 = vrot.lane.b32.xlu0 %v7775, 40
      %v8148 = vpop.permute.xlu0 %8147
      %8149 = vrot.lane.b32.xlu0 %v7777, 40
      %v8150 = vpop.permute.xlu0 %8149
      %8151 = vrot.lane.b32.xlu0 %v7780, 40
      %v8152 = vpop.permute.xlu0 %8151
      %8153 = vrot.lane.b32.xlu0 %v7782, 40
      %v8154 = vpop.permute.xlu0 %8153
      %8155 = vrot.lane.b32.xlu0 %v7785, 40
      %v8156 = vpop.permute.xlu0 %8155
      %8157 = vrot.lane.b32.xlu0 %v7787, 40
      %v8158 = vpop.permute.xlu0 %8157
      %8159 = vrot.lane.b32.xlu0 %v7790, 40
      %v8160 = vpop.permute.xlu0 %8159
      %8161 = vrot.lane.b32.xlu0 %v7792, 40
      %v8162 = vpop.permute.xlu0 %8161
      %8163 = vrot.lane.b32.xlu0 %v7795, 40
      %v8164 = vpop.permute.xlu0 %8163
      %8165 = vrot.lane.b32.xlu0 %v7797, 40
      %v8166 = vpop.permute.xlu0 %8165
      %8167 = vrot.lane.b32.xlu0 %v7800, 40
      %v8168 = vpop.permute.xlu0 %8167
      %8169 = vrot.lane.b32.xlu0 %v7802, 40
      %v8170 = vpop.permute.xlu0 %8169
      %8171 = vrot.lane.b32.xlu0 %v7805, 40
      %v8172 = vpop.permute.xlu0 %8171
      %8173 = vrot.lane.b32.xlu0 %v7807, 40
      %v8174 = vpop.permute.xlu0 %8173
      %8175 = vrot.lane.b32.xlu0 %v7810, 40
      %v8176 = vpop.permute.xlu0 %8175
      %8177 = vrot.lane.b32.xlu0 %v7812, 40
      %v8178 = vpop.permute.xlu0 %8177
      %8179 = vrot.lane.b32.xlu0 %v7815, 40
      %v8180 = vpop.permute.xlu0 %8179
      %8181 = vrot.lane.b32.xlu0 %v7817, 40
      %v8182 = vpop.permute.xlu0 %8181
      %8183 = vrot.lane.b32.xlu0 %v7820, 40
      %v8184 = vpop.permute.xlu0 %8183
      %8185 = vrot.lane.b32.xlu0 %v7822, 40
      %v8186 = vpop.permute.xlu0 %8185
      %8187 = vrot.lane.b32.xlu0 %v7825, 40
      %v8188 = vpop.permute.xlu0 %8187
      %8189 = vrot.lane.b32.xlu0 %v7827, 40
      %v8190 = vpop.permute.xlu0 %8189
      %8191 = vrot.lane.b32.xlu0 %v7830, 40
      %v8192 = vpop.permute.xlu0 %8191
      %8193 = vrot.lane.b32.xlu0 %v7832, 40
      %v8194 = vpop.permute.xlu0 %8193
      %8195 = vrot.lane.b32.xlu0 %v7835, 40
      %v8196 = vpop.permute.xlu0 %8195
      %8197 = vrot.lane.b32.xlu0 %v7837, 40
      %v8198 = vpop.permute.xlu0 %8197
      %8199 = vrot.lane.b32.xlu0 %v8136, 40
      %v8200 = vpop.permute.xlu0 %8199
      %8201 = vrot.lane.b32.xlu0 %v8138, 40
      %v8202 = vpop.permute.xlu0 %8201
      %8237 = vrot.lane.b32.xlu0 %v7486, 48
      %v8238 = vpop.permute.xlu0 %8237
      %8239 = vrot.lane.b32.xlu0 %v7487, 48
      %v8240 = vpop.permute.xlu0 %8239
      %8241 = vrot.lane.b32.xlu0 %v7489, 48
      %v8242 = vpop.permute.xlu0 %8241
      %8243 = vrot.lane.b32.xlu0 %v7490, 48
      %v8244 = vpop.permute.xlu0 %8243
      %8245 = vrot.lane.b32.xlu0 %v7492, 48
      %v8246 = vpop.permute.xlu0 %8245
      %8247 = vrot.lane.b32.xlu0 %v7493, 48
      %v8248 = vpop.permute.xlu0 %8247
      %8249 = vrot.lane.b32.xlu0 %v7495, 48
      %v8250 = vpop.permute.xlu0 %8249
      %8251 = vrot.lane.b32.xlu0 %v7496, 48
      %v8252 = vpop.permute.xlu0 %8251
      %8253 = vrot.lane.b32.xlu0 %v7498, 48
      %v8254 = vpop.permute.xlu0 %8253
      %8255 = vrot.lane.b32.xlu0 %v7499, 48
      %v8256 = vpop.permute.xlu0 %8255
      %8257 = vrot.lane.b32.xlu0 %v7501, 48
      %v8258 = vpop.permute.xlu0 %8257
      %8259 = vrot.lane.b32.xlu0 %v7502, 48
      %v8260 = vpop.permute.xlu0 %8259
      %8261 = vrot.lane.b32.xlu0 %v7504, 48
      %v8262 = vpop.permute.xlu0 %8261
      %8263 = vrot.lane.b32.xlu0 %v7505, 48
      %v8264 = vpop.permute.xlu0 %8263
      %8265 = vrot.lane.b32.xlu0 %v7507, 48
      %v8266 = vpop.permute.xlu0 %8265
      %8267 = vrot.lane.b32.xlu0 %v7508, 48
      %v8268 = vpop.permute.xlu0 %8267
      %8269 = vrot.lane.b32.xlu0 %v7510, 48
      %v8270 = vpop.permute.xlu0 %8269
      %8271 = vrot.lane.b32.xlu0 %v7511, 48
      %v8272 = vpop.permute.xlu0 %8271
      %8273 = vrot.lane.b32.xlu0 %v7513, 48
      %v8274 = vpop.permute.xlu0 %8273
      %8275 = vrot.lane.b32.xlu0 %v7514, 48
      %v8276 = vpop.permute.xlu0 %8275
      %8277 = vrot.lane.b32.xlu0 %v7516, 48
      %v8278 = vpop.permute.xlu0 %8277
      %8279 = vrot.lane.b32.xlu0 %v7517, 48
      %v8280 = vpop.permute.xlu0 %8279
      %8281 = vrot.lane.b32.xlu0 %v7519, 48
      %v8282 = vpop.permute.xlu0 %8281
      %8283 = vrot.lane.b32.xlu0 %v7520, 48
      %v8284 = vpop.permute.xlu0 %8283
      %8285 = vrot.lane.b32.xlu0 %v7522, 48
      %v8286 = vpop.permute.xlu0 %8285
      %8287 = vrot.lane.b32.xlu0 %v7523, 48
      %v8288 = vpop.permute.xlu0 %8287
      %8289 = vrot.lane.b32.xlu0 %v7525, 48
      %v8290 = vpop.permute.xlu0 %8289
      %8291 = vrot.lane.b32.xlu0 %v7526, 48
      %v8292 = vpop.permute.xlu0 %8291
      %8293 = vrot.lane.b32.xlu0 %v7528, 48
      %v8294 = vpop.permute.xlu0 %8293
      %8295 = vrot.lane.b32.xlu0 %v7529, 48
      %v8296 = vpop.permute.xlu0 %8295
      %8297 = vrot.lane.b32.xlu0 %v7531, 48
      %v8298 = vpop.permute.xlu0 %8297
      %8299 = vrot.lane.b32.xlu0 %v7532, 48
      %v8300 = vpop.permute.xlu0 %8299
      %v8334 = vrot.slane %v7531, 1
      %v8335 = vrot.slane %v7532, 1
      %v8336 = vsel %vm1275, %v8334, %v8335
      %v8337 = vrot.slane %v7533, 1
      %v8338 = vsel %vm1275, %v8335, %v8337
      %8339 = vrot.lane.b32.xlu0 %v7594, 56
      %v8340 = vpop.permute.xlu0 %8339
      %8341 = vrot.lane.b32.xlu0 %v7596, 56
      %v8342 = vpop.permute.xlu0 %8341
      %8343 = vrot.lane.b32.xlu0 %v7599, 56
      %v8344 = vpop.permute.xlu0 %8343
      %8345 = vrot.lane.b32.xlu0 %v7601, 56
      %v8346 = vpop.permute.xlu0 %8345
      %8347 = vrot.lane.b32.xlu0 %v7604, 56
      %v8348 = vpop.permute.xlu0 %8347
      %8349 = vrot.lane.b32.xlu0 %v7606, 56
      %v8350 = vpop.permute.xlu0 %8349
      %8351 = vrot.lane.b32.xlu0 %v7609, 56
      %v8352 = vpop.permute.xlu0 %8351
      %8353 = vrot.lane.b32.xlu0 %v7611, 56
      %v8354 = vpop.permute.xlu0 %8353
      %8355 = vrot.lane.b32.xlu0 %v7614, 56
      %v8356 = vpop.permute.xlu0 %8355
      %8357 = vrot.lane.b32.xlu0 %v7616, 56
      %v8358 = vpop.permute.xlu0 %8357
      %8359 = vrot.lane.b32.xlu0 %v7619, 56
      %v8360 = vpop.permute.xlu0 %8359
      %8361 = vrot.lane.b32.xlu0 %v7621, 56
      %v8362 = vpop.permute.xlu0 %8361
      %8363 = vrot.lane.b32.xlu0 %v7624, 56
      %v8364 = vpop.permute.xlu0 %8363
      %8365 = vrot.lane.b32.xlu0 %v7626, 56
      %v8366 = vpop.permute.xlu0 %8365
      %8367 = vrot.lane.b32.xlu0 %v7629, 56
      %v8368 = vpop.permute.xlu0 %8367
      %8369 = vrot.lane.b32.xlu0 %v7631, 56
      %v8370 = vpop.permute.xlu0 %8369
      %8371 = vrot.lane.b32.xlu0 %v7634, 56
      %v8372 = vpop.permute.xlu0 %8371
      %8373 = vrot.lane.b32.xlu0 %v7636, 56
      %v8374 = vpop.permute.xlu0 %8373
      %8375 = vrot.lane.b32.xlu0 %v7639, 56
      %v8376 = vpop.permute.xlu0 %8375
      %8377 = vrot.lane.b32.xlu0 %v7641, 56
      %v8378 = vpop.permute.xlu0 %8377
      %8379 = vrot.lane.b32.xlu0 %v7644, 56
      %v8380 = vpop.permute.xlu0 %8379
      %8381 = vrot.lane.b32.xlu0 %v7646, 56
      %v8382 = vpop.permute.xlu0 %8381
      %8383 = vrot.lane.b32.xlu0 %v7649, 56
      %v8384 = vpop.permute.xlu0 %8383
      %8385 = vrot.lane.b32.xlu0 %v7651, 56
      %v8386 = vpop.permute.xlu0 %8385
      %8387 = vrot.lane.b32.xlu0 %v7654, 56
      %v8388 = vpop.permute.xlu0 %8387
      %8389 = vrot.lane.b32.xlu0 %v7656, 56
      %v8390 = vpop.permute.xlu0 %8389
      %8391 = vrot.lane.b32.xlu0 %v7659, 56
      %v8392 = vpop.permute.xlu0 %8391
      %8393 = vrot.lane.b32.xlu0 %v7661, 56
      %v8394 = vpop.permute.xlu0 %8393
      %8395 = vrot.lane.b32.xlu0 %v8035, 56
      %v8396 = vpop.permute.xlu0 %8395
      %8397 = vrot.lane.b32.xlu0 %v8037, 56
      %v8398 = vpop.permute.xlu0 %8397
      %8399 = vrot.lane.b32.xlu0 %v8336, 56
      %v8400 = vpop.permute.xlu0 %8399
      %8401 = vrot.lane.b32.xlu0 %v8338, 56
      %v8402 = vpop.permute.xlu0 %8401
      %v8435 = vrot.slane %v7531, 2
      %v8436 = vrot.slane %v7532, 2
      %v8437 = vsel %vm1452, %v8435, %v8436
      %v8438 = vrot.slane %v7533, 2
      %v8439 = vsel %vm1452, %v8436, %v8438
      %8440 = vrot.lane.b32.xlu0 %v7770, 64
      %v8441 = vpop.permute.xlu0 %8440
      %8442 = vrot.lane.b32.xlu0 %v7772, 64
      %v8443 = vpop.permute.xlu0 %8442
      %8444 = vrot.lane.b32.xlu0 %v7775, 64
      %v8445 = vpop.permute.xlu0 %8444
      %8446 = vrot.lane.b32.xlu0 %v7777, 64
      %v8447 = vpop.permute.xlu0 %8446
      %8448 = vrot.lane.b32.xlu0 %v7780, 64
      %v8449 = vpop.permute.xlu0 %8448
      %8450 = vrot.lane.b32.xlu0 %v7782, 64
      %v8451 = vpop.permute.xlu0 %8450
      %8452 = vrot.lane.b32.xlu0 %v7785, 64
      %v8453 = vpop.permute.xlu0 %8452
      %8454 = vrot.lane.b32.xlu0 %v7787, 64
      %v8455 = vpop.permute.xlu0 %8454
      %8456 = vrot.lane.b32.xlu0 %v7790, 64
      %v8457 = vpop.permute.xlu0 %8456
      %8458 = vrot.lane.b32.xlu0 %v7792, 64
      %v8459 = vpop.permute.xlu0 %8458
      %8460 = vrot.lane.b32.xlu0 %v7795, 64
      %v8461 = vpop.permute.xlu0 %8460
      %8462 = vrot.lane.b32.xlu0 %v7797, 64
      %v8463 = vpop.permute.xlu0 %8462
      %8464 = vrot.lane.b32.xlu0 %v7800, 64
      %v8465 = vpop.permute.xlu0 %8464
      %8466 = vrot.lane.b32.xlu0 %v7802, 64
      %v8467 = vpop.permute.xlu0 %8466
      %8468 = vrot.lane.b32.xlu0 %v7805, 64
      %v8469 = vpop.permute.xlu0 %8468
      %8470 = vrot.lane.b32.xlu0 %v7807, 64
      %v8471 = vpop.permute.xlu0 %8470
      %8472 = vrot.lane.b32.xlu0 %v7810, 64
      %v8473 = vpop.permute.xlu0 %8472
      %8474 = vrot.lane.b32.xlu0 %v7812, 64
      %v8475 = vpop.permute.xlu0 %8474
      %8476 = vrot.lane.b32.xlu0 %v7815, 64
      %v8477 = vpop.permute.xlu0 %8476
      %8478 = vrot.lane.b32.xlu0 %v7817, 64
      %v8479 = vpop.permute.xlu0 %8478
      %8480 = vrot.lane.b32.xlu0 %v7820, 64
      %v8481 = vpop.permute.xlu0 %8480
      %8482 = vrot.lane.b32.xlu0 %v7822, 64
      %v8483 = vpop.permute.xlu0 %8482
      %8484 = vrot.lane.b32.xlu0 %v7825, 64
      %v8485 = vpop.permute.xlu0 %8484
      %8486 = vrot.lane.b32.xlu0 %v7827, 64
      %v8487 = vpop.permute.xlu0 %8486
      %8488 = vrot.lane.b32.xlu0 %v7830, 64
      %v8489 = vpop.permute.xlu0 %8488
      %8490 = vrot.lane.b32.xlu0 %v7832, 64
      %v8491 = vpop.permute.xlu0 %8490
      %8492 = vrot.lane.b32.xlu0 %v7835, 64
      %v8493 = vpop.permute.xlu0 %8492
      %8494 = vrot.lane.b32.xlu0 %v7837, 64
      %v8495 = vpop.permute.xlu0 %8494
      %8496 = vrot.lane.b32.xlu0 %v8136, 64
      %v8497 = vpop.permute.xlu0 %8496
      %8498 = vrot.lane.b32.xlu0 %v8138, 64
      %v8499 = vpop.permute.xlu0 %8498
      %8500 = vrot.lane.b32.xlu0 %v8437, 64
      %v8501 = vpop.permute.xlu0 %8500
      %8502 = vrot.lane.b32.xlu0 %v8439, 64
      %v8503 = vpop.permute.xlu0 %8502
      %v8536 = vsel %vm746, %v7480, %v7663
      %v8537 = vsel %vm746, %v7481, %v7665
      %v8538 = vsel %vm746, %v7483, %v7667
      %v8539 = vsel %vm746, %v7484, %v7669
      %v8540 = vsel %vm746, %v7486, %v7671
      %v8541 = vsel %vm746, %v7487, %v7673
      %v8542 = vsel %vm746, %v7489, %v7675
      %v8543 = vsel %vm746, %v7490, %v7677
      %v8544 = vsel %vm746, %v7492, %v7679
      %v8545 = vsel %vm746, %v7493, %v7681
      %v8546 = vsel %vm746, %v7495, %v7683
      %v8547 = vsel %vm746, %v7496, %v7685
      %v8548 = vsel %vm746, %v7498, %v7687
      %v8549 = vsel %vm746, %v7499, %v7689
      %v8550 = vsel %vm746, %v7501, %v7691
      %v8551 = vsel %vm746, %v7502, %v7693
      %v8552 = vsel %vm746, %v7504, %v7695
      %v8553 = vsel %vm746, %v7505, %v7697
      %v8554 = vsel %vm746, %v7507, %v7699
      %v8555 = vsel %vm746, %v7508, %v7701
      %v8556 = vsel %vm746, %v7510, %v7703
      %v8557 = vsel %vm746, %v7511, %v7705
      %v8558 = vsel %vm746, %v7513, %v7707
      %v8559 = vsel %vm746, %v7514, %v7709
      %v8560 = vsel %vm746, %v7516, %v7711
      %v8561 = vsel %vm746, %v7517, %v7713
      %v8562 = vsel %vm746, %v7519, %v7715
      %v8563 = vsel %vm746, %v7520, %v7717
      %v8564 = vsel %vm746, %v7522, %v7719
      %v8565 = vsel %vm746, %v7523, %v7721
      %v8566 = vsel %vm746, %v7525, %v7723
      %v8567 = vsel %vm746, %v7526, %v7725
      %v8568 = vsel %vm2328, %v8536, %v7839
      %v8569 = vsel %vm2328, %v8537, %v7841
      %v8570 = vsel %vm2328, %v8538, %v7843
      %v8571 = vsel %vm2328, %v8539, %v7845
      %v8572 = vsel %vm2328, %v8540, %v7847
      %v8573 = vsel %vm2328, %v8541, %v7849
      %v8574 = vsel %vm2328, %v8542, %v7851
      %v8575 = vsel %vm2328, %v8543, %v7853
      %v8576 = vsel %vm2328, %v8544, %v7855
      %v8577 = vsel %vm2328, %v8545, %v7857
      %v8578 = vsel %vm2328, %v8546, %v7859
      %v8579 = vsel %vm2328, %v8547, %v7861
      %v8580 = vsel %vm2328, %v8548, %v7863
      %v8581 = vsel %vm2328, %v8549, %v7865
      %v8582 = vsel %vm2328, %v8550, %v7867
      %v8583 = vsel %vm2328, %v8551, %v7869
      %v8584 = vsel %vm2328, %v8552, %v7871
      %v8585 = vsel %vm2328, %v8553, %v7873
      %v8586 = vsel %vm2328, %v8554, %v7875
      %v8587 = vsel %vm2328, %v8555, %v7877
      %v8588 = vsel %vm2328, %v8556, %v7879
      %v8589 = vsel %vm2328, %v8557, %v7881
      %v8590 = vsel %vm2328, %v8558, %v7883
      %v8591 = vsel %vm2328, %v8559, %v7885
      %v8592 = vsel %vm2328, %v8560, %v7887
      %v8593 = vsel %vm2328, %v8561, %v7889
      %v8594 = vsel %vm2328, %v8562, %v7891
      %v8595 = vsel %vm2328, %v8563, %v7893
      %v8596 = vsel %vm2328, %v8564, %v7895
      %v8597 = vsel %vm2328, %v8565, %v7897
      %v8598 = vsel %vm2328, %v8566, %v7899
      %v8599 = vsel %vm2328, %v8567, %v7901
      %v8600 = vsel %vm2394, %v8568, %v7937
      %v8601 = vsel %vm2394, %v8569, %v7939
      %v8602 = vsel %vm2394, %v8570, %v7941
      %v8603 = vsel %vm2394, %v8571, %v7943
      %v8604 = vsel %vm2394, %v8572, %v7945
      %v8605 = vsel %vm2394, %v8573, %v7947
      %v8606 = vsel %vm2394, %v8574, %v7949
      %v8607 = vsel %vm2394, %v8575, %v7951
      %v8608 = vsel %vm2394, %v8576, %v7953
      %v8609 = vsel %vm2394, %v8577, %v7955
      %v8610 = vsel %vm2394, %v8578, %v7957
      %v8611 = vsel %vm2394, %v8579, %v7959
      %v8612 = vsel %vm2394, %v8580, %v7961
      %v8613 = vsel %vm2394, %v8581, %v7963
      %v8614 = vsel %vm2394, %v8582, %v7965
      %v8615 = vsel %vm2394, %v8583, %v7967
      %v8616 = vsel %vm2394, %v8584, %v7969
      %v8617 = vsel %vm2394, %v8585, %v7971
      %v8618 = vsel %vm2394, %v8586, %v7973
      %v8619 = vsel %vm2394, %v8587, %v7975
      %v8620 = vsel %vm2394, %v8588, %v7977
      %v8621 = vsel %vm2394, %v8589, %v7979
      %v8622 = vsel %vm2394, %v8590, %v7981
      %v8623 = vsel %vm2394, %v8591, %v7983
      %v8624 = vsel %vm2394, %v8592, %v7985
      %v8625 = vsel %vm2394, %v8593, %v7987
      %v8626 = vsel %vm2394, %v8594, %v7989
      %v8627 = vsel %vm2394, %v8595, %v7991
      %v8628 = vsel %vm2394, %v8596, %v7993
      %v8629 = vsel %vm2394, %v8597, %v7995
      %v8630 = vsel %vm2394, %v8598, %v7997
      %v8631 = vsel %vm2394, %v8599, %v7999
      %v8632 = vsel %vm2460, %v8600, %v8039
      %v8633 = vsel %vm2460, %v8601, %v8041
      %v8634 = vsel %vm2460, %v8602, %v8043
      %v8635 = vsel %vm2460, %v8603, %v8045
      %v8636 = vsel %vm2460, %v8604, %v8047
      %v8637 = vsel %vm2460, %v8605, %v8049
      %v8638 = vsel %vm2460, %v8606, %v8051
      %v8639 = vsel %vm2460, %v8607, %v8053
      %v8640 = vsel %vm2460, %v8608, %v8055
      %v8641 = vsel %vm2460, %v8609, %v8057
      %v8642 = vsel %vm2460, %v8610, %v8059
      %v8643 = vsel %vm2460, %v8611, %v8061
      %v8644 = vsel %vm2460, %v8612, %v8063
      %v8645 = vsel %vm2460, %v8613, %v8065
      %v8646 = vsel %vm2460, %v8614, %v8067
      %v8647 = vsel %vm2460, %v8615, %v8069
      %v8648 = vsel %vm2460, %v8616, %v8071
      %v8649 = vsel %vm2460, %v8617, %v8073
      %v8650 = vsel %vm2460, %v8618, %v8075
      %v8651 = vsel %vm2460, %v8619, %v8077
      %v8652 = vsel %vm2460, %v8620, %v8079
      %v8653 = vsel %vm2460, %v8621, %v8081
      %v8654 = vsel %vm2460, %v8622, %v8083
      %v8655 = vsel %vm2460, %v8623, %v8085
      %v8656 = vsel %vm2460, %v8624, %v8087
      %v8657 = vsel %vm2460, %v8625, %v8089
      %v8658 = vsel %vm2460, %v8626, %v8091
      %v8659 = vsel %vm2460, %v8627, %v8093
      %v8660 = vsel %vm2460, %v8628, %v8095
      %v8661 = vsel %vm2460, %v8629, %v8097
      %v8662 = vsel %vm2460, %v8630, %v8099
      %v8663 = vsel %vm2460, %v8631, %v8101
      %v8664 = vsel %vm4539, %v8632, %v8140
      %v8665 = vsel %vm4539, %v8633, %v8142
      %v8666 = vsel %vm4539, %v8634, %v8144
      %v8667 = vsel %vm4539, %v8635, %v8146
      %v8668 = vsel %vm4539, %v8636, %v8148
      %v8669 = vsel %vm4539, %v8637, %v8150
      %v8670 = vsel %vm4539, %v8638, %v8152
      %v8671 = vsel %vm4539, %v8639, %v8154
      %v8672 = vsel %vm4539, %v8640, %v8156
      %v8673 = vsel %vm4539, %v8641, %v8158
      %v8674 = vsel %vm4539, %v8642, %v8160
      %v8675 = vsel %vm4539, %v8643, %v8162
      %v8676 = vsel %vm4539, %v8644, %v8164
      %v8677 = vsel %vm4539, %v8645, %v8166
      %v8678 = vsel %vm4539, %v8646, %v8168
      %v8679 = vsel %vm4539, %v8647, %v8170
      %v8680 = vsel %vm4539, %v8648, %v8172
      %v8681 = vsel %vm4539, %v8649, %v8174
      %v8682 = vsel %vm4539, %v8650, %v8176
      %v8683 = vsel %vm4539, %v8651, %v8178
      %v8684 = vsel %vm4539, %v8652, %v8180
      %v8685 = vsel %vm4539, %v8653, %v8182
      %v8686 = vsel %vm4539, %v8654, %v8184
      %v8687 = vsel %vm4539, %v8655, %v8186
      %v8688 = vsel %vm4539, %v8656, %v8188
      %v8689 = vsel %vm4539, %v8657, %v8190
      %v8690 = vsel %vm4539, %v8658, %v8192
      %v8691 = vsel %vm4539, %v8659, %v8194
      %v8692 = vsel %vm4539, %v8660, %v8196
      %v8693 = vsel %vm4539, %v8661, %v8198
      %v8694 = vsel %vm4539, %v8662, %v8200
      %v8695 = vsel %vm4539, %v8663, %v8202
      %v8696 = vsel %vm4572, %v8664, %v8238
      %v8697 = vsel %vm4572, %v8665, %v8240
      %v8698 = vsel %vm4572, %v8666, %v8242
      %v8699 = vsel %vm4572, %v8667, %v8244
      %v8700 = vsel %vm4572, %v8668, %v8246
      %v8701 = vsel %vm4572, %v8669, %v8248
      %v8702 = vsel %vm4572, %v8670, %v8250
      %v8703 = vsel %vm4572, %v8671, %v8252
      %v8704 = vsel %vm4572, %v8672, %v8254
      %v8705 = vsel %vm4572, %v8673, %v8256
      %v8706 = vsel %vm4572, %v8674, %v8258
      %v8707 = vsel %vm4572, %v8675, %v8260
      %v8708 = vsel %vm4572, %v8676, %v8262
      %v8709 = vsel %vm4572, %v8677, %v8264
      %v8710 = vsel %vm4572, %v8678, %v8266
      %v8711 = vsel %vm4572, %v8679, %v8268
      %v8712 = vsel %vm4572, %v8680, %v8270
      %v8713 = vsel %vm4572, %v8681, %v8272
      %v8714 = vsel %vm4572, %v8682, %v8274
      %v8715 = vsel %vm4572, %v8683, %v8276
      %v8716 = vsel %vm4572, %v8684, %v8278
      %v8717 = vsel %vm4572, %v8685, %v8280
      %v8718 = vsel %vm4572, %v8686, %v8282
      %v8719 = vsel %vm4572, %v8687, %v8284
      %v8720 = vsel %vm4572, %v8688, %v8286
      %v8721 = vsel %vm4572, %v8689, %v8288
      %v8722 = vsel %vm4572, %v8690, %v8290
      %v8723 = vsel %vm4572, %v8691, %v8292
      %v8724 = vsel %vm4572, %v8692, %v8294
      %v8725 = vsel %vm4572, %v8693, %v8296
      %v8726 = vsel %vm4572, %v8694, %v8298
      %v8727 = vsel %vm4572, %v8695, %v8300
      %v8728 = vsel %vm4605, %v8696, %v8340
      %v8729 = vsel %vm4605, %v8697, %v8342
      %v8730 = vsel %vm4605, %v8698, %v8344
      %v8731 = vsel %vm4605, %v8699, %v8346
      %v8732 = vsel %vm4605, %v8700, %v8348
      %v8733 = vsel %vm4605, %v8701, %v8350
      %v8734 = vsel %vm4605, %v8702, %v8352
      %v8735 = vsel %vm4605, %v8703, %v8354
      %v8736 = vsel %vm4605, %v8704, %v8356
      %v8737 = vsel %vm4605, %v8705, %v8358
      %v8738 = vsel %vm4605, %v8706, %v8360
      %v8739 = vsel %vm4605, %v8707, %v8362
      %v8740 = vsel %vm4605, %v8708, %v8364
      %v8741 = vsel %vm4605, %v8709, %v8366
      %v8742 = vsel %vm4605, %v8710, %v8368
      %v8743 = vsel %vm4605, %v8711, %v8370
      %v8744 = vsel %vm4605, %v8712, %v8372
      %v8745 = vsel %vm4605, %v8713, %v8374
      %v8746 = vsel %vm4605, %v8714, %v8376
      %v8747 = vsel %vm4605, %v8715, %v8378
      %v8748 = vsel %vm4605, %v8716, %v8380
      %v8749 = vsel %vm4605, %v8717, %v8382
      %v8750 = vsel %vm4605, %v8718, %v8384
      %v8751 = vsel %vm4605, %v8719, %v8386
      %v8752 = vsel %vm4605, %v8720, %v8388
      %v8753 = vsel %vm4605, %v8721, %v8390
      %v8754 = vsel %vm4605, %v8722, %v8392
      %v8755 = vsel %vm4605, %v8723, %v8394
      %v8756 = vsel %vm4605, %v8724, %v8396
      %v8757 = vsel %vm4605, %v8725, %v8398
      %v8758 = vsel %vm4605, %v8726, %v8400
      %v8759 = vsel %vm4605, %v8727, %v8402
      %v8760 = vsel %vm4638, %v8728, %v8441
      %v8761 = vsel %vm4638, %v8729, %v8443
      %v8762 = vsel %vm4638, %v8730, %v8445
      %v8763 = vsel %vm4638, %v8731, %v8447
      %v8764 = vsel %vm4638, %v8732, %v8449
      %v8765 = vsel %vm4638, %v8733, %v8451
      %v8766 = vsel %vm4638, %v8734, %v8453
      %v8767 = vsel %vm4638, %v8735, %v8455
      %v8768 = vsel %vm4638, %v8736, %v8457
      %v8769 = vsel %vm4638, %v8737, %v8459
      %v8770 = vsel %vm4638, %v8738, %v8461
      %v8771 = vsel %vm4638, %v8739, %v8463
      %v8772 = vsel %vm4638, %v8740, %v8465
      %v8773 = vsel %vm4638, %v8741, %v8467
      %v8774 = vsel %vm4638, %v8742, %v8469
      %v8775 = vsel %vm4638, %v8743, %v8471
      %v8776 = vsel %vm4638, %v8744, %v8473
      %v8777 = vsel %vm4638, %v8745, %v8475
      %v8778 = vsel %vm4638, %v8746, %v8477
      %v8779 = vsel %vm4638, %v8747, %v8479
      %v8780 = vsel %vm4638, %v8748, %v8481
      %v8781 = vsel %vm4638, %v8749, %v8483
      %v8782 = vsel %vm4638, %v8750, %v8485
      %v8783 = vsel %vm4638, %v8751, %v8487
      %v8784 = vsel %vm4638, %v8752, %v8489
      %v8785 = vsel %vm4638, %v8753, %v8491
      %v8786 = vsel %vm4638, %v8754, %v8493
      %v8787 = vsel %vm4638, %v8755, %v8495
      %v8788 = vsel %vm4638, %v8756, %v8497
      %v8789 = vsel %vm4638, %v8757, %v8499
      %v8790 = vsel %vm4638, %v8758, %v8501
      %v8791 = vsel %vm4638, %v8759, %v8503
      %v8792 = vld [vmem:[%s13] sm:$0xff]
      %v8793 = vld [vmem:[%s13 + $0x8] sm:$0xff]
      %v8794 = vld [vmem:[%s13 + $0x10] sm:$0xff]
      %v8795 = vld [vmem:[%s13 + $0x18] sm:$0xff]
      %v8796 = vld [vmem:[%s13 + $0x20] sm:$0xff]
      %v8797 = vld [vmem:[%s13 + $0x28] sm:$0xff]
      %v8798 = vld [vmem:[%s13 + $0x30] sm:$0xff]
      %v8799 = vld [vmem:[%s13 + $0x38] sm:$0xff]
      %v8800 = vld [vmem:[%s13 + $0x40] sm:$0xff]
      %v8801 = vld [vmem:[%s14] sm:$0x1]
      %v8803 = vperm.slane %v8801, 0
      %v8806 = vsel %vm4684, %v8760, 0
      %v8809 = vsel %vm4684, %v8761, 0
      %v8812 = vsel %vm4684, %v8762, 0
      %v8815 = vsel %vm4684, %v8763, 0
      %v8818 = vsel %vm4684, %v8764, 0
      %v8821 = vsel %vm4684, %v8765, 0
      %v8824 = vsel %vm4684, %v8766, 0
      %v8827 = vsel %vm4684, %v8767, 0
      %v8830 = vsel %vm4684, %v8768, 0
      %v8833 = vsel %vm4684, %v8769, 0
      %v8836 = vsel %vm4684, %v8770, 0
      %v8839 = vsel %vm4684, %v8771, 0
      %v8842 = vsel %vm4684, %v8772, 0
      %v8845 = vsel %vm4684, %v8773, 0
      %v8848 = vsel %vm4684, %v8774, 0
      %v8851 = vsel %vm4684, %v8775, 0
      %v8854 = vsel %vm4684, %v8776, 0
      %v8857 = vsel %vm4684, %v8777, 0
      %v8860 = vsel %vm4684, %v8778, 0
      %v8863 = vsel %vm4684, %v8779, 0
      %v8866 = vsel %vm4684, %v8780, 0
      %v8869 = vsel %vm4684, %v8781, 0
      %v8872 = vsel %vm4684, %v8782, 0
      %v8875 = vsel %vm4684, %v8783, 0
      %v8878 = vsel %vm4684, %v8784, 0
      %v8881 = vsel %vm4684, %v8785, 0
      %v8884 = vsel %vm4684, %v8786, 0
      %v8887 = vsel %vm4684, %v8787, 0
      %v8890 = vsel %vm4684, %v8788, 0
      %v8893 = vsel %vm4684, %v8789, 0
      %v8896 = vsel %vm4684, %v8790, 0
      %v8899 = vsel %vm4684, %v8791, 0
      %8901 = vmatpush.msra.mxu0 0.0
      %8902 = vmatpush.msra.mxu0 0.0
      %8903 = vmatpush.msra.mxu0 0.0
      %8904 = vmatpush.msra.mxu0 0.0
      %8905 = vmatpush.msra.mxu0 0.0
      %8906 = vmatpush.msra.mxu0 0.0
      %8907 = vmatpush.msra.mxu0 0.0
      %8908 = vmatpush.msra.mxu0 %v8800
      %8909 = vmatpush.msra.mxu0 %v8799
      %8910 = vmatpush.msra.mxu0 %v8798
      %8911 = vmatpush.msra.mxu0 %v8797
      %8912 = vmatpush.msra.mxu0 %v8796
      %8913 = vmatpush.msra.mxu0 %v8795
      %8914 = vmatpush.msra.mxu0 %v8794
      %8915 = vmatpush.msra.mxu0 %v8793
      %8916 = vmatpush.msra.mxu0 %v8792
      %8917 = vmatmul.f32.gmra.mxu0 %v8806
      %v8918 = vpop.f32.mrf.mxu0
      %v8919 = vadd.f32 %v8803, %v8918
      %8920 = vmatmul.f32.gmra.mxu0 %v8809
      %v8921 = vpop.f32.mrf.mxu0
      %v8922 = vadd.f32 %v8803, %v8921
      %8923 = vmatmul.f32.gmra.mxu0 %v8812
      %v8924 = vpop.f32.mrf.mxu0
      %v8925 = vadd.f32 %v8803, %v8924
      %8926 = vmatmul.f32.gmra.mxu0 %v8815
      %v8927 = vpop.f32.mrf.mxu0
      %v8928 = vadd.f32 %v8803, %v8927
      %8929 = vmatmul.f32.gmra.mxu0 %v8818
      %v8930 = vpop.f32.mrf.mxu0
      %v8931 = vadd.f32 %v8803, %v8930
      %8932 = vmatmul.f32.gmra.mxu0 %v8821
      %v8933 = vpop.f32.mrf.mxu0
      %v8934 = vadd.f32 %v8803, %v8933
      %8935 = vmatmul.f32.gmra.mxu0 %v8824
      %v8936 = vpop.f32.mrf.mxu0
      %v8937 = vadd.f32 %v8803, %v8936
      %8938 = vmatmul.f32.gmra.mxu0 %v8827
      %v8939 = vpop.f32.mrf.mxu0
      %v8940 = vadd.f32 %v8803, %v8939
      %8941 = vmatmul.f32.gmra.mxu0 %v8830
      %v8942 = vpop.f32.mrf.mxu0
      %v8943 = vadd.f32 %v8803, %v8942
      %8944 = vmatmul.f32.gmra.mxu0 %v8833
      %v8945 = vpop.f32.mrf.mxu0
      %v8946 = vadd.f32 %v8803, %v8945
      %8947 = vmatmul.f32.gmra.mxu0 %v8836
      %v8948 = vpop.f32.mrf.mxu0
      %v8949 = vadd.f32 %v8803, %v8948
      %8950 = vmatmul.f32.gmra.mxu0 %v8839
      %v8951 = vpop.f32.mrf.mxu0
      %v8952 = vadd.f32 %v8803, %v8951
      %8953 = vmatmul.f32.gmra.mxu0 %v8842
      %v8954 = vpop.f32.mrf.mxu0
      %v8955 = vadd.f32 %v8803, %v8954
      %8956 = vmatmul.f32.gmra.mxu0 %v8845
      %v8957 = vpop.f32.mrf.mxu0
      %v8958 = vadd.f32 %v8803, %v8957
      %8959 = vmatmul.f32.gmra.mxu0 %v8848
      %v8960 = vpop.f32.mrf.mxu0
      %v8961 = vadd.f32 %v8803, %v8960
      %8962 = vmatmul.f32.gmra.mxu0 %v8851
      %v8963 = vpop.f32.mrf.mxu0
      %v8964 = vadd.f32 %v8803, %v8963
      %8965 = vmatmul.f32.gmra.mxu0 %v8854
      %v8966 = vpop.f32.mrf.mxu0
      %v8967 = vadd.f32 %v8803, %v8966
      %8968 = vmatmul.f32.gmra.mxu0 %v8857
      %v8969 = vpop.f32.mrf.mxu0
      %v8970 = vadd.f32 %v8803, %v8969
      %8971 = vmatmul.f32.gmra.mxu0 %v8860
      %v8972 = vpop.f32.mrf.mxu0
      %v8973 = vadd.f32 %v8803, %v8972
      %8974 = vmatmul.f32.gmra.mxu0 %v8863
      %v8975 = vpop.f32.mrf.mxu0
      %v8976 = vadd.f32 %v8803, %v8975
      %8977 = vmatmul.f32.gmra.mxu0 %v8866
      %v8978 = vpop.f32.mrf.mxu0
      %v8979 = vadd.f32 %v8803, %v8978
      %8980 = vmatmul.f32.gmra.mxu0 %v8869
      %v8981 = vpop.f32.mrf.mxu0
      %v8982 = vadd.f32 %v8803, %v8981
      %8983 = vmatmul.f32.gmra.mxu0 %v8872
      %v8984 = vpop.f32.mrf.mxu0
      %v8985 = vadd.f32 %v8803, %v8984
      %8986 = vmatmul.f32.gmra.mxu0 %v8875
      %v8987 = vpop.f32.mrf.mxu0
      %v8988 = vadd.f32 %v8803, %v8987
      %8989 = vmatmul.f32.gmra.mxu0 %v8878
      %v8990 = vpop.f32.mrf.mxu0
      %v8991 = vadd.f32 %v8803, %v8990
      %8992 = vmatmul.f32.gmra.mxu0 %v8881
      %v8993 = vpop.f32.mrf.mxu0
      %v8994 = vadd.f32 %v8803, %v8993
      %8995 = vmatmul.f32.gmra.mxu0 %v8884
      %v8996 = vpop.f32.mrf.mxu0
      %v8997 = vadd.f32 %v8803, %v8996
      %8998 = vmatmul.f32.gmra.mxu0 %v8887
      %v8999 = vpop.f32.mrf.mxu0
      %v9000 = vadd.f32 %v8803, %v8999
      %9001 = vmatmul.f32.gmra.mxu0 %v8890
      %v9002 = vpop.f32.mrf.mxu0
      %v9003 = vadd.f32 %v8803, %v9002
      %9004 = vmatmul.f32.gmra.mxu0 %v8893
      %v9005 = vpop.f32.mrf.mxu0
      %v9006 = vadd.f32 %v8803, %v9005
      %9007 = vmatmul.f32.gmra.mxu0 %v8896
      %v9008 = vpop.f32.mrf.mxu0
      %v9009 = vadd.f32 %v8803, %v9008
      %9010 = vmatmul.f32.gmra.mxu0 %v8899
      %v9011 = vpop.f32.mrf.mxu0
      %v9012 = vadd.f32 %v8803, %v9011
      %9013 = vdwg.mxu0
      %v9014 = vadd.f32 %v8919, %v4894
      %v9015 = vadd.f32 %v8922, %v4895
      %v9016 = vadd.f32 %v8925, %v4896
      %v9017 = vadd.f32 %v8928, %v4897
      %v9018 = vadd.f32 %v8931, %v4898
      %v9019 = vadd.f32 %v8934, %v4899
      %v9020 = vadd.f32 %v8937, %v4900
      %v9021 = vadd.f32 %v8940, %v4901
      %v9022 = vadd.f32 %v8943, %v4902
      %v9023 = vadd.f32 %v8946, %v4903
      %v9024 = vadd.f32 %v8949, %v4904
      %v9025 = vadd.f32 %v8952, %v4905
      %v9026 = vadd.f32 %v8955, %v4906
      %v9027 = vadd.f32 %v8958, %v4907
      %v9028 = vadd.f32 %v8961, %v4908
      %v9029 = vadd.f32 %v8964, %v4909
      %v9030 = vadd.f32 %v8967, %v4910
      %v9031 = vadd.f32 %v8970, %v4911
      %v9032 = vadd.f32 %v8973, %v4912
      %v9033 = vadd.f32 %v8976, %v4913
      %v9034 = vadd.f32 %v8979, %v4914
      %v9035 = vadd.f32 %v8982, %v4915
      %v9036 = vadd.f32 %v8985, %v4916
      %v9037 = vadd.f32 %v8988, %v4917
      %v9038 = vadd.f32 %v8991, %v4918
      %v9039 = vadd.f32 %v8994, %v4919
      %v9040 = vadd.f32 %v8997, %v4920
      %v9041 = vadd.f32 %v9000, %v4921
      %v9042 = vadd.f32 %v9003, %v4922
      %v9043 = vadd.f32 %v9006, %v4923
      %v9044 = vadd.f32 %v9009, %v4924
      %v9045 = vadd.f32 %v9012, %v4925
      %9046 = vst.msk [vmem:[%s494] sm:$0xff] %vm746, %v9014
      %9047 = vst.msk [vmem:[%s494 + $0x8] sm:$0xff] %vm746, %v9015
      %9048 = vst.msk [vmem:[%s494 + $0x10] sm:$0xff] %vm746, %v9016
      %9049 = vst.msk [vmem:[%s494 + $0x18] sm:$0xff] %vm746, %v9017
      %9050 = vst.msk [vmem:[%s494 + $0x20] sm:$0xff] %vm746, %v9018
      %9051 = vst.msk [vmem:[%s494 + $0x28] sm:$0xff] %vm746, %v9019
      %9052 = vst.msk [vmem:[%s494 + $0x30] sm:$0xff] %vm746, %v9020
      %9053 = vst.msk [vmem:[%s494 + $0x38] sm:$0xff] %vm746, %v9021
      %9054 = vst.msk [vmem:[%s494 + $0x40] sm:$0xff] %vm746, %v9022
      %9055 = vst.msk [vmem:[%s494 + $0x48] sm:$0xff] %vm746, %v9023
      %9056 = vst.msk [vmem:[%s494 + $0x50] sm:$0xff] %vm746, %v9024
      %9057 = vst.msk [vmem:[%s494 + $0x58] sm:$0xff] %vm746, %v9025
      %9058 = vst.msk [vmem:[%s494 + $0x60] sm:$0xff] %vm746, %v9026
      %9059 = vst.msk [vmem:[%s494 + $0x68] sm:$0xff] %vm746, %v9027
      %9060 = vst.msk [vmem:[%s494 + $0x70] sm:$0xff] %vm746, %v9028
      %9061 = vst.msk [vmem:[%s494 + $0x78] sm:$0xff] %vm746, %v9029
      %9062 = vst.msk [vmem:[%s494 + $0x80] sm:$0xff] %vm746, %v9030
      %9063 = vst.msk [vmem:[%s494 + $0x88] sm:$0xff] %vm746, %v9031
      %9064 = vst.msk [vmem:[%s494 + $0x90] sm:$0xff] %vm746, %v9032
      %9065 = vst.msk [vmem:[%s494 + $0x98] sm:$0xff] %vm746, %v9033
      %9066 = vst.msk [vmem:[%s494 + $0xa0] sm:$0xff] %vm746, %v9034
      %9067 = vst.msk [vmem:[%s494 + $0xa8] sm:$0xff] %vm746, %v9035
      %9068 = vst.msk [vmem:[%s494 + $0xb0] sm:$0xff] %vm746, %v9036
      %9069 = vst.msk [vmem:[%s494 + $0xb8] sm:$0xff] %vm746, %v9037
      %9070 = vst.msk [vmem:[%s494 + $0xc0] sm:$0xff] %vm746, %v9038
      %9071 = vst.msk [vmem:[%s494 + $0xc8] sm:$0xff] %vm746, %v9039
      %9072 = vst.msk [vmem:[%s494 + $0xd0] sm:$0xff] %vm746, %v9040
      %9073 = vst.msk [vmem:[%s494 + $0xd8] sm:$0xff] %vm746, %v9041
      %9074 = vst.msk [vmem:[%s494 + $0xe0] sm:$0xff] %vm746, %v9042
      %9075 = vst.msk [vmem:[%s494 + $0xe8] sm:$0xff] %vm746, %v9043
      %9076 = vst.msk [vmem:[%s494 + $0xf0] sm:$0xff] %vm746, %v9044
      %9077 = vst.msk [vmem:[%s494 + $0xf8] sm:$0xff] %vm746, %v9045
      %p9078 = scmp.lt.s32.totalorder %s26, 1
      %s9079 = scalar_select %p9078, %s26, 1
      %s9080 = smul.addr %s9079, 32
      %s9081 = smul.addr %s9080, 8
      %s9082 = scalar_lea.vmem %s15, %s9081
      // Predicated region
      $region81: #{tpu_custom_call.1} parent=79 // pred_check
        %p9083 = pneg %p364
      $region82: #{tpu_custom_call.1} parent=79 // pred_check_branch
        %9085 = sbr.rel (%p9083) target = $region84
      $region83: #{tpu_custom_call.1} parent=79 // pred_region
        _
      $region84: #{tpu_custom_call.1} parent=79 // pred_fallthru
        _
    $region80: #{tpu_custom_call.1} parent=5 // pred_fallthru
      _
    %p9086 = scmp.le.s32.totalorder 2, %s21
    // Predicated region
    $region85: #{tpu_custom_call.1} parent=5 // pred_check
      %p9087 = pneg %p9086
    $region86: #{tpu_custom_call.1} parent=5 // pred_check_branch
      %9089 = sbr.rel (%p9087) target = $region88
    $region87: #{tpu_custom_call.1} parent=5 // pred_region
      %s9090 = ssub.s32 %s21, 2
      // Predicated region
      $region89: #{tpu_custom_call.1} parent=87 // pred_check
        %p9091 = pneg %p370
      $region90: #{tpu_custom_call.1} parent=87 // pred_check_branch
        %9093 = sbr.rel (%p9091) target = $region92
      $region91: #{tpu_custom_call.1} parent=87 // pred_region
        %p9094 = scmp.lt.s32.totalorder %s27, 1
        %s9095 = scalar_select %p9094, %s27, 1
        %s9096 = smul.addr %s9095, 32
        %s9097 = smul.addr %s9096, 8
        %s9098 = scalar_lea.vmem %s15, %s9097
      $region92: #{tpu_custom_call.1} parent=87 // pred_fallthru
        _
    $region88: #{tpu_custom_call.1} parent=5 // pred_fallthru
      _
  $region6: #{tpu_custom_call.1} parent=0 // loop_footer
    %s25 = sadd.s32 1, %s21
  $region7: #{tpu_custom_call.1} parent=0 // loop_footer_branch
    %20 = sbr.rel target = $region3
  $region8: #{tpu_custom_call.1} parent=0 // loop_exit
    _

</llo_original>
